<compile_context>
chip_gen: v5e
topology: v5e:2x2
jax: 0.10.0
libtpu: 0.0.40
codegen_flags: <defaults>
</compile_context>

<pallas_src>
import jax
import jax.numpy as jnp
import numpy as np
from jax.experimental import pallas as pl
from jax.experimental.pallas import tpu as pltpu

# ---- small demo config (consistent with the module's forward) ----
BATCH = 2
T = 8
D_EMB = 16
N_HIDDEN = 32
N_SRC = 2
N_OBS = 10


def _erf_approx(x):
    # Abramowitz & Stegun 7.1.26 (|err| < 1.5e-7): exact-GELU semantics to f32
    # precision, built only from ops guaranteed to lower in Mosaic.
    a1, a2, a3, a4, a5 = 0.254829592, -0.284496736, 1.421413741, -1.453152027, 1.061405429
    p = 0.3275911
    s = jnp.where(x >= 0.0, 1.0, -1.0)
    ax = jnp.abs(x)
    t = 1.0 / (1.0 + p * ax)
    y = 1.0 - (((((a5 * t + a4) * t) + a3) * t + a2) * t + a1) * t * jnp.exp(-ax * ax)
    return s * y


def _gelu_exact(x):
    # matches torch.nn.functional.gelu (erf-based, default)
    return 0.5 * x * (1.0 + _erf_approx(x * 0.7071067811865476))


def _sigmoid(x):
    return 1.0 / (1.0 + jnp.exp(-x))


def hmm_kernel(obs_ref, emb_ref, logemis_ref, logpri_ref,
               wh_ref, bh_ref, ws_ref, bs_ref, wc_ref, tran_ref,
               out_ref, emis_sc, h_sc, score_sc):
    T_, B, _ = out_ref.shape          # (T, B_pad, 1)
    TB, n_src = obs_ref.shape         # TB = T * B_pad
    NSNO, H = logemis_ref.shape       # concatenated (n_src*n_obs, H)

    # ================= phase 1: all timesteps at once =================
    # Fused emission gather: one one-hot over the concatenated source/obs
    # table and ONE matmul for every (t, b).  logemis is pre-scaled by
    # 1/n_src so the matmul directly yields the mean.
    idx = obs_ref[...]                                             # (TB, S) int32 (already offset)
    iota = jax.lax.broadcasted_iota(jnp.int32, (TB, NSNO), 1)
    onehot = jnp.zeros((TB, NSNO), jnp.float32)
    for i in range(n_src):                                         # tiny static loop, runs once
        onehot = onehot + (iota == idx[:, i:i + 1]).astype(jnp.float32)
    emis_sc[...] = jnp.dot(onehot, logemis_ref[...],
                           preferred_element_type=jnp.float32)     # (TB, H)

    # Hidden projection + GELU for every timestep in one MXU pass.
    h_all = _gelu_exact(jnp.dot(emb_ref[...], wh_ref[...],
                                preferred_element_type=jnp.float32) + bh_ref[...])
    h_sc[...] = h_all                                              # (TB, H)

    # Gate score via VPU multiply + lane reduction (no N=1 matmul).
    score_sc[...] = _sigmoid(jnp.sum(h_all * ws_ref[...], axis=-1, keepdims=True)
                             + bs_ref[...])                        # (TB, 1)

    # loop invariants (hoisted)
    tran = tran_ref[...]                                           # (H, H)
    wcb = wc_ref[...][None, :, :]                                  # (1, H, 1)

    # ================= t = 0 : priors =================
    alpha0 = emis_sc[pl.ds(0, B), :] + logpri_ref[...]             # (B, H)
    am0 = jnp.max(alpha0, axis=-1, keepdims=True)
    out_ref[0] = jnp.log(jnp.sum(jnp.exp(alpha0 - am0), axis=-1,
                                 keepdims=True)) + am0             # (B, 1)

    # ================= t = 1 .. T-1 : recurrence =================
    def body(t, alpha):
        off = pl.multiple_of(t * B, 8)                             # B is a multiple of 8
        emis_t = emis_sc[pl.ds(off, B), :]                         # (B, H)
        h_t = h_sc[pl.ds(off, B), :]                               # (B, H)
        score_t = score_sc[pl.ds(off, B), :]                       # (B, 1)

        # stable weights from previous alpha
        m = jnp.max(alpha, axis=-1, keepdims=True)                 # (B, 1)
        w = jnp.exp(alpha - m)                                     # (B, H)

        # static-transition branch: one (B,H)@(H,H) MXU matmul
        term_tran = jnp.dot(w, tran, preferred_element_type=jnp.float32)

        # neural branch: u[b,i,j] = softmax_j(wc[i] * h[b,j])
        # (Conv1d bias is constant along j and cancels in the softmax.)
        hmax = jnp.max(h_t, axis=-1, keepdims=True)[:, :, None]    # (B,1,1)
        hmin = jnp.min(h_t, axis=-1, keepdims=True)[:, :, None]    # (B,1,1)
        mx = jnp.maximum(hmax * wcb, hmin * wcb)                   # exact max_j, (B,H,1)
        u_exp = jnp.exp(wcb * h_t[:, None, :] - mx)                # (B,H,H)
        denom = jnp.sum(u_exp, axis=-1, keepdims=True)             # (B,H,1)
        coeff = w[:, :, None] * pl.reciprocal(denom, approx=True)  # (B,H,1)
        term_u = jnp.sum(coeff * u_exp, axis=1)                    # (B,H)  = sum_i w_i * u_ij

        combined = score_t * term_u + (1.0 - score_t) * term_tran  # (B,H)
        alpha_new = emis_t + jnp.log(combined) + m                 # (B,H)

        am = jnp.max(alpha_new, axis=-1, keepdims=True)
        out_ref[t] = jnp.log(jnp.sum(jnp.exp(alpha_new - am), axis=-1,
                                     keepdims=True)) + am          # (B,1)
        return alpha_new

    jax.lax.fori_loop(1, T_, body, alpha0, unroll=True)


def neural_hmm_forward(embs, obs, lengths, params):
    """embs:(B,T,d_emb) f32, obs:(B,T,n_src) int, lengths:(B,) int -> (B,1) f32"""
    B, T_, n_src = obs.shape
    n_hidden = params["unnormalized_tran"].shape[0]
    d_emb = embs.shape[-1]
    n_obs = params["unnormalized_emis"].shape[-1]

    B_pad = ((B + 7) // 8) * 8                 # sublane-aligned batch
    TB = T_ * B_pad

    # ---- glue: time-major, batch-padded, flattened to (T*B_pad, ·) ----
    obs_tm = jnp.transpose(obs, (1, 0, 2)).astype(jnp.int32)        # (T, B, S)
    emb_tm = jnp.transpose(embs, (1, 0, 2)).astype(jnp.float32)     # (T, B, D)
    if B_pad != B:
        obs_tm = jnp.pad(obs_tm, ((0, 0), (0, B_pad - B), (0, 0)))
        emb_tm = jnp.pad(emb_tm, ((0, 0), (0, B_pad - B), (0, 0)))
    src_off = (jnp.arange(n_src, dtype=jnp.int32) * n_obs)[None, None, :]
    obs_off = (obs_tm + src_off).reshape(TB, n_src)                 # offset into concat table
    emb_2d = emb_tm.reshape(TB, d_emb)

    # ---- parameter preprocessing ----
    log_emis = jax.nn.log_softmax(params["unnormalized_emis"], axis=-1)   # (S,H,O)
    # concatenated over sources, (S*O, H), pre-scaled by 1/n_src for the mean
    logemis_cat = (jnp.transpose(log_emis, (0, 2, 1)).reshape(n_src * n_obs, n_hidden)
                   * (1.0 / n_src)).astype(jnp.float32)
    tran = jax.nn.softmax(params["unnormalized_tran"], axis=-1).astype(jnp.float32)
    priors = jnp.full((n_hidden,), 0.1, jnp.float32).at[0].set(1.0)
    log_priors = jax.nn.log_softmax(priors)[None, :]                      # (1,H)

    wh = params["emb2h_w"].T.astype(jnp.float32)                          # (d_emb,H)
    bh = params["emb2h_b"][None, :].astype(jnp.float32)                   # (1,H)
    ws = params["h2score_w"].reshape(1, n_hidden).astype(jnp.float32)     # (1,H) row
    bs = params["h2score_b"].reshape(1, 1).astype(jnp.float32)            # (1,1)
    wc = params["h2u_w"].reshape(n_hidden, 1).astype(jnp.float32)         # (H,1)
    # h2u_b (Conv1d bias) is constant along the softmax axis and cancels -> not passed.

    def full_spec(arr):
        nd = arr.ndim
        return pl.BlockSpec(arr.shape, lambda i, _nd=nd: (0,) * _nd)

    inputs = (obs_off, emb_2d, logemis_cat, log_priors, wh, bh, ws, bs, wc, tran)

    out_tm = pl.pallas_call(
        hmm_kernel,
        out_shape=jax.ShapeDtypeStruct((T_, B_pad, 1), jnp.float32),
        grid_spec=pltpu.PrefetchScalarGridSpec(
            num_scalar_prefetch=0,
            grid=(1,),                                    # single invocation; loop is in-kernel
            in_specs=[full_spec(x) for x in inputs],
            out_specs=pl.BlockSpec((T_, B_pad, 1), lambda i: (0, 0, 0)),
            scratch_shapes=[pltpu.VMEM((TB, n_hidden), jnp.float32),   # emission, all t
                            pltpu.VMEM((TB, n_hidden), jnp.float32),   # hidden h, all t
                            pltpu.VMEM((TB, 1), jnp.float32)],         # gate score, all t
        ),
        compiler_params=pltpu.CompilerParams(dimension_semantics=("arbitrary",)),
    )(*inputs)

    log_sums = jnp.transpose(out_tm[:, :B, 0], (1, 0))                    # (B, T)
    idx = (lengths.astype(jnp.int32) - 1)[:, None]
    log_probs = jnp.take_along_axis(log_sums, idx, axis=1)                # (B, 1)
    return log_probs


def reference_forward(embs, obs, lengths, params):
    """Pure-JAX mirror of the PyTorch forward (for verification)."""
    B, T_, n_src = obs.shape
    n_hidden = params["unnormalized_tran"].shape[0]
    log_emis = jax.nn.log_softmax(params["unnormalized_emis"], axis=-1)    # (S,H,O)
    tran = jax.nn.softmax(params["unnormalized_tran"], axis=-1)
    priors = jnp.full((n_hidden,), 0.1, jnp.float32).at[0].set(1.0)
    log_priors = jax.nn.log_softmax(priors)

    def emission(o_t):                                                      # (B,S) -> (B,H)
        g = jnp.stack([log_emis[i][:, o_t[:, i]] for i in range(n_src)])    # (S,H,B)
        return jnp.mean(jnp.transpose(g, (2, 0, 1)), axis=1)

    def transition(emb_t, log_alpha):
        h = jax.nn.gelu(emb_t @ params["emb2h_w"].T + params["emb2h_b"],
                        approximate=False)
        score = jax.nn.sigmoid(h @ params["h2score_w"].T + params["h2score_b"])  # (B,1)
        wc = params["h2u_w"].reshape(-1)
        bc = params["h2u_b"]
        u = jax.nn.softmax(wc[None, :, None] * h[:, None, :] + bc[None, :, None], axis=-1)
        sc = score[:, :, None]
        log_ct = jnp.log(sc * u + (1.0 - sc) * tran[None])
        vals = log_alpha[:, :, None] + log_ct
        return jax.scipy.special.logsumexp(vals, axis=1)

    log_alpha = emission(obs[:, 0]) + log_priors[None, :]
    sums = [jax.scipy.special.logsumexp(log_alpha, axis=-1)]
    for t in range(1, T_):
        log_alpha = emission(obs[:, t]) + transition(embs[:, t], log_alpha)
        sums.append(jax.scipy.special.logsumexp(log_alpha, axis=-1))
    log_sums = jnp.stack(sums, axis=1)                                      # (B,T)
    return jnp.take_along_axis(log_sums, (lengths - 1)[:, None], axis=1)


if __name__ == "__main__":
    key = jax.random.PRNGKey(0)
    ks = jax.random.split(key, 10)
    params = {
        "unnormalized_emis": jax.random.normal(ks[0], (N_SRC, N_HIDDEN, N_OBS), jnp.float32),
        "unnormalized_tran": jax.random.normal(ks[1], (N_HIDDEN, N_HIDDEN), jnp.float32),
        "emb2h_w": 0.1 * jax.random.normal(ks[2], (N_HIDDEN, D_EMB), jnp.float32),
        "emb2h_b": 0.1 * jax.random.normal(ks[3], (N_HIDDEN,), jnp.float32),
        "h2score_w": 0.1 * jax.random.normal(ks[4], (1, N_HIDDEN), jnp.float32),
        "h2score_b": 0.1 * jax.random.normal(ks[5], (1,), jnp.float32),
        "h2u_w": 0.1 * jax.random.normal(ks[6], (N_HIDDEN, 1, 1), jnp.float32),
        "h2u_b": 0.1 * jax.random.normal(ks[7], (N_HIDDEN,), jnp.float32),
    }
    embs = jax.random.normal(ks[8], (BATCH, T, D_EMB), jnp.float32)
    obs = jax.random.randint(ks[9], (BATCH, T, N_SRC), 0, N_OBS, jnp.int32)
    lengths = jnp.array([T, T - 3], jnp.int32)

    out = neural_hmm_forward(embs, obs, lengths, params)
    out = jax.block_until_ready(out)

    ref = reference_forward(embs, obs, lengths, params)
    np.testing.assert_allclose(np.asarray(out), np.asarray(ref), rtol=1e-3, atol=1e-3)
    assert out.shape == (BATCH, 1)

    print("KERNEL_OK")
</pallas_src>

<mosaic_0001>
module attributes {stable_mosaic.version = 11 : i64} {
  func.func @hmm_kernel(%arg0: i32, %arg1: memref<64x2xi32, #tpu.memory_space<vmem>>, %arg2: memref<64x16xf32, #tpu.memory_space<vmem>>, %arg3: memref<20x32xf32, #tpu.memory_space<vmem>>, %arg4: memref<1x32xf32, #tpu.memory_space<vmem>>, %arg5: memref<16x32xf32, #tpu.memory_space<vmem>>, %arg6: memref<1x32xf32, #tpu.memory_space<vmem>>, %arg7: memref<1x32xf32, #tpu.memory_space<vmem>>, %arg8: memref<1x1xf32, #tpu.memory_space<vmem>>, %arg9: memref<32x1xf32, #tpu.memory_space<vmem>>, %arg10: memref<32x32xf32, #tpu.memory_space<vmem>>, %arg11: memref<8x8x1xf32, #tpu.memory_space<vmem>>, %arg12: memref<64x32xf32, #tpu.memory_space<vmem>>, %arg13: memref<64x32xf32, #tpu.memory_space<vmem>>, %arg14: memref<64x1xf32, #tpu.memory_space<vmem>>) attributes {dimension_semantics = [#tpu.dimension_semantics<arbitrary>], iteration_bounds = array<i64: 1>, scalar_prefetch = 0 : i64, scratch_operands = 3 : i64, tpu.core_type = #tpu.core_type<tc>, window_params = [{pipeline_mode = #tpu.pipeline_mode<synchronous>, transform_indices = @transform_0, window_bounds = array<i64: 64, 2>}, {pipeline_mode = #tpu.pipeline_mode<synchronous>, transform_indices = @transform_1, window_bounds = array<i64: 64, 16>}, {pipeline_mode = #tpu.pipeline_mode<synchronous>, transform_indices = @transform_2, window_bounds = array<i64: 20, 32>}, {pipeline_mode = #tpu.pipeline_mode<synchronous>, transform_indices = @transform_3, window_bounds = array<i64: 1, 32>}, {pipeline_mode = #tpu.pipeline_mode<synchronous>, transform_indices = @transform_4, window_bounds = array<i64: 16, 32>}, {pipeline_mode = #tpu.pipeline_mode<synchronous>, transform_indices = @transform_5, window_bounds = array<i64: 1, 32>}, {pipeline_mode = #tpu.pipeline_mode<synchronous>, transform_indices = @transform_6, window_bounds = array<i64: 1, 32>}, {pipeline_mode = #tpu.pipeline_mode<synchronous>, transform_indices = @transform_7, window_bounds = array<i64: 1, 1>}, {pipeline_mode = #tpu.pipeline_mode<synchronous>, transform_indices = @transform_8, window_bounds = array<i64: 32, 1>}, {pipeline_mode = #tpu.pipeline_mode<synchronous>, transform_indices = @transform_9, window_bounds = array<i64: 32, 32>}, {pipeline_mode = #tpu.pipeline_mode<synchronous>, transform_indices = @transform_10, window_bounds = array<i64: 8, 8, 1>}]} {
    %c0 = arith.constant 0 : index
    %c0_0 = arith.constant 0 : index
    %0 = vector.load %arg1[%c0, %c0_0] : memref<64x2xi32, #tpu.memory_space<vmem>>, vector<64x2xi32>
    %1 = tpu.iota {dimensions = array<i32: 1>} : vector<64x20xi32>
    %cst = arith.constant 0.000000e+00 : f32
    %2 = vector.broadcast %cst : f32 to vector<64x20xf32>
    %3 = vector.extract_strided_slice %0 {offsets = [0, 0], sizes = [64, 1], strides = [1, 1]} : vector<64x2xi32> to vector<64x1xi32>
    %4 = vector.broadcast %3 : vector<64x1xi32> to vector<64x20xi32>
    %5 = arith.cmpi eq, %1, %4 : vector<64x20xi32>
    %6 = arith.extui %5 : vector<64x20xi1> to vector<64x20xi32>
    %7 = arith.sitofp %6 : vector<64x20xi32> to vector<64x20xf32>
    %8 = arith.addf %2, %7 : vector<64x20xf32>
    %9 = vector.extract_strided_slice %0 {offsets = [0, 1], sizes = [64, 1], strides = [1, 1]} : vector<64x2xi32> to vector<64x1xi32>
    %10 = vector.broadcast %9 : vector<64x1xi32> to vector<64x20xi32>
    %11 = arith.cmpi eq, %1, %10 : vector<64x20xi32>
    %12 = arith.extui %11 : vector<64x20xi1> to vector<64x20xi32>
    %13 = arith.sitofp %12 : vector<64x20xi32> to vector<64x20xf32>
    %14 = arith.addf %8, %13 : vector<64x20xf32>
    %c0_1 = arith.constant 0 : index
    %c0_2 = arith.constant 0 : index
    %15 = vector.load %arg3[%c0_1, %c0_2] : memref<20x32xf32, #tpu.memory_space<vmem>>, vector<20x32xf32>
    %cst_3 = arith.constant dense<0.000000e+00> : vector<64x32xf32>
    %16 = tpu.matmul %14, %15, %cst_3 {dimension_numbers = #tpu.dot_dimension_numbers<[1], [0], [0], [1], [0, 0, 1, 1], [], []>} : vector<64x20xf32>, vector<20x32xf32>, vector<64x32xf32> -> vector<64x32xf32>
    %c0_4 = arith.constant 0 : index
    %c0_5 = arith.constant 0 : index
    %17 = vector.load %arg12[%c0_4, %c0_5] : memref<64x32xf32, #tpu.memory_space<vmem>>, vector<64x32xf32>
    tpu.vector_store %arg12[%c0_4, %c0_5], %16 {strides = array<i32>} : memref<64x32xf32, #tpu.memory_space<vmem>>, vector<64x32xf32>,
    %c0_6 = arith.constant 0 : index
    %c0_7 = arith.constant 0 : index
    %18 = vector.load %arg2[%c0_6, %c0_7] : memref<64x16xf32, #tpu.memory_space<vmem>>, vector<64x16xf32>
    %c0_8 = arith.constant 0 : index
    %c0_9 = arith.constant 0 : index
    %19 = vector.load %arg5[%c0_8, %c0_9] : memref<16x32xf32, #tpu.memory_space<vmem>>, vector<16x32xf32>
    %cst_10 = arith.constant dense<0.000000e+00> : vector<64x32xf32>
    %20 = tpu.matmul %18, %19, %cst_10 {dimension_numbers = #tpu.dot_dimension_numbers<[1], [0], [0], [1], [0, 0, 1, 1], [], []>} : vector<64x16xf32>, vector<16x32xf32>, vector<64x32xf32> -> vector<64x32xf32>
    %c0_11 = arith.constant 0 : index
    %c0_12 = arith.constant 0 : index
    %21 = vector.load %arg6[%c0_11, %c0_12] : memref<1x32xf32, #tpu.memory_space<vmem>>, vector<1x32xf32>
    %22 = vector.broadcast %21 : vector<1x32xf32> to vector<64x32xf32>
    %23 = arith.addf %20, %22 : vector<64x32xf32>
    %cst_13 = arith.constant 5.000000e-01 : f32
    %24 = vector.broadcast %cst_13 : f32 to vector<64x32xf32>
    %25 = arith.mulf %24, %23 : vector<64x32xf32>
    %cst_14 = arith.constant 0.707106769 : f32
    %26 = vector.broadcast %cst_14 : f32 to vector<64x32xf32>
    %27 = arith.mulf %23, %26 : vector<64x32xf32>
    %cst_15 = arith.constant 0.000000e+00 : f32
    %28 = vector.broadcast %cst_15 : f32 to vector<64x32xf32>
    %29 = arith.cmpf oge, %27, %28 : vector<64x32xf32>
    %cst_16 = arith.constant 1.000000e+00 : f32
    %cst_17 = arith.constant -1.000000e+00 : f32
    %30 = vector.broadcast %cst_16 : f32 to vector<64x32xf32>
    %31 = vector.broadcast %cst_17 : f32 to vector<64x32xf32>
    %32 = arith.select %29, %30, %31 : vector<64x32xi1>, vector<64x32xf32>
    %33 = math.absf %27 : vector<64x32xf32>
    %cst_18 = arith.constant 0.327591091 : f32
    %34 = vector.broadcast %cst_18 : f32 to vector<64x32xf32>
    %35 = arith.mulf %34, %33 : vector<64x32xf32>
    %cst_19 = arith.constant 1.000000e+00 : f32
    %36 = vector.broadcast %cst_19 : f32 to vector<64x32xf32>
    %37 = arith.addf %36, %35 : vector<64x32xf32>
    %cst_20 = arith.constant 1.000000e+00 : f32
    %38 = vector.broadcast %cst_20 : f32 to vector<64x32xf32>
    %39 = arith.divf %38, %37 : vector<64x32xf32>
    %cst_21 = arith.constant 1.06140542 : f32
    %40 = vector.broadcast %cst_21 : f32 to vector<64x32xf32>
    %41 = arith.mulf %40, %39 : vector<64x32xf32>
    %cst_22 = arith.constant -1.45315206 : f32
    %42 = vector.broadcast %cst_22 : f32 to vector<64x32xf32>
    %43 = arith.addf %41, %42 : vector<64x32xf32>
    %44 = arith.mulf %43, %39 : vector<64x32xf32>
    %cst_23 = arith.constant 1.42141378 : f32
    %45 = vector.broadcast %cst_23 : f32 to vector<64x32xf32>
    %46 = arith.addf %44, %45 : vector<64x32xf32>
    %47 = arith.mulf %46, %39 : vector<64x32xf32>
    %cst_24 = arith.constant -0.284496725 : f32
    %48 = vector.broadcast %cst_24 : f32 to vector<64x32xf32>
    %49 = arith.addf %47, %48 : vector<64x32xf32>
    %50 = arith.mulf %49, %39 : vector<64x32xf32>
    %cst_25 = arith.constant 0.254829586 : f32
    %51 = vector.broadcast %cst_25 : f32 to vector<64x32xf32>
    %52 = arith.addf %50, %51 : vector<64x32xf32>
    %53 = arith.mulf %52, %39 : vector<64x32xf32>
    %cst_26 = arith.constant 0.000000e+00 : f32
    %54 = vector.broadcast %cst_26 : f32 to vector<64x32xf32>
    %55 = arith.subf %54, %33 : vector<64x32xf32>
    %56 = arith.mulf %55, %33 : vector<64x32xf32>
    %57 = math.exp %56 : vector<64x32xf32>
    %58 = arith.mulf %53, %57 : vector<64x32xf32>
    %cst_27 = arith.constant 1.000000e+00 : f32
    %59 = vector.broadcast %cst_27 : f32 to vector<64x32xf32>
    %60 = arith.subf %59, %58 : vector<64x32xf32>
    %61 = arith.mulf %32, %60 : vector<64x32xf32>
    %cst_28 = arith.constant 1.000000e+00 : f32
    %62 = vector.broadcast %cst_28 : f32 to vector<64x32xf32>
    %63 = arith.addf %62, %61 : vector<64x32xf32>
    %64 = arith.mulf %25, %63 : vector<64x32xf32>
    %c0_29 = arith.constant 0 : index
    %c0_30 = arith.constant 0 : index
    %65 = vector.load %arg13[%c0_29, %c0_30] : memref<64x32xf32, #tpu.memory_space<vmem>>, vector<64x32xf32>
    tpu.vector_store %arg13[%c0_29, %c0_30], %64 {strides = array<i32>} : memref<64x32xf32, #tpu.memory_space<vmem>>, vector<64x32xf32>,
    %c0_31 = arith.constant 0 : index
    %c0_32 = arith.constant 0 : index
    %66 = vector.load %arg7[%c0_31, %c0_32] : memref<1x32xf32, #tpu.memory_space<vmem>>, vector<1x32xf32>
    %67 = vector.broadcast %66 : vector<1x32xf32> to vector<64x32xf32>
    %68 = arith.mulf %64, %67 : vector<64x32xf32>
    %cst_33 = arith.constant dense<0.000000e+00> : vector<64xf32>
    %69 = vector.multi_reduction <add>, %68, %cst_33 [1] : vector<64x32xf32> to vector<64xf32>
    %70 = vector.shape_cast %69 : vector<64xf32> to vector<64x1xf32>
    %c0_34 = arith.constant 0 : index
    %c0_35 = arith.constant 0 : index
    %71 = vector.load %arg8[%c0_34, %c0_35] : memref<1x1xf32, #tpu.memory_space<vmem>>, vector<1x1xf32>
    %72 = vector.broadcast %71 : vector<1x1xf32> to vector<64x1xf32>
    %73 = arith.addf %70, %72 : vector<64x1xf32>
    %cst_36 = arith.constant 0.000000e+00 : f32
    %74 = vector.broadcast %cst_36 : f32 to vector<64x1xf32>
    %75 = arith.subf %74, %73 : vector<64x1xf32>
    %76 = math.exp %75 : vector<64x1xf32>
    %cst_37 = arith.constant 1.000000e+00 : f32
    %77 = vector.broadcast %cst_37 : f32 to vector<64x1xf32>
    %78 = arith.addf %77, %76 : vector<64x1xf32>
    %cst_38 = arith.constant 1.000000e+00 : f32
    %79 = vector.broadcast %cst_38 : f32 to vector<64x1xf32>
    %80 = arith.divf %79, %78 : vector<64x1xf32>
    %c0_39 = arith.constant 0 : index
    %c0_40 = arith.constant 0 : index
    %81 = vector.load %arg14[%c0_39, %c0_40] : memref<64x1xf32, #tpu.memory_space<vmem>>, vector<64x1xf32>
    tpu.vector_store %arg14[%c0_39, %c0_40], %80 {strides = array<i32>} : memref<64x1xf32, #tpu.memory_space<vmem>>, vector<64x1xf32>,
    %c0_41 = arith.constant 0 : index
    %c0_42 = arith.constant 0 : index
    %82 = vector.load %arg10[%c0_41, %c0_42] : memref<32x32xf32, #tpu.memory_space<vmem>>, vector<32x32xf32>
    %c0_43 = arith.constant 0 : index
    %c0_44 = arith.constant 0 : index
    %83 = vector.load %arg9[%c0_43, %c0_44] : memref<32x1xf32, #tpu.memory_space<vmem>>, vector<32x1xf32>
    %84 = vector.shape_cast %83 : vector<32x1xf32> to vector<1x32x1xf32>
    %c0_45 = arith.constant 0 : index
    %c0_46 = arith.constant 0 : index
    %85 = vector.load %arg12[%c0_45, %c0_46] : memref<64x32xf32, #tpu.memory_space<vmem>>, vector<8x32xf32>
    %c0_47 = arith.constant 0 : index
    %c0_48 = arith.constant 0 : index
    %86 = vector.load %arg4[%c0_47, %c0_48] : memref<1x32xf32, #tpu.memory_space<vmem>>, vector<1x32xf32>
    %87 = vector.broadcast %86 : vector<1x32xf32> to vector<8x32xf32>
    %88 = arith.addf %85, %87 : vector<8x32xf32>
    %cst_49 = arith.constant dense<0xFF800000> : vector<8xf32>
    %89 = vector.multi_reduction <maximumf>, %88, %cst_49 [1] : vector<8x32xf32> to vector<8xf32>
    %90 = vector.shape_cast %89 : vector<8xf32> to vector<8x1xf32>
    %91 = vector.broadcast %90 : vector<8x1xf32> to vector<8x32xf32>
    %92 = arith.subf %88, %91 : vector<8x32xf32>
    %93 = math.exp %92 : vector<8x32xf32>
    %cst_50 = arith.constant dense<0.000000e+00> : vector<8xf32>
    %94 = vector.multi_reduction <add>, %93, %cst_50 [1] : vector<8x32xf32> to vector<8xf32>
    %95 = vector.shape_cast %94 : vector<8xf32> to vector<8x1xf32>
    %96 = math.log %95 : vector<8x1xf32>
    %97 = arith.addf %96, %90 : vector<8x1xf32>
    %c0_51 = arith.constant 0 : index
    %c0_52 = arith.constant 0 : index
    %c0_53 = arith.constant 0 : index
    %98 = vector.load %arg11[%c0_51, %c0_52, %c0_53] : memref<8x8x1xf32, #tpu.memory_space<vmem>>, vector<1x8x1xf32>
    %99 = vector.shape_cast %98 : vector<1x8x1xf32> to vector<8x1xf32>
    %100 = vector.shape_cast %97 : vector<8x1xf32> to vector<1x8x1xf32>
    tpu.vector_store %arg11[%c0_51, %c0_52, %c0_53], %100 {strides = array<i32>} : memref<8x8x1xf32, #tpu.memory_space<vmem>>, vector<1x8x1xf32>,
    %c1_i32 = arith.constant 1 : i32
    %c8_i32 = arith.constant 8 : i32
    %101 = arith.muli %c1_i32, %c8_i32 : i32
    %102 = tpu.assume_multiple %101, 8 : i32
    %103 = arith.index_cast %102 : i32 to index
    %c0_54 = arith.constant 0 : index
    %104 = vector.load %arg12[%103, %c0_54] : memref<64x32xf32, #tpu.memory_space<vmem>>, vector<8x32xf32>
    %105 = arith.index_cast %102 : i32 to index
    %c0_55 = arith.constant 0 : index
    %106 = vector.load %arg13[%105, %c0_55] : memref<64x32xf32, #tpu.memory_space<vmem>>, vector<8x32xf32>
    %107 = arith.index_cast %102 : i32 to index
    %c0_56 = arith.constant 0 : index
    %108 = vector.load %arg14[%107, %c0_56] : memref<64x1xf32, #tpu.memory_space<vmem>>, vector<8x1xf32>
    %cst_57 = arith.constant dense<0xFF800000> : vector<8xf32>
    %109 = vector.multi_reduction <maximumf>, %88, %cst_57 [1] : vector<8x32xf32> to vector<8xf32>
    %110 = vector.shape_cast %109 : vector<8xf32> to vector<8x1xf32>
    %111 = vector.broadcast %110 : vector<8x1xf32> to vector<8x32xf32>
    %112 = arith.subf %88, %111 : vector<8x32xf32>
    %113 = math.exp %112 : vector<8x32xf32>
    %cst_58 = arith.constant dense<0.000000e+00> : vector<8x32xf32>
    %114 = tpu.matmul %113, %82, %cst_58 {dimension_numbers = #tpu.dot_dimension_numbers<[1], [0], [0], [1], [0, 0, 1, 1], [], []>} : vector<8x32xf32>, vector<32x32xf32>, vector<8x32xf32> -> vector<8x32xf32>
    %cst_59 = arith.constant dense<0xFF800000> : vector<8xf32>
    %115 = vector.multi_reduction <maximumf>, %106, %cst_59 [1] : vector<8x32xf32> to vector<8xf32>
    %116 = vector.shape_cast %115 : vector<8xf32> to vector<8x1xf32>
    %117 = vector.shape_cast %116 : vector<8x1xf32> to vector<8x1x1xf32>
    %cst_60 = arith.constant dense<0x7F800000> : vector<8xf32>
    %118 = vector.multi_reduction <minimumf>, %106, %cst_60 [1] : vector<8x32xf32> to vector<8xf32>
    %119 = vector.shape_cast %118 : vector<8xf32> to vector<8x1xf32>
    %120 = vector.shape_cast %119 : vector<8x1xf32> to vector<8x1x1xf32>
    %121 = vector.broadcast %117 : vector<8x1x1xf32> to vector<8x32x1xf32>
    %122 = vector.broadcast %84 : vector<1x32x1xf32> to vector<8x32x1xf32>
    %123 = arith.mulf %121, %122 : vector<8x32x1xf32>
    %124 = vector.broadcast %120 : vector<8x1x1xf32> to vector<8x32x1xf32>
    %125 = vector.broadcast %84 : vector<1x32x1xf32> to vector<8x32x1xf32>
    %126 = arith.mulf %124, %125 : vector<8x32x1xf32>
    %127 = arith.maximumf %123, %126 : vector<8x32x1xf32>
    %128 = vector.shape_cast %106 : vector<8x32xf32> to vector<8x1x32xf32>
    %129 = vector.broadcast %84 : vector<1x32x1xf32> to vector<8x32x32xf32>
    %130 = vector.broadcast %128 : vector<8x1x32xf32> to vector<8x32x32xf32>
    %131 = arith.mulf %129, %130 : vector<8x32x32xf32>
    %132 = vector.broadcast %127 : vector<8x32x1xf32> to vector<8x32x32xf32>
    %133 = arith.subf %131, %132 : vector<8x32x32xf32>
    %134 = math.exp %133 : vector<8x32x32xf32>
    %cst_61 = arith.constant dense<0.000000e+00> : vector<8x32xf32>
    %135 = vector.multi_reduction <add>, %134, %cst_61 [2] : vector<8x32x32xf32> to vector<8x32xf32>
    %136 = vector.shape_cast %135 : vector<8x32xf32> to vector<8x32x1xf32>
    %137 = vector.shape_cast %113 : vector<8x32xf32> to vector<8x32x1xf32>
    %138 = tpu.reciprocal %136 {approx = true} : vector<8x32x1xf32> -> vector<8x32x1xf32>
    %139 = arith.mulf %137, %138 : vector<8x32x1xf32>
    %140 = vector.broadcast %139 : vector<8x32x1xf32> to vector<8x32x32xf32>
    %141 = arith.mulf %140, %134 : vector<8x32x32xf32>
    %cst_62 = arith.constant dense<0.000000e+00> : vector<8x32xf32>
    %142 = vector.multi_reduction <add>, %141, %cst_62 [1] : vector<8x32x32xf32> to vector<8x32xf32>
    %143 = vector.broadcast %108 : vector<8x1xf32> to vector<8x32xf32>
    %144 = arith.mulf %143, %142 : vector<8x32xf32>
    %cst_63 = arith.constant 1.000000e+00 : f32
    %145 = vector.broadcast %cst_63 : f32 to vector<8x1xf32>
    %146 = arith.subf %145, %108 : vector<8x1xf32>
    %147 = vector.broadcast %146 : vector<8x1xf32> to vector<8x32xf32>
    %148 = arith.mulf %147, %114 : vector<8x32xf32>
    %149 = arith.addf %144, %148 : vector<8x32xf32>
    %150 = math.log %149 : vector<8x32xf32>
    %151 = arith.addf %104, %150 : vector<8x32xf32>
    %152 = vector.broadcast %110 : vector<8x1xf32> to vector<8x32xf32>
    %153 = arith.addf %151, %152 : vector<8x32xf32>
    %cst_64 = arith.constant dense<0xFF800000> : vector<8xf32>
    %154 = vector.multi_reduction <maximumf>, %153, %cst_64 [1] : vector<8x32xf32> to vector<8xf32>
    %155 = vector.shape_cast %154 : vector<8xf32> to vector<8x1xf32>
    %156 = vector.broadcast %155 : vector<8x1xf32> to vector<8x32xf32>
    %157 = arith.subf %153, %156 : vector<8x32xf32>
    %158 = math.exp %157 : vector<8x32xf32>
    %cst_65 = arith.constant dense<0.000000e+00> : vector<8xf32>
    %159 = vector.multi_reduction <add>, %158, %cst_65 [1] : vector<8x32xf32> to vector<8xf32>
    %160 = vector.shape_cast %159 : vector<8xf32> to vector<8x1xf32>
    %161 = math.log %160 : vector<8x1xf32>
    %162 = arith.addf %161, %155 : vector<8x1xf32>
    %163 = arith.index_cast %c1_i32 : i32 to index
    %c0_66 = arith.constant 0 : index
    %c0_67 = arith.constant 0 : index
    %164 = vector.load %arg11[%163, %c0_66, %c0_67] : memref<8x8x1xf32, #tpu.memory_space<vmem>>, vector<1x8x1xf32>
    %165 = vector.shape_cast %164 : vector<1x8x1xf32> to vector<8x1xf32>
    %166 = vector.shape_cast %162 : vector<8x1xf32> to vector<1x8x1xf32>
    tpu.vector_store %arg11[%163, %c0_66, %c0_67], %166 {strides = array<i32>} : memref<8x8x1xf32, #tpu.memory_space<vmem>>, vector<1x8x1xf32>,
    %c2_i32 = arith.constant 2 : i32
    %c8_i32_68 = arith.constant 8 : i32
    %167 = arith.muli %c2_i32, %c8_i32_68 : i32
    %168 = tpu.assume_multiple %167, 8 : i32
    %169 = arith.index_cast %168 : i32 to index
    %c0_69 = arith.constant 0 : index
    %170 = vector.load %arg12[%169, %c0_69] : memref<64x32xf32, #tpu.memory_space<vmem>>, vector<8x32xf32>
    %171 = arith.index_cast %168 : i32 to index
    %c0_70 = arith.constant 0 : index
    %172 = vector.load %arg13[%171, %c0_70] : memref<64x32xf32, #tpu.memory_space<vmem>>, vector<8x32xf32>
    %173 = arith.index_cast %168 : i32 to index
    %c0_71 = arith.constant 0 : index
    %174 = vector.load %arg14[%173, %c0_71] : memref<64x1xf32, #tpu.memory_space<vmem>>, vector<8x1xf32>
    %cst_72 = arith.constant dense<0xFF800000> : vector<8xf32>
    %175 = vector.multi_reduction <maximumf>, %153, %cst_72 [1] : vector<8x32xf32> to vector<8xf32>
    %176 = vector.shape_cast %175 : vector<8xf32> to vector<8x1xf32>
    %177 = vector.broadcast %176 : vector<8x1xf32> to vector<8x32xf32>
    %178 = arith.subf %153, %177 : vector<8x32xf32>
    %179 = math.exp %178 : vector<8x32xf32>
    %cst_73 = arith.constant dense<0.000000e+00> : vector<8x32xf32>
    %180 = tpu.matmul %179, %82, %cst_73 {dimension_numbers = #tpu.dot_dimension_numbers<[1], [0], [0], [1], [0, 0, 1, 1], [], []>} : vector<8x32xf32>, vector<32x32xf32>, vector<8x32xf32> -> vector<8x32xf32>
    %cst_74 = arith.constant dense<0xFF800000> : vector<8xf32>
    %181 = vector.multi_reduction <maximumf>, %172, %cst_74 [1] : vector<8x32xf32> to vector<8xf32>
    %182 = vector.shape_cast %181 : vector<8xf32> to vector<8x1xf32>
    %183 = vector.shape_cast %182 : vector<8x1xf32> to vector<8x1x1xf32>
    %cst_75 = arith.constant dense<0x7F800000> : vector<8xf32>
    %184 = vector.multi_reduction <minimumf>, %172, %cst_75 [1] : vector<8x32xf32> to vector<8xf32>
    %185 = vector.shape_cast %184 : vector<8xf32> to vector<8x1xf32>
    %186 = vector.shape_cast %185 : vector<8x1xf32> to vector<8x1x1xf32>
    %187 = vector.broadcast %183 : vector<8x1x1xf32> to vector<8x32x1xf32>
    %188 = vector.broadcast %84 : vector<1x32x1xf32> to vector<8x32x1xf32>
    %189 = arith.mulf %187, %188 : vector<8x32x1xf32>
    %190 = vector.broadcast %186 : vector<8x1x1xf32> to vector<8x32x1xf32>
    %191 = vector.broadcast %84 : vector<1x32x1xf32> to vector<8x32x1xf32>
    %192 = arith.mulf %190, %191 : vector<8x32x1xf32>
    %193 = arith.maximumf %189, %192 : vector<8x32x1xf32>
    %194 = vector.shape_cast %172 : vector<8x32xf32> to vector<8x1x32xf32>
    %195 = vector.broadcast %84 : vector<1x32x1xf32> to vector<8x32x32xf32>
    %196 = vector.broadcast %194 : vector<8x1x32xf32> to vector<8x32x32xf32>
    %197 = arith.mulf %195, %196 : vector<8x32x32xf32>
    %198 = vector.broadcast %193 : vector<8x32x1xf32> to vector<8x32x32xf32>
    %199 = arith.subf %197, %198 : vector<8x32x32xf32>
    %200 = math.exp %199 : vector<8x32x32xf32>
    %cst_76 = arith.constant dense<0.000000e+00> : vector<8x32xf32>
    %201 = vector.multi_reduction <add>, %200, %cst_76 [2] : vector<8x32x32xf32> to vector<8x32xf32>
    %202 = vector.shape_cast %201 : vector<8x32xf32> to vector<8x32x1xf32>
    %203 = vector.shape_cast %179 : vector<8x32xf32> to vector<8x32x1xf32>
    %204 = tpu.reciprocal %202 {approx = true} : vector<8x32x1xf32> -> vector<8x32x1xf32>
    %205 = arith.mulf %203, %204 : vector<8x32x1xf32>
    %206 = vector.broadcast %205 : vector<8x32x1xf32> to vector<8x32x32xf32>
    %207 = arith.mulf %206, %200 : vector<8x32x32xf32>
    %cst_77 = arith.constant dense<0.000000e+00> : vector<8x32xf32>
    %208 = vector.multi_reduction <add>, %207, %cst_77 [1] : vector<8x32x32xf32> to vector<8x32xf32>
    %209 = vector.broadcast %174 : vector<8x1xf32> to vector<8x32xf32>
    %210 = arith.mulf %209, %208 : vector<8x32xf32>
    %cst_78 = arith.constant 1.000000e+00 : f32
    %211 = vector.broadcast %cst_78 : f32 to vector<8x1xf32>
    %212 = arith.subf %211, %174 : vector<8x1xf32>
    %213 = vector.broadcast %212 : vector<8x1xf32> to vector<8x32xf32>
    %214 = arith.mulf %213, %180 : vector<8x32xf32>
    %215 = arith.addf %210, %214 : vector<8x32xf32>
    %216 = math.log %215 : vector<8x32xf32>
    %217 = arith.addf %170, %216 : vector<8x32xf32>
    %218 = vector.broadcast %176 : vector<8x1xf32> to vector<8x32xf32>
    %219 = arith.addf %217, %218 : vector<8x32xf32>
    %cst_79 = arith.constant dense<0xFF800000> : vector<8xf32>
    %220 = vector.multi_reduction <maximumf>, %219, %cst_79 [1] : vector<8x32xf32> to vector<8xf32>
    %221 = vector.shape_cast %220 : vector<8xf32> to vector<8x1xf32>
    %222 = vector.broadcast %221 : vector<8x1xf32> to vector<8x32xf32>
    %223 = arith.subf %219, %222 : vector<8x32xf32>
    %224 = math.exp %223 : vector<8x32xf32>
    %cst_80 = arith.constant dense<0.000000e+00> : vector<8xf32>
    %225 = vector.multi_reduction <add>, %224, %cst_80 [1] : vector<8x32xf32> to vector<8xf32>
    %226 = vector.shape_cast %225 : vector<8xf32> to vector<8x1xf32>
    %227 = math.log %226 : vector<8x1xf32>
    %228 = arith.addf %227, %221 : vector<8x1xf32>
    %229 = arith.index_cast %c2_i32 : i32 to index
    %c0_81 = arith.constant 0 : index
    %c0_82 = arith.constant 0 : index
    %230 = vector.load %arg11[%229, %c0_81, %c0_82] : memref<8x8x1xf32, #tpu.memory_space<vmem>>, vector<1x8x1xf32>
    %231 = vector.shape_cast %230 : vector<1x8x1xf32> to vector<8x1xf32>
    %232 = vector.shape_cast %228 : vector<8x1xf32> to vector<1x8x1xf32>
    tpu.vector_store %arg11[%229, %c0_81, %c0_82], %232 {strides = array<i32>} : memref<8x8x1xf32, #tpu.memory_space<vmem>>, vector<1x8x1xf32>,
    %c3_i32 = arith.constant 3 : i32
    %c8_i32_83 = arith.constant 8 : i32
    %233 = arith.muli %c3_i32, %c8_i32_83 : i32
    %234 = tpu.assume_multiple %233, 8 : i32
    %235 = arith.index_cast %234 : i32 to index
    %c0_84 = arith.constant 0 : index
    %236 = vector.load %arg12[%235, %c0_84] : memref<64x32xf32, #tpu.memory_space<vmem>>, vector<8x32xf32>
    %237 = arith.index_cast %234 : i32 to index
    %c0_85 = arith.constant 0 : index
    %238 = vector.load %arg13[%237, %c0_85] : memref<64x32xf32, #tpu.memory_space<vmem>>, vector<8x32xf32>
    %239 = arith.index_cast %234 : i32 to index
    %c0_86 = arith.constant 0 : index
    %240 = vector.load %arg14[%239, %c0_86] : memref<64x1xf32, #tpu.memory_space<vmem>>, vector<8x1xf32>
    %cst_87 = arith.constant dense<0xFF800000> : vector<8xf32>
    %241 = vector.multi_reduction <maximumf>, %219, %cst_87 [1] : vector<8x32xf32> to vector<8xf32>
    %242 = vector.shape_cast %241 : vector<8xf32> to vector<8x1xf32>
    %243 = vector.broadcast %242 : vector<8x1xf32> to vector<8x32xf32>
    %244 = arith.subf %219, %243 : vector<8x32xf32>
    %245 = math.exp %244 : vector<8x32xf32>
    %cst_88 = arith.constant dense<0.000000e+00> : vector<8x32xf32>
    %246 = tpu.matmul %245, %82, %cst_88 {dimension_numbers = #tpu.dot_dimension_numbers<[1], [0], [0], [1], [0, 0, 1, 1], [], []>} : vector<8x32xf32>, vector<32x32xf32>, vector<8x32xf32> -> vector<8x32xf32>
    %cst_89 = arith.constant dense<0xFF800000> : vector<8xf32>
    %247 = vector.multi_reduction <maximumf>, %238, %cst_89 [1] : vector<8x32xf32> to vector<8xf32>
    %248 = vector.shape_cast %247 : vector<8xf32> to vector<8x1xf32>
    %249 = vector.shape_cast %248 : vector<8x1xf32> to vector<8x1x1xf32>
    %cst_90 = arith.constant dense<0x7F800000> : vector<8xf32>
    %250 = vector.multi_reduction <minimumf>, %238, %cst_90 [1] : vector<8x32xf32> to vector<8xf32>
    %251 = vector.shape_cast %250 : vector<8xf32> to vector<8x1xf32>
    %252 = vector.shape_cast %251 : vector<8x1xf32> to vector<8x1x1xf32>
    %253 = vector.broadcast %249 : vector<8x1x1xf32> to vector<8x32x1xf32>
    %254 = vector.broadcast %84 : vector<1x32x1xf32> to vector<8x32x1xf32>
    %255 = arith.mulf %253, %254 : vector<8x32x1xf32>
    %256 = vector.broadcast %252 : vector<8x1x1xf32> to vector<8x32x1xf32>
    %257 = vector.broadcast %84 : vector<1x32x1xf32> to vector<8x32x1xf32>
    %258 = arith.mulf %256, %257 : vector<8x32x1xf32>
    %259 = arith.maximumf %255, %258 : vector<8x32x1xf32>
    %260 = vector.shape_cast %238 : vector<8x32xf32> to vector<8x1x32xf32>
    %261 = vector.broadcast %84 : vector<1x32x1xf32> to vector<8x32x32xf32>
    %262 = vector.broadcast %260 : vector<8x1x32xf32> to vector<8x32x32xf32>
    %263 = arith.mulf %261, %262 : vector<8x32x32xf32>
    %264 = vector.broadcast %259 : vector<8x32x1xf32> to vector<8x32x32xf32>
    %265 = arith.subf %263, %264 : vector<8x32x32xf32>
    %266 = math.exp %265 : vector<8x32x32xf32>
    %cst_91 = arith.constant dense<0.000000e+00> : vector<8x32xf32>
    %267 = vector.multi_reduction <add>, %266, %cst_91 [2] : vector<8x32x32xf32> to vector<8x32xf32>
    %268 = vector.shape_cast %267 : vector<8x32xf32> to vector<8x32x1xf32>
    %269 = vector.shape_cast %245 : vector<8x32xf32> to vector<8x32x1xf32>
    %270 = tpu.reciprocal %268 {approx = true} : vector<8x32x1xf32> -> vector<8x32x1xf32>
    %271 = arith.mulf %269, %270 : vector<8x32x1xf32>
    %272 = vector.broadcast %271 : vector<8x32x1xf32> to vector<8x32x32xf32>
    %273 = arith.mulf %272, %266 : vector<8x32x32xf32>
    %cst_92 = arith.constant dense<0.000000e+00> : vector<8x32xf32>
    %274 = vector.multi_reduction <add>, %273, %cst_92 [1] : vector<8x32x32xf32> to vector<8x32xf32>
    %275 = vector.broadcast %240 : vector<8x1xf32> to vector<8x32xf32>
    %276 = arith.mulf %275, %274 : vector<8x32xf32>
    %cst_93 = arith.constant 1.000000e+00 : f32
    %277 = vector.broadcast %cst_93 : f32 to vector<8x1xf32>
    %278 = arith.subf %277, %240 : vector<8x1xf32>
    %279 = vector.broadcast %278 : vector<8x1xf32> to vector<8x32xf32>
    %280 = arith.mulf %279, %246 : vector<8x32xf32>
    %281 = arith.addf %276, %280 : vector<8x32xf32>
    %282 = math.log %281 : vector<8x32xf32>
    %283 = arith.addf %236, %282 : vector<8x32xf32>
    %284 = vector.broadcast %242 : vector<8x1xf32> to vector<8x32xf32>
    %285 = arith.addf %283, %284 : vector<8x32xf32>
    %cst_94 = arith.constant dense<0xFF800000> : vector<8xf32>
    %286 = vector.multi_reduction <maximumf>, %285, %cst_94 [1] : vector<8x32xf32> to vector<8xf32>
    %287 = vector.shape_cast %286 : vector<8xf32> to vector<8x1xf32>
    %288 = vector.broadcast %287 : vector<8x1xf32> to vector<8x32xf32>
    %289 = arith.subf %285, %288 : vector<8x32xf32>
    %290 = math.exp %289 : vector<8x32xf32>
    %cst_95 = arith.constant dense<0.000000e+00> : vector<8xf32>
    %291 = vector.multi_reduction <add>, %290, %cst_95 [1] : vector<8x32xf32> to vector<8xf32>
    %292 = vector.shape_cast %291 : vector<8xf32> to vector<8x1xf32>
    %293 = math.log %292 : vector<8x1xf32>
    %294 = arith.addf %293, %287 : vector<8x1xf32>
    %295 = arith.index_cast %c3_i32 : i32 to index
    %c0_96 = arith.constant 0 : index
    %c0_97 = arith.constant 0 : index
    %296 = vector.load %arg11[%295, %c0_96, %c0_97] : memref<8x8x1xf32, #tpu.memory_space<vmem>>, vector<1x8x1xf32>
    %297 = vector.shape_cast %296 : vector<1x8x1xf32> to vector<8x1xf32>
    %298 = vector.shape_cast %294 : vector<8x1xf32> to vector<1x8x1xf32>
    tpu.vector_store %arg11[%295, %c0_96, %c0_97], %298 {strides = array<i32>} : memref<8x8x1xf32, #tpu.memory_space<vmem>>, vector<1x8x1xf32>,
    %c4_i32 = arith.constant 4 : i32
    %c8_i32_98 = arith.constant 8 : i32
    %299 = arith.muli %c4_i32, %c8_i32_98 : i32
    %300 = tpu.assume_multiple %299, 8 : i32
    %301 = arith.index_cast %300 : i32 to index
    %c0_99 = arith.constant 0 : index
    %302 = vector.load %arg12[%301, %c0_99] : memref<64x32xf32, #tpu.memory_space<vmem>>, vector<8x32xf32>
    %303 = arith.index_cast %300 : i32 to index
    %c0_100 = arith.constant 0 : index
    %304 = vector.load %arg13[%303, %c0_100] : memref<64x32xf32, #tpu.memory_space<vmem>>, vector<8x32xf32>
    %305 = arith.index_cast %300 : i32 to index
    %c0_101 = arith.constant 0 : index
    %306 = vector.load %arg14[%305, %c0_101] : memref<64x1xf32, #tpu.memory_space<vmem>>, vector<8x1xf32>
    %cst_102 = arith.constant dense<0xFF800000> : vector<8xf32>
    %307 = vector.multi_reduction <maximumf>, %285, %cst_102 [1] : vector<8x32xf32> to vector<8xf32>
    %308 = vector.shape_cast %307 : vector<8xf32> to vector<8x1xf32>
    %309 = vector.broadcast %308 : vector<8x1xf32> to vector<8x32xf32>
    %310 = arith.subf %285, %309 : vector<8x32xf32>
    %311 = math.exp %310 : vector<8x32xf32>
    %cst_103 = arith.constant dense<0.000000e+00> : vector<8x32xf32>
    %312 = tpu.matmul %311, %82, %cst_103 {dimension_numbers = #tpu.dot_dimension_numbers<[1], [0], [0], [1], [0, 0, 1, 1], [], []>} : vector<8x32xf32>, vector<32x32xf32>, vector<8x32xf32> -> vector<8x32xf32>
    %cst_104 = arith.constant dense<0xFF800000> : vector<8xf32>
    %313 = vector.multi_reduction <maximumf>, %304, %cst_104 [1] : vector<8x32xf32> to vector<8xf32>
    %314 = vector.shape_cast %313 : vector<8xf32> to vector<8x1xf32>
    %315 = vector.shape_cast %314 : vector<8x1xf32> to vector<8x1x1xf32>
    %cst_105 = arith.constant dense<0x7F800000> : vector<8xf32>
    %316 = vector.multi_reduction <minimumf>, %304, %cst_105 [1] : vector<8x32xf32> to vector<8xf32>
    %317 = vector.shape_cast %316 : vector<8xf32> to vector<8x1xf32>
    %318 = vector.shape_cast %317 : vector<8x1xf32> to vector<8x1x1xf32>
    %319 = vector.broadcast %315 : vector<8x1x1xf32> to vector<8x32x1xf32>
    %320 = vector.broadcast %84 : vector<1x32x1xf32> to vector<8x32x1xf32>
    %321 = arith.mulf %319, %320 : vector<8x32x1xf32>
    %322 = vector.broadcast %318 : vector<8x1x1xf32> to vector<8x32x1xf32>
    %323 = vector.broadcast %84 : vector<1x32x1xf32> to vector<8x32x1xf32>
    %324 = arith.mulf %322, %323 : vector<8x32x1xf32>
    %325 = arith.maximumf %321, %324 : vector<8x32x1xf32>
    %326 = vector.shape_cast %304 : vector<8x32xf32> to vector<8x1x32xf32>
    %327 = vector.broadcast %84 : vector<1x32x1xf32> to vector<8x32x32xf32>
    %328 = vector.broadcast %326 : vector<8x1x32xf32> to vector<8x32x32xf32>
    %329 = arith.mulf %327, %328 : vector<8x32x32xf32>
    %330 = vector.broadcast %325 : vector<8x32x1xf32> to vector<8x32x32xf32>
    %331 = arith.subf %329, %330 : vector<8x32x32xf32>
    %332 = math.exp %331 : vector<8x32x32xf32>
    %cst_106 = arith.constant dense<0.000000e+00> : vector<8x32xf32>
    %333 = vector.multi_reduction <add>, %332, %cst_106 [2] : vector<8x32x32xf32> to vector<8x32xf32>
    %334 = vector.shape_cast %333 : vector<8x32xf32> to vector<8x32x1xf32>
    %335 = vector.shape_cast %311 : vector<8x32xf32> to vector<8x32x1xf32>
    %336 = tpu.reciprocal %334 {approx = true} : vector<8x32x1xf32> -> vector<8x32x1xf32>
    %337 = arith.mulf %335, %336 : vector<8x32x1xf32>
    %338 = vector.broadcast %337 : vector<8x32x1xf32> to vector<8x32x32xf32>
    %339 = arith.mulf %338, %332 : vector<8x32x32xf32>
    %cst_107 = arith.constant dense<0.000000e+00> : vector<8x32xf32>
    %340 = vector.multi_reduction <add>, %339, %cst_107 [1] : vector<8x32x32xf32> to vector<8x32xf32>
    %341 = vector.broadcast %306 : vector<8x1xf32> to vector<8x32xf32>
    %342 = arith.mulf %341, %340 : vector<8x32xf32>
    %cst_108 = arith.constant 1.000000e+00 : f32
    %343 = vector.broadcast %cst_108 : f32 to vector<8x1xf32>
    %344 = arith.subf %343, %306 : vector<8x1xf32>
    %345 = vector.broadcast %344 : vector<8x1xf32> to vector<8x32xf32>
    %346 = arith.mulf %345, %312 : vector<8x32xf32>
    %347 = arith.addf %342, %346 : vector<8x32xf32>
    %348 = math.log %347 : vector<8x32xf32>
    %349 = arith.addf %302, %348 : vector<8x32xf32>
    %350 = vector.broadcast %308 : vector<8x1xf32> to vector<8x32xf32>
    %351 = arith.addf %349, %350 : vector<8x32xf32>
    %cst_109 = arith.constant dense<0xFF800000> : vector<8xf32>
    %352 = vector.multi_reduction <maximumf>, %351, %cst_109 [1] : vector<8x32xf32> to vector<8xf32>
    %353 = vector.shape_cast %352 : vector<8xf32> to vector<8x1xf32>
    %354 = vector.broadcast %353 : vector<8x1xf32> to vector<8x32xf32>
    %355 = arith.subf %351, %354 : vector<8x32xf32>
    %356 = math.exp %355 : vector<8x32xf32>
    %cst_110 = arith.constant dense<0.000000e+00> : vector<8xf32>
    %357 = vector.multi_reduction <add>, %356, %cst_110 [1] : vector<8x32xf32> to vector<8xf32>
    %358 = vector.shape_cast %357 : vector<8xf32> to vector<8x1xf32>
    %359 = math.log %358 : vector<8x1xf32>
    %360 = arith.addf %359, %353 : vector<8x1xf32>
    %361 = arith.index_cast %c4_i32 : i32 to index
    %c0_111 = arith.constant 0 : index
    %c0_112 = arith.constant 0 : index
    %362 = vector.load %arg11[%361, %c0_111, %c0_112] : memref<8x8x1xf32, #tpu.memory_space<vmem>>, vector<1x8x1xf32>
    %363 = vector.shape_cast %362 : vector<1x8x1xf32> to vector<8x1xf32>
    %364 = vector.shape_cast %360 : vector<8x1xf32> to vector<1x8x1xf32>
    tpu.vector_store %arg11[%361, %c0_111, %c0_112], %364 {strides = array<i32>} : memref<8x8x1xf32, #tpu.memory_space<vmem>>, vector<1x8x1xf32>,
    %c5_i32 = arith.constant 5 : i32
    %c8_i32_113 = arith.constant 8 : i32
    %365 = arith.muli %c5_i32, %c8_i32_113 : i32
    %366 = tpu.assume_multiple %365, 8 : i32
    %367 = arith.index_cast %366 : i32 to index
    %c0_114 = arith.constant 0 : index
    %368 = vector.load %arg12[%367, %c0_114] : memref<64x32xf32, #tpu.memory_space<vmem>>, vector<8x32xf32>
    %369 = arith.index_cast %366 : i32 to index
    %c0_115 = arith.constant 0 : index
    %370 = vector.load %arg13[%369, %c0_115] : memref<64x32xf32, #tpu.memory_space<vmem>>, vector<8x32xf32>
    %371 = arith.index_cast %366 : i32 to index
    %c0_116 = arith.constant 0 : index
    %372 = vector.load %arg14[%371, %c0_116] : memref<64x1xf32, #tpu.memory_space<vmem>>, vector<8x1xf32>
    %cst_117 = arith.constant dense<0xFF800000> : vector<8xf32>
    %373 = vector.multi_reduction <maximumf>, %351, %cst_117 [1] : vector<8x32xf32> to vector<8xf32>
    %374 = vector.shape_cast %373 : vector<8xf32> to vector<8x1xf32>
    %375 = vector.broadcast %374 : vector<8x1xf32> to vector<8x32xf32>
    %376 = arith.subf %351, %375 : vector<8x32xf32>
    %377 = math.exp %376 : vector<8x32xf32>
    %cst_118 = arith.constant dense<0.000000e+00> : vector<8x32xf32>
    %378 = tpu.matmul %377, %82, %cst_118 {dimension_numbers = #tpu.dot_dimension_numbers<[1], [0], [0], [1], [0, 0, 1, 1], [], []>} : vector<8x32xf32>, vector<32x32xf32>, vector<8x32xf32> -> vector<8x32xf32>
    %cst_119 = arith.constant dense<0xFF800000> : vector<8xf32>
    %379 = vector.multi_reduction <maximumf>, %370, %cst_119 [1] : vector<8x32xf32> to vector<8xf32>
    %380 = vector.shape_cast %379 : vector<8xf32> to vector<8x1xf32>
    %381 = vector.shape_cast %380 : vector<8x1xf32> to vector<8x1x1xf32>
    %cst_120 = arith.constant dense<0x7F800000> : vector<8xf32>
    %382 = vector.multi_reduction <minimumf>, %370, %cst_120 [1] : vector<8x32xf32> to vector<8xf32>
    %383 = vector.shape_cast %382 : vector<8xf32> to vector<8x1xf32>
    %384 = vector.shape_cast %383 : vector<8x1xf32> to vector<8x1x1xf32>
    %385 = vector.broadcast %381 : vector<8x1x1xf32> to vector<8x32x1xf32>
    %386 = vector.broadcast %84 : vector<1x32x1xf32> to vector<8x32x1xf32>
    %387 = arith.mulf %385, %386 : vector<8x32x1xf32>
    %388 = vector.broadcast %384 : vector<8x1x1xf32> to vector<8x32x1xf32>
    %389 = vector.broadcast %84 : vector<1x32x1xf32> to vector<8x32x1xf32>
    %390 = arith.mulf %388, %389 : vector<8x32x1xf32>
    %391 = arith.maximumf %387, %390 : vector<8x32x1xf32>
    %392 = vector.shape_cast %370 : vector<8x32xf32> to vector<8x1x32xf32>
    %393 = vector.broadcast %84 : vector<1x32x1xf32> to vector<8x32x32xf32>
    %394 = vector.broadcast %392 : vector<8x1x32xf32> to vector<8x32x32xf32>
    %395 = arith.mulf %393, %394 : vector<8x32x32xf32>
    %396 = vector.broadcast %391 : vector<8x32x1xf32> to vector<8x32x32xf32>
    %397 = arith.subf %395, %396 : vector<8x32x32xf32>
    %398 = math.exp %397 : vector<8x32x32xf32>
    %cst_121 = arith.constant dense<0.000000e+00> : vector<8x32xf32>
    %399 = vector.multi_reduction <add>, %398, %cst_121 [2] : vector<8x32x32xf32> to vector<8x32xf32>
    %400 = vector.shape_cast %399 : vector<8x32xf32> to vector<8x32x1xf32>
    %401 = vector.shape_cast %377 : vector<8x32xf32> to vector<8x32x1xf32>
    %402 = tpu.reciprocal %400 {approx = true} : vector<8x32x1xf32> -> vector<8x32x1xf32>
    %403 = arith.mulf %401, %402 : vector<8x32x1xf32>
    %404 = vector.broadcast %403 : vector<8x32x1xf32> to vector<8x32x32xf32>
    %405 = arith.mulf %404, %398 : vector<8x32x32xf32>
    %cst_122 = arith.constant dense<0.000000e+00> : vector<8x32xf32>
    %406 = vector.multi_reduction <add>, %405, %cst_122 [1] : vector<8x32x32xf32> to vector<8x32xf32>
    %407 = vector.broadcast %372 : vector<8x1xf32> to vector<8x32xf32>
    %408 = arith.mulf %407, %406 : vector<8x32xf32>
    %cst_123 = arith.constant 1.000000e+00 : f32
    %409 = vector.broadcast %cst_123 : f32 to vector<8x1xf32>
    %410 = arith.subf %409, %372 : vector<8x1xf32>
    %411 = vector.broadcast %410 : vector<8x1xf32> to vector<8x32xf32>
    %412 = arith.mulf %411, %378 : vector<8x32xf32>
    %413 = arith.addf %408, %412 : vector<8x32xf32>
    %414 = math.log %413 : vector<8x32xf32>
    %415 = arith.addf %368, %414 : vector<8x32xf32>
    %416 = vector.broadcast %374 : vector<8x1xf32> to vector<8x32xf32>
    %417 = arith.addf %415, %416 : vector<8x32xf32>
    %cst_124 = arith.constant dense<0xFF800000> : vector<8xf32>
    %418 = vector.multi_reduction <maximumf>, %417, %cst_124 [1] : vector<8x32xf32> to vector<8xf32>
    %419 = vector.shape_cast %418 : vector<8xf32> to vector<8x1xf32>
    %420 = vector.broadcast %419 : vector<8x1xf32> to vector<8x32xf32>
    %421 = arith.subf %417, %420 : vector<8x32xf32>
    %422 = math.exp %421 : vector<8x32xf32>
    %cst_125 = arith.constant dense<0.000000e+00> : vector<8xf32>
    %423 = vector.multi_reduction <add>, %422, %cst_125 [1] : vector<8x32xf32> to vector<8xf32>
    %424 = vector.shape_cast %423 : vector<8xf32> to vector<8x1xf32>
    %425 = math.log %424 : vector<8x1xf32>
    %426 = arith.addf %425, %419 : vector<8x1xf32>
    %427 = arith.index_cast %c5_i32 : i32 to index
    %c0_126 = arith.constant 0 : index
    %c0_127 = arith.constant 0 : index
    %428 = vector.load %arg11[%427, %c0_126, %c0_127] : memref<8x8x1xf32, #tpu.memory_space<vmem>>, vector<1x8x1xf32>
    %429 = vector.shape_cast %428 : vector<1x8x1xf32> to vector<8x1xf32>
    %430 = vector.shape_cast %426 : vector<8x1xf32> to vector<1x8x1xf32>
    tpu.vector_store %arg11[%427, %c0_126, %c0_127], %430 {strides = array<i32>} : memref<8x8x1xf32, #tpu.memory_space<vmem>>, vector<1x8x1xf32>,
    %c6_i32 = arith.constant 6 : i32
    %c8_i32_128 = arith.constant 8 : i32
    %431 = arith.muli %c6_i32, %c8_i32_128 : i32
    %432 = tpu.assume_multiple %431, 8 : i32
    %433 = arith.index_cast %432 : i32 to index
    %c0_129 = arith.constant 0 : index
    %434 = vector.load %arg12[%433, %c0_129] : memref<64x32xf32, #tpu.memory_space<vmem>>, vector<8x32xf32>
    %435 = arith.index_cast %432 : i32 to index
    %c0_130 = arith.constant 0 : index
    %436 = vector.load %arg13[%435, %c0_130] : memref<64x32xf32, #tpu.memory_space<vmem>>, vector<8x32xf32>
    %437 = arith.index_cast %432 : i32 to index
    %c0_131 = arith.constant 0 : index
    %438 = vector.load %arg14[%437, %c0_131] : memref<64x1xf32, #tpu.memory_space<vmem>>, vector<8x1xf32>
    %cst_132 = arith.constant dense<0xFF800000> : vector<8xf32>
    %439 = vector.multi_reduction <maximumf>, %417, %cst_132 [1] : vector<8x32xf32> to vector<8xf32>
    %440 = vector.shape_cast %439 : vector<8xf32> to vector<8x1xf32>
    %441 = vector.broadcast %440 : vector<8x1xf32> to vector<8x32xf32>
    %442 = arith.subf %417, %441 : vector<8x32xf32>
    %443 = math.exp %442 : vector<8x32xf32>
    %cst_133 = arith.constant dense<0.000000e+00> : vector<8x32xf32>
    %444 = tpu.matmul %443, %82, %cst_133 {dimension_numbers = #tpu.dot_dimension_numbers<[1], [0], [0], [1], [0, 0, 1, 1], [], []>} : vector<8x32xf32>, vector<32x32xf32>, vector<8x32xf32> -> vector<8x32xf32>
    %cst_134 = arith.constant dense<0xFF800000> : vector<8xf32>
    %445 = vector.multi_reduction <maximumf>, %436, %cst_134 [1] : vector<8x32xf32> to vector<8xf32>
    %446 = vector.shape_cast %445 : vector<8xf32> to vector<8x1xf32>
    %447 = vector.shape_cast %446 : vector<8x1xf32> to vector<8x1x1xf32>
    %cst_135 = arith.constant dense<0x7F800000> : vector<8xf32>
    %448 = vector.multi_reduction <minimumf>, %436, %cst_135 [1] : vector<8x32xf32> to vector<8xf32>
    %449 = vector.shape_cast %448 : vector<8xf32> to vector<8x1xf32>
    %450 = vector.shape_cast %449 : vector<8x1xf32> to vector<8x1x1xf32>
    %451 = vector.broadcast %447 : vector<8x1x1xf32> to vector<8x32x1xf32>
    %452 = vector.broadcast %84 : vector<1x32x1xf32> to vector<8x32x1xf32>
    %453 = arith.mulf %451, %452 : vector<8x32x1xf32>
    %454 = vector.broadcast %450 : vector<8x1x1xf32> to vector<8x32x1xf32>
    %455 = vector.broadcast %84 : vector<1x32x1xf32> to vector<8x32x1xf32>
    %456 = arith.mulf %454, %455 : vector<8x32x1xf32>
    %457 = arith.maximumf %453, %456 : vector<8x32x1xf32>
    %458 = vector.shape_cast %436 : vector<8x32xf32> to vector<8x1x32xf32>
    %459 = vector.broadcast %84 : vector<1x32x1xf32> to vector<8x32x32xf32>
    %460 = vector.broadcast %458 : vector<8x1x32xf32> to vector<8x32x32xf32>
    %461 = arith.mulf %459, %460 : vector<8x32x32xf32>
    %462 = vector.broadcast %457 : vector<8x32x1xf32> to vector<8x32x32xf32>
    %463 = arith.subf %461, %462 : vector<8x32x32xf32>
    %464 = math.exp %463 : vector<8x32x32xf32>
    %cst_136 = arith.constant dense<0.000000e+00> : vector<8x32xf32>
    %465 = vector.multi_reduction <add>, %464, %cst_136 [2] : vector<8x32x32xf32> to vector<8x32xf32>
    %466 = vector.shape_cast %465 : vector<8x32xf32> to vector<8x32x1xf32>
    %467 = vector.shape_cast %443 : vector<8x32xf32> to vector<8x32x1xf32>
    %468 = tpu.reciprocal %466 {approx = true} : vector<8x32x1xf32> -> vector<8x32x1xf32>
    %469 = arith.mulf %467, %468 : vector<8x32x1xf32>
    %470 = vector.broadcast %469 : vector<8x32x1xf32> to vector<8x32x32xf32>
    %471 = arith.mulf %470, %464 : vector<8x32x32xf32>
    %cst_137 = arith.constant dense<0.000000e+00> : vector<8x32xf32>
    %472 = vector.multi_reduction <add>, %471, %cst_137 [1] : vector<8x32x32xf32> to vector<8x32xf32>
    %473 = vector.broadcast %438 : vector<8x1xf32> to vector<8x32xf32>
    %474 = arith.mulf %473, %472 : vector<8x32xf32>
    %cst_138 = arith.constant 1.000000e+00 : f32
    %475 = vector.broadcast %cst_138 : f32 to vector<8x1xf32>
    %476 = arith.subf %475, %438 : vector<8x1xf32>
    %477 = vector.broadcast %476 : vector<8x1xf32> to vector<8x32xf32>
    %478 = arith.mulf %477, %444 : vector<8x32xf32>
    %479 = arith.addf %474, %478 : vector<8x32xf32>
    %480 = math.log %479 : vector<8x32xf32>
    %481 = arith.addf %434, %480 : vector<8x32xf32>
    %482 = vector.broadcast %440 : vector<8x1xf32> to vector<8x32xf32>
    %483 = arith.addf %481, %482 : vector<8x32xf32>
    %cst_139 = arith.constant dense<0xFF800000> : vector<8xf32>
    %484 = vector.multi_reduction <maximumf>, %483, %cst_139 [1] : vector<8x32xf32> to vector<8xf32>
    %485 = vector.shape_cast %484 : vector<8xf32> to vector<8x1xf32>
    %486 = vector.broadcast %485 : vector<8x1xf32> to vector<8x32xf32>
    %487 = arith.subf %483, %486 : vector<8x32xf32>
    %488 = math.exp %487 : vector<8x32xf32>
    %cst_140 = arith.constant dense<0.000000e+00> : vector<8xf32>
    %489 = vector.multi_reduction <add>, %488, %cst_140 [1] : vector<8x32xf32> to vector<8xf32>
    %490 = vector.shape_cast %489 : vector<8xf32> to vector<8x1xf32>
    %491 = math.log %490 : vector<8x1xf32>
    %492 = arith.addf %491, %485 : vector<8x1xf32>
    %493 = arith.index_cast %c6_i32 : i32 to index
    %c0_141 = arith.constant 0 : index
    %c0_142 = arith.constant 0 : index
    %494 = vector.load %arg11[%493, %c0_141, %c0_142] : memref<8x8x1xf32, #tpu.memory_space<vmem>>, vector<1x8x1xf32>
    %495 = vector.shape_cast %494 : vector<1x8x1xf32> to vector<8x1xf32>
    %496 = vector.shape_cast %492 : vector<8x1xf32> to vector<1x8x1xf32>
    tpu.vector_store %arg11[%493, %c0_141, %c0_142], %496 {strides = array<i32>} : memref<8x8x1xf32, #tpu.memory_space<vmem>>, vector<1x8x1xf32>,
    %c7_i32 = arith.constant 7 : i32
    %c8_i32_143 = arith.constant 8 : i32
    %497 = arith.muli %c7_i32, %c8_i32_143 : i32
    %498 = tpu.assume_multiple %497, 8 : i32
    %499 = arith.index_cast %498 : i32 to index
    %c0_144 = arith.constant 0 : index
    %500 = vector.load %arg12[%499, %c0_144] : memref<64x32xf32, #tpu.memory_space<vmem>>, vector<8x32xf32>
    %501 = arith.index_cast %498 : i32 to index
    %c0_145 = arith.constant 0 : index
    %502 = vector.load %arg13[%501, %c0_145] : memref<64x32xf32, #tpu.memory_space<vmem>>, vector<8x32xf32>
    %503 = arith.index_cast %498 : i32 to index
    %c0_146 = arith.constant 0 : index
    %504 = vector.load %arg14[%503, %c0_146] : memref<64x1xf32, #tpu.memory_space<vmem>>, vector<8x1xf32>
    %cst_147 = arith.constant dense<0xFF800000> : vector<8xf32>
    %505 = vector.multi_reduction <maximumf>, %483, %cst_147 [1] : vector<8x32xf32> to vector<8xf32>
    %506 = vector.shape_cast %505 : vector<8xf32> to vector<8x1xf32>
    %507 = vector.broadcast %506 : vector<8x1xf32> to vector<8x32xf32>
    %508 = arith.subf %483, %507 : vector<8x32xf32>
    %509 = math.exp %508 : vector<8x32xf32>
    %cst_148 = arith.constant dense<0.000000e+00> : vector<8x32xf32>
    %510 = tpu.matmul %509, %82, %cst_148 {dimension_numbers = #tpu.dot_dimension_numbers<[1], [0], [0], [1], [0, 0, 1, 1], [], []>} : vector<8x32xf32>, vector<32x32xf32>, vector<8x32xf32> -> vector<8x32xf32>
    %cst_149 = arith.constant dense<0xFF800000> : vector<8xf32>
    %511 = vector.multi_reduction <maximumf>, %502, %cst_149 [1] : vector<8x32xf32> to vector<8xf32>
    %512 = vector.shape_cast %511 : vector<8xf32> to vector<8x1xf32>
    %513 = vector.shape_cast %512 : vector<8x1xf32> to vector<8x1x1xf32>
    %cst_150 = arith.constant dense<0x7F800000> : vector<8xf32>
    %514 = vector.multi_reduction <minimumf>, %502, %cst_150 [1] : vector<8x32xf32> to vector<8xf32>
    %515 = vector.shape_cast %514 : vector<8xf32> to vector<8x1xf32>
    %516 = vector.shape_cast %515 : vector<8x1xf32> to vector<8x1x1xf32>
    %517 = vector.broadcast %513 : vector<8x1x1xf32> to vector<8x32x1xf32>
    %518 = vector.broadcast %84 : vector<1x32x1xf32> to vector<8x32x1xf32>
    %519 = arith.mulf %517, %518 : vector<8x32x1xf32>
    %520 = vector.broadcast %516 : vector<8x1x1xf32> to vector<8x32x1xf32>
    %521 = vector.broadcast %84 : vector<1x32x1xf32> to vector<8x32x1xf32>
    %522 = arith.mulf %520, %521 : vector<8x32x1xf32>
    %523 = arith.maximumf %519, %522 : vector<8x32x1xf32>
    %524 = vector.shape_cast %502 : vector<8x32xf32> to vector<8x1x32xf32>
    %525 = vector.broadcast %84 : vector<1x32x1xf32> to vector<8x32x32xf32>
    %526 = vector.broadcast %524 : vector<8x1x32xf32> to vector<8x32x32xf32>
    %527 = arith.mulf %525, %526 : vector<8x32x32xf32>
    %528 = vector.broadcast %523 : vector<8x32x1xf32> to vector<8x32x32xf32>
    %529 = arith.subf %527, %528 : vector<8x32x32xf32>
    %530 = math.exp %529 : vector<8x32x32xf32>
    %cst_151 = arith.constant dense<0.000000e+00> : vector<8x32xf32>
    %531 = vector.multi_reduction <add>, %530, %cst_151 [2] : vector<8x32x32xf32> to vector<8x32xf32>
    %532 = vector.shape_cast %531 : vector<8x32xf32> to vector<8x32x1xf32>
    %533 = vector.shape_cast %509 : vector<8x32xf32> to vector<8x32x1xf32>
    %534 = tpu.reciprocal %532 {approx = true} : vector<8x32x1xf32> -> vector<8x32x1xf32>
    %535 = arith.mulf %533, %534 : vector<8x32x1xf32>
    %536 = vector.broadcast %535 : vector<8x32x1xf32> to vector<8x32x32xf32>
    %537 = arith.mulf %536, %530 : vector<8x32x32xf32>
    %cst_152 = arith.constant dense<0.000000e+00> : vector<8x32xf32>
    %538 = vector.multi_reduction <add>, %537, %cst_152 [1] : vector<8x32x32xf32> to vector<8x32xf32>
    %539 = vector.broadcast %504 : vector<8x1xf32> to vector<8x32xf32>
    %540 = arith.mulf %539, %538 : vector<8x32xf32>
    %cst_153 = arith.constant 1.000000e+00 : f32
    %541 = vector.broadcast %cst_153 : f32 to vector<8x1xf32>
    %542 = arith.subf %541, %504 : vector<8x1xf32>
    %543 = vector.broadcast %542 : vector<8x1xf32> to vector<8x32xf32>
    %544 = arith.mulf %543, %510 : vector<8x32xf32>
    %545 = arith.addf %540, %544 : vector<8x32xf32>
    %546 = math.log %545 : vector<8x32xf32>
    %547 = arith.addf %500, %546 : vector<8x32xf32>
    %548 = vector.broadcast %506 : vector<8x1xf32> to vector<8x32xf32>
    %549 = arith.addf %547, %548 : vector<8x32xf32>
    %cst_154 = arith.constant dense<0xFF800000> : vector<8xf32>
    %550 = vector.multi_reduction <maximumf>, %549, %cst_154 [1] : vector<8x32xf32> to vector<8xf32>
    %551 = vector.shape_cast %550 : vector<8xf32> to vector<8x1xf32>
    %552 = vector.broadcast %551 : vector<8x1xf32> to vector<8x32xf32>
    %553 = arith.subf %549, %552 : vector<8x32xf32>
    %554 = math.exp %553 : vector<8x32xf32>
    %cst_155 = arith.constant dense<0.000000e+00> : vector<8xf32>
    %555 = vector.multi_reduction <add>, %554, %cst_155 [1] : vector<8x32xf32> to vector<8xf32>
    %556 = vector.shape_cast %555 : vector<8xf32> to vector<8x1xf32>
    %557 = math.log %556 : vector<8x1xf32>
    %558 = arith.addf %557, %551 : vector<8x1xf32>
    %559 = arith.index_cast %c7_i32 : i32 to index
    %c0_156 = arith.constant 0 : index
    %c0_157 = arith.constant 0 : index
    %560 = vector.load %arg11[%559, %c0_156, %c0_157] : memref<8x8x1xf32, #tpu.memory_space<vmem>>, vector<1x8x1xf32>
    %561 = vector.shape_cast %560 : vector<1x8x1xf32> to vector<8x1xf32>
    %562 = vector.shape_cast %558 : vector<8x1xf32> to vector<1x8x1xf32>
    tpu.vector_store %arg11[%559, %c0_156, %c0_157], %562 {strides = array<i32>} : memref<8x8x1xf32, #tpu.memory_space<vmem>>, vector<1x8x1xf32>,
    %c7_i32_158 = arith.constant 7 : i32
    return
  }
  func.func @transform_0(%arg0: i32) -> (i32, i32) {
    %c0_i32 = arith.constant 0 : i32
    %c0_i32_0 = arith.constant 0 : i32
    %c0_i32_1 = arith.constant 0 : i32
    return %c0_i32, %c0_i32_0 : i32, i32
  }
  func.func @transform_1(%arg0: i32) -> (i32, i32) {
    %c0_i32 = arith.constant 0 : i32
    %c0_i32_0 = arith.constant 0 : i32
    %c0_i32_1 = arith.constant 0 : i32
    return %c0_i32, %c0_i32_0 : i32, i32
  }
  func.func @transform_2(%arg0: i32) -> (i32, i32) {
    %c0_i32 = arith.constant 0 : i32
    %c0_i32_0 = arith.constant 0 : i32
    %c0_i32_1 = arith.constant 0 : i32
    return %c0_i32, %c0_i32_0 : i32, i32
  }
  func.func @transform_3(%arg0: i32) -> (i32, i32) {
    %c0_i32 = arith.constant 0 : i32
    %c0_i32_0 = arith.constant 0 : i32
    %c0_i32_1 = arith.constant 0 : i32
    return %c0_i32, %c0_i32_0 : i32, i32
  }
  func.func @transform_4(%arg0: i32) -> (i32, i32) {
    %c0_i32 = arith.constant 0 : i32
    %c0_i32_0 = arith.constant 0 : i32
    %c0_i32_1 = arith.constant 0 : i32
    return %c0_i32, %c0_i32_0 : i32, i32
  }
  func.func @transform_5(%arg0: i32) -> (i32, i32) {
    %c0_i32 = arith.constant 0 : i32
    %c0_i32_0 = arith.constant 0 : i32
    %c0_i32_1 = arith.constant 0 : i32
    return %c0_i32, %c0_i32_0 : i32, i32
  }
  func.func @transform_6(%arg0: i32) -> (i32, i32) {
    %c0_i32 = arith.constant 0 : i32
    %c0_i32_0 = arith.constant 0 : i32
    %c0_i32_1 = arith.constant 0 : i32
    return %c0_i32, %c0_i32_0 : i32, i32
  }
  func.func @transform_7(%arg0: i32) -> (i32, i32) {
    %c0_i32 = arith.constant 0 : i32
    %c0_i32_0 = arith.constant 0 : i32
    %c0_i32_1 = arith.constant 0 : i32
    return %c0_i32, %c0_i32_0 : i32, i32
  }
  func.func @transform_8(%arg0: i32) -> (i32, i32) {
    %c0_i32 = arith.constant 0 : i32
    %c0_i32_0 = arith.constant 0 : i32
    %c0_i32_1 = arith.constant 0 : i32
    return %c0_i32, %c0_i32_0 : i32, i32
  }
  func.func @transform_9(%arg0: i32) -> (i32, i32) {
    %c0_i32 = arith.constant 0 : i32
    %c0_i32_0 = arith.constant 0 : i32
    %c0_i32_1 = arith.constant 0 : i32
    return %c0_i32, %c0_i32_0 : i32, i32
  }
  func.func @transform_10(%arg0: i32) -> (i32, i32, i32) {
    %c0_i32 = arith.constant 0 : i32
    %c0_i32_0 = arith.constant 0 : i32
    %c0_i32_1 = arith.constant 0 : i32
    %c0_i32_2 = arith.constant 0 : i32
    return %c0_i32, %c0_i32_0, %c0_i32_1 : i32, i32, i32
  }
}

</mosaic_0001>

<llo_original>
// kernel: tpu_custom_call.1
$region0: #{tpu_custom_call.1}
  #allocation0 [shape = 'u32[]', space=smem, size = 0x4, offset = 0x4, fixed_abs, tag = 'smem constant byte address 0x4 - core index']
  #allocation1 [shape = 'u32[72,128]{1,0:T(1,128)}', space=vmem, size = 0x9000, scoped, tag = 'internal scratch']
  #allocation2 [shape = 'f32[64,32]{1,0:T(8,128)}', space=vmem, size = 0x8000, scoped, tag = 'scratch operand']
  #allocation3 [shape = 'f32[64,32]{1,0:T(8,128)}', space=vmem, size = 0x8000, scoped, tag = 'scratch operand']
  #allocation4 [shape = 'f32[64,1]{1,0:T(8,128)}', space=vmem, size = 0x8000, scoped, tag = 'scratch operand']
  #allocation5 [shape = 'f32[1,1]{1,0:T(1,128)S(1)}', space=vmem, size = 0x200, scoped, tag = 'scoped memory for tpu_custom_call.1']
  %s0 = inlined_call_operand.vmem [shape: s32[64,2], index: 0, kind: input, shape index: {}]
  %s1 = inlined_call_operand.vmem [shape: f32[64,16], index: 1, kind: input, shape index: {}]
  %s2 = inlined_call_operand.vmem [shape: f32[20,32], index: 2, kind: input, shape index: {}]
  %s3 = inlined_call_operand.vmem [shape: f32[1,32], index: 3, kind: input, shape index: {}]
  %s4 = inlined_call_operand.vmem [shape: f32[16,32], index: 4, kind: input, shape index: {}]
  %s5 = inlined_call_operand.vmem [shape: f32[1,32], index: 5, kind: input, shape index: {}]
  %s6 = inlined_call_operand.vmem [shape: f32[1,32], index: 6, kind: input, shape index: {}]
  %s7 = inlined_call_operand.<no memory space> [shape: f32[1,1], index: 7, kind: input, shape index: {}]
  %s8 = inlined_call_operand.vmem [shape: f32[32,1], index: 8, kind: input, shape index: {}]
  %s9 = inlined_call_operand.vmem [shape: f32[32,32], index: 9, kind: input, shape index: {}]
  %s10 = inlined_call_operand.vmem [shape: f32[8,8,1], index: 10, kind: output, shape index: {}]
  %s11 = sld [smem:[#allocation0]]
  $region50: #{tpu_custom_call.1} parent=0
    _
  %s13 = ssub.s32 1, %s11
  %s14 = scalar_select 0, %s13, %s11
  %v15 = vstv %s7
  %16 = vst [vmem:[#allocation5] sm:$0x1] %v15
  // Predicated region
  $region2: #{tpu_custom_call.1} parent=0 // pred_check
    _
  $region3: #{tpu_custom_call.1} parent=0 // pred_check_branch
    %18 = sbr.rel (0) target = $region5
  $region4: #{tpu_custom_call.1} parent=0 // pred_region
    _
  $region5: #{tpu_custom_call.1} parent=0 // pred_fallthru
    _
  // Predicated region
  $region6: #{tpu_custom_call.1} parent=0 // pred_check
    _
  $region7: #{tpu_custom_call.1} parent=0 // pred_check_branch
    %20 = sbr.rel (0) target = $region9
  $region8: #{tpu_custom_call.1} parent=0 // pred_region
    _
  $region9: #{tpu_custom_call.1} parent=0 // pred_fallthru
    _
  // Predicated region
  $region10: #{tpu_custom_call.1} parent=0 // pred_check
    _
  $region11: #{tpu_custom_call.1} parent=0 // pred_check_branch
    %22 = sbr.rel (0) target = $region13
  $region12: #{tpu_custom_call.1} parent=0 // pred_region
    _
  $region13: #{tpu_custom_call.1} parent=0 // pred_fallthru
    _
  // Predicated region
  $region14: #{tpu_custom_call.1} parent=0 // pred_check
    _
  $region15: #{tpu_custom_call.1} parent=0 // pred_check_branch
    %24 = sbr.rel (0) target = $region17
  $region16: #{tpu_custom_call.1} parent=0 // pred_region
    _
  $region17: #{tpu_custom_call.1} parent=0 // pred_fallthru
    _
  // Predicated region
  $region18: #{tpu_custom_call.1} parent=0 // pred_check
    _
  $region19: #{tpu_custom_call.1} parent=0 // pred_check_branch
    %26 = sbr.rel (0) target = $region21
  $region20: #{tpu_custom_call.1} parent=0 // pred_region
    _
  $region21: #{tpu_custom_call.1} parent=0 // pred_fallthru
    _
  // Predicated region
  $region22: #{tpu_custom_call.1} parent=0 // pred_check
    _
  $region23: #{tpu_custom_call.1} parent=0 // pred_check_branch
    %28 = sbr.rel (0) target = $region25
  $region24: #{tpu_custom_call.1} parent=0 // pred_region
    _
  $region25: #{tpu_custom_call.1} parent=0 // pred_fallthru
    _
  // Predicated region
  $region26: #{tpu_custom_call.1} parent=0 // pred_check
    _
  $region27: #{tpu_custom_call.1} parent=0 // pred_check_branch
    %30 = sbr.rel (0) target = $region29
  $region28: #{tpu_custom_call.1} parent=0 // pred_region
    _
  $region29: #{tpu_custom_call.1} parent=0 // pred_fallthru
    _
  // Predicated region
  $region30: #{tpu_custom_call.1} parent=0 // pred_check
    _
  $region31: #{tpu_custom_call.1} parent=0 // pred_check_branch
    %32 = sbr.rel (0) target = $region33
  $region32: #{tpu_custom_call.1} parent=0 // pred_region
    _
  $region33: #{tpu_custom_call.1} parent=0 // pred_fallthru
    _
  // Predicated region
  $region34: #{tpu_custom_call.1} parent=0 // pred_check
    _
  $region35: #{tpu_custom_call.1} parent=0 // pred_check_branch
    %34 = sbr.rel (0) target = $region37
  $region36: #{tpu_custom_call.1} parent=0 // pred_region
    _
  $region37: #{tpu_custom_call.1} parent=0 // pred_fallthru
    _
  // Predicated region
  $region38: #{tpu_custom_call.1} parent=0 // pred_check
    _
  $region39: #{tpu_custom_call.1} parent=0 // pred_check_branch
    %36 = sbr.rel (0) target = $region41
  $region40: #{tpu_custom_call.1} parent=0 // pred_region
    _
  $region41: #{tpu_custom_call.1} parent=0 // pred_fallthru
    _
  %v37 = vld [vmem:[%s0] sm:$0xff]
  %v38 = vld [vmem:[%s0 + $0x8] sm:$0xff]
  %v39 = vld [vmem:[%s0 + $0x10] sm:$0xff]
  %v40 = vld [vmem:[%s0 + $0x18] sm:$0xff]
  %v41 = vld [vmem:[%s0 + $0x20] sm:$0xff]
  %v42 = vld [vmem:[%s0 + $0x28] sm:$0xff]
  %v43 = vld [vmem:[%s0 + $0x30] sm:$0xff]
  %v44 = vld [vmem:[%s0 + $0x38] sm:$0xff]
  %v45 = vlaneseq
  %v46 = vand.u32 %v45, 127
  %47 = vset.pattern.permute.xlu0 0
  %48 = vperm.xlu0 %47, %v37
  %v49 = vpop.permute.xlu0 %48
  %50 = vset.pattern.permute.xlu0 0
  %51 = vperm.xlu0 %50, %v38
  %v52 = vpop.permute.xlu0 %51
  %53 = vset.pattern.permute.xlu0 0
  %54 = vperm.xlu0 %53, %v39
  %v55 = vpop.permute.xlu0 %54
  %56 = vset.pattern.permute.xlu0 0
  %57 = vperm.xlu0 %56, %v40
  %v58 = vpop.permute.xlu0 %57
  %59 = vset.pattern.permute.xlu0 0
  %60 = vperm.xlu0 %59, %v41
  %v61 = vpop.permute.xlu0 %60
  %62 = vset.pattern.permute.xlu0 0
  %63 = vperm.xlu0 %62, %v42
  %v64 = vpop.permute.xlu0 %63
  %65 = vset.pattern.permute.xlu0 0
  %66 = vperm.xlu0 %65, %v43
  %v67 = vpop.permute.xlu0 %66
  %68 = vset.pattern.permute.xlu0 0
  %69 = vperm.xlu0 %68, %v44
  %v70 = vpop.permute.xlu0 %69
  %vm71 = vcmp.eq.s32.totalorder %v46, %v49
  %vm72 = vcmp.eq.s32.totalorder %v46, %v52
  %vm73 = vcmp.eq.s32.totalorder %v46, %v55
  %vm74 = vcmp.eq.s32.totalorder %v46, %v58
  %vm75 = vcmp.eq.s32.totalorder %v46, %v61
  %vm76 = vcmp.eq.s32.totalorder %v46, %v64
  %vm77 = vcmp.eq.s32.totalorder %v46, %v67
  %vm78 = vcmp.eq.s32.totalorder %v46, %v70
  %v79 = vsel %vm71, 1, 0
  %v80 = vsel %vm72, 1, 0
  %v81 = vsel %vm73, 1, 0
  %v82 = vsel %vm74, 1, 0
  %v83 = vsel %vm75, 1, 0
  %v84 = vsel %vm76, 1, 0
  %v85 = vsel %vm77, 1, 0
  %v86 = vsel %vm78, 1, 0
  %v87 = vcvt.s32.f32 %v79
  %v88 = vcvt.s32.f32 %v80
  %v89 = vcvt.s32.f32 %v81
  %v90 = vcvt.s32.f32 %v82
  %v91 = vcvt.s32.f32 %v83
  %v92 = vcvt.s32.f32 %v84
  %v93 = vcvt.s32.f32 %v85
  %v94 = vcvt.s32.f32 %v86
  %v95 = vadd.f32 %v87, 0.0
  %v96 = vadd.f32 %v88, 0.0
  %v97 = vadd.f32 %v89, 0.0
  %v98 = vadd.f32 %v90, 0.0
  %v99 = vadd.f32 %v91, 0.0
  %v100 = vadd.f32 %v92, 0.0
  %v101 = vadd.f32 %v93, 0.0
  %v102 = vadd.f32 %v94, 0.0
  %103 = vset.pattern.permute.xlu0 1
  %104 = vperm.xlu0 %103, %v37
  %v105 = vpop.permute.xlu0 %104
  %106 = vset.pattern.permute.xlu0 1
  %107 = vperm.xlu0 %106, %v38
  %v108 = vpop.permute.xlu0 %107
  %109 = vset.pattern.permute.xlu0 1
  %110 = vperm.xlu0 %109, %v39
  %v111 = vpop.permute.xlu0 %110
  %112 = vset.pattern.permute.xlu0 1
  %113 = vperm.xlu0 %112, %v40
  %v114 = vpop.permute.xlu0 %113
  %115 = vset.pattern.permute.xlu0 1
  %116 = vperm.xlu0 %115, %v41
  %v117 = vpop.permute.xlu0 %116
  %118 = vset.pattern.permute.xlu0 1
  %119 = vperm.xlu0 %118, %v42
  %v120 = vpop.permute.xlu0 %119
  %121 = vset.pattern.permute.xlu0 1
  %122 = vperm.xlu0 %121, %v43
  %v123 = vpop.permute.xlu0 %122
  %124 = vset.pattern.permute.xlu0 1
  %125 = vperm.xlu0 %124, %v44
  %v126 = vpop.permute.xlu0 %125
  %vm127 = vcmp.eq.s32.totalorder %v46, %v105
  %vm128 = vcmp.eq.s32.totalorder %v46, %v108
  %vm129 = vcmp.eq.s32.totalorder %v46, %v111
  %vm130 = vcmp.eq.s32.totalorder %v46, %v114
  %vm131 = vcmp.eq.s32.totalorder %v46, %v117
  %vm132 = vcmp.eq.s32.totalorder %v46, %v120
  %vm133 = vcmp.eq.s32.totalorder %v46, %v123
  %vm134 = vcmp.eq.s32.totalorder %v46, %v126
  %v135 = vsel %vm127, 1, 0
  %v136 = vsel %vm128, 1, 0
  %v137 = vsel %vm129, 1, 0
  %v138 = vsel %vm130, 1, 0
  %v139 = vsel %vm131, 1, 0
  %v140 = vsel %vm132, 1, 0
  %v141 = vsel %vm133, 1, 0
  %v142 = vsel %vm134, 1, 0
  %v143 = vcvt.s32.f32 %v135
  %v144 = vcvt.s32.f32 %v136
  %v145 = vcvt.s32.f32 %v137
  %v146 = vcvt.s32.f32 %v138
  %v147 = vcvt.s32.f32 %v139
  %v148 = vcvt.s32.f32 %v140
  %v149 = vcvt.s32.f32 %v141
  %v150 = vcvt.s32.f32 %v142
  %v151 = vadd.f32 %v95, %v143
  %v152 = vadd.f32 %v96, %v144
  %v153 = vadd.f32 %v97, %v145
  %v154 = vadd.f32 %v98, %v146
  %v155 = vadd.f32 %v99, %v147
  %v156 = vadd.f32 %v100, %v148
  %v157 = vadd.f32 %v101, %v149
  %v158 = vadd.f32 %v102, %v150
  %v159 = vld [vmem:[%s2] sm:$0xff]
  %v160 = vld [vmem:[%s2 + $0x8] sm:$0xff]
  %v161 = vld [vmem:[%s2 + $0x10] sm:$0xf]
  %vm162 = vcmask 162816
  %v164 = vsel %vm162, %v151, 0
  %v167 = vsel %vm162, %v152, 0
  %v170 = vsel %vm162, %v153, 0
  %v173 = vsel %vm162, %v154, 0
  %v176 = vsel %vm162, %v155, 0
  %v179 = vsel %vm162, %v156, 0
  %v182 = vsel %vm162, %v157, 0
  %v185 = vsel %vm162, %v158, 0
  %vm187 = vcmask 1043456
  %v189 = vsel %vm187, %v161, 0
  %191 = vmatpush.msra.mxu0 0.0
  %192 = vmatpush.msra.mxu0 0.0
  %193 = vmatpush.msra.mxu0 0.0
  %194 = vmatpush.msra.mxu0 0.0
  %195 = vmatpush.msra.mxu0 0.0
  %196 = vmatpush.msra.mxu0 0.0
  %197 = vmatpush.msra.mxu0 0.0
  %198 = vmatpush.msra.mxu0 0.0
  %199 = vmatpush.msra.mxu0 0.0
  %200 = vmatpush.msra.mxu0 0.0
  %201 = vmatpush.msra.mxu0 0.0
  %202 = vmatpush.msra.mxu0 0.0
  %203 = vmatpush.msra.mxu0 0.0
  %204 = vmatpush.msra.mxu0 %v189
  %205 = vmatpush.msra.mxu0 %v160
  %206 = vmatpush.msra.mxu0 %v159
  %207 = vmatmul.f32.gmra.mxu0 %v164
  %v208 = vpop.f32.mrf.mxu0
  %v209 = vadd.f32 0.0, %v208
  %210 = vmatmul.f32.gmra.mxu0 %v167
  %v211 = vpop.f32.mrf.mxu0
  %v212 = vadd.f32 0.0, %v211
  %213 = vmatmul.f32.gmra.mxu0 %v170
  %v214 = vpop.f32.mrf.mxu0
  %v215 = vadd.f32 0.0, %v214
  %216 = vmatmul.f32.gmra.mxu0 %v173
  %v217 = vpop.f32.mrf.mxu0
  %v218 = vadd.f32 0.0, %v217
  %219 = vmatmul.f32.gmra.mxu0 %v176
  %v220 = vpop.f32.mrf.mxu0
  %v221 = vadd.f32 0.0, %v220
  %222 = vmatmul.f32.gmra.mxu0 %v179
  %v223 = vpop.f32.mrf.mxu0
  %v224 = vadd.f32 0.0, %v223
  %225 = vmatmul.f32.gmra.mxu0 %v182
  %v226 = vpop.f32.mrf.mxu0
  %v227 = vadd.f32 0.0, %v226
  %228 = vmatmul.f32.gmra.mxu0 %v185
  %v229 = vpop.f32.mrf.mxu0
  %v230 = vadd.f32 0.0, %v229
  %231 = vdwg.mxu0
  %vm232 = vcmask 261120
  %233 = vst.msk [vmem:[#allocation2] sm:$0xff] %vm232, %v209
  %234 = vst.msk [vmem:[#allocation2 + $0x8] sm:$0xff] %vm232, %v212
  %235 = vst.msk [vmem:[#allocation2 + $0x10] sm:$0xff] %vm232, %v215
  %236 = vst.msk [vmem:[#allocation2 + $0x18] sm:$0xff] %vm232, %v218
  %237 = vst.msk [vmem:[#allocation2 + $0x20] sm:$0xff] %vm232, %v221
  %238 = vst.msk [vmem:[#allocation2 + $0x28] sm:$0xff] %vm232, %v224
  %239 = vst.msk [vmem:[#allocation2 + $0x30] sm:$0xff] %vm232, %v227
  %240 = vst.msk [vmem:[#allocation2 + $0x38] sm:$0xff] %vm232, %v230
  %v241 = vld [vmem:[%s1] sm:$0xff]
  %v242 = vld [vmem:[%s1 + $0x8] sm:$0xff]
  %v243 = vld [vmem:[%s1 + $0x10] sm:$0xff]
  %v244 = vld [vmem:[%s1 + $0x18] sm:$0xff]
  %v245 = vld [vmem:[%s1 + $0x20] sm:$0xff]
  %v246 = vld [vmem:[%s1 + $0x28] sm:$0xff]
  %v247 = vld [vmem:[%s1 + $0x30] sm:$0xff]
  %v248 = vld [vmem:[%s1 + $0x38] sm:$0xff]
  %v249 = vld [vmem:[%s4] sm:$0xff]
  %v250 = vld [vmem:[%s4 + $0x8] sm:$0xff]
  %v251 = vld [vmem:[%s5] sm:$0x1]
  %v253 = vperm.slane %v251, 0
  %vm255 = vcmask 130048
  %v257 = vsel %vm255, %v241, 0
  %v260 = vsel %vm255, %v242, 0
  %v263 = vsel %vm255, %v243, 0
  %v266 = vsel %vm255, %v244, 0
  %v269 = vsel %vm255, %v245, 0
  %v272 = vsel %vm255, %v246, 0
  %v275 = vsel %vm255, %v247, 0
  %v278 = vsel %vm255, %v248, 0
  %280 = vmatpush.msra.mxu0 0.0
  %281 = vmatpush.msra.mxu0 0.0
  %282 = vmatpush.msra.mxu0 0.0
  %283 = vmatpush.msra.mxu0 0.0
  %284 = vmatpush.msra.mxu0 0.0
  %285 = vmatpush.msra.mxu0 0.0
  %286 = vmatpush.msra.mxu0 0.0
  %287 = vmatpush.msra.mxu0 0.0
  %288 = vmatpush.msra.mxu0 0.0
  %289 = vmatpush.msra.mxu0 0.0
  %290 = vmatpush.msra.mxu0 0.0
  %291 = vmatpush.msra.mxu0 0.0
  %292 = vmatpush.msra.mxu0 0.0
  %293 = vmatpush.msra.mxu0 0.0
  %294 = vmatpush.msra.mxu0 %v250
  %295 = vmatpush.msra.mxu0 %v249
  %296 = vmatmul.f32.gmra.mxu0 %v257
  %v297 = vpop.f32.mrf.mxu0
  %v298 = vadd.f32 %v253, %v297
  %299 = vmatmul.f32.gmra.mxu0 %v260
  %v300 = vpop.f32.mrf.mxu0
  %v301 = vadd.f32 %v253, %v300
  %302 = vmatmul.f32.gmra.mxu0 %v263
  %v303 = vpop.f32.mrf.mxu0
  %v304 = vadd.f32 %v253, %v303
  %305 = vmatmul.f32.gmra.mxu0 %v266
  %v306 = vpop.f32.mrf.mxu0
  %v307 = vadd.f32 %v253, %v306
  %308 = vmatmul.f32.gmra.mxu0 %v269
  %v309 = vpop.f32.mrf.mxu0
  %v310 = vadd.f32 %v253, %v309
  %311 = vmatmul.f32.gmra.mxu0 %v272
  %v312 = vpop.f32.mrf.mxu0
  %v313 = vadd.f32 %v253, %v312
  %314 = vmatmul.f32.gmra.mxu0 %v275
  %v315 = vpop.f32.mrf.mxu0
  %v316 = vadd.f32 %v253, %v315
  %317 = vmatmul.f32.gmra.mxu0 %v278
  %v318 = vpop.f32.mrf.mxu0
  %v319 = vadd.f32 %v253, %v318
  %320 = vdwg.mxu0
  %v321 = vmul.f32 %v298, 0.5
  %v322 = vmul.f32 %v301, 0.5
  %v323 = vmul.f32 %v304, 0.5
  %v324 = vmul.f32 %v307, 0.5
  %v325 = vmul.f32 %v310, 0.5
  %v326 = vmul.f32 %v313, 0.5
  %v327 = vmul.f32 %v316, 0.5
  %v328 = vmul.f32 %v319, 0.5
  %v329 = vmul.f32 %v298, 0.70710677
  %v330 = vmul.f32 %v301, 0.70710677
  %v331 = vmul.f32 %v304, 0.70710677
  %v332 = vmul.f32 %v307, 0.70710677
  %v333 = vmul.f32 %v310, 0.70710677
  %v334 = vmul.f32 %v313, 0.70710677
  %v335 = vmul.f32 %v316, 0.70710677
  %v336 = vmul.f32 %v319, 0.70710677
  %vm337 = vcmp.ge.f32.partialorder %v329, 0.0
  %vm338 = vcmp.ge.f32.partialorder %v330, 0.0
  %vm339 = vcmp.ge.f32.partialorder %v331, 0.0
  %vm340 = vcmp.ge.f32.partialorder %v332, 0.0
  %vm341 = vcmp.ge.f32.partialorder %v333, 0.0
  %vm342 = vcmp.ge.f32.partialorder %v334, 0.0
  %vm343 = vcmp.ge.f32.partialorder %v335, 0.0
  %vm344 = vcmp.ge.f32.partialorder %v336, 0.0
  %v345 = vsel %vm337, 1.0, -1.0
  %v346 = vsel %vm338, 1.0, -1.0
  %v347 = vsel %vm339, 1.0, -1.0
  %v348 = vsel %vm340, 1.0, -1.0
  %v349 = vsel %vm341, 1.0, -1.0
  %v350 = vsel %vm342, 1.0, -1.0
  %v351 = vsel %vm343, 1.0, -1.0
  %v352 = vsel %vm344, 1.0, -1.0
  %v353 = vand.u32 2147483647, %v329
  %v354 = vand.u32 2147483647, %v330
  %v355 = vand.u32 2147483647, %v331
  %v356 = vand.u32 2147483647, %v332
  %v357 = vand.u32 2147483647, %v333
  %v358 = vand.u32 2147483647, %v334
  %v359 = vand.u32 2147483647, %v335
  %v360 = vand.u32 2147483647, %v336
  %v361 = vmul.f32 %v353, 0.3275911
  %v362 = vmul.f32 %v354, 0.3275911
  %v363 = vmul.f32 %v355, 0.3275911
  %v364 = vmul.f32 %v356, 0.3275911
  %v365 = vmul.f32 %v357, 0.3275911
  %v366 = vmul.f32 %v358, 0.3275911
  %v367 = vmul.f32 %v359, 0.3275911
  %v368 = vmul.f32 %v360, 0.3275911
  %v369 = vadd.f32 %v361, 1.0
  %v370 = vadd.f32 %v362, 1.0
  %v371 = vadd.f32 %v363, 1.0
  %v372 = vadd.f32 %v364, 1.0
  %v373 = vadd.f32 %v365, 1.0
  %v374 = vadd.f32 %v366, 1.0
  %v375 = vadd.f32 %v367, 1.0
  %v376 = vadd.f32 %v368, 1.0
  %v377 = vrcp.pop %v369
  %v378 = vmul.f32 %v369, %v377
  %v379 = vsub.f32 1.0, %v378
  %v380 = vmul.f32 %v377, %v379
  %v381 = vadd.f32 %v377, %v380
  %vm382 = vweird.f32 %v369
  %vm383 = vweird.f32 %v377
  %vm384 = vmor %vm382, %vm383
  %v385 = vsel %vm384, %v377, %v381
  %v386 = vand.u32 2147483647, %v369
  %vm387 = vcmp.eq.f32.partialorder %v386, 8.507059e+37
  %v388 = vand.u32 %v369, 2147483648
  %v389 = vor.u32 1.1754944e-38, %v388
  %v390 = vsel %vm387, %v389, %v385
  %v391 = vmul.f32 1.0, %v390
  %v392 = vrcp.pop %v370
  %v393 = vmul.f32 %v370, %v392
  %v394 = vsub.f32 1.0, %v393
  %v395 = vmul.f32 %v392, %v394
  %v396 = vadd.f32 %v392, %v395
  %vm397 = vweird.f32 %v370
  %vm398 = vweird.f32 %v392
  %vm399 = vmor %vm397, %vm398
  %v400 = vsel %vm399, %v392, %v396
  %v401 = vand.u32 2147483647, %v370
  %vm402 = vcmp.eq.f32.partialorder %v401, 8.507059e+37
  %v403 = vand.u32 %v370, 2147483648
  %v404 = vor.u32 1.1754944e-38, %v403
  %v405 = vsel %vm402, %v404, %v400
  %v406 = vmul.f32 1.0, %v405
  %v407 = vrcp.pop %v371
  %v408 = vmul.f32 %v371, %v407
  %v409 = vsub.f32 1.0, %v408
  %v410 = vmul.f32 %v407, %v409
  %v411 = vadd.f32 %v407, %v410
  %vm412 = vweird.f32 %v371
  %vm413 = vweird.f32 %v407
  %vm414 = vmor %vm412, %vm413
  %v415 = vsel %vm414, %v407, %v411
  %v416 = vand.u32 2147483647, %v371
  %vm417 = vcmp.eq.f32.partialorder %v416, 8.507059e+37
  %v418 = vand.u32 %v371, 2147483648
  %v419 = vor.u32 1.1754944e-38, %v418
  %v420 = vsel %vm417, %v419, %v415
  %v421 = vmul.f32 1.0, %v420
  %v422 = vrcp.pop %v372
  %v423 = vmul.f32 %v372, %v422
  %v424 = vsub.f32 1.0, %v423
  %v425 = vmul.f32 %v422, %v424
  %v426 = vadd.f32 %v422, %v425
  %vm427 = vweird.f32 %v372
  %vm428 = vweird.f32 %v422
  %vm429 = vmor %vm427, %vm428
  %v430 = vsel %vm429, %v422, %v426
  %v431 = vand.u32 2147483647, %v372
  %vm432 = vcmp.eq.f32.partialorder %v431, 8.507059e+37
  %v433 = vand.u32 %v372, 2147483648
  %v434 = vor.u32 1.1754944e-38, %v433
  %v435 = vsel %vm432, %v434, %v430
  %v436 = vmul.f32 1.0, %v435
  %v437 = vrcp.pop %v373
  %v438 = vmul.f32 %v373, %v437
  %v439 = vsub.f32 1.0, %v438
  %v440 = vmul.f32 %v437, %v439
  %v441 = vadd.f32 %v437, %v440
  %vm442 = vweird.f32 %v373
  %vm443 = vweird.f32 %v437
  %vm444 = vmor %vm442, %vm443
  %v445 = vsel %vm444, %v437, %v441
  %v446 = vand.u32 2147483647, %v373
  %vm447 = vcmp.eq.f32.partialorder %v446, 8.507059e+37
  %v448 = vand.u32 %v373, 2147483648
  %v449 = vor.u32 1.1754944e-38, %v448
  %v450 = vsel %vm447, %v449, %v445
  %v451 = vmul.f32 1.0, %v450
  %v452 = vrcp.pop %v374
  %v453 = vmul.f32 %v374, %v452
  %v454 = vsub.f32 1.0, %v453
  %v455 = vmul.f32 %v452, %v454
  %v456 = vadd.f32 %v452, %v455
  %vm457 = vweird.f32 %v374
  %vm458 = vweird.f32 %v452
  %vm459 = vmor %vm457, %vm458
  %v460 = vsel %vm459, %v452, %v456
  %v461 = vand.u32 2147483647, %v374
  %vm462 = vcmp.eq.f32.partialorder %v461, 8.507059e+37
  %v463 = vand.u32 %v374, 2147483648
  %v464 = vor.u32 1.1754944e-38, %v463
  %v465 = vsel %vm462, %v464, %v460
  %v466 = vmul.f32 1.0, %v465
  %v467 = vrcp.pop %v375
  %v468 = vmul.f32 %v375, %v467
  %v469 = vsub.f32 1.0, %v468
  %v470 = vmul.f32 %v467, %v469
  %v471 = vadd.f32 %v467, %v470
  %vm472 = vweird.f32 %v375
  %vm473 = vweird.f32 %v467
  %vm474 = vmor %vm472, %vm473
  %v475 = vsel %vm474, %v467, %v471
  %v476 = vand.u32 2147483647, %v375
  %vm477 = vcmp.eq.f32.partialorder %v476, 8.507059e+37
  %v478 = vand.u32 %v375, 2147483648
  %v479 = vor.u32 1.1754944e-38, %v478
  %v480 = vsel %vm477, %v479, %v475
  %v481 = vmul.f32 1.0, %v480
  %v482 = vrcp.pop %v376
  %v483 = vmul.f32 %v376, %v482
  %v484 = vsub.f32 1.0, %v483
  %v485 = vmul.f32 %v482, %v484
  %v486 = vadd.f32 %v482, %v485
  %vm487 = vweird.f32 %v376
  %vm488 = vweird.f32 %v482
  %vm489 = vmor %vm487, %vm488
  %v490 = vsel %vm489, %v482, %v486
  %v491 = vand.u32 2147483647, %v376
  %vm492 = vcmp.eq.f32.partialorder %v491, 8.507059e+37
  %v493 = vand.u32 %v376, 2147483648
  %v494 = vor.u32 1.1754944e-38, %v493
  %v495 = vsel %vm492, %v494, %v490
  %v496 = vmul.f32 1.0, %v495
  %v497 = vmul.f32 %v391, 1.0614054
  %v498 = vmul.f32 %v406, 1.0614054
  %v499 = vmul.f32 %v421, 1.0614054
  %v500 = vmul.f32 %v436, 1.0614054
  %v501 = vmul.f32 %v451, 1.0614054
  %v502 = vmul.f32 %v466, 1.0614054
  %v503 = vmul.f32 %v481, 1.0614054
  %v504 = vmul.f32 %v496, 1.0614054
  %v505 = vadd.f32 %v497, -1.4531521
  %v506 = vadd.f32 %v498, -1.4531521
  %v507 = vadd.f32 %v499, -1.4531521
  %v508 = vadd.f32 %v500, -1.4531521
  %v509 = vadd.f32 %v501, -1.4531521
  %v510 = vadd.f32 %v502, -1.4531521
  %v511 = vadd.f32 %v503, -1.4531521
  %v512 = vadd.f32 %v504, -1.4531521
  %v513 = vmul.f32 %v505, %v391
  %v514 = vmul.f32 %v506, %v406
  %v515 = vmul.f32 %v507, %v421
  %v516 = vmul.f32 %v508, %v436
  %v517 = vmul.f32 %v509, %v451
  %v518 = vmul.f32 %v510, %v466
  %v519 = vmul.f32 %v511, %v481
  %v520 = vmul.f32 %v512, %v496
  %v521 = vadd.f32 %v513, 1.4214138
  %v522 = vadd.f32 %v514, 1.4214138
  %v523 = vadd.f32 %v515, 1.4214138
  %v524 = vadd.f32 %v516, 1.4214138
  %v525 = vadd.f32 %v517, 1.4214138
  %v526 = vadd.f32 %v518, 1.4214138
  %v527 = vadd.f32 %v519, 1.4214138
  %v528 = vadd.f32 %v520, 1.4214138
  %v529 = vmul.f32 %v521, %v391
  %v530 = vmul.f32 %v522, %v406
  %v531 = vmul.f32 %v523, %v421
  %v532 = vmul.f32 %v524, %v436
  %v533 = vmul.f32 %v525, %v451
  %v534 = vmul.f32 %v526, %v466
  %v535 = vmul.f32 %v527, %v481
  %v536 = vmul.f32 %v528, %v496
  %v537 = vadd.f32 %v529, -0.28449672
  %v538 = vadd.f32 %v530, -0.28449672
  %v539 = vadd.f32 %v531, -0.28449672
  %v540 = vadd.f32 %v532, -0.28449672
  %v541 = vadd.f32 %v533, -0.28449672
  %v542 = vadd.f32 %v534, -0.28449672
  %v543 = vadd.f32 %v535, -0.28449672
  %v544 = vadd.f32 %v536, -0.28449672
  %v545 = vmul.f32 %v537, %v391
  %v546 = vmul.f32 %v538, %v406
  %v547 = vmul.f32 %v539, %v421
  %v548 = vmul.f32 %v540, %v436
  %v549 = vmul.f32 %v541, %v451
  %v550 = vmul.f32 %v542, %v466
  %v551 = vmul.f32 %v543, %v481
  %v552 = vmul.f32 %v544, %v496
  %v553 = vadd.f32 %v545, 0.2548296
  %v554 = vadd.f32 %v546, 0.2548296
  %v555 = vadd.f32 %v547, 0.2548296
  %v556 = vadd.f32 %v548, 0.2548296
  %v557 = vadd.f32 %v549, 0.2548296
  %v558 = vadd.f32 %v550, 0.2548296
  %v559 = vadd.f32 %v551, 0.2548296
  %v560 = vadd.f32 %v552, 0.2548296
  %v561 = vmul.f32 %v553, %v391
  %v562 = vmul.f32 %v554, %v406
  %v563 = vmul.f32 %v555, %v421
  %v564 = vmul.f32 %v556, %v436
  %v565 = vmul.f32 %v557, %v451
  %v566 = vmul.f32 %v558, %v466
  %v567 = vmul.f32 %v559, %v481
  %v568 = vmul.f32 %v560, %v496
  %v569 = vsub.f32 0.0, %v353
  %v570 = vsub.f32 0.0, %v354
  %v571 = vsub.f32 0.0, %v355
  %v572 = vsub.f32 0.0, %v356
  %v573 = vsub.f32 0.0, %v357
  %v574 = vsub.f32 0.0, %v358
  %v575 = vsub.f32 0.0, %v359
  %v576 = vsub.f32 0.0, %v360
  %v577 = vmul.f32 %v569, %v353
  %v578 = vmul.f32 %v570, %v354
  %v579 = vmul.f32 %v571, %v355
  %v580 = vmul.f32 %v572, %v356
  %v581 = vmul.f32 %v573, %v357
  %v582 = vmul.f32 %v574, %v358
  %v583 = vmul.f32 %v575, %v359
  %v584 = vmul.f32 %v576, %v360
  %v585 = vmul.f32 %v577, 1.442695
  %v586 = vpow.pop %v585
  %v587 = vmul.f32 %v578, 1.442695
  %v588 = vpow.pop %v587
  %v589 = vmul.f32 %v579, 1.442695
  %v590 = vpow.pop %v589
  %v591 = vmul.f32 %v580, 1.442695
  %v592 = vpow.pop %v591
  %v593 = vmul.f32 %v581, 1.442695
  %v594 = vpow.pop %v593
  %v595 = vmul.f32 %v582, 1.442695
  %v596 = vpow.pop %v595
  %v597 = vmul.f32 %v583, 1.442695
  %v598 = vpow.pop %v597
  %v599 = vmul.f32 %v584, 1.442695
  %v600 = vpow.pop %v599
  %v601 = vmul.f32 %v561, %v586
  %v602 = vmul.f32 %v562, %v588
  %v603 = vmul.f32 %v563, %v590
  %v604 = vmul.f32 %v564, %v592
  %v605 = vmul.f32 %v565, %v594
  %v606 = vmul.f32 %v566, %v596
  %v607 = vmul.f32 %v567, %v598
  %v608 = vmul.f32 %v568, %v600
  %v609 = vsub.f32 1.0, %v601
  %v610 = vsub.f32 1.0, %v602
  %v611 = vsub.f32 1.0, %v603
  %v612 = vsub.f32 1.0, %v604
  %v613 = vsub.f32 1.0, %v605
  %v614 = vsub.f32 1.0, %v606
  %v615 = vsub.f32 1.0, %v607
  %v616 = vsub.f32 1.0, %v608
  %v617 = vmul.f32 %v345, %v609
  %v618 = vmul.f32 %v346, %v610
  %v619 = vmul.f32 %v347, %v611
  %v620 = vmul.f32 %v348, %v612
  %v621 = vmul.f32 %v349, %v613
  %v622 = vmul.f32 %v350, %v614
  %v623 = vmul.f32 %v351, %v615
  %v624 = vmul.f32 %v352, %v616
  %v625 = vadd.f32 %v617, 1.0
  %v626 = vadd.f32 %v618, 1.0
  %v627 = vadd.f32 %v619, 1.0
  %v628 = vadd.f32 %v620, 1.0
  %v629 = vadd.f32 %v621, 1.0
  %v630 = vadd.f32 %v622, 1.0
  %v631 = vadd.f32 %v623, 1.0
  %v632 = vadd.f32 %v624, 1.0
  %v633 = vmul.f32 %v321, %v625
  %v634 = vmul.f32 %v322, %v626
  %v635 = vmul.f32 %v323, %v627
  %v636 = vmul.f32 %v324, %v628
  %v637 = vmul.f32 %v325, %v629
  %v638 = vmul.f32 %v326, %v630
  %v639 = vmul.f32 %v327, %v631
  %v640 = vmul.f32 %v328, %v632
  %641 = vst.msk [vmem:[#allocation3] sm:$0xff] %vm232, %v633
  %642 = vst.msk [vmem:[#allocation3 + $0x8] sm:$0xff] %vm232, %v634
  %643 = vst.msk [vmem:[#allocation3 + $0x10] sm:$0xff] %vm232, %v635
  %644 = vst.msk [vmem:[#allocation3 + $0x18] sm:$0xff] %vm232, %v636
  %645 = vst.msk [vmem:[#allocation3 + $0x20] sm:$0xff] %vm232, %v637
  %646 = vst.msk [vmem:[#allocation3 + $0x28] sm:$0xff] %vm232, %v638
  %647 = vst.msk [vmem:[#allocation3 + $0x30] sm:$0xff] %vm232, %v639
  %648 = vst.msk [vmem:[#allocation3 + $0x38] sm:$0xff] %vm232, %v640
  %v649 = vld [vmem:[%s6] sm:$0x1]
  %v651 = vperm.slane %v649, 0
  %v653 = vmul.f32 %v633, %v651
  %v654 = vmul.f32 %v634, %v651
  %v655 = vmul.f32 %v635, %v651
  %v656 = vmul.f32 %v636, %v651
  %v657 = vmul.f32 %v637, %v651
  %v658 = vmul.f32 %v638, %v651
  %v659 = vmul.f32 %v639, %v651
  %v660 = vmul.f32 %v640, %v651
  %v661 = vsel %vm232, %v653, 0.0
  %662 = vadd.xlane.f32.xlu0 %v661
  %v663 = vpop.xlane.xlu0 %662
  %v664 = vsel %vm232, %v654, 0.0
  %665 = vadd.xlane.f32.xlu0 %v664
  %v666 = vpop.xlane.xlu0 %665
  %v667 = vsel %vm232, %v655, 0.0
  %668 = vadd.xlane.f32.xlu0 %v667
  %v669 = vpop.xlane.xlu0 %668
  %v670 = vsel %vm232, %v656, 0.0
  %671 = vadd.xlane.f32.xlu0 %v670
  %v672 = vpop.xlane.xlu0 %671
  %v673 = vsel %vm232, %v657, 0.0
  %674 = vadd.xlane.f32.xlu0 %v673
  %v675 = vpop.xlane.xlu0 %674
  %v676 = vsel %vm232, %v658, 0.0
  %677 = vadd.xlane.f32.xlu0 %v676
  %v678 = vpop.xlane.xlu0 %677
  %v679 = vsel %vm232, %v659, 0.0
  %680 = vadd.xlane.f32.xlu0 %v679
  %v681 = vpop.xlane.xlu0 %680
  %v682 = vsel %vm232, %v660, 0.0
  %683 = vadd.xlane.f32.xlu0 %v682
  %v684 = vpop.xlane.xlu0 %683
  %v685 = vld [vmem:[#allocation5] sm:$0x1]
  %v687 = vperm.slane %v685, 0
  %v689 = vadd.f32 %v663, %v687
  %v690 = vadd.f32 %v666, %v687
  %v691 = vadd.f32 %v669, %v687
  %v692 = vadd.f32 %v672, %v687
  %v693 = vadd.f32 %v675, %v687
  %v694 = vadd.f32 %v678, %v687
  %v695 = vadd.f32 %v681, %v687
  %v696 = vadd.f32 %v684, %v687
  %v697 = vsub.f32 0.0, %v689
  %v698 = vsub.f32 0.0, %v690
  %v699 = vsub.f32 0.0, %v691
  %v700 = vsub.f32 0.0, %v692
  %v701 = vsub.f32 0.0, %v693
  %v702 = vsub.f32 0.0, %v694
  %v703 = vsub.f32 0.0, %v695
  %v704 = vsub.f32 0.0, %v696
  %v705 = vmul.f32 %v697, 1.442695
  %v706 = vpow.pop %v705
  %v707 = vmul.f32 %v698, 1.442695
  %v708 = vpow.pop %v707
  %v709 = vmul.f32 %v699, 1.442695
  %v710 = vpow.pop %v709
  %v711 = vmul.f32 %v700, 1.442695
  %v712 = vpow.pop %v711
  %v713 = vmul.f32 %v701, 1.442695
  %v714 = vpow.pop %v713
  %v715 = vmul.f32 %v702, 1.442695
  %v716 = vpow.pop %v715
  %v717 = vmul.f32 %v703, 1.442695
  %v718 = vpow.pop %v717
  %v719 = vmul.f32 %v704, 1.442695
  %v720 = vpow.pop %v719
  %v721 = vadd.f32 %v706, 1.0
  %v722 = vadd.f32 %v708, 1.0
  %v723 = vadd.f32 %v710, 1.0
  %v724 = vadd.f32 %v712, 1.0
  %v725 = vadd.f32 %v714, 1.0
  %v726 = vadd.f32 %v716, 1.0
  %v727 = vadd.f32 %v718, 1.0
  %v728 = vadd.f32 %v720, 1.0
  %v729 = vrcp.pop %v721
  %v730 = vmul.f32 %v721, %v729
  %v731 = vsub.f32 1.0, %v730
  %v732 = vmul.f32 %v729, %v731
  %v733 = vadd.f32 %v729, %v732
  %vm734 = vweird.f32 %v721
  %vm735 = vweird.f32 %v729
  %vm736 = vmor %vm734, %vm735
  %v737 = vsel %vm736, %v729, %v733
  %v738 = vand.u32 2147483647, %v721
  %vm739 = vcmp.eq.f32.partialorder %v738, 8.507059e+37
  %v740 = vand.u32 %v721, 2147483648
  %v741 = vor.u32 1.1754944e-38, %v740
  %v742 = vsel %vm739, %v741, %v737
  %v743 = vmul.f32 1.0, %v742
  %v744 = vrcp.pop %v722
  %v745 = vmul.f32 %v722, %v744
  %v746 = vsub.f32 1.0, %v745
  %v747 = vmul.f32 %v744, %v746
  %v748 = vadd.f32 %v744, %v747
  %vm749 = vweird.f32 %v722
  %vm750 = vweird.f32 %v744
  %vm751 = vmor %vm749, %vm750
  %v752 = vsel %vm751, %v744, %v748
  %v753 = vand.u32 2147483647, %v722
  %vm754 = vcmp.eq.f32.partialorder %v753, 8.507059e+37
  %v755 = vand.u32 %v722, 2147483648
  %v756 = vor.u32 1.1754944e-38, %v755
  %v757 = vsel %vm754, %v756, %v752
  %v758 = vmul.f32 1.0, %v757
  %v759 = vrcp.pop %v723
  %v760 = vmul.f32 %v723, %v759
  %v761 = vsub.f32 1.0, %v760
  %v762 = vmul.f32 %v759, %v761
  %v763 = vadd.f32 %v759, %v762
  %vm764 = vweird.f32 %v723
  %vm765 = vweird.f32 %v759
  %vm766 = vmor %vm764, %vm765
  %v767 = vsel %vm766, %v759, %v763
  %v768 = vand.u32 2147483647, %v723
  %vm769 = vcmp.eq.f32.partialorder %v768, 8.507059e+37
  %v770 = vand.u32 %v723, 2147483648
  %v771 = vor.u32 1.1754944e-38, %v770
  %v772 = vsel %vm769, %v771, %v767
  %v773 = vmul.f32 1.0, %v772
  %v774 = vrcp.pop %v724
  %v775 = vmul.f32 %v724, %v774
  %v776 = vsub.f32 1.0, %v775
  %v777 = vmul.f32 %v774, %v776
  %v778 = vadd.f32 %v774, %v777
  %vm779 = vweird.f32 %v724
  %vm780 = vweird.f32 %v774
  %vm781 = vmor %vm779, %vm780
  %v782 = vsel %vm781, %v774, %v778
  %v783 = vand.u32 2147483647, %v724
  %vm784 = vcmp.eq.f32.partialorder %v783, 8.507059e+37
  %v785 = vand.u32 %v724, 2147483648
  %v786 = vor.u32 1.1754944e-38, %v785
  %v787 = vsel %vm784, %v786, %v782
  %v788 = vmul.f32 1.0, %v787
  %v789 = vrcp.pop %v725
  %v790 = vmul.f32 %v725, %v789
  %v791 = vsub.f32 1.0, %v790
  %v792 = vmul.f32 %v789, %v791
  %v793 = vadd.f32 %v789, %v792
  %vm794 = vweird.f32 %v725
  %vm795 = vweird.f32 %v789
  %vm796 = vmor %vm794, %vm795
  %v797 = vsel %vm796, %v789, %v793
  %v798 = vand.u32 2147483647, %v725
  %vm799 = vcmp.eq.f32.partialorder %v798, 8.507059e+37
  %v800 = vand.u32 %v725, 2147483648
  %v801 = vor.u32 1.1754944e-38, %v800
  %v802 = vsel %vm799, %v801, %v797
  %v803 = vmul.f32 1.0, %v802
  %v804 = vrcp.pop %v726
  %v805 = vmul.f32 %v726, %v804
  %v806 = vsub.f32 1.0, %v805
  %v807 = vmul.f32 %v804, %v806
  %v808 = vadd.f32 %v804, %v807
  %vm809 = vweird.f32 %v726
  %vm810 = vweird.f32 %v804
  %vm811 = vmor %vm809, %vm810
  %v812 = vsel %vm811, %v804, %v808
  %v813 = vand.u32 2147483647, %v726
  %vm814 = vcmp.eq.f32.partialorder %v813, 8.507059e+37
  %v815 = vand.u32 %v726, 2147483648
  %v816 = vor.u32 1.1754944e-38, %v815
  %v817 = vsel %vm814, %v816, %v812
  %v818 = vmul.f32 1.0, %v817
  %v819 = vrcp.pop %v727
  %v820 = vmul.f32 %v727, %v819
  %v821 = vsub.f32 1.0, %v820
  %v822 = vmul.f32 %v819, %v821
  %v823 = vadd.f32 %v819, %v822
  %vm824 = vweird.f32 %v727
  %vm825 = vweird.f32 %v819
  %vm826 = vmor %vm824, %vm825
  %v827 = vsel %vm826, %v819, %v823
  %v828 = vand.u32 2147483647, %v727
  %vm829 = vcmp.eq.f32.partialorder %v828, 8.507059e+37
  %v830 = vand.u32 %v727, 2147483648
  %v831 = vor.u32 1.1754944e-38, %v830
  %v832 = vsel %vm829, %v831, %v827
  %v833 = vmul.f32 1.0, %v832
  %v834 = vrcp.pop %v728
  %v835 = vmul.f32 %v728, %v834
  %v836 = vsub.f32 1.0, %v835
  %v837 = vmul.f32 %v834, %v836
  %v838 = vadd.f32 %v834, %v837
  %vm839 = vweird.f32 %v728
  %vm840 = vweird.f32 %v834
  %vm841 = vmor %vm839, %vm840
  %v842 = vsel %vm841, %v834, %v838
  %v843 = vand.u32 2147483647, %v728
  %vm844 = vcmp.eq.f32.partialorder %v843, 8.507059e+37
  %v845 = vand.u32 %v728, 2147483648
  %v846 = vor.u32 1.1754944e-38, %v845
  %v847 = vsel %vm844, %v846, %v842
  %v848 = vmul.f32 1.0, %v847
  %vm849 = vcmask 7168
  %850 = vst.msk [vmem:[#allocation4] sm:$0xff] %vm849, %v743
  %851 = vst.msk [vmem:[#allocation4 + $0x8] sm:$0xff] %vm849, %v758
  %852 = vst.msk [vmem:[#allocation4 + $0x10] sm:$0xff] %vm849, %v773
  %853 = vst.msk [vmem:[#allocation4 + $0x18] sm:$0xff] %vm849, %v788
  %854 = vst.msk [vmem:[#allocation4 + $0x20] sm:$0xff] %vm849, %v803
  %855 = vst.msk [vmem:[#allocation4 + $0x28] sm:$0xff] %vm849, %v818
  %856 = vst.msk [vmem:[#allocation4 + $0x30] sm:$0xff] %vm849, %v833
  %857 = vst.msk [vmem:[#allocation4 + $0x38] sm:$0xff] %vm849, %v848
  %v858 = vld [vmem:[%s9] sm:$0xff]
  %v859 = vld [vmem:[%s9 + $0x8] sm:$0xff]
  %v860 = vld [vmem:[%s9 + $0x10] sm:$0xff]
  %v861 = vld [vmem:[%s9 + $0x18] sm:$0xff]
  %v862 = vld [vmem:[%s8] sm:$0xff]
  %v863 = vld [vmem:[%s8 + $0x8] sm:$0xff]
  %v864 = vld [vmem:[%s8 + $0x10] sm:$0xff]
  %v865 = vld [vmem:[%s8 + $0x18] sm:$0xff]
  %v866 = vld [vmem:[#allocation2] sm:$0xff]
  %v867 = vld [vmem:[%s3] sm:$0x1]
  %v869 = vperm.slane %v867, 0
  %v871 = vadd.f32 %v866, %v869
  %v872 = vsel %vm232, %v871, -inf
  %873 = vmax.xlane.f32.xlu0 %v872
  %v874 = vpop.xlane.xlu0 %873
  %v875 = vsub.f32 %v871, %v874
  %v876 = vmul.f32 %v875, 1.442695
  %v877 = vpow.pop %v876
  %v878 = vsel %vm232, %v877, 0.0
  %879 = vadd.xlane.f32.xlu0 %v878
  %v880 = vpop.xlane.xlu0 %879
  %v881 = vlog2.pop %v880
  %v882 = vmul.f32 %v881, 0.6931472
  %v883 = vadd.f32 %v882, %v874
  %884 = vst.msk [vmem:[%s10] sm:$0xff] %vm849, %v883
  %s885 = scalar_lea.vmem [#allocation2], 8
  %v886 = vld [vmem:[%s885] sm:$0xff]
  %s887 = scalar_lea.vmem [#allocation3], 8
  %v888 = vld [vmem:[%s887] sm:$0xff]
  %s889 = scalar_lea.vmem [#allocation4], 8
  %v890 = vld [vmem:[%s889] sm:$0xff]
  %v892 = vsel %vm232, %v877, 0
  %894 = vmatpush.msra.mxu0 0.0
  %895 = vmatpush.msra.mxu0 0.0
  %896 = vmatpush.msra.mxu0 0.0
  %897 = vmatpush.msra.mxu0 0.0
  %898 = vmatpush.msra.mxu0 0.0
  %899 = vmatpush.msra.mxu0 0.0
  %900 = vmatpush.msra.mxu0 0.0
  %901 = vmatpush.msra.mxu0 0.0
  %902 = vmatpush.msra.mxu0 0.0
  %903 = vmatpush.msra.mxu0 0.0
  %904 = vmatpush.msra.mxu0 0.0
  %905 = vmatpush.msra.mxu0 0.0
  %906 = vmatpush.msra.mxu0 %v861
  %907 = vmatpush.msra.mxu0 %v860
  %908 = vmatpush.msra.mxu0 %v859
  %909 = vmatpush.msra.mxu0 %v858
  %910 = vmatmul.f32.gmra.mxu0 %v892
  %v911 = vpop.f32.mrf.mxu0
  %v912 = vadd.f32 0.0, %v911
  %913 = vdwg.mxu0
  %v914 = vsel %vm232, %v888, -inf
  %915 = vmax.xlane.f32.xlu0 %v914
  %v916 = vpop.xlane.xlu0 %915
  %v918 = vperm.slane %v916, 0
  %v919 = vperm.slane %v916, 1
  %v920 = vperm.slane %v916, 2
  %v921 = vperm.slane %v916, 3
  %v922 = vperm.slane %v916, 4
  %v923 = vperm.slane %v916, 5
  %v924 = vperm.slane %v916, 6
  %v925 = vperm.slane %v916, 7
  %v934 = vsel %vm232, %v888, inf
  %935 = vmin.xlane.f32.xlu0 %v934
  %v936 = vpop.xlane.xlu0 %935
  %v938 = vperm.slane %v936, 0
  %v939 = vperm.slane %v936, 1
  %v940 = vperm.slane %v936, 2
  %v941 = vperm.slane %v936, 3
  %v942 = vperm.slane %v936, 4
  %v943 = vperm.slane %v936, 5
  %v944 = vperm.slane %v936, 6
  %v945 = vperm.slane %v936, 7
  %v954 = vmul.f32 %v918, %v862
  %v955 = vmul.f32 %v918, %v863
  %v956 = vmul.f32 %v918, %v864
  %v957 = vmul.f32 %v918, %v865
  %v958 = vmul.f32 %v919, %v862
  %v959 = vmul.f32 %v919, %v863
  %v960 = vmul.f32 %v919, %v864
  %v961 = vmul.f32 %v919, %v865
  %v962 = vmul.f32 %v920, %v862
  %v963 = vmul.f32 %v920, %v863
  %v964 = vmul.f32 %v920, %v864
  %v965 = vmul.f32 %v920, %v865
  %v966 = vmul.f32 %v921, %v862
  %v967 = vmul.f32 %v921, %v863
  %v968 = vmul.f32 %v921, %v864
  %v969 = vmul.f32 %v921, %v865
  %v970 = vmul.f32 %v922, %v862
  %v971 = vmul.f32 %v922, %v863
  %v972 = vmul.f32 %v922, %v864
  %v973 = vmul.f32 %v922, %v865
  %v974 = vmul.f32 %v923, %v862
  %v975 = vmul.f32 %v923, %v863
  %v976 = vmul.f32 %v923, %v864
  %v977 = vmul.f32 %v923, %v865
  %v978 = vmul.f32 %v924, %v862
  %v979 = vmul.f32 %v924, %v863
  %v980 = vmul.f32 %v924, %v864
  %v981 = vmul.f32 %v924, %v865
  %v982 = vmul.f32 %v925, %v862
  %v983 = vmul.f32 %v925, %v863
  %v984 = vmul.f32 %v925, %v864
  %v985 = vmul.f32 %v925, %v865
  %v986 = vmul.f32 %v938, %v862
  %v987 = vmul.f32 %v938, %v863
  %v988 = vmul.f32 %v938, %v864
  %v989 = vmul.f32 %v938, %v865
  %v990 = vmul.f32 %v939, %v862
  %v991 = vmul.f32 %v939, %v863
  %v992 = vmul.f32 %v939, %v864
  %v993 = vmul.f32 %v939, %v865
  %v994 = vmul.f32 %v940, %v862
  %v995 = vmul.f32 %v940, %v863
  %v996 = vmul.f32 %v940, %v864
  %v997 = vmul.f32 %v940, %v865
  %v998 = vmul.f32 %v941, %v862
  %v999 = vmul.f32 %v941, %v863
  %v1000 = vmul.f32 %v941, %v864
  %v1001 = vmul.f32 %v941, %v865
  %v1002 = vmul.f32 %v942, %v862
  %v1003 = vmul.f32 %v942, %v863
  %v1004 = vmul.f32 %v942, %v864
  %v1005 = vmul.f32 %v942, %v865
  %v1006 = vmul.f32 %v943, %v862
  %v1007 = vmul.f32 %v943, %v863
  %v1008 = vmul.f32 %v943, %v864
  %v1009 = vmul.f32 %v943, %v865
  %v1010 = vmul.f32 %v944, %v862
  %v1011 = vmul.f32 %v944, %v863
  %v1012 = vmul.f32 %v944, %v864
  %v1013 = vmul.f32 %v944, %v865
  %v1014 = vmul.f32 %v945, %v862
  %v1015 = vmul.f32 %v945, %v863
  %v1016 = vmul.f32 %v945, %v864
  %v1017 = vmul.f32 %v945, %v865
  %v1018 = vmax.f32 %v954, %v986
  %v1019 = vmax.f32 %v955, %v987
  %v1020 = vmax.f32 %v956, %v988
  %v1021 = vmax.f32 %v957, %v989
  %v1022 = vmax.f32 %v958, %v990
  %v1023 = vmax.f32 %v959, %v991
  %v1024 = vmax.f32 %v960, %v992
  %v1025 = vmax.f32 %v961, %v993
  %v1026 = vmax.f32 %v962, %v994
  %v1027 = vmax.f32 %v963, %v995
  %v1028 = vmax.f32 %v964, %v996
  %v1029 = vmax.f32 %v965, %v997
  %v1030 = vmax.f32 %v966, %v998
  %v1031 = vmax.f32 %v967, %v999
  %v1032 = vmax.f32 %v968, %v1000
  %v1033 = vmax.f32 %v969, %v1001
  %v1034 = vmax.f32 %v970, %v1002
  %v1035 = vmax.f32 %v971, %v1003
  %v1036 = vmax.f32 %v972, %v1004
  %v1037 = vmax.f32 %v973, %v1005
  %v1038 = vmax.f32 %v974, %v1006
  %v1039 = vmax.f32 %v975, %v1007
  %v1040 = vmax.f32 %v976, %v1008
  %v1041 = vmax.f32 %v977, %v1009
  %v1042 = vmax.f32 %v978, %v1010
  %v1043 = vmax.f32 %v979, %v1011
  %v1044 = vmax.f32 %v980, %v1012
  %v1045 = vmax.f32 %v981, %v1013
  %v1046 = vmax.f32 %v982, %v1014
  %v1047 = vmax.f32 %v983, %v1015
  %v1048 = vmax.f32 %v984, %v1016
  %v1049 = vmax.f32 %v985, %v1017
  %v1051 = vrot.slane %v888, 1
  %v1052 = vrot.slane %v888, 2
  %v1053 = vrot.slane %v888, 3
  %v1054 = vrot.slane %v888, 4
  %v1055 = vrot.slane %v888, 5
  %v1056 = vrot.slane %v888, 6
  %v1057 = vrot.slane %v888, 7
  %1059 = vset.pattern.permute.xlu0 0
  %1060 = vperm.xlu0 %1059, %v862
  %v1061 = vpop.permute.xlu0 %1060
  %1064 = vset.pattern.permute.xlu0 0
  %1065 = vperm.xlu0 %1064, %v863
  %v1066 = vpop.permute.xlu0 %1065
  %1069 = vset.pattern.permute.xlu0 0
  %1070 = vperm.xlu0 %1069, %v864
  %v1071 = vpop.permute.xlu0 %1070
  %1074 = vset.pattern.permute.xlu0 0
  %1075 = vperm.xlu0 %1074, %v865
  %v1076 = vpop.permute.xlu0 %1075
  %v1078 = vperm.slane %v888, 0
  %v1079 = vperm.slane %v1051, 0
  %v1080 = vperm.slane %v1052, 0
  %v1081 = vperm.slane %v1053, 0
  %v1082 = vperm.slane %v1054, 0
  %v1083 = vperm.slane %v1055, 0
  %v1084 = vperm.slane %v1056, 0
  %v1085 = vperm.slane %v1057, 0
  %v1094 = vmul.f32 %v1061, %v1078
  %v1095 = vmul.f32 %v1066, %v1078
  %v1096 = vmul.f32 %v1071, %v1078
  %v1097 = vmul.f32 %v1076, %v1078
  %v1098 = vmul.f32 %v1061, %v1079
  %v1099 = vmul.f32 %v1066, %v1079
  %v1100 = vmul.f32 %v1071, %v1079
  %v1101 = vmul.f32 %v1076, %v1079
  %v1102 = vmul.f32 %v1061, %v1080
  %v1103 = vmul.f32 %v1066, %v1080
  %v1104 = vmul.f32 %v1071, %v1080
  %v1105 = vmul.f32 %v1076, %v1080
  %v1106 = vmul.f32 %v1061, %v1081
  %v1107 = vmul.f32 %v1066, %v1081
  %v1108 = vmul.f32 %v1071, %v1081
  %v1109 = vmul.f32 %v1076, %v1081
  %v1110 = vmul.f32 %v1061, %v1082
  %v1111 = vmul.f32 %v1066, %v1082
  %v1112 = vmul.f32 %v1071, %v1082
  %v1113 = vmul.f32 %v1076, %v1082
  %v1114 = vmul.f32 %v1061, %v1083
  %v1115 = vmul.f32 %v1066, %v1083
  %v1116 = vmul.f32 %v1071, %v1083
  %v1117 = vmul.f32 %v1076, %v1083
  %v1118 = vmul.f32 %v1061, %v1084
  %v1119 = vmul.f32 %v1066, %v1084
  %v1120 = vmul.f32 %v1071, %v1084
  %v1121 = vmul.f32 %v1076, %v1084
  %v1122 = vmul.f32 %v1061, %v1085
  %v1123 = vmul.f32 %v1066, %v1085
  %v1124 = vmul.f32 %v1071, %v1085
  %v1125 = vmul.f32 %v1076, %v1085
  %1127 = vset.pattern.permute.xlu0 0
  %1128 = vperm.xlu0 %1127, %v1018
  %v1129 = vpop.permute.xlu0 %1128
  %1132 = vset.pattern.permute.xlu0 0
  %1133 = vperm.xlu0 %1132, %v1019
  %v1134 = vpop.permute.xlu0 %1133
  %1137 = vset.pattern.permute.xlu0 0
  %1138 = vperm.xlu0 %1137, %v1020
  %v1139 = vpop.permute.xlu0 %1138
  %1142 = vset.pattern.permute.xlu0 0
  %1143 = vperm.xlu0 %1142, %v1021
  %v1144 = vpop.permute.xlu0 %1143
  %1147 = vset.pattern.permute.xlu0 0
  %1148 = vperm.xlu0 %1147, %v1022
  %v1149 = vpop.permute.xlu0 %1148
  %1152 = vset.pattern.permute.xlu0 0
  %1153 = vperm.xlu0 %1152, %v1023
  %v1154 = vpop.permute.xlu0 %1153
  %1157 = vset.pattern.permute.xlu0 0
  %1158 = vperm.xlu0 %1157, %v1024
  %v1159 = vpop.permute.xlu0 %1158
  %1162 = vset.pattern.permute.xlu0 0
  %1163 = vperm.xlu0 %1162, %v1025
  %v1164 = vpop.permute.xlu0 %1163
  %1167 = vset.pattern.permute.xlu0 0
  %1168 = vperm.xlu0 %1167, %v1026
  %v1169 = vpop.permute.xlu0 %1168
  %1172 = vset.pattern.permute.xlu0 0
  %1173 = vperm.xlu0 %1172, %v1027
  %v1174 = vpop.permute.xlu0 %1173
  %1177 = vset.pattern.permute.xlu0 0
  %1178 = vperm.xlu0 %1177, %v1028
  %v1179 = vpop.permute.xlu0 %1178
  %1182 = vset.pattern.permute.xlu0 0
  %1183 = vperm.xlu0 %1182, %v1029
  %v1184 = vpop.permute.xlu0 %1183
  %1187 = vset.pattern.permute.xlu0 0
  %1188 = vperm.xlu0 %1187, %v1030
  %v1189 = vpop.permute.xlu0 %1188
  %1192 = vset.pattern.permute.xlu0 0
  %1193 = vperm.xlu0 %1192, %v1031
  %v1194 = vpop.permute.xlu0 %1193
  %1197 = vset.pattern.permute.xlu0 0
  %1198 = vperm.xlu0 %1197, %v1032
  %v1199 = vpop.permute.xlu0 %1198
  %1202 = vset.pattern.permute.xlu0 0
  %1203 = vperm.xlu0 %1202, %v1033
  %v1204 = vpop.permute.xlu0 %1203
  %1207 = vset.pattern.permute.xlu0 0
  %1208 = vperm.xlu0 %1207, %v1034
  %v1209 = vpop.permute.xlu0 %1208
  %1212 = vset.pattern.permute.xlu0 0
  %1213 = vperm.xlu0 %1212, %v1035
  %v1214 = vpop.permute.xlu0 %1213
  %1217 = vset.pattern.permute.xlu0 0
  %1218 = vperm.xlu0 %1217, %v1036
  %v1219 = vpop.permute.xlu0 %1218
  %1222 = vset.pattern.permute.xlu0 0
  %1223 = vperm.xlu0 %1222, %v1037
  %v1224 = vpop.permute.xlu0 %1223
  %1227 = vset.pattern.permute.xlu0 0
  %1228 = vperm.xlu0 %1227, %v1038
  %v1229 = vpop.permute.xlu0 %1228
  %1232 = vset.pattern.permute.xlu0 0
  %1233 = vperm.xlu0 %1232, %v1039
  %v1234 = vpop.permute.xlu0 %1233
  %1237 = vset.pattern.permute.xlu0 0
  %1238 = vperm.xlu0 %1237, %v1040
  %v1239 = vpop.permute.xlu0 %1238
  %1242 = vset.pattern.permute.xlu0 0
  %1243 = vperm.xlu0 %1242, %v1041
  %v1244 = vpop.permute.xlu0 %1243
  %1247 = vset.pattern.permute.xlu0 0
  %1248 = vperm.xlu0 %1247, %v1042
  %v1249 = vpop.permute.xlu0 %1248
  %1252 = vset.pattern.permute.xlu0 0
  %1253 = vperm.xlu0 %1252, %v1043
  %v1254 = vpop.permute.xlu0 %1253
  %1257 = vset.pattern.permute.xlu0 0
  %1258 = vperm.xlu0 %1257, %v1044
  %v1259 = vpop.permute.xlu0 %1258
  %1262 = vset.pattern.permute.xlu0 0
  %1263 = vperm.xlu0 %1262, %v1045
  %v1264 = vpop.permute.xlu0 %1263
  %1267 = vset.pattern.permute.xlu0 0
  %1268 = vperm.xlu0 %1267, %v1046
  %v1269 = vpop.permute.xlu0 %1268
  %1272 = vset.pattern.permute.xlu0 0
  %1273 = vperm.xlu0 %1272, %v1047
  %v1274 = vpop.permute.xlu0 %1273
  %1277 = vset.pattern.permute.xlu0 0
  %1278 = vperm.xlu0 %1277, %v1048
  %v1279 = vpop.permute.xlu0 %1278
  %1282 = vset.pattern.permute.xlu0 0
  %1283 = vperm.xlu0 %1282, %v1049
  %v1284 = vpop.permute.xlu0 %1283
  %v1286 = vsub.f32 %v1094, %v1129
  %v1287 = vsub.f32 %v1095, %v1134
  %v1288 = vsub.f32 %v1096, %v1139
  %v1289 = vsub.f32 %v1097, %v1144
  %v1290 = vsub.f32 %v1098, %v1149
  %v1291 = vsub.f32 %v1099, %v1154
  %v1292 = vsub.f32 %v1100, %v1159
  %v1293 = vsub.f32 %v1101, %v1164
  %v1294 = vsub.f32 %v1102, %v1169
  %v1295 = vsub.f32 %v1103, %v1174
  %v1296 = vsub.f32 %v1104, %v1179
  %v1297 = vsub.f32 %v1105, %v1184
  %v1298 = vsub.f32 %v1106, %v1189
  %v1299 = vsub.f32 %v1107, %v1194
  %v1300 = vsub.f32 %v1108, %v1199
  %v1301 = vsub.f32 %v1109, %v1204
  %v1302 = vsub.f32 %v1110, %v1209
  %v1303 = vsub.f32 %v1111, %v1214
  %v1304 = vsub.f32 %v1112, %v1219
  %v1305 = vsub.f32 %v1113, %v1224
  %v1306 = vsub.f32 %v1114, %v1229
  %v1307 = vsub.f32 %v1115, %v1234
  %v1308 = vsub.f32 %v1116, %v1239
  %v1309 = vsub.f32 %v1117, %v1244
  %v1310 = vsub.f32 %v1118, %v1249
  %v1311 = vsub.f32 %v1119, %v1254
  %v1312 = vsub.f32 %v1120, %v1259
  %v1313 = vsub.f32 %v1121, %v1264
  %v1314 = vsub.f32 %v1122, %v1269
  %v1315 = vsub.f32 %v1123, %v1274
  %v1316 = vsub.f32 %v1124, %v1279
  %v1317 = vsub.f32 %v1125, %v1284
  %v1318 = vmul.f32 %v1286, 1.442695
  %v1319 = vpow.pop %v1318
  %v1320 = vmul.f32 %v1287, 1.442695
  %v1321 = vpow.pop %v1320
  %v1322 = vmul.f32 %v1288, 1.442695
  %v1323 = vpow.pop %v1322
  %v1324 = vmul.f32 %v1289, 1.442695
  %v1325 = vpow.pop %v1324
  %v1326 = vmul.f32 %v1290, 1.442695
  %v1327 = vpow.pop %v1326
  %v1328 = vmul.f32 %v1291, 1.442695
  %v1329 = vpow.pop %v1328
  %v1330 = vmul.f32 %v1292, 1.442695
  %v1331 = vpow.pop %v1330
  %v1332 = vmul.f32 %v1293, 1.442695
  %v1333 = vpow.pop %v1332
  %v1334 = vmul.f32 %v1294, 1.442695
  %v1335 = vpow.pop %v1334
  %v1336 = vmul.f32 %v1295, 1.442695
  %v1337 = vpow.pop %v1336
  %v1338 = vmul.f32 %v1296, 1.442695
  %v1339 = vpow.pop %v1338
  %v1340 = vmul.f32 %v1297, 1.442695
  %v1341 = vpow.pop %v1340
  %v1342 = vmul.f32 %v1298, 1.442695
  %v1343 = vpow.pop %v1342
  %v1344 = vmul.f32 %v1299, 1.442695
  %v1345 = vpow.pop %v1344
  %v1346 = vmul.f32 %v1300, 1.442695
  %v1347 = vpow.pop %v1346
  %v1348 = vmul.f32 %v1301, 1.442695
  %v1349 = vpow.pop %v1348
  %v1350 = vmul.f32 %v1302, 1.442695
  %v1351 = vpow.pop %v1350
  %v1352 = vmul.f32 %v1303, 1.442695
  %v1353 = vpow.pop %v1352
  %v1354 = vmul.f32 %v1304, 1.442695
  %v1355 = vpow.pop %v1354
  %v1356 = vmul.f32 %v1305, 1.442695
  %v1357 = vpow.pop %v1356
  %v1358 = vmul.f32 %v1306, 1.442695
  %v1359 = vpow.pop %v1358
  %v1360 = vmul.f32 %v1307, 1.442695
  %v1361 = vpow.pop %v1360
  %v1362 = vmul.f32 %v1308, 1.442695
  %v1363 = vpow.pop %v1362
  %v1364 = vmul.f32 %v1309, 1.442695
  %v1365 = vpow.pop %v1364
  %v1366 = vmul.f32 %v1310, 1.442695
  %v1367 = vpow.pop %v1366
  %v1368 = vmul.f32 %v1311, 1.442695
  %v1369 = vpow.pop %v1368
  %v1370 = vmul.f32 %v1312, 1.442695
  %v1371 = vpow.pop %v1370
  %v1372 = vmul.f32 %v1313, 1.442695
  %v1373 = vpow.pop %v1372
  %v1374 = vmul.f32 %v1314, 1.442695
  %v1375 = vpow.pop %v1374
  %v1376 = vmul.f32 %v1315, 1.442695
  %v1377 = vpow.pop %v1376
  %v1378 = vmul.f32 %v1316, 1.442695
  %v1379 = vpow.pop %v1378
  %v1380 = vmul.f32 %v1317, 1.442695
  %v1381 = vpow.pop %v1380
  %v1382 = vsel %vm232, %v1319, 0.0
  %1383 = vadd.xlane.f32.xlu0 %v1382
  %v1384 = vpop.xlane.xlu0 %1383
  %v1385 = vsel %vm232, %v1321, 0.0
  %1386 = vadd.xlane.f32.xlu0 %v1385
  %v1387 = vpop.xlane.xlu0 %1386
  %v1388 = vsel %vm232, %v1323, 0.0
  %1389 = vadd.xlane.f32.xlu0 %v1388
  %v1390 = vpop.xlane.xlu0 %1389
  %v1391 = vsel %vm232, %v1325, 0.0
  %1392 = vadd.xlane.f32.xlu0 %v1391
  %v1393 = vpop.xlane.xlu0 %1392
  %v1394 = vsel %vm232, %v1327, 0.0
  %1395 = vadd.xlane.f32.xlu0 %v1394
  %v1396 = vpop.xlane.xlu0 %1395
  %v1397 = vsel %vm232, %v1329, 0.0
  %1398 = vadd.xlane.f32.xlu0 %v1397
  %v1399 = vpop.xlane.xlu0 %1398
  %v1400 = vsel %vm232, %v1331, 0.0
  %1401 = vadd.xlane.f32.xlu0 %v1400
  %v1402 = vpop.xlane.xlu0 %1401
  %v1403 = vsel %vm232, %v1333, 0.0
  %1404 = vadd.xlane.f32.xlu0 %v1403
  %v1405 = vpop.xlane.xlu0 %1404
  %v1406 = vsel %vm232, %v1335, 0.0
  %1407 = vadd.xlane.f32.xlu0 %v1406
  %v1408 = vpop.xlane.xlu0 %1407
  %v1409 = vsel %vm232, %v1337, 0.0
  %1410 = vadd.xlane.f32.xlu0 %v1409
  %v1411 = vpop.xlane.xlu0 %1410
  %v1412 = vsel %vm232, %v1339, 0.0
  %1413 = vadd.xlane.f32.xlu0 %v1412
  %v1414 = vpop.xlane.xlu0 %1413
  %v1415 = vsel %vm232, %v1341, 0.0
  %1416 = vadd.xlane.f32.xlu0 %v1415
  %v1417 = vpop.xlane.xlu0 %1416
  %v1418 = vsel %vm232, %v1343, 0.0
  %1419 = vadd.xlane.f32.xlu0 %v1418
  %v1420 = vpop.xlane.xlu0 %1419
  %v1421 = vsel %vm232, %v1345, 0.0
  %1422 = vadd.xlane.f32.xlu0 %v1421
  %v1423 = vpop.xlane.xlu0 %1422
  %v1424 = vsel %vm232, %v1347, 0.0
  %1425 = vadd.xlane.f32.xlu0 %v1424
  %v1426 = vpop.xlane.xlu0 %1425
  %v1427 = vsel %vm232, %v1349, 0.0
  %1428 = vadd.xlane.f32.xlu0 %v1427
  %v1429 = vpop.xlane.xlu0 %1428
  %v1430 = vsel %vm232, %v1351, 0.0
  %1431 = vadd.xlane.f32.xlu0 %v1430
  %v1432 = vpop.xlane.xlu0 %1431
  %v1433 = vsel %vm232, %v1353, 0.0
  %1434 = vadd.xlane.f32.xlu0 %v1433
  %v1435 = vpop.xlane.xlu0 %1434
  %v1436 = vsel %vm232, %v1355, 0.0
  %1437 = vadd.xlane.f32.xlu0 %v1436
  %v1438 = vpop.xlane.xlu0 %1437
  %v1439 = vsel %vm232, %v1357, 0.0
  %1440 = vadd.xlane.f32.xlu0 %v1439
  %v1441 = vpop.xlane.xlu0 %1440
  %v1442 = vsel %vm232, %v1359, 0.0
  %1443 = vadd.xlane.f32.xlu0 %v1442
  %v1444 = vpop.xlane.xlu0 %1443
  %v1445 = vsel %vm232, %v1361, 0.0
  %1446 = vadd.xlane.f32.xlu0 %v1445
  %v1447 = vpop.xlane.xlu0 %1446
  %v1448 = vsel %vm232, %v1363, 0.0
  %1449 = vadd.xlane.f32.xlu0 %v1448
  %v1450 = vpop.xlane.xlu0 %1449
  %v1451 = vsel %vm232, %v1365, 0.0
  %1452 = vadd.xlane.f32.xlu0 %v1451
  %v1453 = vpop.xlane.xlu0 %1452
  %v1454 = vsel %vm232, %v1367, 0.0
  %1455 = vadd.xlane.f32.xlu0 %v1454
  %v1456 = vpop.xlane.xlu0 %1455
  %v1457 = vsel %vm232, %v1369, 0.0
  %1458 = vadd.xlane.f32.xlu0 %v1457
  %v1459 = vpop.xlane.xlu0 %1458
  %v1460 = vsel %vm232, %v1371, 0.0
  %1461 = vadd.xlane.f32.xlu0 %v1460
  %v1462 = vpop.xlane.xlu0 %1461
  %v1463 = vsel %vm232, %v1373, 0.0
  %1464 = vadd.xlane.f32.xlu0 %v1463
  %v1465 = vpop.xlane.xlu0 %1464
  %v1466 = vsel %vm232, %v1375, 0.0
  %1467 = vadd.xlane.f32.xlu0 %v1466
  %v1468 = vpop.xlane.xlu0 %1467
  %v1469 = vsel %vm232, %v1377, 0.0
  %1470 = vadd.xlane.f32.xlu0 %v1469
  %v1471 = vpop.xlane.xlu0 %1470
  %v1472 = vsel %vm232, %v1379, 0.0
  %1473 = vadd.xlane.f32.xlu0 %v1472
  %v1474 = vpop.xlane.xlu0 %1473
  %v1475 = vsel %vm232, %v1381, 0.0
  %1476 = vadd.xlane.f32.xlu0 %v1475
  %v1477 = vpop.xlane.xlu0 %1476
  %v1478 = vperm.slane %v877, 0
  %v1479 = vlaneseq
  %v1480 = vshrl.u32 %v1479, 7
  %1482 = vset.pattern.permute.xlu0 %v1480
  %1483 = vperm.xlu0 %1482, %v1478
  %v1484 = vpop.permute.xlu0 %1483
  %v1485 = vlaneseq
  %v1486 = vshrl.u32 %v1485, 7
  %v1487 = vadd.s32 %v1486, 8
  %1488 = vset.pattern.permute.xlu0 %v1487
  %1489 = vperm.xlu0 %1488, %v1478
  %v1490 = vpop.permute.xlu0 %1489
  %v1491 = vlaneseq
  %v1492 = vshrl.u32 %v1491, 7
  %v1493 = vadd.s32 %v1492, 16
  %1494 = vset.pattern.permute.xlu0 %v1493
  %1495 = vperm.xlu0 %1494, %v1478
  %v1496 = vpop.permute.xlu0 %1495
  %v1497 = vlaneseq
  %v1498 = vshrl.u32 %v1497, 7
  %v1499 = vadd.s32 %v1498, 24
  %1500 = vset.pattern.permute.xlu0 %v1499
  %1501 = vperm.xlu0 %1500, %v1478
  %v1502 = vpop.permute.xlu0 %1501
  %v1503 = vperm.slane %v877, 1
  %v1504 = vlaneseq
  %v1505 = vshrl.u32 %v1504, 7
  %1507 = vset.pattern.permute.xlu0 %v1505
  %1508 = vperm.xlu0 %1507, %v1503
  %v1509 = vpop.permute.xlu0 %1508
  %v1510 = vlaneseq
  %v1511 = vshrl.u32 %v1510, 7
  %v1512 = vadd.s32 %v1511, 8
  %1513 = vset.pattern.permute.xlu0 %v1512
  %1514 = vperm.xlu0 %1513, %v1503
  %v1515 = vpop.permute.xlu0 %1514
  %v1516 = vlaneseq
  %v1517 = vshrl.u32 %v1516, 7
  %v1518 = vadd.s32 %v1517, 16
  %1519 = vset.pattern.permute.xlu0 %v1518
  %1520 = vperm.xlu0 %1519, %v1503
  %v1521 = vpop.permute.xlu0 %1520
  %v1522 = vlaneseq
  %v1523 = vshrl.u32 %v1522, 7
  %v1524 = vadd.s32 %v1523, 24
  %1525 = vset.pattern.permute.xlu0 %v1524
  %1526 = vperm.xlu0 %1525, %v1503
  %v1527 = vpop.permute.xlu0 %1526
  %v1528 = vperm.slane %v877, 2
  %v1529 = vlaneseq
  %v1530 = vshrl.u32 %v1529, 7
  %1532 = vset.pattern.permute.xlu0 %v1530
  %1533 = vperm.xlu0 %1532, %v1528
  %v1534 = vpop.permute.xlu0 %1533
  %v1535 = vlaneseq
  %v1536 = vshrl.u32 %v1535, 7
  %v1537 = vadd.s32 %v1536, 8
  %1538 = vset.pattern.permute.xlu0 %v1537
  %1539 = vperm.xlu0 %1538, %v1528
  %v1540 = vpop.permute.xlu0 %1539
  %v1541 = vlaneseq
  %v1542 = vshrl.u32 %v1541, 7
  %v1543 = vadd.s32 %v1542, 16
  %1544 = vset.pattern.permute.xlu0 %v1543
  %1545 = vperm.xlu0 %1544, %v1528
  %v1546 = vpop.permute.xlu0 %1545
  %v1547 = vlaneseq
  %v1548 = vshrl.u32 %v1547, 7
  %v1549 = vadd.s32 %v1548, 24
  %1550 = vset.pattern.permute.xlu0 %v1549
  %1551 = vperm.xlu0 %1550, %v1528
  %v1552 = vpop.permute.xlu0 %1551
  %v1553 = vperm.slane %v877, 3
  %v1554 = vlaneseq
  %v1555 = vshrl.u32 %v1554, 7
  %1557 = vset.pattern.permute.xlu0 %v1555
  %1558 = vperm.xlu0 %1557, %v1553
  %v1559 = vpop.permute.xlu0 %1558
  %v1560 = vlaneseq
  %v1561 = vshrl.u32 %v1560, 7
  %v1562 = vadd.s32 %v1561, 8
  %1563 = vset.pattern.permute.xlu0 %v1562
  %1564 = vperm.xlu0 %1563, %v1553
  %v1565 = vpop.permute.xlu0 %1564
  %v1566 = vlaneseq
  %v1567 = vshrl.u32 %v1566, 7
  %v1568 = vadd.s32 %v1567, 16
  %1569 = vset.pattern.permute.xlu0 %v1568
  %1570 = vperm.xlu0 %1569, %v1553
  %v1571 = vpop.permute.xlu0 %1570
  %v1572 = vlaneseq
  %v1573 = vshrl.u32 %v1572, 7
  %v1574 = vadd.s32 %v1573, 24
  %1575 = vset.pattern.permute.xlu0 %v1574
  %1576 = vperm.xlu0 %1575, %v1553
  %v1577 = vpop.permute.xlu0 %1576
  %v1578 = vperm.slane %v877, 4
  %v1579 = vlaneseq
  %v1580 = vshrl.u32 %v1579, 7
  %1582 = vset.pattern.permute.xlu0 %v1580
  %1583 = vperm.xlu0 %1582, %v1578
  %v1584 = vpop.permute.xlu0 %1583
  %v1585 = vlaneseq
  %v1586 = vshrl.u32 %v1585, 7
  %v1587 = vadd.s32 %v1586, 8
  %1588 = vset.pattern.permute.xlu0 %v1587
  %1589 = vperm.xlu0 %1588, %v1578
  %v1590 = vpop.permute.xlu0 %1589
  %v1591 = vlaneseq
  %v1592 = vshrl.u32 %v1591, 7
  %v1593 = vadd.s32 %v1592, 16
  %1594 = vset.pattern.permute.xlu0 %v1593
  %1595 = vperm.xlu0 %1594, %v1578
  %v1596 = vpop.permute.xlu0 %1595
  %v1597 = vlaneseq
  %v1598 = vshrl.u32 %v1597, 7
  %v1599 = vadd.s32 %v1598, 24
  %1600 = vset.pattern.permute.xlu0 %v1599
  %1601 = vperm.xlu0 %1600, %v1578
  %v1602 = vpop.permute.xlu0 %1601
  %v1603 = vperm.slane %v877, 5
  %v1604 = vlaneseq
  %v1605 = vshrl.u32 %v1604, 7
  %1607 = vset.pattern.permute.xlu0 %v1605
  %1608 = vperm.xlu0 %1607, %v1603
  %v1609 = vpop.permute.xlu0 %1608
  %v1610 = vlaneseq
  %v1611 = vshrl.u32 %v1610, 7
  %v1612 = vadd.s32 %v1611, 8
  %1613 = vset.pattern.permute.xlu0 %v1612
  %1614 = vperm.xlu0 %1613, %v1603
  %v1615 = vpop.permute.xlu0 %1614
  %v1616 = vlaneseq
  %v1617 = vshrl.u32 %v1616, 7
  %v1618 = vadd.s32 %v1617, 16
  %1619 = vset.pattern.permute.xlu0 %v1618
  %1620 = vperm.xlu0 %1619, %v1603
  %v1621 = vpop.permute.xlu0 %1620
  %v1622 = vlaneseq
  %v1623 = vshrl.u32 %v1622, 7
  %v1624 = vadd.s32 %v1623, 24
  %1625 = vset.pattern.permute.xlu0 %v1624
  %1626 = vperm.xlu0 %1625, %v1603
  %v1627 = vpop.permute.xlu0 %1626
  %v1628 = vperm.slane %v877, 6
  %v1629 = vlaneseq
  %v1630 = vshrl.u32 %v1629, 7
  %1632 = vset.pattern.permute.xlu0 %v1630
  %1633 = vperm.xlu0 %1632, %v1628
  %v1634 = vpop.permute.xlu0 %1633
  %v1635 = vlaneseq
  %v1636 = vshrl.u32 %v1635, 7
  %v1637 = vadd.s32 %v1636, 8
  %1638 = vset.pattern.permute.xlu0 %v1637
  %1639 = vperm.xlu0 %1638, %v1628
  %v1640 = vpop.permute.xlu0 %1639
  %v1641 = vlaneseq
  %v1642 = vshrl.u32 %v1641, 7
  %v1643 = vadd.s32 %v1642, 16
  %1644 = vset.pattern.permute.xlu0 %v1643
  %1645 = vperm.xlu0 %1644, %v1628
  %v1646 = vpop.permute.xlu0 %1645
  %v1647 = vlaneseq
  %v1648 = vshrl.u32 %v1647, 7
  %v1649 = vadd.s32 %v1648, 24
  %1650 = vset.pattern.permute.xlu0 %v1649
  %1651 = vperm.xlu0 %1650, %v1628
  %v1652 = vpop.permute.xlu0 %1651
  %v1653 = vperm.slane %v877, 7
  %v1654 = vlaneseq
  %v1655 = vshrl.u32 %v1654, 7
  %1657 = vset.pattern.permute.xlu0 %v1655
  %1658 = vperm.xlu0 %1657, %v1653
  %v1659 = vpop.permute.xlu0 %1658
  %v1660 = vlaneseq
  %v1661 = vshrl.u32 %v1660, 7
  %v1662 = vadd.s32 %v1661, 8
  %1663 = vset.pattern.permute.xlu0 %v1662
  %1664 = vperm.xlu0 %1663, %v1653
  %v1665 = vpop.permute.xlu0 %1664
  %v1666 = vlaneseq
  %v1667 = vshrl.u32 %v1666, 7
  %v1668 = vadd.s32 %v1667, 16
  %1669 = vset.pattern.permute.xlu0 %v1668
  %1670 = vperm.xlu0 %1669, %v1653
  %v1671 = vpop.permute.xlu0 %1670
  %v1672 = vlaneseq
  %v1673 = vshrl.u32 %v1672, 7
  %v1674 = vadd.s32 %v1673, 24
  %1675 = vset.pattern.permute.xlu0 %v1674
  %1676 = vperm.xlu0 %1675, %v1653
  %v1677 = vpop.permute.xlu0 %1676
  %v1678 = vrcp.pop %v1384
  %v1679 = vrcp.pop %v1387
  %v1680 = vrcp.pop %v1390
  %v1681 = vrcp.pop %v1393
  %v1682 = vrcp.pop %v1396
  %v1683 = vrcp.pop %v1399
  %v1684 = vrcp.pop %v1402
  %v1685 = vrcp.pop %v1405
  %v1686 = vrcp.pop %v1408
  %v1687 = vrcp.pop %v1411
  %v1688 = vrcp.pop %v1414
  %v1689 = vrcp.pop %v1417
  %v1690 = vrcp.pop %v1420
  %v1691 = vrcp.pop %v1423
  %v1692 = vrcp.pop %v1426
  %v1693 = vrcp.pop %v1429
  %v1694 = vrcp.pop %v1432
  %v1695 = vrcp.pop %v1435
  %v1696 = vrcp.pop %v1438
  %v1697 = vrcp.pop %v1441
  %v1698 = vrcp.pop %v1444
  %v1699 = vrcp.pop %v1447
  %v1700 = vrcp.pop %v1450
  %v1701 = vrcp.pop %v1453
  %v1702 = vrcp.pop %v1456
  %v1703 = vrcp.pop %v1459
  %v1704 = vrcp.pop %v1462
  %v1705 = vrcp.pop %v1465
  %v1706 = vrcp.pop %v1468
  %v1707 = vrcp.pop %v1471
  %v1708 = vrcp.pop %v1474
  %v1709 = vrcp.pop %v1477
  %v1710 = vmul.f32 %v1484, %v1678
  %v1711 = vmul.f32 %v1490, %v1679
  %v1712 = vmul.f32 %v1496, %v1680
  %v1713 = vmul.f32 %v1502, %v1681
  %v1714 = vmul.f32 %v1509, %v1682
  %v1715 = vmul.f32 %v1515, %v1683
  %v1716 = vmul.f32 %v1521, %v1684
  %v1717 = vmul.f32 %v1527, %v1685
  %v1718 = vmul.f32 %v1534, %v1686
  %v1719 = vmul.f32 %v1540, %v1687
  %v1720 = vmul.f32 %v1546, %v1688
  %v1721 = vmul.f32 %v1552, %v1689
  %v1722 = vmul.f32 %v1559, %v1690
  %v1723 = vmul.f32 %v1565, %v1691
  %v1724 = vmul.f32 %v1571, %v1692
  %v1725 = vmul.f32 %v1577, %v1693
  %v1726 = vmul.f32 %v1584, %v1694
  %v1727 = vmul.f32 %v1590, %v1695
  %v1728 = vmul.f32 %v1596, %v1696
  %v1729 = vmul.f32 %v1602, %v1697
  %v1730 = vmul.f32 %v1609, %v1698
  %v1731 = vmul.f32 %v1615, %v1699
  %v1732 = vmul.f32 %v1621, %v1700
  %v1733 = vmul.f32 %v1627, %v1701
  %v1734 = vmul.f32 %v1634, %v1702
  %v1735 = vmul.f32 %v1640, %v1703
  %v1736 = vmul.f32 %v1646, %v1704
  %v1737 = vmul.f32 %v1652, %v1705
  %v1738 = vmul.f32 %v1659, %v1706
  %v1739 = vmul.f32 %v1665, %v1707
  %v1740 = vmul.f32 %v1671, %v1708
  %v1741 = vmul.f32 %v1677, %v1709
  %v1742 = vmul.f32 %v1710, %v1319
  %v1743 = vmul.f32 %v1711, %v1321
  %v1744 = vmul.f32 %v1712, %v1323
  %v1745 = vmul.f32 %v1713, %v1325
  %v1746 = vmul.f32 %v1714, %v1327
  %v1747 = vmul.f32 %v1715, %v1329
  %v1748 = vmul.f32 %v1716, %v1331
  %v1749 = vmul.f32 %v1717, %v1333
  %v1750 = vmul.f32 %v1718, %v1335
  %v1751 = vmul.f32 %v1719, %v1337
  %v1752 = vmul.f32 %v1720, %v1339
  %v1753 = vmul.f32 %v1721, %v1341
  %v1754 = vmul.f32 %v1722, %v1343
  %v1755 = vmul.f32 %v1723, %v1345
  %v1756 = vmul.f32 %v1724, %v1347
  %v1757 = vmul.f32 %v1725, %v1349
  %v1758 = vmul.f32 %v1726, %v1351
  %v1759 = vmul.f32 %v1727, %v1353
  %v1760 = vmul.f32 %v1728, %v1355
  %v1761 = vmul.f32 %v1729, %v1357
  %v1762 = vmul.f32 %v1730, %v1359
  %v1763 = vmul.f32 %v1731, %v1361
  %v1764 = vmul.f32 %v1732, %v1363
  %v1765 = vmul.f32 %v1733, %v1365
  %v1766 = vmul.f32 %v1734, %v1367
  %v1767 = vmul.f32 %v1735, %v1369
  %v1768 = vmul.f32 %v1736, %v1371
  %v1769 = vmul.f32 %v1737, %v1373
  %v1770 = vmul.f32 %v1738, %v1375
  %v1771 = vmul.f32 %v1739, %v1377
  %v1772 = vmul.f32 %v1740, %v1379
  %v1773 = vmul.f32 %v1741, %v1381
  %v1774 = vsel %vm232, %v1742, 0.0
  %v1775 = vsel %vm232, %v1743, 0.0
  %v1776 = vadd.f32 %v1774, %v1775
  %v1777 = vsel %vm232, %v1744, 0.0
  %v1778 = vadd.f32 %v1776, %v1777
  %v1779 = vsel %vm232, %v1745, 0.0
  %v1780 = vadd.f32 %v1778, %v1779
  %v1781 = vrot.slane %v1780, 4
  %v1782 = vadd.f32 %v1780, %v1781
  %v1783 = vrot.slane %v1782, 2
  %v1784 = vadd.f32 %v1782, %v1783
  %v1785 = vrot.slane %v1784, 1
  %v1786 = vadd.f32 %v1784, %v1785
  %v1787 = vsel %vm232, %v1746, 0.0
  %v1788 = vsel %vm232, %v1747, 0.0
  %v1789 = vadd.f32 %v1787, %v1788
  %v1790 = vsel %vm232, %v1748, 0.0
  %v1791 = vadd.f32 %v1789, %v1790
  %v1792 = vsel %vm232, %v1749, 0.0
  %v1793 = vadd.f32 %v1791, %v1792
  %v1794 = vrot.slane %v1793, 4
  %v1795 = vadd.f32 %v1793, %v1794
  %v1796 = vrot.slane %v1795, 2
  %v1797 = vadd.f32 %v1795, %v1796
  %v1798 = vrot.slane %v1797, 1
  %v1799 = vadd.f32 %v1797, %v1798
  %v1800 = vsel %vm232, %v1750, 0.0
  %v1801 = vsel %vm232, %v1751, 0.0
  %v1802 = vadd.f32 %v1800, %v1801
  %v1803 = vsel %vm232, %v1752, 0.0
  %v1804 = vadd.f32 %v1802, %v1803
  %v1805 = vsel %vm232, %v1753, 0.0
  %v1806 = vadd.f32 %v1804, %v1805
  %v1807 = vrot.slane %v1806, 4
  %v1808 = vadd.f32 %v1806, %v1807
  %v1809 = vrot.slane %v1808, 2
  %v1810 = vadd.f32 %v1808, %v1809
  %v1811 = vrot.slane %v1810, 1
  %v1812 = vadd.f32 %v1810, %v1811
  %v1813 = vsel %vm232, %v1754, 0.0
  %v1814 = vsel %vm232, %v1755, 0.0
  %v1815 = vadd.f32 %v1813, %v1814
  %v1816 = vsel %vm232, %v1756, 0.0
  %v1817 = vadd.f32 %v1815, %v1816
  %v1818 = vsel %vm232, %v1757, 0.0
  %v1819 = vadd.f32 %v1817, %v1818
  %v1820 = vrot.slane %v1819, 4
  %v1821 = vadd.f32 %v1819, %v1820
  %v1822 = vrot.slane %v1821, 2
  %v1823 = vadd.f32 %v1821, %v1822
  %v1824 = vrot.slane %v1823, 1
  %v1825 = vadd.f32 %v1823, %v1824
  %v1826 = vsel %vm232, %v1758, 0.0
  %v1827 = vsel %vm232, %v1759, 0.0
  %v1828 = vadd.f32 %v1826, %v1827
  %v1829 = vsel %vm232, %v1760, 0.0
  %v1830 = vadd.f32 %v1828, %v1829
  %v1831 = vsel %vm232, %v1761, 0.0
  %v1832 = vadd.f32 %v1830, %v1831
  %v1833 = vrot.slane %v1832, 4
  %v1834 = vadd.f32 %v1832, %v1833
  %v1835 = vrot.slane %v1834, 2
  %v1836 = vadd.f32 %v1834, %v1835
  %v1837 = vrot.slane %v1836, 1
  %v1838 = vadd.f32 %v1836, %v1837
  %v1839 = vsel %vm232, %v1762, 0.0
  %v1840 = vsel %vm232, %v1763, 0.0
  %v1841 = vadd.f32 %v1839, %v1840
  %v1842 = vsel %vm232, %v1764, 0.0
  %v1843 = vadd.f32 %v1841, %v1842
  %v1844 = vsel %vm232, %v1765, 0.0
  %v1845 = vadd.f32 %v1843, %v1844
  %v1846 = vrot.slane %v1845, 4
  %v1847 = vadd.f32 %v1845, %v1846
  %v1848 = vrot.slane %v1847, 2
  %v1849 = vadd.f32 %v1847, %v1848
  %v1850 = vrot.slane %v1849, 1
  %v1851 = vadd.f32 %v1849, %v1850
  %v1852 = vsel %vm232, %v1766, 0.0
  %v1853 = vsel %vm232, %v1767, 0.0
  %v1854 = vadd.f32 %v1852, %v1853
  %v1855 = vsel %vm232, %v1768, 0.0
  %v1856 = vadd.f32 %v1854, %v1855
  %v1857 = vsel %vm232, %v1769, 0.0
  %v1858 = vadd.f32 %v1856, %v1857
  %v1859 = vrot.slane %v1858, 4
  %v1860 = vadd.f32 %v1858, %v1859
  %v1861 = vrot.slane %v1860, 2
  %v1862 = vadd.f32 %v1860, %v1861
  %v1863 = vrot.slane %v1862, 1
  %v1864 = vadd.f32 %v1862, %v1863
  %v1865 = vsel %vm232, %v1770, 0.0
  %v1866 = vsel %vm232, %v1771, 0.0
  %v1867 = vadd.f32 %v1865, %v1866
  %v1868 = vsel %vm232, %v1772, 0.0
  %v1869 = vadd.f32 %v1867, %v1868
  %v1870 = vsel %vm232, %v1773, 0.0
  %v1871 = vadd.f32 %v1869, %v1870
  %v1872 = vrot.slane %v1871, 4
  %v1873 = vadd.f32 %v1871, %v1872
  %v1874 = vrot.slane %v1873, 2
  %v1875 = vadd.f32 %v1873, %v1874
  %v1876 = vrot.slane %v1875, 1
  %v1877 = vadd.f32 %v1875, %v1876
  %1879 = vset.pattern.permute.xlu0 0
  %1880 = vperm.xlu0 %1879, %v890
  %v1881 = vpop.permute.xlu0 %1880
  %vm1891 = vcmask 1041409
  %v1892 = vsel %vm1891, %v1799, %v1786
  %vm1893 = vcmask 1042434
  %v1894 = vsel %vm1893, %v1812, %v1892
  %vm1895 = vcmask 1043459
  %v1896 = vsel %vm1895, %v1825, %v1894
  %vm1897 = vcmask 1044484
  %v1898 = vsel %vm1897, %v1838, %v1896
  %vm1899 = vcmask 1045509
  %v1900 = vsel %vm1899, %v1851, %v1898
  %vm1901 = vcmask 1046534
  %v1902 = vsel %vm1901, %v1864, %v1900
  %vm1903 = vcmask 1047559
  %v1904 = vsel %vm1903, %v1877, %v1902
  %v1906 = vmul.f32 %v1881, %v1904
  %v1907 = vsub.f32 1.0, %v890
  %1909 = vset.pattern.permute.xlu0 0
  %1910 = vperm.xlu0 %1909, %v1907
  %v1911 = vpop.permute.xlu0 %1910
  %v1913 = vmul.f32 %v1911, %v912
  %v1914 = vadd.f32 %v1906, %v1913
  %v1915 = vlog2.pop %v1914
  %v1916 = vmul.f32 %v1915, 0.6931472
  %v1917 = vadd.f32 %v886, %v1916
  %v1918 = vadd.f32 %v1917, %v874
  %v1919 = vsel %vm232, %v1918, -inf
  %1920 = vmax.xlane.f32.xlu0 %v1919
  %v1921 = vpop.xlane.xlu0 %1920
  %v1922 = vsub.f32 %v1918, %v1921
  %v1923 = vmul.f32 %v1922, 1.442695
  %v1924 = vpow.pop %v1923
  %v1925 = vsel %vm232, %v1924, 0.0
  %1926 = vadd.xlane.f32.xlu0 %v1925
  %v1927 = vpop.xlane.xlu0 %1926
  %v1928 = vlog2.pop %v1927
  %v1929 = vmul.f32 %v1928, 0.6931472
  %v1930 = vadd.f32 %v1929, %v1921
  %s1931 = scalar_lea.vmem %s10, 8
  %1932 = vst.msk [vmem:[%s1931] sm:$0xff] %vm849, %v1930
  %s1933 = scalar_lea.vmem [#allocation2], 16
  %v1934 = vld [vmem:[%s1933] sm:$0xff]
  %s1935 = scalar_lea.vmem [#allocation3], 16
  %v1936 = vld [vmem:[%s1935] sm:$0xff]
  %s1937 = scalar_lea.vmem [#allocation4], 16
  %v1938 = vld [vmem:[%s1937] sm:$0xff]
  %v1940 = vsel %vm232, %v1924, 0
  %1942 = vmatpush.msra.mxu0 0.0
  %1943 = vmatpush.msra.mxu0 0.0
  %1944 = vmatpush.msra.mxu0 0.0
  %1945 = vmatpush.msra.mxu0 0.0
  %1946 = vmatpush.msra.mxu0 0.0
  %1947 = vmatpush.msra.mxu0 0.0
  %1948 = vmatpush.msra.mxu0 0.0
  %1949 = vmatpush.msra.mxu0 0.0
  %1950 = vmatpush.msra.mxu0 0.0
  %1951 = vmatpush.msra.mxu0 0.0
  %1952 = vmatpush.msra.mxu0 0.0
  %1953 = vmatpush.msra.mxu0 0.0
  %1954 = vmatpush.msra.mxu0 %v861
  %1955 = vmatpush.msra.mxu0 %v860
  %1956 = vmatpush.msra.mxu0 %v859
  %1957 = vmatpush.msra.mxu0 %v858
  %1958 = vmatmul.f32.gmra.mxu0 %v1940
  %v1959 = vpop.f32.mrf.mxu0
  %v1960 = vadd.f32 0.0, %v1959
  %1961 = vdwg.mxu0
  %v1962 = vsel %vm232, %v1936, -inf
  %1963 = vmax.xlane.f32.xlu0 %v1962
  %v1964 = vpop.xlane.xlu0 %1963
  %v1966 = vperm.slane %v1964, 0
  %v1967 = vperm.slane %v1964, 1
  %v1968 = vperm.slane %v1964, 2
  %v1969 = vperm.slane %v1964, 3
  %v1970 = vperm.slane %v1964, 4
  %v1971 = vperm.slane %v1964, 5
  %v1972 = vperm.slane %v1964, 6
  %v1973 = vperm.slane %v1964, 7
  %v1982 = vsel %vm232, %v1936, inf
  %1983 = vmin.xlane.f32.xlu0 %v1982
  %v1984 = vpop.xlane.xlu0 %1983
  %v1986 = vperm.slane %v1984, 0
  %v1987 = vperm.slane %v1984, 1
  %v1988 = vperm.slane %v1984, 2
  %v1989 = vperm.slane %v1984, 3
  %v1990 = vperm.slane %v1984, 4
  %v1991 = vperm.slane %v1984, 5
  %v1992 = vperm.slane %v1984, 6
  %v1993 = vperm.slane %v1984, 7
  %v2002 = vmul.f32 %v1966, %v862
  %v2003 = vmul.f32 %v1966, %v863
  %v2004 = vmul.f32 %v1966, %v864
  %v2005 = vmul.f32 %v1966, %v865
  %v2006 = vmul.f32 %v1967, %v862
  %v2007 = vmul.f32 %v1967, %v863
  %v2008 = vmul.f32 %v1967, %v864
  %v2009 = vmul.f32 %v1967, %v865
  %v2010 = vmul.f32 %v1968, %v862
  %v2011 = vmul.f32 %v1968, %v863
  %v2012 = vmul.f32 %v1968, %v864
  %v2013 = vmul.f32 %v1968, %v865
  %v2014 = vmul.f32 %v1969, %v862
  %v2015 = vmul.f32 %v1969, %v863
  %v2016 = vmul.f32 %v1969, %v864
  %v2017 = vmul.f32 %v1969, %v865
  %v2018 = vmul.f32 %v1970, %v862
  %v2019 = vmul.f32 %v1970, %v863
  %v2020 = vmul.f32 %v1970, %v864
  %v2021 = vmul.f32 %v1970, %v865
  %v2022 = vmul.f32 %v1971, %v862
  %v2023 = vmul.f32 %v1971, %v863
  %v2024 = vmul.f32 %v1971, %v864
  %v2025 = vmul.f32 %v1971, %v865
  %v2026 = vmul.f32 %v1972, %v862
  %v2027 = vmul.f32 %v1972, %v863
  %v2028 = vmul.f32 %v1972, %v864
  %v2029 = vmul.f32 %v1972, %v865
  %v2030 = vmul.f32 %v1973, %v862
  %v2031 = vmul.f32 %v1973, %v863
  %v2032 = vmul.f32 %v1973, %v864
  %v2033 = vmul.f32 %v1973, %v865
  %v2034 = vmul.f32 %v1986, %v862
  %v2035 = vmul.f32 %v1986, %v863
  %v2036 = vmul.f32 %v1986, %v864
  %v2037 = vmul.f32 %v1986, %v865
  %v2038 = vmul.f32 %v1987, %v862
  %v2039 = vmul.f32 %v1987, %v863
  %v2040 = vmul.f32 %v1987, %v864
  %v2041 = vmul.f32 %v1987, %v865
  %v2042 = vmul.f32 %v1988, %v862
  %v2043 = vmul.f32 %v1988, %v863
  %v2044 = vmul.f32 %v1988, %v864
  %v2045 = vmul.f32 %v1988, %v865
  %v2046 = vmul.f32 %v1989, %v862
  %v2047 = vmul.f32 %v1989, %v863
  %v2048 = vmul.f32 %v1989, %v864
  %v2049 = vmul.f32 %v1989, %v865
  %v2050 = vmul.f32 %v1990, %v862
  %v2051 = vmul.f32 %v1990, %v863
  %v2052 = vmul.f32 %v1990, %v864
  %v2053 = vmul.f32 %v1990, %v865
  %v2054 = vmul.f32 %v1991, %v862
  %v2055 = vmul.f32 %v1991, %v863
  %v2056 = vmul.f32 %v1991, %v864
  %v2057 = vmul.f32 %v1991, %v865
  %v2058 = vmul.f32 %v1992, %v862
  %v2059 = vmul.f32 %v1992, %v863
  %v2060 = vmul.f32 %v1992, %v864
  %v2061 = vmul.f32 %v1992, %v865
  %v2062 = vmul.f32 %v1993, %v862
  %v2063 = vmul.f32 %v1993, %v863
  %v2064 = vmul.f32 %v1993, %v864
  %v2065 = vmul.f32 %v1993, %v865
  %v2066 = vmax.f32 %v2002, %v2034
  %v2067 = vmax.f32 %v2003, %v2035
  %v2068 = vmax.f32 %v2004, %v2036
  %v2069 = vmax.f32 %v2005, %v2037
  %v2070 = vmax.f32 %v2006, %v2038
  %v2071 = vmax.f32 %v2007, %v2039
  %v2072 = vmax.f32 %v2008, %v2040
  %v2073 = vmax.f32 %v2009, %v2041
  %v2074 = vmax.f32 %v2010, %v2042
  %v2075 = vmax.f32 %v2011, %v2043
  %v2076 = vmax.f32 %v2012, %v2044
  %v2077 = vmax.f32 %v2013, %v2045
  %v2078 = vmax.f32 %v2014, %v2046
  %v2079 = vmax.f32 %v2015, %v2047
  %v2080 = vmax.f32 %v2016, %v2048
  %v2081 = vmax.f32 %v2017, %v2049
  %v2082 = vmax.f32 %v2018, %v2050
  %v2083 = vmax.f32 %v2019, %v2051
  %v2084 = vmax.f32 %v2020, %v2052
  %v2085 = vmax.f32 %v2021, %v2053
  %v2086 = vmax.f32 %v2022, %v2054
  %v2087 = vmax.f32 %v2023, %v2055
  %v2088 = vmax.f32 %v2024, %v2056
  %v2089 = vmax.f32 %v2025, %v2057
  %v2090 = vmax.f32 %v2026, %v2058
  %v2091 = vmax.f32 %v2027, %v2059
  %v2092 = vmax.f32 %v2028, %v2060
  %v2093 = vmax.f32 %v2029, %v2061
  %v2094 = vmax.f32 %v2030, %v2062
  %v2095 = vmax.f32 %v2031, %v2063
  %v2096 = vmax.f32 %v2032, %v2064
  %v2097 = vmax.f32 %v2033, %v2065
  %v2099 = vrot.slane %v1936, 1
  %v2100 = vrot.slane %v1936, 2
  %v2101 = vrot.slane %v1936, 3
  %v2102 = vrot.slane %v1936, 4
  %v2103 = vrot.slane %v1936, 5
  %v2104 = vrot.slane %v1936, 6
  %v2105 = vrot.slane %v1936, 7
  %v2106 = vperm.slane %v1936, 0
  %v2107 = vperm.slane %v2099, 0
  %v2108 = vperm.slane %v2100, 0
  %v2109 = vperm.slane %v2101, 0
  %v2110 = vperm.slane %v2102, 0
  %v2111 = vperm.slane %v2103, 0
  %v2112 = vperm.slane %v2104, 0
  %v2113 = vperm.slane %v2105, 0
  %v2122 = vmul.f32 %v1061, %v2106
  %v2123 = vmul.f32 %v1066, %v2106
  %v2124 = vmul.f32 %v1071, %v2106
  %v2125 = vmul.f32 %v1076, %v2106
  %v2126 = vmul.f32 %v1061, %v2107
  %v2127 = vmul.f32 %v1066, %v2107
  %v2128 = vmul.f32 %v1071, %v2107
  %v2129 = vmul.f32 %v1076, %v2107
  %v2130 = vmul.f32 %v1061, %v2108
  %v2131 = vmul.f32 %v1066, %v2108
  %v2132 = vmul.f32 %v1071, %v2108
  %v2133 = vmul.f32 %v1076, %v2108
  %v2134 = vmul.f32 %v1061, %v2109
  %v2135 = vmul.f32 %v1066, %v2109
  %v2136 = vmul.f32 %v1071, %v2109
  %v2137 = vmul.f32 %v1076, %v2109
  %v2138 = vmul.f32 %v1061, %v2110
  %v2139 = vmul.f32 %v1066, %v2110
  %v2140 = vmul.f32 %v1071, %v2110
  %v2141 = vmul.f32 %v1076, %v2110
  %v2142 = vmul.f32 %v1061, %v2111
  %v2143 = vmul.f32 %v1066, %v2111
  %v2144 = vmul.f32 %v1071, %v2111
  %v2145 = vmul.f32 %v1076, %v2111
  %v2146 = vmul.f32 %v1061, %v2112
  %v2147 = vmul.f32 %v1066, %v2112
  %v2148 = vmul.f32 %v1071, %v2112
  %v2149 = vmul.f32 %v1076, %v2112
  %v2150 = vmul.f32 %v1061, %v2113
  %v2151 = vmul.f32 %v1066, %v2113
  %v2152 = vmul.f32 %v1071, %v2113
  %v2153 = vmul.f32 %v1076, %v2113
  %2155 = vset.pattern.permute.xlu0 0
  %2156 = vperm.xlu0 %2155, %v2066
  %v2157 = vpop.permute.xlu0 %2156
  %2160 = vset.pattern.permute.xlu0 0
  %2161 = vperm.xlu0 %2160, %v2067
  %v2162 = vpop.permute.xlu0 %2161
  %2165 = vset.pattern.permute.xlu0 0
  %2166 = vperm.xlu0 %2165, %v2068
  %v2167 = vpop.permute.xlu0 %2166
  %2170 = vset.pattern.permute.xlu0 0
  %2171 = vperm.xlu0 %2170, %v2069
  %v2172 = vpop.permute.xlu0 %2171
  %2175 = vset.pattern.permute.xlu0 0
  %2176 = vperm.xlu0 %2175, %v2070
  %v2177 = vpop.permute.xlu0 %2176
  %2180 = vset.pattern.permute.xlu0 0
  %2181 = vperm.xlu0 %2180, %v2071
  %v2182 = vpop.permute.xlu0 %2181
  %2185 = vset.pattern.permute.xlu0 0
  %2186 = vperm.xlu0 %2185, %v2072
  %v2187 = vpop.permute.xlu0 %2186
  %2190 = vset.pattern.permute.xlu0 0
  %2191 = vperm.xlu0 %2190, %v2073
  %v2192 = vpop.permute.xlu0 %2191
  %2195 = vset.pattern.permute.xlu0 0
  %2196 = vperm.xlu0 %2195, %v2074
  %v2197 = vpop.permute.xlu0 %2196
  %2200 = vset.pattern.permute.xlu0 0
  %2201 = vperm.xlu0 %2200, %v2075
  %v2202 = vpop.permute.xlu0 %2201
  %2205 = vset.pattern.permute.xlu0 0
  %2206 = vperm.xlu0 %2205, %v2076
  %v2207 = vpop.permute.xlu0 %2206
  %2210 = vset.pattern.permute.xlu0 0
  %2211 = vperm.xlu0 %2210, %v2077
  %v2212 = vpop.permute.xlu0 %2211
  %2215 = vset.pattern.permute.xlu0 0
  %2216 = vperm.xlu0 %2215, %v2078
  %v2217 = vpop.permute.xlu0 %2216
  %2220 = vset.pattern.permute.xlu0 0
  %2221 = vperm.xlu0 %2220, %v2079
  %v2222 = vpop.permute.xlu0 %2221
  %2225 = vset.pattern.permute.xlu0 0
  %2226 = vperm.xlu0 %2225, %v2080
  %v2227 = vpop.permute.xlu0 %2226
  %2230 = vset.pattern.permute.xlu0 0
  %2231 = vperm.xlu0 %2230, %v2081
  %v2232 = vpop.permute.xlu0 %2231
  %2235 = vset.pattern.permute.xlu0 0
  %2236 = vperm.xlu0 %2235, %v2082
  %v2237 = vpop.permute.xlu0 %2236
  %2240 = vset.pattern.permute.xlu0 0
  %2241 = vperm.xlu0 %2240, %v2083
  %v2242 = vpop.permute.xlu0 %2241
  %2245 = vset.pattern.permute.xlu0 0
  %2246 = vperm.xlu0 %2245, %v2084
  %v2247 = vpop.permute.xlu0 %2246
  %2250 = vset.pattern.permute.xlu0 0
  %2251 = vperm.xlu0 %2250, %v2085
  %v2252 = vpop.permute.xlu0 %2251
  %2255 = vset.pattern.permute.xlu0 0
  %2256 = vperm.xlu0 %2255, %v2086
  %v2257 = vpop.permute.xlu0 %2256
  %2260 = vset.pattern.permute.xlu0 0
  %2261 = vperm.xlu0 %2260, %v2087
  %v2262 = vpop.permute.xlu0 %2261
  %2265 = vset.pattern.permute.xlu0 0
  %2266 = vperm.xlu0 %2265, %v2088
  %v2267 = vpop.permute.xlu0 %2266
  %2270 = vset.pattern.permute.xlu0 0
  %2271 = vperm.xlu0 %2270, %v2089
  %v2272 = vpop.permute.xlu0 %2271
  %2275 = vset.pattern.permute.xlu0 0
  %2276 = vperm.xlu0 %2275, %v2090
  %v2277 = vpop.permute.xlu0 %2276
  %2280 = vset.pattern.permute.xlu0 0
  %2281 = vperm.xlu0 %2280, %v2091
  %v2282 = vpop.permute.xlu0 %2281
  %2285 = vset.pattern.permute.xlu0 0
  %2286 = vperm.xlu0 %2285, %v2092
  %v2287 = vpop.permute.xlu0 %2286
  %2290 = vset.pattern.permute.xlu0 0
  %2291 = vperm.xlu0 %2290, %v2093
  %v2292 = vpop.permute.xlu0 %2291
  %2295 = vset.pattern.permute.xlu0 0
  %2296 = vperm.xlu0 %2295, %v2094
  %v2297 = vpop.permute.xlu0 %2296
  %2300 = vset.pattern.permute.xlu0 0
  %2301 = vperm.xlu0 %2300, %v2095
  %v2302 = vpop.permute.xlu0 %2301
  %2305 = vset.pattern.permute.xlu0 0
  %2306 = vperm.xlu0 %2305, %v2096
  %v2307 = vpop.permute.xlu0 %2306
  %2310 = vset.pattern.permute.xlu0 0
  %2311 = vperm.xlu0 %2310, %v2097
  %v2312 = vpop.permute.xlu0 %2311
  %v2314 = vsub.f32 %v2122, %v2157
  %v2315 = vsub.f32 %v2123, %v2162
  %v2316 = vsub.f32 %v2124, %v2167
  %v2317 = vsub.f32 %v2125, %v2172
  %v2318 = vsub.f32 %v2126, %v2177
  %v2319 = vsub.f32 %v2127, %v2182
  %v2320 = vsub.f32 %v2128, %v2187
  %v2321 = vsub.f32 %v2129, %v2192
  %v2322 = vsub.f32 %v2130, %v2197
  %v2323 = vsub.f32 %v2131, %v2202
  %v2324 = vsub.f32 %v2132, %v2207
  %v2325 = vsub.f32 %v2133, %v2212
  %v2326 = vsub.f32 %v2134, %v2217
  %v2327 = vsub.f32 %v2135, %v2222
  %v2328 = vsub.f32 %v2136, %v2227
  %v2329 = vsub.f32 %v2137, %v2232
  %v2330 = vsub.f32 %v2138, %v2237
  %v2331 = vsub.f32 %v2139, %v2242
  %v2332 = vsub.f32 %v2140, %v2247
  %v2333 = vsub.f32 %v2141, %v2252
  %v2334 = vsub.f32 %v2142, %v2257
  %v2335 = vsub.f32 %v2143, %v2262
  %v2336 = vsub.f32 %v2144, %v2267
  %v2337 = vsub.f32 %v2145, %v2272
  %v2338 = vsub.f32 %v2146, %v2277
  %v2339 = vsub.f32 %v2147, %v2282
  %v2340 = vsub.f32 %v2148, %v2287
  %v2341 = vsub.f32 %v2149, %v2292
  %v2342 = vsub.f32 %v2150, %v2297
  %v2343 = vsub.f32 %v2151, %v2302
  %v2344 = vsub.f32 %v2152, %v2307
  %v2345 = vsub.f32 %v2153, %v2312
  %v2346 = vmul.f32 %v2314, 1.442695
  %v2347 = vpow.pop %v2346
  %v2348 = vmul.f32 %v2315, 1.442695
  %v2349 = vpow.pop %v2348
  %v2350 = vmul.f32 %v2316, 1.442695
  %v2351 = vpow.pop %v2350
  %v2352 = vmul.f32 %v2317, 1.442695
  %v2353 = vpow.pop %v2352
  %v2354 = vmul.f32 %v2318, 1.442695
  %v2355 = vpow.pop %v2354
  %v2356 = vmul.f32 %v2319, 1.442695
  %v2357 = vpow.pop %v2356
  %v2358 = vmul.f32 %v2320, 1.442695
  %v2359 = vpow.pop %v2358
  %v2360 = vmul.f32 %v2321, 1.442695
  %v2361 = vpow.pop %v2360
  %v2362 = vmul.f32 %v2322, 1.442695
  %v2363 = vpow.pop %v2362
  %v2364 = vmul.f32 %v2323, 1.442695
  %v2365 = vpow.pop %v2364
  %v2366 = vmul.f32 %v2324, 1.442695
  %v2367 = vpow.pop %v2366
  %v2368 = vmul.f32 %v2325, 1.442695
  %v2369 = vpow.pop %v2368
  %v2370 = vmul.f32 %v2326, 1.442695
  %v2371 = vpow.pop %v2370
  %v2372 = vmul.f32 %v2327, 1.442695
  %v2373 = vpow.pop %v2372
  %v2374 = vmul.f32 %v2328, 1.442695
  %v2375 = vpow.pop %v2374
  %v2376 = vmul.f32 %v2329, 1.442695
  %v2377 = vpow.pop %v2376
  %v2378 = vmul.f32 %v2330, 1.442695
  %v2379 = vpow.pop %v2378
  %v2380 = vmul.f32 %v2331, 1.442695
  %v2381 = vpow.pop %v2380
  %v2382 = vmul.f32 %v2332, 1.442695
  %v2383 = vpow.pop %v2382
  %v2384 = vmul.f32 %v2333, 1.442695
  %v2385 = vpow.pop %v2384
  %v2386 = vmul.f32 %v2334, 1.442695
  %v2387 = vpow.pop %v2386
  %v2388 = vmul.f32 %v2335, 1.442695
  %v2389 = vpow.pop %v2388
  %v2390 = vmul.f32 %v2336, 1.442695
  %v2391 = vpow.pop %v2390
  %v2392 = vmul.f32 %v2337, 1.442695
  %v2393 = vpow.pop %v2392
  %v2394 = vmul.f32 %v2338, 1.442695
  %v2395 = vpow.pop %v2394
  %v2396 = vmul.f32 %v2339, 1.442695
  %v2397 = vpow.pop %v2396
  %v2398 = vmul.f32 %v2340, 1.442695
  %v2399 = vpow.pop %v2398
  %v2400 = vmul.f32 %v2341, 1.442695
  %v2401 = vpow.pop %v2400
  %v2402 = vmul.f32 %v2342, 1.442695
  %v2403 = vpow.pop %v2402
  %v2404 = vmul.f32 %v2343, 1.442695
  %v2405 = vpow.pop %v2404
  %v2406 = vmul.f32 %v2344, 1.442695
  %v2407 = vpow.pop %v2406
  %v2408 = vmul.f32 %v2345, 1.442695
  %v2409 = vpow.pop %v2408
  %v2410 = vsel %vm232, %v2347, 0.0
  %2411 = vadd.xlane.f32.xlu0 %v2410
  %v2412 = vpop.xlane.xlu0 %2411
  %v2413 = vsel %vm232, %v2349, 0.0
  %2414 = vadd.xlane.f32.xlu0 %v2413
  %v2415 = vpop.xlane.xlu0 %2414
  %v2416 = vsel %vm232, %v2351, 0.0
  %2417 = vadd.xlane.f32.xlu0 %v2416
  %v2418 = vpop.xlane.xlu0 %2417
  %v2419 = vsel %vm232, %v2353, 0.0
  %2420 = vadd.xlane.f32.xlu0 %v2419
  %v2421 = vpop.xlane.xlu0 %2420
  %v2422 = vsel %vm232, %v2355, 0.0
  %2423 = vadd.xlane.f32.xlu0 %v2422
  %v2424 = vpop.xlane.xlu0 %2423
  %v2425 = vsel %vm232, %v2357, 0.0
  %2426 = vadd.xlane.f32.xlu0 %v2425
  %v2427 = vpop.xlane.xlu0 %2426
  %v2428 = vsel %vm232, %v2359, 0.0
  %2429 = vadd.xlane.f32.xlu0 %v2428
  %v2430 = vpop.xlane.xlu0 %2429
  %v2431 = vsel %vm232, %v2361, 0.0
  %2432 = vadd.xlane.f32.xlu0 %v2431
  %v2433 = vpop.xlane.xlu0 %2432
  %v2434 = vsel %vm232, %v2363, 0.0
  %2435 = vadd.xlane.f32.xlu0 %v2434
  %v2436 = vpop.xlane.xlu0 %2435
  %v2437 = vsel %vm232, %v2365, 0.0
  %2438 = vadd.xlane.f32.xlu0 %v2437
  %v2439 = vpop.xlane.xlu0 %2438
  %v2440 = vsel %vm232, %v2367, 0.0
  %2441 = vadd.xlane.f32.xlu0 %v2440
  %v2442 = vpop.xlane.xlu0 %2441
  %v2443 = vsel %vm232, %v2369, 0.0
  %2444 = vadd.xlane.f32.xlu0 %v2443
  %v2445 = vpop.xlane.xlu0 %2444
  %v2446 = vsel %vm232, %v2371, 0.0
  %2447 = vadd.xlane.f32.xlu0 %v2446
  %v2448 = vpop.xlane.xlu0 %2447
  %v2449 = vsel %vm232, %v2373, 0.0
  %2450 = vadd.xlane.f32.xlu0 %v2449
  %v2451 = vpop.xlane.xlu0 %2450
  %v2452 = vsel %vm232, %v2375, 0.0
  %2453 = vadd.xlane.f32.xlu0 %v2452
  %v2454 = vpop.xlane.xlu0 %2453
  %v2455 = vsel %vm232, %v2377, 0.0
  %2456 = vadd.xlane.f32.xlu0 %v2455
  %v2457 = vpop.xlane.xlu0 %2456
  %v2458 = vsel %vm232, %v2379, 0.0
  %2459 = vadd.xlane.f32.xlu0 %v2458
  %v2460 = vpop.xlane.xlu0 %2459
  %v2461 = vsel %vm232, %v2381, 0.0
  %2462 = vadd.xlane.f32.xlu0 %v2461
  %v2463 = vpop.xlane.xlu0 %2462
  %v2464 = vsel %vm232, %v2383, 0.0
  %2465 = vadd.xlane.f32.xlu0 %v2464
  %v2466 = vpop.xlane.xlu0 %2465
  %v2467 = vsel %vm232, %v2385, 0.0
  %2468 = vadd.xlane.f32.xlu0 %v2467
  %v2469 = vpop.xlane.xlu0 %2468
  %v2470 = vsel %vm232, %v2387, 0.0
  %2471 = vadd.xlane.f32.xlu0 %v2470
  %v2472 = vpop.xlane.xlu0 %2471
  %v2473 = vsel %vm232, %v2389, 0.0
  %2474 = vadd.xlane.f32.xlu0 %v2473
  %v2475 = vpop.xlane.xlu0 %2474
  %v2476 = vsel %vm232, %v2391, 0.0
  %2477 = vadd.xlane.f32.xlu0 %v2476
  %v2478 = vpop.xlane.xlu0 %2477
  %v2479 = vsel %vm232, %v2393, 0.0
  %2480 = vadd.xlane.f32.xlu0 %v2479
  %v2481 = vpop.xlane.xlu0 %2480
  %v2482 = vsel %vm232, %v2395, 0.0
  %2483 = vadd.xlane.f32.xlu0 %v2482
  %v2484 = vpop.xlane.xlu0 %2483
  %v2485 = vsel %vm232, %v2397, 0.0
  %2486 = vadd.xlane.f32.xlu0 %v2485
  %v2487 = vpop.xlane.xlu0 %2486
  %v2488 = vsel %vm232, %v2399, 0.0
  %2489 = vadd.xlane.f32.xlu0 %v2488
  %v2490 = vpop.xlane.xlu0 %2489
  %v2491 = vsel %vm232, %v2401, 0.0
  %2492 = vadd.xlane.f32.xlu0 %v2491
  %v2493 = vpop.xlane.xlu0 %2492
  %v2494 = vsel %vm232, %v2403, 0.0
  %2495 = vadd.xlane.f32.xlu0 %v2494
  %v2496 = vpop.xlane.xlu0 %2495
  %v2497 = vsel %vm232, %v2405, 0.0
  %2498 = vadd.xlane.f32.xlu0 %v2497
  %v2499 = vpop.xlane.xlu0 %2498
  %v2500 = vsel %vm232, %v2407, 0.0
  %2501 = vadd.xlane.f32.xlu0 %v2500
  %v2502 = vpop.xlane.xlu0 %2501
  %v2503 = vsel %vm232, %v2409, 0.0
  %2504 = vadd.xlane.f32.xlu0 %v2503
  %v2505 = vpop.xlane.xlu0 %2504
  %v2506 = vperm.slane %v1924, 0
  %v2507 = vlaneseq
  %v2508 = vshrl.u32 %v2507, 7
  %2510 = vset.pattern.permute.xlu0 %v2508
  %2511 = vperm.xlu0 %2510, %v2506
  %v2512 = vpop.permute.xlu0 %2511
  %v2513 = vlaneseq
  %v2514 = vshrl.u32 %v2513, 7
  %v2515 = vadd.s32 %v2514, 8
  %2516 = vset.pattern.permute.xlu0 %v2515
  %2517 = vperm.xlu0 %2516, %v2506
  %v2518 = vpop.permute.xlu0 %2517
  %v2519 = vlaneseq
  %v2520 = vshrl.u32 %v2519, 7
  %v2521 = vadd.s32 %v2520, 16
  %2522 = vset.pattern.permute.xlu0 %v2521
  %2523 = vperm.xlu0 %2522, %v2506
  %v2524 = vpop.permute.xlu0 %2523
  %v2525 = vlaneseq
  %v2526 = vshrl.u32 %v2525, 7
  %v2527 = vadd.s32 %v2526, 24
  %2528 = vset.pattern.permute.xlu0 %v2527
  %2529 = vperm.xlu0 %2528, %v2506
  %v2530 = vpop.permute.xlu0 %2529
  %v2531 = vperm.slane %v1924, 1
  %v2532 = vlaneseq
  %v2533 = vshrl.u32 %v2532, 7
  %2535 = vset.pattern.permute.xlu0 %v2533
  %2536 = vperm.xlu0 %2535, %v2531
  %v2537 = vpop.permute.xlu0 %2536
  %v2538 = vlaneseq
  %v2539 = vshrl.u32 %v2538, 7
  %v2540 = vadd.s32 %v2539, 8
  %2541 = vset.pattern.permute.xlu0 %v2540
  %2542 = vperm.xlu0 %2541, %v2531
  %v2543 = vpop.permute.xlu0 %2542
  %v2544 = vlaneseq
  %v2545 = vshrl.u32 %v2544, 7
  %v2546 = vadd.s32 %v2545, 16
  %2547 = vset.pattern.permute.xlu0 %v2546
  %2548 = vperm.xlu0 %2547, %v2531
  %v2549 = vpop.permute.xlu0 %2548
  %v2550 = vlaneseq
  %v2551 = vshrl.u32 %v2550, 7
  %v2552 = vadd.s32 %v2551, 24
  %2553 = vset.pattern.permute.xlu0 %v2552
  %2554 = vperm.xlu0 %2553, %v2531
  %v2555 = vpop.permute.xlu0 %2554
  %v2556 = vperm.slane %v1924, 2
  %v2557 = vlaneseq
  %v2558 = vshrl.u32 %v2557, 7
  %2560 = vset.pattern.permute.xlu0 %v2558
  %2561 = vperm.xlu0 %2560, %v2556
  %v2562 = vpop.permute.xlu0 %2561
  %v2563 = vlaneseq
  %v2564 = vshrl.u32 %v2563, 7
  %v2565 = vadd.s32 %v2564, 8
  %2566 = vset.pattern.permute.xlu0 %v2565
  %2567 = vperm.xlu0 %2566, %v2556
  %v2568 = vpop.permute.xlu0 %2567
  %v2569 = vlaneseq
  %v2570 = vshrl.u32 %v2569, 7
  %v2571 = vadd.s32 %v2570, 16
  %2572 = vset.pattern.permute.xlu0 %v2571
  %2573 = vperm.xlu0 %2572, %v2556
  %v2574 = vpop.permute.xlu0 %2573
  %v2575 = vlaneseq
  %v2576 = vshrl.u32 %v2575, 7
  %v2577 = vadd.s32 %v2576, 24
  %2578 = vset.pattern.permute.xlu0 %v2577
  %2579 = vperm.xlu0 %2578, %v2556
  %v2580 = vpop.permute.xlu0 %2579
  %v2581 = vperm.slane %v1924, 3
  %v2582 = vlaneseq
  %v2583 = vshrl.u32 %v2582, 7
  %2585 = vset.pattern.permute.xlu0 %v2583
  %2586 = vperm.xlu0 %2585, %v2581
  %v2587 = vpop.permute.xlu0 %2586
  %v2588 = vlaneseq
  %v2589 = vshrl.u32 %v2588, 7
  %v2590 = vadd.s32 %v2589, 8
  %2591 = vset.pattern.permute.xlu0 %v2590
  %2592 = vperm.xlu0 %2591, %v2581
  %v2593 = vpop.permute.xlu0 %2592
  %v2594 = vlaneseq
  %v2595 = vshrl.u32 %v2594, 7
  %v2596 = vadd.s32 %v2595, 16
  %2597 = vset.pattern.permute.xlu0 %v2596
  %2598 = vperm.xlu0 %2597, %v2581
  %v2599 = vpop.permute.xlu0 %2598
  %v2600 = vlaneseq
  %v2601 = vshrl.u32 %v2600, 7
  %v2602 = vadd.s32 %v2601, 24
  %2603 = vset.pattern.permute.xlu0 %v2602
  %2604 = vperm.xlu0 %2603, %v2581
  %v2605 = vpop.permute.xlu0 %2604
  %v2606 = vperm.slane %v1924, 4
  %v2607 = vlaneseq
  %v2608 = vshrl.u32 %v2607, 7
  %2610 = vset.pattern.permute.xlu0 %v2608
  %2611 = vperm.xlu0 %2610, %v2606
  %v2612 = vpop.permute.xlu0 %2611
  %v2613 = vlaneseq
  %v2614 = vshrl.u32 %v2613, 7
  %v2615 = vadd.s32 %v2614, 8
  %2616 = vset.pattern.permute.xlu0 %v2615
  %2617 = vperm.xlu0 %2616, %v2606
  %v2618 = vpop.permute.xlu0 %2617
  %v2619 = vlaneseq
  %v2620 = vshrl.u32 %v2619, 7
  %v2621 = vadd.s32 %v2620, 16
  %2622 = vset.pattern.permute.xlu0 %v2621
  %2623 = vperm.xlu0 %2622, %v2606
  %v2624 = vpop.permute.xlu0 %2623
  %v2625 = vlaneseq
  %v2626 = vshrl.u32 %v2625, 7
  %v2627 = vadd.s32 %v2626, 24
  %2628 = vset.pattern.permute.xlu0 %v2627
  %2629 = vperm.xlu0 %2628, %v2606
  %v2630 = vpop.permute.xlu0 %2629
  %v2631 = vperm.slane %v1924, 5
  %v2632 = vlaneseq
  %v2633 = vshrl.u32 %v2632, 7
  %2635 = vset.pattern.permute.xlu0 %v2633
  %2636 = vperm.xlu0 %2635, %v2631
  %v2637 = vpop.permute.xlu0 %2636
  %v2638 = vlaneseq
  %v2639 = vshrl.u32 %v2638, 7
  %v2640 = vadd.s32 %v2639, 8
  %2641 = vset.pattern.permute.xlu0 %v2640
  %2642 = vperm.xlu0 %2641, %v2631
  %v2643 = vpop.permute.xlu0 %2642
  %v2644 = vlaneseq
  %v2645 = vshrl.u32 %v2644, 7
  %v2646 = vadd.s32 %v2645, 16
  %2647 = vset.pattern.permute.xlu0 %v2646
  %2648 = vperm.xlu0 %2647, %v2631
  %v2649 = vpop.permute.xlu0 %2648
  %v2650 = vlaneseq
  %v2651 = vshrl.u32 %v2650, 7
  %v2652 = vadd.s32 %v2651, 24
  %2653 = vset.pattern.permute.xlu0 %v2652
  %2654 = vperm.xlu0 %2653, %v2631
  %v2655 = vpop.permute.xlu0 %2654
  %v2656 = vperm.slane %v1924, 6
  %v2657 = vlaneseq
  %v2658 = vshrl.u32 %v2657, 7
  %2660 = vset.pattern.permute.xlu0 %v2658
  %2661 = vperm.xlu0 %2660, %v2656
  %v2662 = vpop.permute.xlu0 %2661
  %v2663 = vlaneseq
  %v2664 = vshrl.u32 %v2663, 7
  %v2665 = vadd.s32 %v2664, 8
  %2666 = vset.pattern.permute.xlu0 %v2665
  %2667 = vperm.xlu0 %2666, %v2656
  %v2668 = vpop.permute.xlu0 %2667
  %v2669 = vlaneseq
  %v2670 = vshrl.u32 %v2669, 7
  %v2671 = vadd.s32 %v2670, 16
  %2672 = vset.pattern.permute.xlu0 %v2671
  %2673 = vperm.xlu0 %2672, %v2656
  %v2674 = vpop.permute.xlu0 %2673
  %v2675 = vlaneseq
  %v2676 = vshrl.u32 %v2675, 7
  %v2677 = vadd.s32 %v2676, 24
  %2678 = vset.pattern.permute.xlu0 %v2677
  %2679 = vperm.xlu0 %2678, %v2656
  %v2680 = vpop.permute.xlu0 %2679
  %v2681 = vperm.slane %v1924, 7
  %v2682 = vlaneseq
  %v2683 = vshrl.u32 %v2682, 7
  %2685 = vset.pattern.permute.xlu0 %v2683
  %2686 = vperm.xlu0 %2685, %v2681
  %v2687 = vpop.permute.xlu0 %2686
  %v2688 = vlaneseq
  %v2689 = vshrl.u32 %v2688, 7
  %v2690 = vadd.s32 %v2689, 8
  %2691 = vset.pattern.permute.xlu0 %v2690
  %2692 = vperm.xlu0 %2691, %v2681
  %v2693 = vpop.permute.xlu0 %2692
  %v2694 = vlaneseq
  %v2695 = vshrl.u32 %v2694, 7
  %v2696 = vadd.s32 %v2695, 16
  %2697 = vset.pattern.permute.xlu0 %v2696
  %2698 = vperm.xlu0 %2697, %v2681
  %v2699 = vpop.permute.xlu0 %2698
  %v2700 = vlaneseq
  %v2701 = vshrl.u32 %v2700, 7
  %v2702 = vadd.s32 %v2701, 24
  %2703 = vset.pattern.permute.xlu0 %v2702
  %2704 = vperm.xlu0 %2703, %v2681
  %v2705 = vpop.permute.xlu0 %2704
  %v2706 = vrcp.pop %v2412
  %v2707 = vrcp.pop %v2415
  %v2708 = vrcp.pop %v2418
  %v2709 = vrcp.pop %v2421
  %v2710 = vrcp.pop %v2424
  %v2711 = vrcp.pop %v2427
  %v2712 = vrcp.pop %v2430
  %v2713 = vrcp.pop %v2433
  %v2714 = vrcp.pop %v2436
  %v2715 = vrcp.pop %v2439
  %v2716 = vrcp.pop %v2442
  %v2717 = vrcp.pop %v2445
  %v2718 = vrcp.pop %v2448
  %v2719 = vrcp.pop %v2451
  %v2720 = vrcp.pop %v2454
  %v2721 = vrcp.pop %v2457
  %v2722 = vrcp.pop %v2460
  %v2723 = vrcp.pop %v2463
  %v2724 = vrcp.pop %v2466
  %v2725 = vrcp.pop %v2469
  %v2726 = vrcp.pop %v2472
  %v2727 = vrcp.pop %v2475
  %v2728 = vrcp.pop %v2478
  %v2729 = vrcp.pop %v2481
  %v2730 = vrcp.pop %v2484
  %v2731 = vrcp.pop %v2487
  %v2732 = vrcp.pop %v2490
  %v2733 = vrcp.pop %v2493
  %v2734 = vrcp.pop %v2496
  %v2735 = vrcp.pop %v2499
  %v2736 = vrcp.pop %v2502
  %v2737 = vrcp.pop %v2505
  %v2738 = vmul.f32 %v2512, %v2706
  %v2739 = vmul.f32 %v2518, %v2707
  %v2740 = vmul.f32 %v2524, %v2708
  %v2741 = vmul.f32 %v2530, %v2709
  %v2742 = vmul.f32 %v2537, %v2710
  %v2743 = vmul.f32 %v2543, %v2711
  %v2744 = vmul.f32 %v2549, %v2712
  %v2745 = vmul.f32 %v2555, %v2713
  %v2746 = vmul.f32 %v2562, %v2714
  %v2747 = vmul.f32 %v2568, %v2715
  %v2748 = vmul.f32 %v2574, %v2716
  %v2749 = vmul.f32 %v2580, %v2717
  %v2750 = vmul.f32 %v2587, %v2718
  %v2751 = vmul.f32 %v2593, %v2719
  %v2752 = vmul.f32 %v2599, %v2720
  %v2753 = vmul.f32 %v2605, %v2721
  %v2754 = vmul.f32 %v2612, %v2722
  %v2755 = vmul.f32 %v2618, %v2723
  %v2756 = vmul.f32 %v2624, %v2724
  %v2757 = vmul.f32 %v2630, %v2725
  %v2758 = vmul.f32 %v2637, %v2726
  %v2759 = vmul.f32 %v2643, %v2727
  %v2760 = vmul.f32 %v2649, %v2728
  %v2761 = vmul.f32 %v2655, %v2729
  %v2762 = vmul.f32 %v2662, %v2730
  %v2763 = vmul.f32 %v2668, %v2731
  %v2764 = vmul.f32 %v2674, %v2732
  %v2765 = vmul.f32 %v2680, %v2733
  %v2766 = vmul.f32 %v2687, %v2734
  %v2767 = vmul.f32 %v2693, %v2735
  %v2768 = vmul.f32 %v2699, %v2736
  %v2769 = vmul.f32 %v2705, %v2737
  %v2770 = vmul.f32 %v2738, %v2347
  %v2771 = vmul.f32 %v2739, %v2349
  %v2772 = vmul.f32 %v2740, %v2351
  %v2773 = vmul.f32 %v2741, %v2353
  %v2774 = vmul.f32 %v2742, %v2355
  %v2775 = vmul.f32 %v2743, %v2357
  %v2776 = vmul.f32 %v2744, %v2359
  %v2777 = vmul.f32 %v2745, %v2361
  %v2778 = vmul.f32 %v2746, %v2363
  %v2779 = vmul.f32 %v2747, %v2365
  %v2780 = vmul.f32 %v2748, %v2367
  %v2781 = vmul.f32 %v2749, %v2369
  %v2782 = vmul.f32 %v2750, %v2371
  %v2783 = vmul.f32 %v2751, %v2373
  %v2784 = vmul.f32 %v2752, %v2375
  %v2785 = vmul.f32 %v2753, %v2377
  %v2786 = vmul.f32 %v2754, %v2379
  %v2787 = vmul.f32 %v2755, %v2381
  %v2788 = vmul.f32 %v2756, %v2383
  %v2789 = vmul.f32 %v2757, %v2385
  %v2790 = vmul.f32 %v2758, %v2387
  %v2791 = vmul.f32 %v2759, %v2389
  %v2792 = vmul.f32 %v2760, %v2391
  %v2793 = vmul.f32 %v2761, %v2393
  %v2794 = vmul.f32 %v2762, %v2395
  %v2795 = vmul.f32 %v2763, %v2397
  %v2796 = vmul.f32 %v2764, %v2399
  %v2797 = vmul.f32 %v2765, %v2401
  %v2798 = vmul.f32 %v2766, %v2403
  %v2799 = vmul.f32 %v2767, %v2405
  %v2800 = vmul.f32 %v2768, %v2407
  %v2801 = vmul.f32 %v2769, %v2409
  %v2802 = vsel %vm232, %v2770, 0.0
  %v2803 = vsel %vm232, %v2771, 0.0
  %v2804 = vadd.f32 %v2802, %v2803
  %v2805 = vsel %vm232, %v2772, 0.0
  %v2806 = vadd.f32 %v2804, %v2805
  %v2807 = vsel %vm232, %v2773, 0.0
  %v2808 = vadd.f32 %v2806, %v2807
  %v2809 = vrot.slane %v2808, 4
  %v2810 = vadd.f32 %v2808, %v2809
  %v2811 = vrot.slane %v2810, 2
  %v2812 = vadd.f32 %v2810, %v2811
  %v2813 = vrot.slane %v2812, 1
  %v2814 = vadd.f32 %v2812, %v2813
  %v2815 = vsel %vm232, %v2774, 0.0
  %v2816 = vsel %vm232, %v2775, 0.0
  %v2817 = vadd.f32 %v2815, %v2816
  %v2818 = vsel %vm232, %v2776, 0.0
  %v2819 = vadd.f32 %v2817, %v2818
  %v2820 = vsel %vm232, %v2777, 0.0
  %v2821 = vadd.f32 %v2819, %v2820
  %v2822 = vrot.slane %v2821, 4
  %v2823 = vadd.f32 %v2821, %v2822
  %v2824 = vrot.slane %v2823, 2
  %v2825 = vadd.f32 %v2823, %v2824
  %v2826 = vrot.slane %v2825, 1
  %v2827 = vadd.f32 %v2825, %v2826
  %v2828 = vsel %vm232, %v2778, 0.0
  %v2829 = vsel %vm232, %v2779, 0.0
  %v2830 = vadd.f32 %v2828, %v2829
  %v2831 = vsel %vm232, %v2780, 0.0
  %v2832 = vadd.f32 %v2830, %v2831
  %v2833 = vsel %vm232, %v2781, 0.0
  %v2834 = vadd.f32 %v2832, %v2833
  %v2835 = vrot.slane %v2834, 4
  %v2836 = vadd.f32 %v2834, %v2835
  %v2837 = vrot.slane %v2836, 2
  %v2838 = vadd.f32 %v2836, %v2837
  %v2839 = vrot.slane %v2838, 1
  %v2840 = vadd.f32 %v2838, %v2839
  %v2841 = vsel %vm232, %v2782, 0.0
  %v2842 = vsel %vm232, %v2783, 0.0
  %v2843 = vadd.f32 %v2841, %v2842
  %v2844 = vsel %vm232, %v2784, 0.0
  %v2845 = vadd.f32 %v2843, %v2844
  %v2846 = vsel %vm232, %v2785, 0.0
  %v2847 = vadd.f32 %v2845, %v2846
  %v2848 = vrot.slane %v2847, 4
  %v2849 = vadd.f32 %v2847, %v2848
  %v2850 = vrot.slane %v2849, 2
  %v2851 = vadd.f32 %v2849, %v2850
  %v2852 = vrot.slane %v2851, 1
  %v2853 = vadd.f32 %v2851, %v2852
  %v2854 = vsel %vm232, %v2786, 0.0
  %v2855 = vsel %vm232, %v2787, 0.0
  %v2856 = vadd.f32 %v2854, %v2855
  %v2857 = vsel %vm232, %v2788, 0.0
  %v2858 = vadd.f32 %v2856, %v2857
  %v2859 = vsel %vm232, %v2789, 0.0
  %v2860 = vadd.f32 %v2858, %v2859
  %v2861 = vrot.slane %v2860, 4
  %v2862 = vadd.f32 %v2860, %v2861
  %v2863 = vrot.slane %v2862, 2
  %v2864 = vadd.f32 %v2862, %v2863
  %v2865 = vrot.slane %v2864, 1
  %v2866 = vadd.f32 %v2864, %v2865
  %v2867 = vsel %vm232, %v2790, 0.0
  %v2868 = vsel %vm232, %v2791, 0.0
  %v2869 = vadd.f32 %v2867, %v2868
  %v2870 = vsel %vm232, %v2792, 0.0
  %v2871 = vadd.f32 %v2869, %v2870
  %v2872 = vsel %vm232, %v2793, 0.0
  %v2873 = vadd.f32 %v2871, %v2872
  %v2874 = vrot.slane %v2873, 4
  %v2875 = vadd.f32 %v2873, %v2874
  %v2876 = vrot.slane %v2875, 2
  %v2877 = vadd.f32 %v2875, %v2876
  %v2878 = vrot.slane %v2877, 1
  %v2879 = vadd.f32 %v2877, %v2878
  %v2880 = vsel %vm232, %v2794, 0.0
  %v2881 = vsel %vm232, %v2795, 0.0
  %v2882 = vadd.f32 %v2880, %v2881
  %v2883 = vsel %vm232, %v2796, 0.0
  %v2884 = vadd.f32 %v2882, %v2883
  %v2885 = vsel %vm232, %v2797, 0.0
  %v2886 = vadd.f32 %v2884, %v2885
  %v2887 = vrot.slane %v2886, 4
  %v2888 = vadd.f32 %v2886, %v2887
  %v2889 = vrot.slane %v2888, 2
  %v2890 = vadd.f32 %v2888, %v2889
  %v2891 = vrot.slane %v2890, 1
  %v2892 = vadd.f32 %v2890, %v2891
  %v2893 = vsel %vm232, %v2798, 0.0
  %v2894 = vsel %vm232, %v2799, 0.0
  %v2895 = vadd.f32 %v2893, %v2894
  %v2896 = vsel %vm232, %v2800, 0.0
  %v2897 = vadd.f32 %v2895, %v2896
  %v2898 = vsel %vm232, %v2801, 0.0
  %v2899 = vadd.f32 %v2897, %v2898
  %v2900 = vrot.slane %v2899, 4
  %v2901 = vadd.f32 %v2899, %v2900
  %v2902 = vrot.slane %v2901, 2
  %v2903 = vadd.f32 %v2901, %v2902
  %v2904 = vrot.slane %v2903, 1
  %v2905 = vadd.f32 %v2903, %v2904
  %2907 = vset.pattern.permute.xlu0 0
  %2908 = vperm.xlu0 %2907, %v1938
  %v2909 = vpop.permute.xlu0 %2908
  %v2919 = vsel %vm1891, %v2827, %v2814
  %v2920 = vsel %vm1893, %v2840, %v2919
  %v2921 = vsel %vm1895, %v2853, %v2920
  %v2922 = vsel %vm1897, %v2866, %v2921
  %v2923 = vsel %vm1899, %v2879, %v2922
  %v2924 = vsel %vm1901, %v2892, %v2923
  %v2925 = vsel %vm1903, %v2905, %v2924
  %v2927 = vmul.f32 %v2909, %v2925
  %v2928 = vsub.f32 1.0, %v1938
  %2930 = vset.pattern.permute.xlu0 0
  %2931 = vperm.xlu0 %2930, %v2928
  %v2932 = vpop.permute.xlu0 %2931
  %v2934 = vmul.f32 %v2932, %v1960
  %v2935 = vadd.f32 %v2927, %v2934
  %v2936 = vlog2.pop %v2935
  %v2937 = vmul.f32 %v2936, 0.6931472
  %v2938 = vadd.f32 %v1934, %v2937
  %v2939 = vadd.f32 %v2938, %v1921
  %v2940 = vsel %vm232, %v2939, -inf
  %2941 = vmax.xlane.f32.xlu0 %v2940
  %v2942 = vpop.xlane.xlu0 %2941
  %v2943 = vsub.f32 %v2939, %v2942
  %v2944 = vmul.f32 %v2943, 1.442695
  %v2945 = vpow.pop %v2944
  %v2946 = vsel %vm232, %v2945, 0.0
  %2947 = vadd.xlane.f32.xlu0 %v2946
  %v2948 = vpop.xlane.xlu0 %2947
  %v2949 = vlog2.pop %v2948
  %v2950 = vmul.f32 %v2949, 0.6931472
  %v2951 = vadd.f32 %v2950, %v2942
  %s2952 = scalar_lea.vmem %s10, 16
  %2953 = vst.msk [vmem:[%s2952] sm:$0xff] %vm849, %v2951
  %s2954 = scalar_lea.vmem [#allocation2], 24
  %v2955 = vld [vmem:[%s2954] sm:$0xff]
  %s2956 = scalar_lea.vmem [#allocation3], 24
  %v2957 = vld [vmem:[%s2956] sm:$0xff]
  %s2958 = scalar_lea.vmem [#allocation4], 24
  %v2959 = vld [vmem:[%s2958] sm:$0xff]
  %v2961 = vsel %vm232, %v2945, 0
  %2963 = vmatpush.msra.mxu0 0.0
  %2964 = vmatpush.msra.mxu0 0.0
  %2965 = vmatpush.msra.mxu0 0.0
  %2966 = vmatpush.msra.mxu0 0.0
  %2967 = vmatpush.msra.mxu0 0.0
  %2968 = vmatpush.msra.mxu0 0.0
  %2969 = vmatpush.msra.mxu0 0.0
  %2970 = vmatpush.msra.mxu0 0.0
  %2971 = vmatpush.msra.mxu0 0.0
  %2972 = vmatpush.msra.mxu0 0.0
  %2973 = vmatpush.msra.mxu0 0.0
  %2974 = vmatpush.msra.mxu0 0.0
  %2975 = vmatpush.msra.mxu0 %v861
  %2976 = vmatpush.msra.mxu0 %v860
  %2977 = vmatpush.msra.mxu0 %v859
  %2978 = vmatpush.msra.mxu0 %v858
  %2979 = vmatmul.f32.gmra.mxu0 %v2961
  %v2980 = vpop.f32.mrf.mxu0
  %v2981 = vadd.f32 0.0, %v2980
  %2982 = vdwg.mxu0
  %v2983 = vsel %vm232, %v2957, -inf
  %2984 = vmax.xlane.f32.xlu0 %v2983
  %v2985 = vpop.xlane.xlu0 %2984
  %v2987 = vperm.slane %v2985, 0
  %v2988 = vperm.slane %v2985, 1
  %v2989 = vperm.slane %v2985, 2
  %v2990 = vperm.slane %v2985, 3
  %v2991 = vperm.slane %v2985, 4
  %v2992 = vperm.slane %v2985, 5
  %v2993 = vperm.slane %v2985, 6
  %v2994 = vperm.slane %v2985, 7
  %v3003 = vsel %vm232, %v2957, inf
  %3004 = vmin.xlane.f32.xlu0 %v3003
  %v3005 = vpop.xlane.xlu0 %3004
  %v3007 = vperm.slane %v3005, 0
  %v3008 = vperm.slane %v3005, 1
  %v3009 = vperm.slane %v3005, 2
  %v3010 = vperm.slane %v3005, 3
  %v3011 = vperm.slane %v3005, 4
  %v3012 = vperm.slane %v3005, 5
  %v3013 = vperm.slane %v3005, 6
  %v3014 = vperm.slane %v3005, 7
  %v3023 = vmul.f32 %v2987, %v862
  %v3024 = vmul.f32 %v2987, %v863
  %v3025 = vmul.f32 %v2987, %v864
  %v3026 = vmul.f32 %v2987, %v865
  %v3027 = vmul.f32 %v2988, %v862
  %v3028 = vmul.f32 %v2988, %v863
  %v3029 = vmul.f32 %v2988, %v864
  %v3030 = vmul.f32 %v2988, %v865
  %v3031 = vmul.f32 %v2989, %v862
  %v3032 = vmul.f32 %v2989, %v863
  %v3033 = vmul.f32 %v2989, %v864
  %v3034 = vmul.f32 %v2989, %v865
  %v3035 = vmul.f32 %v2990, %v862
  %v3036 = vmul.f32 %v2990, %v863
  %v3037 = vmul.f32 %v2990, %v864
  %v3038 = vmul.f32 %v2990, %v865
  %v3039 = vmul.f32 %v2991, %v862
  %v3040 = vmul.f32 %v2991, %v863
  %v3041 = vmul.f32 %v2991, %v864
  %v3042 = vmul.f32 %v2991, %v865
  %v3043 = vmul.f32 %v2992, %v862
  %v3044 = vmul.f32 %v2992, %v863
  %v3045 = vmul.f32 %v2992, %v864
  %v3046 = vmul.f32 %v2992, %v865
  %v3047 = vmul.f32 %v2993, %v862
  %v3048 = vmul.f32 %v2993, %v863
  %v3049 = vmul.f32 %v2993, %v864
  %v3050 = vmul.f32 %v2993, %v865
  %v3051 = vmul.f32 %v2994, %v862
  %v3052 = vmul.f32 %v2994, %v863
  %v3053 = vmul.f32 %v2994, %v864
  %v3054 = vmul.f32 %v2994, %v865
  %v3055 = vmul.f32 %v3007, %v862
  %v3056 = vmul.f32 %v3007, %v863
  %v3057 = vmul.f32 %v3007, %v864
  %v3058 = vmul.f32 %v3007, %v865
  %v3059 = vmul.f32 %v3008, %v862
  %v3060 = vmul.f32 %v3008, %v863
  %v3061 = vmul.f32 %v3008, %v864
  %v3062 = vmul.f32 %v3008, %v865
  %v3063 = vmul.f32 %v3009, %v862
  %v3064 = vmul.f32 %v3009, %v863
  %v3065 = vmul.f32 %v3009, %v864
  %v3066 = vmul.f32 %v3009, %v865
  %v3067 = vmul.f32 %v3010, %v862
  %v3068 = vmul.f32 %v3010, %v863
  %v3069 = vmul.f32 %v3010, %v864
  %v3070 = vmul.f32 %v3010, %v865
  %v3071 = vmul.f32 %v3011, %v862
  %v3072 = vmul.f32 %v3011, %v863
  %v3073 = vmul.f32 %v3011, %v864
  %v3074 = vmul.f32 %v3011, %v865
  %v3075 = vmul.f32 %v3012, %v862
  %v3076 = vmul.f32 %v3012, %v863
  %v3077 = vmul.f32 %v3012, %v864
  %v3078 = vmul.f32 %v3012, %v865
  %v3079 = vmul.f32 %v3013, %v862
  %v3080 = vmul.f32 %v3013, %v863
  %v3081 = vmul.f32 %v3013, %v864
  %v3082 = vmul.f32 %v3013, %v865
  %v3083 = vmul.f32 %v3014, %v862
  %v3084 = vmul.f32 %v3014, %v863
  %v3085 = vmul.f32 %v3014, %v864
  %v3086 = vmul.f32 %v3014, %v865
  %v3087 = vmax.f32 %v3023, %v3055
  %v3088 = vmax.f32 %v3024, %v3056
  %v3089 = vmax.f32 %v3025, %v3057
  %v3090 = vmax.f32 %v3026, %v3058
  %v3091 = vmax.f32 %v3027, %v3059
  %v3092 = vmax.f32 %v3028, %v3060
  %v3093 = vmax.f32 %v3029, %v3061
  %v3094 = vmax.f32 %v3030, %v3062
  %v3095 = vmax.f32 %v3031, %v3063
  %v3096 = vmax.f32 %v3032, %v3064
  %v3097 = vmax.f32 %v3033, %v3065
  %v3098 = vmax.f32 %v3034, %v3066
  %v3099 = vmax.f32 %v3035, %v3067
  %v3100 = vmax.f32 %v3036, %v3068
  %v3101 = vmax.f32 %v3037, %v3069
  %v3102 = vmax.f32 %v3038, %v3070
  %v3103 = vmax.f32 %v3039, %v3071
  %v3104 = vmax.f32 %v3040, %v3072
  %v3105 = vmax.f32 %v3041, %v3073
  %v3106 = vmax.f32 %v3042, %v3074
  %v3107 = vmax.f32 %v3043, %v3075
  %v3108 = vmax.f32 %v3044, %v3076
  %v3109 = vmax.f32 %v3045, %v3077
  %v3110 = vmax.f32 %v3046, %v3078
  %v3111 = vmax.f32 %v3047, %v3079
  %v3112 = vmax.f32 %v3048, %v3080
  %v3113 = vmax.f32 %v3049, %v3081
  %v3114 = vmax.f32 %v3050, %v3082
  %v3115 = vmax.f32 %v3051, %v3083
  %v3116 = vmax.f32 %v3052, %v3084
  %v3117 = vmax.f32 %v3053, %v3085
  %v3118 = vmax.f32 %v3054, %v3086
  %v3120 = vrot.slane %v2957, 1
  %v3121 = vrot.slane %v2957, 2
  %v3122 = vrot.slane %v2957, 3
  %v3123 = vrot.slane %v2957, 4
  %v3124 = vrot.slane %v2957, 5
  %v3125 = vrot.slane %v2957, 6
  %v3126 = vrot.slane %v2957, 7
  %v3127 = vperm.slane %v2957, 0
  %v3128 = vperm.slane %v3120, 0
  %v3129 = vperm.slane %v3121, 0
  %v3130 = vperm.slane %v3122, 0
  %v3131 = vperm.slane %v3123, 0
  %v3132 = vperm.slane %v3124, 0
  %v3133 = vperm.slane %v3125, 0
  %v3134 = vperm.slane %v3126, 0
  %v3143 = vmul.f32 %v1061, %v3127
  %v3144 = vmul.f32 %v1066, %v3127
  %v3145 = vmul.f32 %v1071, %v3127
  %v3146 = vmul.f32 %v1076, %v3127
  %v3147 = vmul.f32 %v1061, %v3128
  %v3148 = vmul.f32 %v1066, %v3128
  %v3149 = vmul.f32 %v1071, %v3128
  %v3150 = vmul.f32 %v1076, %v3128
  %v3151 = vmul.f32 %v1061, %v3129
  %v3152 = vmul.f32 %v1066, %v3129
  %v3153 = vmul.f32 %v1071, %v3129
  %v3154 = vmul.f32 %v1076, %v3129
  %v3155 = vmul.f32 %v1061, %v3130
  %v3156 = vmul.f32 %v1066, %v3130
  %v3157 = vmul.f32 %v1071, %v3130
  %v3158 = vmul.f32 %v1076, %v3130
  %v3159 = vmul.f32 %v1061, %v3131
  %v3160 = vmul.f32 %v1066, %v3131
  %v3161 = vmul.f32 %v1071, %v3131
  %v3162 = vmul.f32 %v1076, %v3131
  %v3163 = vmul.f32 %v1061, %v3132
  %v3164 = vmul.f32 %v1066, %v3132
  %v3165 = vmul.f32 %v1071, %v3132
  %v3166 = vmul.f32 %v1076, %v3132
  %v3167 = vmul.f32 %v1061, %v3133
  %v3168 = vmul.f32 %v1066, %v3133
  %v3169 = vmul.f32 %v1071, %v3133
  %v3170 = vmul.f32 %v1076, %v3133
  %v3171 = vmul.f32 %v1061, %v3134
  %v3172 = vmul.f32 %v1066, %v3134
  %v3173 = vmul.f32 %v1071, %v3134
  %v3174 = vmul.f32 %v1076, %v3134
  %3176 = vset.pattern.permute.xlu0 0
  %3177 = vperm.xlu0 %3176, %v3087
  %v3178 = vpop.permute.xlu0 %3177
  %3181 = vset.pattern.permute.xlu0 0
  %3182 = vperm.xlu0 %3181, %v3088
  %v3183 = vpop.permute.xlu0 %3182
  %3186 = vset.pattern.permute.xlu0 0
  %3187 = vperm.xlu0 %3186, %v3089
  %v3188 = vpop.permute.xlu0 %3187
  %3191 = vset.pattern.permute.xlu0 0
  %3192 = vperm.xlu0 %3191, %v3090
  %v3193 = vpop.permute.xlu0 %3192
  %3196 = vset.pattern.permute.xlu0 0
  %3197 = vperm.xlu0 %3196, %v3091
  %v3198 = vpop.permute.xlu0 %3197
  %3201 = vset.pattern.permute.xlu0 0
  %3202 = vperm.xlu0 %3201, %v3092
  %v3203 = vpop.permute.xlu0 %3202
  %3206 = vset.pattern.permute.xlu0 0
  %3207 = vperm.xlu0 %3206, %v3093
  %v3208 = vpop.permute.xlu0 %3207
  %3211 = vset.pattern.permute.xlu0 0
  %3212 = vperm.xlu0 %3211, %v3094
  %v3213 = vpop.permute.xlu0 %3212
  %3216 = vset.pattern.permute.xlu0 0
  %3217 = vperm.xlu0 %3216, %v3095
  %v3218 = vpop.permute.xlu0 %3217
  %3221 = vset.pattern.permute.xlu0 0
  %3222 = vperm.xlu0 %3221, %v3096
  %v3223 = vpop.permute.xlu0 %3222
  %3226 = vset.pattern.permute.xlu0 0
  %3227 = vperm.xlu0 %3226, %v3097
  %v3228 = vpop.permute.xlu0 %3227
  %3231 = vset.pattern.permute.xlu0 0
  %3232 = vperm.xlu0 %3231, %v3098
  %v3233 = vpop.permute.xlu0 %3232
  %3236 = vset.pattern.permute.xlu0 0
  %3237 = vperm.xlu0 %3236, %v3099
  %v3238 = vpop.permute.xlu0 %3237
  %3241 = vset.pattern.permute.xlu0 0
  %3242 = vperm.xlu0 %3241, %v3100
  %v3243 = vpop.permute.xlu0 %3242
  %3246 = vset.pattern.permute.xlu0 0
  %3247 = vperm.xlu0 %3246, %v3101
  %v3248 = vpop.permute.xlu0 %3247
  %3251 = vset.pattern.permute.xlu0 0
  %3252 = vperm.xlu0 %3251, %v3102
  %v3253 = vpop.permute.xlu0 %3252
  %3256 = vset.pattern.permute.xlu0 0
  %3257 = vperm.xlu0 %3256, %v3103
  %v3258 = vpop.permute.xlu0 %3257
  %3261 = vset.pattern.permute.xlu0 0
  %3262 = vperm.xlu0 %3261, %v3104
  %v3263 = vpop.permute.xlu0 %3262
  %3266 = vset.pattern.permute.xlu0 0
  %3267 = vperm.xlu0 %3266, %v3105
  %v3268 = vpop.permute.xlu0 %3267
  %3271 = vset.pattern.permute.xlu0 0
  %3272 = vperm.xlu0 %3271, %v3106
  %v3273 = vpop.permute.xlu0 %3272
  %3276 = vset.pattern.permute.xlu0 0
  %3277 = vperm.xlu0 %3276, %v3107
  %v3278 = vpop.permute.xlu0 %3277
  %3281 = vset.pattern.permute.xlu0 0
  %3282 = vperm.xlu0 %3281, %v3108
  %v3283 = vpop.permute.xlu0 %3282
  %3286 = vset.pattern.permute.xlu0 0
  %3287 = vperm.xlu0 %3286, %v3109
  %v3288 = vpop.permute.xlu0 %3287
  %3291 = vset.pattern.permute.xlu0 0
  %3292 = vperm.xlu0 %3291, %v3110
  %v3293 = vpop.permute.xlu0 %3292
  %3296 = vset.pattern.permute.xlu0 0
  %3297 = vperm.xlu0 %3296, %v3111
  %v3298 = vpop.permute.xlu0 %3297
  %3301 = vset.pattern.permute.xlu0 0
  %3302 = vperm.xlu0 %3301, %v3112
  %v3303 = vpop.permute.xlu0 %3302
  %3306 = vset.pattern.permute.xlu0 0
  %3307 = vperm.xlu0 %3306, %v3113
  %v3308 = vpop.permute.xlu0 %3307
  %3311 = vset.pattern.permute.xlu0 0
  %3312 = vperm.xlu0 %3311, %v3114
  %v3313 = vpop.permute.xlu0 %3312
  %3316 = vset.pattern.permute.xlu0 0
  %3317 = vperm.xlu0 %3316, %v3115
  %v3318 = vpop.permute.xlu0 %3317
  %3321 = vset.pattern.permute.xlu0 0
  %3322 = vperm.xlu0 %3321, %v3116
  %v3323 = vpop.permute.xlu0 %3322
  %3326 = vset.pattern.permute.xlu0 0
  %3327 = vperm.xlu0 %3326, %v3117
  %v3328 = vpop.permute.xlu0 %3327
  %3331 = vset.pattern.permute.xlu0 0
  %3332 = vperm.xlu0 %3331, %v3118
  %v3333 = vpop.permute.xlu0 %3332
  %v3335 = vsub.f32 %v3143, %v3178
  %v3336 = vsub.f32 %v3144, %v3183
  %v3337 = vsub.f32 %v3145, %v3188
  %v3338 = vsub.f32 %v3146, %v3193
  %v3339 = vsub.f32 %v3147, %v3198
  %v3340 = vsub.f32 %v3148, %v3203
  %v3341 = vsub.f32 %v3149, %v3208
  %v3342 = vsub.f32 %v3150, %v3213
  %v3343 = vsub.f32 %v3151, %v3218
  %v3344 = vsub.f32 %v3152, %v3223
  %v3345 = vsub.f32 %v3153, %v3228
  %v3346 = vsub.f32 %v3154, %v3233
  %v3347 = vsub.f32 %v3155, %v3238
  %v3348 = vsub.f32 %v3156, %v3243
  %v3349 = vsub.f32 %v3157, %v3248
  %v3350 = vsub.f32 %v3158, %v3253
  %v3351 = vsub.f32 %v3159, %v3258
  %v3352 = vsub.f32 %v3160, %v3263
  %v3353 = vsub.f32 %v3161, %v3268
  %v3354 = vsub.f32 %v3162, %v3273
  %v3355 = vsub.f32 %v3163, %v3278
  %v3356 = vsub.f32 %v3164, %v3283
  %v3357 = vsub.f32 %v3165, %v3288
  %v3358 = vsub.f32 %v3166, %v3293
  %v3359 = vsub.f32 %v3167, %v3298
  %v3360 = vsub.f32 %v3168, %v3303
  %v3361 = vsub.f32 %v3169, %v3308
  %v3362 = vsub.f32 %v3170, %v3313
  %v3363 = vsub.f32 %v3171, %v3318
  %v3364 = vsub.f32 %v3172, %v3323
  %v3365 = vsub.f32 %v3173, %v3328
  %v3366 = vsub.f32 %v3174, %v3333
  %v3367 = vmul.f32 %v3335, 1.442695
  %v3368 = vpow.pop %v3367
  %v3369 = vmul.f32 %v3336, 1.442695
  %v3370 = vpow.pop %v3369
  %v3371 = vmul.f32 %v3337, 1.442695
  %v3372 = vpow.pop %v3371
  %v3373 = vmul.f32 %v3338, 1.442695
  %v3374 = vpow.pop %v3373
  %v3375 = vmul.f32 %v3339, 1.442695
  %v3376 = vpow.pop %v3375
  %v3377 = vmul.f32 %v3340, 1.442695
  %v3378 = vpow.pop %v3377
  %v3379 = vmul.f32 %v3341, 1.442695
  %v3380 = vpow.pop %v3379
  %v3381 = vmul.f32 %v3342, 1.442695
  %v3382 = vpow.pop %v3381
  %v3383 = vmul.f32 %v3343, 1.442695
  %v3384 = vpow.pop %v3383
  %v3385 = vmul.f32 %v3344, 1.442695
  %v3386 = vpow.pop %v3385
  %v3387 = vmul.f32 %v3345, 1.442695
  %v3388 = vpow.pop %v3387
  %v3389 = vmul.f32 %v3346, 1.442695
  %v3390 = vpow.pop %v3389
  %v3391 = vmul.f32 %v3347, 1.442695
  %v3392 = vpow.pop %v3391
  %v3393 = vmul.f32 %v3348, 1.442695
  %v3394 = vpow.pop %v3393
  %v3395 = vmul.f32 %v3349, 1.442695
  %v3396 = vpow.pop %v3395
  %v3397 = vmul.f32 %v3350, 1.442695
  %v3398 = vpow.pop %v3397
  %v3399 = vmul.f32 %v3351, 1.442695
  %v3400 = vpow.pop %v3399
  %v3401 = vmul.f32 %v3352, 1.442695
  %v3402 = vpow.pop %v3401
  %v3403 = vmul.f32 %v3353, 1.442695
  %v3404 = vpow.pop %v3403
  %v3405 = vmul.f32 %v3354, 1.442695
  %v3406 = vpow.pop %v3405
  %v3407 = vmul.f32 %v3355, 1.442695
  %v3408 = vpow.pop %v3407
  %v3409 = vmul.f32 %v3356, 1.442695
  %v3410 = vpow.pop %v3409
  %v3411 = vmul.f32 %v3357, 1.442695
  %v3412 = vpow.pop %v3411
  %v3413 = vmul.f32 %v3358, 1.442695
  %v3414 = vpow.pop %v3413
  %v3415 = vmul.f32 %v3359, 1.442695
  %v3416 = vpow.pop %v3415
  %v3417 = vmul.f32 %v3360, 1.442695
  %v3418 = vpow.pop %v3417
  %v3419 = vmul.f32 %v3361, 1.442695
  %v3420 = vpow.pop %v3419
  %v3421 = vmul.f32 %v3362, 1.442695
  %v3422 = vpow.pop %v3421
  %v3423 = vmul.f32 %v3363, 1.442695
  %v3424 = vpow.pop %v3423
  %v3425 = vmul.f32 %v3364, 1.442695
  %v3426 = vpow.pop %v3425
  %v3427 = vmul.f32 %v3365, 1.442695
  %v3428 = vpow.pop %v3427
  %v3429 = vmul.f32 %v3366, 1.442695
  %v3430 = vpow.pop %v3429
  %v3431 = vsel %vm232, %v3368, 0.0
  %3432 = vadd.xlane.f32.xlu0 %v3431
  %v3433 = vpop.xlane.xlu0 %3432
  %v3434 = vsel %vm232, %v3370, 0.0
  %3435 = vadd.xlane.f32.xlu0 %v3434
  %v3436 = vpop.xlane.xlu0 %3435
  %v3437 = vsel %vm232, %v3372, 0.0
  %3438 = vadd.xlane.f32.xlu0 %v3437
  %v3439 = vpop.xlane.xlu0 %3438
  %v3440 = vsel %vm232, %v3374, 0.0
  %3441 = vadd.xlane.f32.xlu0 %v3440
  %v3442 = vpop.xlane.xlu0 %3441
  %v3443 = vsel %vm232, %v3376, 0.0
  %3444 = vadd.xlane.f32.xlu0 %v3443
  %v3445 = vpop.xlane.xlu0 %3444
  %v3446 = vsel %vm232, %v3378, 0.0
  %3447 = vadd.xlane.f32.xlu0 %v3446
  %v3448 = vpop.xlane.xlu0 %3447
  %v3449 = vsel %vm232, %v3380, 0.0
  %3450 = vadd.xlane.f32.xlu0 %v3449
  %v3451 = vpop.xlane.xlu0 %3450
  %v3452 = vsel %vm232, %v3382, 0.0
  %3453 = vadd.xlane.f32.xlu0 %v3452
  %v3454 = vpop.xlane.xlu0 %3453
  %v3455 = vsel %vm232, %v3384, 0.0
  %3456 = vadd.xlane.f32.xlu0 %v3455
  %v3457 = vpop.xlane.xlu0 %3456
  %v3458 = vsel %vm232, %v3386, 0.0
  %3459 = vadd.xlane.f32.xlu0 %v3458
  %v3460 = vpop.xlane.xlu0 %3459
  %v3461 = vsel %vm232, %v3388, 0.0
  %3462 = vadd.xlane.f32.xlu0 %v3461
  %v3463 = vpop.xlane.xlu0 %3462
  %v3464 = vsel %vm232, %v3390, 0.0
  %3465 = vadd.xlane.f32.xlu0 %v3464
  %v3466 = vpop.xlane.xlu0 %3465
  %v3467 = vsel %vm232, %v3392, 0.0
  %3468 = vadd.xlane.f32.xlu0 %v3467
  %v3469 = vpop.xlane.xlu0 %3468
  %v3470 = vsel %vm232, %v3394, 0.0
  %3471 = vadd.xlane.f32.xlu0 %v3470
  %v3472 = vpop.xlane.xlu0 %3471
  %v3473 = vsel %vm232, %v3396, 0.0
  %3474 = vadd.xlane.f32.xlu0 %v3473
  %v3475 = vpop.xlane.xlu0 %3474
  %v3476 = vsel %vm232, %v3398, 0.0
  %3477 = vadd.xlane.f32.xlu0 %v3476
  %v3478 = vpop.xlane.xlu0 %3477
  %v3479 = vsel %vm232, %v3400, 0.0
  %3480 = vadd.xlane.f32.xlu0 %v3479
  %v3481 = vpop.xlane.xlu0 %3480
  %v3482 = vsel %vm232, %v3402, 0.0
  %3483 = vadd.xlane.f32.xlu0 %v3482
  %v3484 = vpop.xlane.xlu0 %3483
  %v3485 = vsel %vm232, %v3404, 0.0
  %3486 = vadd.xlane.f32.xlu0 %v3485
  %v3487 = vpop.xlane.xlu0 %3486
  %v3488 = vsel %vm232, %v3406, 0.0
  %3489 = vadd.xlane.f32.xlu0 %v3488
  %v3490 = vpop.xlane.xlu0 %3489
  %v3491 = vsel %vm232, %v3408, 0.0
  %3492 = vadd.xlane.f32.xlu0 %v3491
  %v3493 = vpop.xlane.xlu0 %3492
  %v3494 = vsel %vm232, %v3410, 0.0
  %3495 = vadd.xlane.f32.xlu0 %v3494
  %v3496 = vpop.xlane.xlu0 %3495
  %v3497 = vsel %vm232, %v3412, 0.0
  %3498 = vadd.xlane.f32.xlu0 %v3497
  %v3499 = vpop.xlane.xlu0 %3498
  %v3500 = vsel %vm232, %v3414, 0.0
  %3501 = vadd.xlane.f32.xlu0 %v3500
  %v3502 = vpop.xlane.xlu0 %3501
  %v3503 = vsel %vm232, %v3416, 0.0
  %3504 = vadd.xlane.f32.xlu0 %v3503
  %v3505 = vpop.xlane.xlu0 %3504
  %v3506 = vsel %vm232, %v3418, 0.0
  %3507 = vadd.xlane.f32.xlu0 %v3506
  %v3508 = vpop.xlane.xlu0 %3507
  %v3509 = vsel %vm232, %v3420, 0.0
  %3510 = vadd.xlane.f32.xlu0 %v3509
  %v3511 = vpop.xlane.xlu0 %3510
  %v3512 = vsel %vm232, %v3422, 0.0
  %3513 = vadd.xlane.f32.xlu0 %v3512
  %v3514 = vpop.xlane.xlu0 %3513
  %v3515 = vsel %vm232, %v3424, 0.0
  %3516 = vadd.xlane.f32.xlu0 %v3515
  %v3517 = vpop.xlane.xlu0 %3516
  %v3518 = vsel %vm232, %v3426, 0.0
  %3519 = vadd.xlane.f32.xlu0 %v3518
  %v3520 = vpop.xlane.xlu0 %3519
  %v3521 = vsel %vm232, %v3428, 0.0
  %3522 = vadd.xlane.f32.xlu0 %v3521
  %v3523 = vpop.xlane.xlu0 %3522
  %v3524 = vsel %vm232, %v3430, 0.0
  %3525 = vadd.xlane.f32.xlu0 %v3524
  %v3526 = vpop.xlane.xlu0 %3525
  %v3527 = vperm.slane %v2945, 0
  %v3528 = vlaneseq
  %v3529 = vshrl.u32 %v3528, 7
  %3531 = vset.pattern.permute.xlu0 %v3529
  %3532 = vperm.xlu0 %3531, %v3527
  %v3533 = vpop.permute.xlu0 %3532
  %v3534 = vlaneseq
  %v3535 = vshrl.u32 %v3534, 7
  %v3536 = vadd.s32 %v3535, 8
  %3537 = vset.pattern.permute.xlu0 %v3536
  %3538 = vperm.xlu0 %3537, %v3527
  %v3539 = vpop.permute.xlu0 %3538
  %v3540 = vlaneseq
  %v3541 = vshrl.u32 %v3540, 7
  %v3542 = vadd.s32 %v3541, 16
  %3543 = vset.pattern.permute.xlu0 %v3542
  %3544 = vperm.xlu0 %3543, %v3527
  %v3545 = vpop.permute.xlu0 %3544
  %v3546 = vlaneseq
  %v3547 = vshrl.u32 %v3546, 7
  %v3548 = vadd.s32 %v3547, 24
  %3549 = vset.pattern.permute.xlu0 %v3548
  %3550 = vperm.xlu0 %3549, %v3527
  %v3551 = vpop.permute.xlu0 %3550
  %v3552 = vperm.slane %v2945, 1
  %v3553 = vlaneseq
  %v3554 = vshrl.u32 %v3553, 7
  %3556 = vset.pattern.permute.xlu0 %v3554
  %3557 = vperm.xlu0 %3556, %v3552
  %v3558 = vpop.permute.xlu0 %3557
  %v3559 = vlaneseq
  %v3560 = vshrl.u32 %v3559, 7
  %v3561 = vadd.s32 %v3560, 8
  %3562 = vset.pattern.permute.xlu0 %v3561
  %3563 = vperm.xlu0 %3562, %v3552
  %v3564 = vpop.permute.xlu0 %3563
  %v3565 = vlaneseq
  %v3566 = vshrl.u32 %v3565, 7
  %v3567 = vadd.s32 %v3566, 16
  %3568 = vset.pattern.permute.xlu0 %v3567
  %3569 = vperm.xlu0 %3568, %v3552
  %v3570 = vpop.permute.xlu0 %3569
  %v3571 = vlaneseq
  %v3572 = vshrl.u32 %v3571, 7
  %v3573 = vadd.s32 %v3572, 24
  %3574 = vset.pattern.permute.xlu0 %v3573
  %3575 = vperm.xlu0 %3574, %v3552
  %v3576 = vpop.permute.xlu0 %3575
  %v3577 = vperm.slane %v2945, 2
  %v3578 = vlaneseq
  %v3579 = vshrl.u32 %v3578, 7
  %3581 = vset.pattern.permute.xlu0 %v3579
  %3582 = vperm.xlu0 %3581, %v3577
  %v3583 = vpop.permute.xlu0 %3582
  %v3584 = vlaneseq
  %v3585 = vshrl.u32 %v3584, 7
  %v3586 = vadd.s32 %v3585, 8
  %3587 = vset.pattern.permute.xlu0 %v3586
  %3588 = vperm.xlu0 %3587, %v3577
  %v3589 = vpop.permute.xlu0 %3588
  %v3590 = vlaneseq
  %v3591 = vshrl.u32 %v3590, 7
  %v3592 = vadd.s32 %v3591, 16
  %3593 = vset.pattern.permute.xlu0 %v3592
  %3594 = vperm.xlu0 %3593, %v3577
  %v3595 = vpop.permute.xlu0 %3594
  %v3596 = vlaneseq
  %v3597 = vshrl.u32 %v3596, 7
  %v3598 = vadd.s32 %v3597, 24
  %3599 = vset.pattern.permute.xlu0 %v3598
  %3600 = vperm.xlu0 %3599, %v3577
  %v3601 = vpop.permute.xlu0 %3600
  %v3602 = vperm.slane %v2945, 3
  %v3603 = vlaneseq
  %v3604 = vshrl.u32 %v3603, 7
  %3606 = vset.pattern.permute.xlu0 %v3604
  %3607 = vperm.xlu0 %3606, %v3602
  %v3608 = vpop.permute.xlu0 %3607
  %v3609 = vlaneseq
  %v3610 = vshrl.u32 %v3609, 7
  %v3611 = vadd.s32 %v3610, 8
  %3612 = vset.pattern.permute.xlu0 %v3611
  %3613 = vperm.xlu0 %3612, %v3602
  %v3614 = vpop.permute.xlu0 %3613
  %v3615 = vlaneseq
  %v3616 = vshrl.u32 %v3615, 7
  %v3617 = vadd.s32 %v3616, 16
  %3618 = vset.pattern.permute.xlu0 %v3617
  %3619 = vperm.xlu0 %3618, %v3602
  %v3620 = vpop.permute.xlu0 %3619
  %v3621 = vlaneseq
  %v3622 = vshrl.u32 %v3621, 7
  %v3623 = vadd.s32 %v3622, 24
  %3624 = vset.pattern.permute.xlu0 %v3623
  %3625 = vperm.xlu0 %3624, %v3602
  %v3626 = vpop.permute.xlu0 %3625
  %v3627 = vperm.slane %v2945, 4
  %v3628 = vlaneseq
  %v3629 = vshrl.u32 %v3628, 7
  %3631 = vset.pattern.permute.xlu0 %v3629
  %3632 = vperm.xlu0 %3631, %v3627
  %v3633 = vpop.permute.xlu0 %3632
  %v3634 = vlaneseq
  %v3635 = vshrl.u32 %v3634, 7
  %v3636 = vadd.s32 %v3635, 8
  %3637 = vset.pattern.permute.xlu0 %v3636
  %3638 = vperm.xlu0 %3637, %v3627
  %v3639 = vpop.permute.xlu0 %3638
  %v3640 = vlaneseq
  %v3641 = vshrl.u32 %v3640, 7
  %v3642 = vadd.s32 %v3641, 16
  %3643 = vset.pattern.permute.xlu0 %v3642
  %3644 = vperm.xlu0 %3643, %v3627
  %v3645 = vpop.permute.xlu0 %3644
  %v3646 = vlaneseq
  %v3647 = vshrl.u32 %v3646, 7
  %v3648 = vadd.s32 %v3647, 24
  %3649 = vset.pattern.permute.xlu0 %v3648
  %3650 = vperm.xlu0 %3649, %v3627
  %v3651 = vpop.permute.xlu0 %3650
  %v3652 = vperm.slane %v2945, 5
  %v3653 = vlaneseq
  %v3654 = vshrl.u32 %v3653, 7
  %3656 = vset.pattern.permute.xlu0 %v3654
  %3657 = vperm.xlu0 %3656, %v3652
  %v3658 = vpop.permute.xlu0 %3657
  %v3659 = vlaneseq
  %v3660 = vshrl.u32 %v3659, 7
  %v3661 = vadd.s32 %v3660, 8
  %3662 = vset.pattern.permute.xlu0 %v3661
  %3663 = vperm.xlu0 %3662, %v3652
  %v3664 = vpop.permute.xlu0 %3663
  %v3665 = vlaneseq
  %v3666 = vshrl.u32 %v3665, 7
  %v3667 = vadd.s32 %v3666, 16
  %3668 = vset.pattern.permute.xlu0 %v3667
  %3669 = vperm.xlu0 %3668, %v3652
  %v3670 = vpop.permute.xlu0 %3669
  %v3671 = vlaneseq
  %v3672 = vshrl.u32 %v3671, 7
  %v3673 = vadd.s32 %v3672, 24
  %3674 = vset.pattern.permute.xlu0 %v3673
  %3675 = vperm.xlu0 %3674, %v3652
  %v3676 = vpop.permute.xlu0 %3675
  %v3677 = vperm.slane %v2945, 6
  %v3678 = vlaneseq
  %v3679 = vshrl.u32 %v3678, 7
  %3681 = vset.pattern.permute.xlu0 %v3679
  %3682 = vperm.xlu0 %3681, %v3677
  %v3683 = vpop.permute.xlu0 %3682
  %v3684 = vlaneseq
  %v3685 = vshrl.u32 %v3684, 7
  %v3686 = vadd.s32 %v3685, 8
  %3687 = vset.pattern.permute.xlu0 %v3686
  %3688 = vperm.xlu0 %3687, %v3677
  %v3689 = vpop.permute.xlu0 %3688
  %v3690 = vlaneseq
  %v3691 = vshrl.u32 %v3690, 7
  %v3692 = vadd.s32 %v3691, 16
  %3693 = vset.pattern.permute.xlu0 %v3692
  %3694 = vperm.xlu0 %3693, %v3677
  %v3695 = vpop.permute.xlu0 %3694
  %v3696 = vlaneseq
  %v3697 = vshrl.u32 %v3696, 7
  %v3698 = vadd.s32 %v3697, 24
  %3699 = vset.pattern.permute.xlu0 %v3698
  %3700 = vperm.xlu0 %3699, %v3677
  %v3701 = vpop.permute.xlu0 %3700
  %v3702 = vperm.slane %v2945, 7
  %v3703 = vlaneseq
  %v3704 = vshrl.u32 %v3703, 7
  %3706 = vset.pattern.permute.xlu0 %v3704
  %3707 = vperm.xlu0 %3706, %v3702
  %v3708 = vpop.permute.xlu0 %3707
  %v3709 = vlaneseq
  %v3710 = vshrl.u32 %v3709, 7
  %v3711 = vadd.s32 %v3710, 8
  %3712 = vset.pattern.permute.xlu0 %v3711
  %3713 = vperm.xlu0 %3712, %v3702
  %v3714 = vpop.permute.xlu0 %3713
  %v3715 = vlaneseq
  %v3716 = vshrl.u32 %v3715, 7
  %v3717 = vadd.s32 %v3716, 16
  %3718 = vset.pattern.permute.xlu0 %v3717
  %3719 = vperm.xlu0 %3718, %v3702
  %v3720 = vpop.permute.xlu0 %3719
  %v3721 = vlaneseq
  %v3722 = vshrl.u32 %v3721, 7
  %v3723 = vadd.s32 %v3722, 24
  %3724 = vset.pattern.permute.xlu0 %v3723
  %3725 = vperm.xlu0 %3724, %v3702
  %v3726 = vpop.permute.xlu0 %3725
  %v3727 = vrcp.pop %v3433
  %v3728 = vrcp.pop %v3436
  %v3729 = vrcp.pop %v3439
  %v3730 = vrcp.pop %v3442
  %v3731 = vrcp.pop %v3445
  %v3732 = vrcp.pop %v3448
  %v3733 = vrcp.pop %v3451
  %v3734 = vrcp.pop %v3454
  %v3735 = vrcp.pop %v3457
  %v3736 = vrcp.pop %v3460
  %v3737 = vrcp.pop %v3463
  %v3738 = vrcp.pop %v3466
  %v3739 = vrcp.pop %v3469
  %v3740 = vrcp.pop %v3472
  %v3741 = vrcp.pop %v3475
  %v3742 = vrcp.pop %v3478
  %v3743 = vrcp.pop %v3481
  %v3744 = vrcp.pop %v3484
  %v3745 = vrcp.pop %v3487
  %v3746 = vrcp.pop %v3490
  %v3747 = vrcp.pop %v3493
  %v3748 = vrcp.pop %v3496
  %v3749 = vrcp.pop %v3499
  %v3750 = vrcp.pop %v3502
  %v3751 = vrcp.pop %v3505
  %v3752 = vrcp.pop %v3508
  %v3753 = vrcp.pop %v3511
  %v3754 = vrcp.pop %v3514
  %v3755 = vrcp.pop %v3517
  %v3756 = vrcp.pop %v3520
  %v3757 = vrcp.pop %v3523
  %v3758 = vrcp.pop %v3526
  %v3759 = vmul.f32 %v3533, %v3727
  %v3760 = vmul.f32 %v3539, %v3728
  %v3761 = vmul.f32 %v3545, %v3729
  %v3762 = vmul.f32 %v3551, %v3730
  %v3763 = vmul.f32 %v3558, %v3731
  %v3764 = vmul.f32 %v3564, %v3732
  %v3765 = vmul.f32 %v3570, %v3733
  %v3766 = vmul.f32 %v3576, %v3734
  %v3767 = vmul.f32 %v3583, %v3735
  %v3768 = vmul.f32 %v3589, %v3736
  %v3769 = vmul.f32 %v3595, %v3737
  %v3770 = vmul.f32 %v3601, %v3738
  %v3771 = vmul.f32 %v3608, %v3739
  %v3772 = vmul.f32 %v3614, %v3740
  %v3773 = vmul.f32 %v3620, %v3741
  %v3774 = vmul.f32 %v3626, %v3742
  %v3775 = vmul.f32 %v3633, %v3743
  %v3776 = vmul.f32 %v3639, %v3744
  %v3777 = vmul.f32 %v3645, %v3745
  %v3778 = vmul.f32 %v3651, %v3746
  %v3779 = vmul.f32 %v3658, %v3747
  %v3780 = vmul.f32 %v3664, %v3748
  %v3781 = vmul.f32 %v3670, %v3749
  %v3782 = vmul.f32 %v3676, %v3750
  %v3783 = vmul.f32 %v3683, %v3751
  %v3784 = vmul.f32 %v3689, %v3752
  %v3785 = vmul.f32 %v3695, %v3753
  %v3786 = vmul.f32 %v3701, %v3754
  %v3787 = vmul.f32 %v3708, %v3755
  %v3788 = vmul.f32 %v3714, %v3756
  %v3789 = vmul.f32 %v3720, %v3757
  %v3790 = vmul.f32 %v3726, %v3758
  %v3791 = vmul.f32 %v3759, %v3368
  %v3792 = vmul.f32 %v3760, %v3370
  %v3793 = vmul.f32 %v3761, %v3372
  %v3794 = vmul.f32 %v3762, %v3374
  %v3795 = vmul.f32 %v3763, %v3376
  %v3796 = vmul.f32 %v3764, %v3378
  %v3797 = vmul.f32 %v3765, %v3380
  %v3798 = vmul.f32 %v3766, %v3382
  %v3799 = vmul.f32 %v3767, %v3384
  %v3800 = vmul.f32 %v3768, %v3386
  %v3801 = vmul.f32 %v3769, %v3388
  %v3802 = vmul.f32 %v3770, %v3390
  %v3803 = vmul.f32 %v3771, %v3392
  %v3804 = vmul.f32 %v3772, %v3394
  %v3805 = vmul.f32 %v3773, %v3396
  %v3806 = vmul.f32 %v3774, %v3398
  %v3807 = vmul.f32 %v3775, %v3400
  %v3808 = vmul.f32 %v3776, %v3402
  %v3809 = vmul.f32 %v3777, %v3404
  %v3810 = vmul.f32 %v3778, %v3406
  %v3811 = vmul.f32 %v3779, %v3408
  %v3812 = vmul.f32 %v3780, %v3410
  %v3813 = vmul.f32 %v3781, %v3412
  %v3814 = vmul.f32 %v3782, %v3414
  %v3815 = vmul.f32 %v3783, %v3416
  %v3816 = vmul.f32 %v3784, %v3418
  %v3817 = vmul.f32 %v3785, %v3420
  %v3818 = vmul.f32 %v3786, %v3422
  %v3819 = vmul.f32 %v3787, %v3424
  %v3820 = vmul.f32 %v3788, %v3426
  %v3821 = vmul.f32 %v3789, %v3428
  %v3822 = vmul.f32 %v3790, %v3430
  %v3823 = vsel %vm232, %v3791, 0.0
  %v3824 = vsel %vm232, %v3792, 0.0
  %v3825 = vadd.f32 %v3823, %v3824
  %v3826 = vsel %vm232, %v3793, 0.0
  %v3827 = vadd.f32 %v3825, %v3826
  %v3828 = vsel %vm232, %v3794, 0.0
  %v3829 = vadd.f32 %v3827, %v3828
  %v3830 = vrot.slane %v3829, 4
  %v3831 = vadd.f32 %v3829, %v3830
  %v3832 = vrot.slane %v3831, 2
  %v3833 = vadd.f32 %v3831, %v3832
  %v3834 = vrot.slane %v3833, 1
  %v3835 = vadd.f32 %v3833, %v3834
  %v3836 = vsel %vm232, %v3795, 0.0
  %v3837 = vsel %vm232, %v3796, 0.0
  %v3838 = vadd.f32 %v3836, %v3837
  %v3839 = vsel %vm232, %v3797, 0.0
  %v3840 = vadd.f32 %v3838, %v3839
  %v3841 = vsel %vm232, %v3798, 0.0
  %v3842 = vadd.f32 %v3840, %v3841
  %v3843 = vrot.slane %v3842, 4
  %v3844 = vadd.f32 %v3842, %v3843
  %v3845 = vrot.slane %v3844, 2
  %v3846 = vadd.f32 %v3844, %v3845
  %v3847 = vrot.slane %v3846, 1
  %v3848 = vadd.f32 %v3846, %v3847
  %v3849 = vsel %vm232, %v3799, 0.0
  %v3850 = vsel %vm232, %v3800, 0.0
  %v3851 = vadd.f32 %v3849, %v3850
  %v3852 = vsel %vm232, %v3801, 0.0
  %v3853 = vadd.f32 %v3851, %v3852
  %v3854 = vsel %vm232, %v3802, 0.0
  %v3855 = vadd.f32 %v3853, %v3854
  %v3856 = vrot.slane %v3855, 4
  %v3857 = vadd.f32 %v3855, %v3856
  %v3858 = vrot.slane %v3857, 2
  %v3859 = vadd.f32 %v3857, %v3858
  %v3860 = vrot.slane %v3859, 1
  %v3861 = vadd.f32 %v3859, %v3860
  %v3862 = vsel %vm232, %v3803, 0.0
  %v3863 = vsel %vm232, %v3804, 0.0
  %v3864 = vadd.f32 %v3862, %v3863
  %v3865 = vsel %vm232, %v3805, 0.0
  %v3866 = vadd.f32 %v3864, %v3865
  %v3867 = vsel %vm232, %v3806, 0.0
  %v3868 = vadd.f32 %v3866, %v3867
  %v3869 = vrot.slane %v3868, 4
  %v3870 = vadd.f32 %v3868, %v3869
  %v3871 = vrot.slane %v3870, 2
  %v3872 = vadd.f32 %v3870, %v3871
  %v3873 = vrot.slane %v3872, 1
  %v3874 = vadd.f32 %v3872, %v3873
  %v3875 = vsel %vm232, %v3807, 0.0
  %v3876 = vsel %vm232, %v3808, 0.0
  %v3877 = vadd.f32 %v3875, %v3876
  %v3878 = vsel %vm232, %v3809, 0.0
  %v3879 = vadd.f32 %v3877, %v3878
  %v3880 = vsel %vm232, %v3810, 0.0
  %v3881 = vadd.f32 %v3879, %v3880
  %v3882 = vrot.slane %v3881, 4
  %v3883 = vadd.f32 %v3881, %v3882
  %v3884 = vrot.slane %v3883, 2
  %v3885 = vadd.f32 %v3883, %v3884
  %v3886 = vrot.slane %v3885, 1
  %v3887 = vadd.f32 %v3885, %v3886
  %v3888 = vsel %vm232, %v3811, 0.0
  %v3889 = vsel %vm232, %v3812, 0.0
  %v3890 = vadd.f32 %v3888, %v3889
  %v3891 = vsel %vm232, %v3813, 0.0
  %v3892 = vadd.f32 %v3890, %v3891
  %v3893 = vsel %vm232, %v3814, 0.0
  %v3894 = vadd.f32 %v3892, %v3893
  %v3895 = vrot.slane %v3894, 4
  %v3896 = vadd.f32 %v3894, %v3895
  %v3897 = vrot.slane %v3896, 2
  %v3898 = vadd.f32 %v3896, %v3897
  %v3899 = vrot.slane %v3898, 1
  %v3900 = vadd.f32 %v3898, %v3899
  %v3901 = vsel %vm232, %v3815, 0.0
  %v3902 = vsel %vm232, %v3816, 0.0
  %v3903 = vadd.f32 %v3901, %v3902
  %v3904 = vsel %vm232, %v3817, 0.0
  %v3905 = vadd.f32 %v3903, %v3904
  %v3906 = vsel %vm232, %v3818, 0.0
  %v3907 = vadd.f32 %v3905, %v3906
  %v3908 = vrot.slane %v3907, 4
  %v3909 = vadd.f32 %v3907, %v3908
  %v3910 = vrot.slane %v3909, 2
  %v3911 = vadd.f32 %v3909, %v3910
  %v3912 = vrot.slane %v3911, 1
  %v3913 = vadd.f32 %v3911, %v3912
  %v3914 = vsel %vm232, %v3819, 0.0
  %v3915 = vsel %vm232, %v3820, 0.0
  %v3916 = vadd.f32 %v3914, %v3915
  %v3917 = vsel %vm232, %v3821, 0.0
  %v3918 = vadd.f32 %v3916, %v3917
  %v3919 = vsel %vm232, %v3822, 0.0
  %v3920 = vadd.f32 %v3918, %v3919
  %v3921 = vrot.slane %v3920, 4
  %v3922 = vadd.f32 %v3920, %v3921
  %v3923 = vrot.slane %v3922, 2
  %v3924 = vadd.f32 %v3922, %v3923
  %v3925 = vrot.slane %v3924, 1
  %v3926 = vadd.f32 %v3924, %v3925
  %3928 = vset.pattern.permute.xlu0 0
  %3929 = vperm.xlu0 %3928, %v2959
  %v3930 = vpop.permute.xlu0 %3929
  %v3940 = vsel %vm1891, %v3848, %v3835
  %v3941 = vsel %vm1893, %v3861, %v3940
  %v3942 = vsel %vm1895, %v3874, %v3941
  %v3943 = vsel %vm1897, %v3887, %v3942
  %v3944 = vsel %vm1899, %v3900, %v3943
  %v3945 = vsel %vm1901, %v3913, %v3944
  %v3946 = vsel %vm1903, %v3926, %v3945
  %v3948 = vmul.f32 %v3930, %v3946
  %v3949 = vsub.f32 1.0, %v2959
  %3951 = vset.pattern.permute.xlu0 0
  %3952 = vperm.xlu0 %3951, %v3949
  %v3953 = vpop.permute.xlu0 %3952
  %v3955 = vmul.f32 %v3953, %v2981
  %v3956 = vadd.f32 %v3948, %v3955
  %v3957 = vlog2.pop %v3956
  %v3958 = vmul.f32 %v3957, 0.6931472
  %v3959 = vadd.f32 %v2955, %v3958
  %v3960 = vadd.f32 %v3959, %v2942
  %v3961 = vsel %vm232, %v3960, -inf
  %3962 = vmax.xlane.f32.xlu0 %v3961
  %v3963 = vpop.xlane.xlu0 %3962
  %v3964 = vsub.f32 %v3960, %v3963
  %v3965 = vmul.f32 %v3964, 1.442695
  %v3966 = vpow.pop %v3965
  %v3967 = vsel %vm232, %v3966, 0.0
  %3968 = vadd.xlane.f32.xlu0 %v3967
  %v3969 = vpop.xlane.xlu0 %3968
  %v3970 = vlog2.pop %v3969
  %v3971 = vmul.f32 %v3970, 0.6931472
  %v3972 = vadd.f32 %v3971, %v3963
  %s3973 = scalar_lea.vmem %s10, 24
  %3974 = vst.msk [vmem:[%s3973] sm:$0xff] %vm849, %v3972
  %s3975 = scalar_lea.vmem [#allocation2], 32
  %v3976 = vld [vmem:[%s3975] sm:$0xff]
  %s3977 = scalar_lea.vmem [#allocation3], 32
  %v3978 = vld [vmem:[%s3977] sm:$0xff]
  %s3979 = scalar_lea.vmem [#allocation4], 32
  %v3980 = vld [vmem:[%s3979] sm:$0xff]
  %v3982 = vsel %vm232, %v3966, 0
  %3984 = vmatpush.msra.mxu0 0.0
  %3985 = vmatpush.msra.mxu0 0.0
  %3986 = vmatpush.msra.mxu0 0.0
  %3987 = vmatpush.msra.mxu0 0.0
  %3988 = vmatpush.msra.mxu0 0.0
  %3989 = vmatpush.msra.mxu0 0.0
  %3990 = vmatpush.msra.mxu0 0.0
  %3991 = vmatpush.msra.mxu0 0.0
  %3992 = vmatpush.msra.mxu0 0.0
  %3993 = vmatpush.msra.mxu0 0.0
  %3994 = vmatpush.msra.mxu0 0.0
  %3995 = vmatpush.msra.mxu0 0.0
  %3996 = vmatpush.msra.mxu0 %v861
  %3997 = vmatpush.msra.mxu0 %v860
  %3998 = vmatpush.msra.mxu0 %v859
  %3999 = vmatpush.msra.mxu0 %v858
  %4000 = vmatmul.f32.gmra.mxu0 %v3982
  %v4001 = vpop.f32.mrf.mxu0
  %v4002 = vadd.f32 0.0, %v4001
  %4003 = vdwg.mxu0
  %v4004 = vsel %vm232, %v3978, -inf
  %4005 = vmax.xlane.f32.xlu0 %v4004
  %v4006 = vpop.xlane.xlu0 %4005
  %v4008 = vperm.slane %v4006, 0
  %v4009 = vperm.slane %v4006, 1
  %v4010 = vperm.slane %v4006, 2
  %v4011 = vperm.slane %v4006, 3
  %v4012 = vperm.slane %v4006, 4
  %v4013 = vperm.slane %v4006, 5
  %v4014 = vperm.slane %v4006, 6
  %v4015 = vperm.slane %v4006, 7
  %v4024 = vsel %vm232, %v3978, inf
  %4025 = vmin.xlane.f32.xlu0 %v4024
  %v4026 = vpop.xlane.xlu0 %4025
  %v4028 = vperm.slane %v4026, 0
  %v4029 = vperm.slane %v4026, 1
  %v4030 = vperm.slane %v4026, 2
  %v4031 = vperm.slane %v4026, 3
  %v4032 = vperm.slane %v4026, 4
  %v4033 = vperm.slane %v4026, 5
  %v4034 = vperm.slane %v4026, 6
  %v4035 = vperm.slane %v4026, 7
  %v4044 = vmul.f32 %v4008, %v862
  %v4045 = vmul.f32 %v4008, %v863
  %v4046 = vmul.f32 %v4008, %v864
  %v4047 = vmul.f32 %v4008, %v865
  %v4048 = vmul.f32 %v4009, %v862
  %v4049 = vmul.f32 %v4009, %v863
  %v4050 = vmul.f32 %v4009, %v864
  %v4051 = vmul.f32 %v4009, %v865
  %v4052 = vmul.f32 %v4010, %v862
  %v4053 = vmul.f32 %v4010, %v863
  %v4054 = vmul.f32 %v4010, %v864
  %v4055 = vmul.f32 %v4010, %v865
  %v4056 = vmul.f32 %v4011, %v862
  %v4057 = vmul.f32 %v4011, %v863
  %v4058 = vmul.f32 %v4011, %v864
  %v4059 = vmul.f32 %v4011, %v865
  %v4060 = vmul.f32 %v4012, %v862
  %v4061 = vmul.f32 %v4012, %v863
  %v4062 = vmul.f32 %v4012, %v864
  %v4063 = vmul.f32 %v4012, %v865
  %v4064 = vmul.f32 %v4013, %v862
  %v4065 = vmul.f32 %v4013, %v863
  %v4066 = vmul.f32 %v4013, %v864
  %v4067 = vmul.f32 %v4013, %v865
  %v4068 = vmul.f32 %v4014, %v862
  %v4069 = vmul.f32 %v4014, %v863
  %v4070 = vmul.f32 %v4014, %v864
  %v4071 = vmul.f32 %v4014, %v865
  %v4072 = vmul.f32 %v4015, %v862
  %v4073 = vmul.f32 %v4015, %v863
  %v4074 = vmul.f32 %v4015, %v864
  %v4075 = vmul.f32 %v4015, %v865
  %v4076 = vmul.f32 %v4028, %v862
  %v4077 = vmul.f32 %v4028, %v863
  %v4078 = vmul.f32 %v4028, %v864
  %v4079 = vmul.f32 %v4028, %v865
  %v4080 = vmul.f32 %v4029, %v862
  %v4081 = vmul.f32 %v4029, %v863
  %v4082 = vmul.f32 %v4029, %v864
  %v4083 = vmul.f32 %v4029, %v865
  %v4084 = vmul.f32 %v4030, %v862
  %v4085 = vmul.f32 %v4030, %v863
  %v4086 = vmul.f32 %v4030, %v864
  %v4087 = vmul.f32 %v4030, %v865
  %v4088 = vmul.f32 %v4031, %v862
  %v4089 = vmul.f32 %v4031, %v863
  %v4090 = vmul.f32 %v4031, %v864
  %v4091 = vmul.f32 %v4031, %v865
  %v4092 = vmul.f32 %v4032, %v862
  %v4093 = vmul.f32 %v4032, %v863
  %v4094 = vmul.f32 %v4032, %v864
  %v4095 = vmul.f32 %v4032, %v865
  %v4096 = vmul.f32 %v4033, %v862
  %v4097 = vmul.f32 %v4033, %v863
  %v4098 = vmul.f32 %v4033, %v864
  %v4099 = vmul.f32 %v4033, %v865
  %v4100 = vmul.f32 %v4034, %v862
  %v4101 = vmul.f32 %v4034, %v863
  %v4102 = vmul.f32 %v4034, %v864
  %v4103 = vmul.f32 %v4034, %v865
  %v4104 = vmul.f32 %v4035, %v862
  %v4105 = vmul.f32 %v4035, %v863
  %v4106 = vmul.f32 %v4035, %v864
  %v4107 = vmul.f32 %v4035, %v865
  %v4108 = vmax.f32 %v4044, %v4076
  %v4109 = vmax.f32 %v4045, %v4077
  %v4110 = vmax.f32 %v4046, %v4078
  %v4111 = vmax.f32 %v4047, %v4079
  %v4112 = vmax.f32 %v4048, %v4080
  %v4113 = vmax.f32 %v4049, %v4081
  %v4114 = vmax.f32 %v4050, %v4082
  %v4115 = vmax.f32 %v4051, %v4083
  %v4116 = vmax.f32 %v4052, %v4084
  %v4117 = vmax.f32 %v4053, %v4085
  %v4118 = vmax.f32 %v4054, %v4086
  %v4119 = vmax.f32 %v4055, %v4087
  %v4120 = vmax.f32 %v4056, %v4088
  %v4121 = vmax.f32 %v4057, %v4089
  %v4122 = vmax.f32 %v4058, %v4090
  %v4123 = vmax.f32 %v4059, %v4091
  %v4124 = vmax.f32 %v4060, %v4092
  %v4125 = vmax.f32 %v4061, %v4093
  %v4126 = vmax.f32 %v4062, %v4094
  %v4127 = vmax.f32 %v4063, %v4095
  %v4128 = vmax.f32 %v4064, %v4096
  %v4129 = vmax.f32 %v4065, %v4097
  %v4130 = vmax.f32 %v4066, %v4098
  %v4131 = vmax.f32 %v4067, %v4099
  %v4132 = vmax.f32 %v4068, %v4100
  %v4133 = vmax.f32 %v4069, %v4101
  %v4134 = vmax.f32 %v4070, %v4102
  %v4135 = vmax.f32 %v4071, %v4103
  %v4136 = vmax.f32 %v4072, %v4104
  %v4137 = vmax.f32 %v4073, %v4105
  %v4138 = vmax.f32 %v4074, %v4106
  %v4139 = vmax.f32 %v4075, %v4107
  %v4141 = vrot.slane %v3978, 1
  %v4142 = vrot.slane %v3978, 2
  %v4143 = vrot.slane %v3978, 3
  %v4144 = vrot.slane %v3978, 4
  %v4145 = vrot.slane %v3978, 5
  %v4146 = vrot.slane %v3978, 6
  %v4147 = vrot.slane %v3978, 7
  %v4148 = vperm.slane %v3978, 0
  %v4149 = vperm.slane %v4141, 0
  %v4150 = vperm.slane %v4142, 0
  %v4151 = vperm.slane %v4143, 0
  %v4152 = vperm.slane %v4144, 0
  %v4153 = vperm.slane %v4145, 0
  %v4154 = vperm.slane %v4146, 0
  %v4155 = vperm.slane %v4147, 0
  %v4164 = vmul.f32 %v1061, %v4148
  %v4165 = vmul.f32 %v1066, %v4148
  %v4166 = vmul.f32 %v1071, %v4148
  %v4167 = vmul.f32 %v1076, %v4148
  %v4168 = vmul.f32 %v1061, %v4149
  %v4169 = vmul.f32 %v1066, %v4149
  %v4170 = vmul.f32 %v1071, %v4149
  %v4171 = vmul.f32 %v1076, %v4149
  %v4172 = vmul.f32 %v1061, %v4150
  %v4173 = vmul.f32 %v1066, %v4150
  %v4174 = vmul.f32 %v1071, %v4150
  %v4175 = vmul.f32 %v1076, %v4150
  %v4176 = vmul.f32 %v1061, %v4151
  %v4177 = vmul.f32 %v1066, %v4151
  %v4178 = vmul.f32 %v1071, %v4151
  %v4179 = vmul.f32 %v1076, %v4151
  %v4180 = vmul.f32 %v1061, %v4152
  %v4181 = vmul.f32 %v1066, %v4152
  %v4182 = vmul.f32 %v1071, %v4152
  %v4183 = vmul.f32 %v1076, %v4152
  %v4184 = vmul.f32 %v1061, %v4153
  %v4185 = vmul.f32 %v1066, %v4153
  %v4186 = vmul.f32 %v1071, %v4153
  %v4187 = vmul.f32 %v1076, %v4153
  %v4188 = vmul.f32 %v1061, %v4154
  %v4189 = vmul.f32 %v1066, %v4154
  %v4190 = vmul.f32 %v1071, %v4154
  %v4191 = vmul.f32 %v1076, %v4154
  %v4192 = vmul.f32 %v1061, %v4155
  %v4193 = vmul.f32 %v1066, %v4155
  %v4194 = vmul.f32 %v1071, %v4155
  %v4195 = vmul.f32 %v1076, %v4155
  %4197 = vset.pattern.permute.xlu0 0
  %4198 = vperm.xlu0 %4197, %v4108
  %v4199 = vpop.permute.xlu0 %4198
  %4202 = vset.pattern.permute.xlu0 0
  %4203 = vperm.xlu0 %4202, %v4109
  %v4204 = vpop.permute.xlu0 %4203
  %4207 = vset.pattern.permute.xlu0 0
  %4208 = vperm.xlu0 %4207, %v4110
  %v4209 = vpop.permute.xlu0 %4208
  %4212 = vset.pattern.permute.xlu0 0
  %4213 = vperm.xlu0 %4212, %v4111
  %v4214 = vpop.permute.xlu0 %4213
  %4217 = vset.pattern.permute.xlu0 0
  %4218 = vperm.xlu0 %4217, %v4112
  %v4219 = vpop.permute.xlu0 %4218
  %4222 = vset.pattern.permute.xlu0 0
  %4223 = vperm.xlu0 %4222, %v4113
  %v4224 = vpop.permute.xlu0 %4223
  %4227 = vset.pattern.permute.xlu0 0
  %4228 = vperm.xlu0 %4227, %v4114
  %v4229 = vpop.permute.xlu0 %4228
  %4232 = vset.pattern.permute.xlu0 0
  %4233 = vperm.xlu0 %4232, %v4115
  %v4234 = vpop.permute.xlu0 %4233
  %4237 = vset.pattern.permute.xlu0 0
  %4238 = vperm.xlu0 %4237, %v4116
  %v4239 = vpop.permute.xlu0 %4238
  %4242 = vset.pattern.permute.xlu0 0
  %4243 = vperm.xlu0 %4242, %v4117
  %v4244 = vpop.permute.xlu0 %4243
  %4247 = vset.pattern.permute.xlu0 0
  %4248 = vperm.xlu0 %4247, %v4118
  %v4249 = vpop.permute.xlu0 %4248
  %4252 = vset.pattern.permute.xlu0 0
  %4253 = vperm.xlu0 %4252, %v4119
  %v4254 = vpop.permute.xlu0 %4253
  %4257 = vset.pattern.permute.xlu0 0
  %4258 = vperm.xlu0 %4257, %v4120
  %v4259 = vpop.permute.xlu0 %4258
  %4262 = vset.pattern.permute.xlu0 0
  %4263 = vperm.xlu0 %4262, %v4121
  %v4264 = vpop.permute.xlu0 %4263
  %4267 = vset.pattern.permute.xlu0 0
  %4268 = vperm.xlu0 %4267, %v4122
  %v4269 = vpop.permute.xlu0 %4268
  %4272 = vset.pattern.permute.xlu0 0
  %4273 = vperm.xlu0 %4272, %v4123
  %v4274 = vpop.permute.xlu0 %4273
  %4277 = vset.pattern.permute.xlu0 0
  %4278 = vperm.xlu0 %4277, %v4124
  %v4279 = vpop.permute.xlu0 %4278
  %4282 = vset.pattern.permute.xlu0 0
  %4283 = vperm.xlu0 %4282, %v4125
  %v4284 = vpop.permute.xlu0 %4283
  %4287 = vset.pattern.permute.xlu0 0
  %4288 = vperm.xlu0 %4287, %v4126
  %v4289 = vpop.permute.xlu0 %4288
  %4292 = vset.pattern.permute.xlu0 0
  %4293 = vperm.xlu0 %4292, %v4127
  %v4294 = vpop.permute.xlu0 %4293
  %4297 = vset.pattern.permute.xlu0 0
  %4298 = vperm.xlu0 %4297, %v4128
  %v4299 = vpop.permute.xlu0 %4298
  %4302 = vset.pattern.permute.xlu0 0
  %4303 = vperm.xlu0 %4302, %v4129
  %v4304 = vpop.permute.xlu0 %4303
  %4307 = vset.pattern.permute.xlu0 0
  %4308 = vperm.xlu0 %4307, %v4130
  %v4309 = vpop.permute.xlu0 %4308
  %4312 = vset.pattern.permute.xlu0 0
  %4313 = vperm.xlu0 %4312, %v4131
  %v4314 = vpop.permute.xlu0 %4313
  %4317 = vset.pattern.permute.xlu0 0
  %4318 = vperm.xlu0 %4317, %v4132
  %v4319 = vpop.permute.xlu0 %4318
  %4322 = vset.pattern.permute.xlu0 0
  %4323 = vperm.xlu0 %4322, %v4133
  %v4324 = vpop.permute.xlu0 %4323
  %4327 = vset.pattern.permute.xlu0 0
  %4328 = vperm.xlu0 %4327, %v4134
  %v4329 = vpop.permute.xlu0 %4328
  %4332 = vset.pattern.permute.xlu0 0
  %4333 = vperm.xlu0 %4332, %v4135
  %v4334 = vpop.permute.xlu0 %4333
  %4337 = vset.pattern.permute.xlu0 0
  %4338 = vperm.xlu0 %4337, %v4136
  %v4339 = vpop.permute.xlu0 %4338
  %4342 = vset.pattern.permute.xlu0 0
  %4343 = vperm.xlu0 %4342, %v4137
  %v4344 = vpop.permute.xlu0 %4343
  %4347 = vset.pattern.permute.xlu0 0
  %4348 = vperm.xlu0 %4347, %v4138
  %v4349 = vpop.permute.xlu0 %4348
  %4352 = vset.pattern.permute.xlu0 0
  %4353 = vperm.xlu0 %4352, %v4139
  %v4354 = vpop.permute.xlu0 %4353
  %v4356 = vsub.f32 %v4164, %v4199
  %v4357 = vsub.f32 %v4165, %v4204
  %v4358 = vsub.f32 %v4166, %v4209
  %v4359 = vsub.f32 %v4167, %v4214
  %v4360 = vsub.f32 %v4168, %v4219
  %v4361 = vsub.f32 %v4169, %v4224
  %v4362 = vsub.f32 %v4170, %v4229
  %v4363 = vsub.f32 %v4171, %v4234
  %v4364 = vsub.f32 %v4172, %v4239
  %v4365 = vsub.f32 %v4173, %v4244
  %v4366 = vsub.f32 %v4174, %v4249
  %v4367 = vsub.f32 %v4175, %v4254
  %v4368 = vsub.f32 %v4176, %v4259
  %v4369 = vsub.f32 %v4177, %v4264
  %v4370 = vsub.f32 %v4178, %v4269
  %v4371 = vsub.f32 %v4179, %v4274
  %v4372 = vsub.f32 %v4180, %v4279
  %v4373 = vsub.f32 %v4181, %v4284
  %v4374 = vsub.f32 %v4182, %v4289
  %v4375 = vsub.f32 %v4183, %v4294
  %v4376 = vsub.f32 %v4184, %v4299
  %v4377 = vsub.f32 %v4185, %v4304
  %v4378 = vsub.f32 %v4186, %v4309
  %v4379 = vsub.f32 %v4187, %v4314
  %v4380 = vsub.f32 %v4188, %v4319
  %v4381 = vsub.f32 %v4189, %v4324
  %v4382 = vsub.f32 %v4190, %v4329
  %v4383 = vsub.f32 %v4191, %v4334
  %v4384 = vsub.f32 %v4192, %v4339
  %v4385 = vsub.f32 %v4193, %v4344
  %v4386 = vsub.f32 %v4194, %v4349
  %v4387 = vsub.f32 %v4195, %v4354
  %v4388 = vmul.f32 %v4356, 1.442695
  %v4389 = vpow.pop %v4388
  %v4390 = vmul.f32 %v4357, 1.442695
  %v4391 = vpow.pop %v4390
  %v4392 = vmul.f32 %v4358, 1.442695
  %v4393 = vpow.pop %v4392
  %v4394 = vmul.f32 %v4359, 1.442695
  %v4395 = vpow.pop %v4394
  %v4396 = vmul.f32 %v4360, 1.442695
  %v4397 = vpow.pop %v4396
  %v4398 = vmul.f32 %v4361, 1.442695
  %v4399 = vpow.pop %v4398
  %v4400 = vmul.f32 %v4362, 1.442695
  %v4401 = vpow.pop %v4400
  %v4402 = vmul.f32 %v4363, 1.442695
  %v4403 = vpow.pop %v4402
  %v4404 = vmul.f32 %v4364, 1.442695
  %v4405 = vpow.pop %v4404
  %v4406 = vmul.f32 %v4365, 1.442695
  %v4407 = vpow.pop %v4406
  %v4408 = vmul.f32 %v4366, 1.442695
  %v4409 = vpow.pop %v4408
  %v4410 = vmul.f32 %v4367, 1.442695
  %v4411 = vpow.pop %v4410
  %v4412 = vmul.f32 %v4368, 1.442695
  %v4413 = vpow.pop %v4412
  %v4414 = vmul.f32 %v4369, 1.442695
  %v4415 = vpow.pop %v4414
  %v4416 = vmul.f32 %v4370, 1.442695
  %v4417 = vpow.pop %v4416
  %v4418 = vmul.f32 %v4371, 1.442695
  %v4419 = vpow.pop %v4418
  %v4420 = vmul.f32 %v4372, 1.442695
  %v4421 = vpow.pop %v4420
  %v4422 = vmul.f32 %v4373, 1.442695
  %v4423 = vpow.pop %v4422
  %v4424 = vmul.f32 %v4374, 1.442695
  %v4425 = vpow.pop %v4424
  %v4426 = vmul.f32 %v4375, 1.442695
  %v4427 = vpow.pop %v4426
  %v4428 = vmul.f32 %v4376, 1.442695
  %v4429 = vpow.pop %v4428
  %v4430 = vmul.f32 %v4377, 1.442695
  %v4431 = vpow.pop %v4430
  %v4432 = vmul.f32 %v4378, 1.442695
  %v4433 = vpow.pop %v4432
  %v4434 = vmul.f32 %v4379, 1.442695
  %v4435 = vpow.pop %v4434
  %v4436 = vmul.f32 %v4380, 1.442695
  %v4437 = vpow.pop %v4436
  %v4438 = vmul.f32 %v4381, 1.442695
  %v4439 = vpow.pop %v4438
  %v4440 = vmul.f32 %v4382, 1.442695
  %v4441 = vpow.pop %v4440
  %v4442 = vmul.f32 %v4383, 1.442695
  %v4443 = vpow.pop %v4442
  %v4444 = vmul.f32 %v4384, 1.442695
  %v4445 = vpow.pop %v4444
  %v4446 = vmul.f32 %v4385, 1.442695
  %v4447 = vpow.pop %v4446
  %v4448 = vmul.f32 %v4386, 1.442695
  %v4449 = vpow.pop %v4448
  %v4450 = vmul.f32 %v4387, 1.442695
  %v4451 = vpow.pop %v4450
  %v4452 = vsel %vm232, %v4389, 0.0
  %4453 = vadd.xlane.f32.xlu0 %v4452
  %v4454 = vpop.xlane.xlu0 %4453
  %v4455 = vsel %vm232, %v4391, 0.0
  %4456 = vadd.xlane.f32.xlu0 %v4455
  %v4457 = vpop.xlane.xlu0 %4456
  %v4458 = vsel %vm232, %v4393, 0.0
  %4459 = vadd.xlane.f32.xlu0 %v4458
  %v4460 = vpop.xlane.xlu0 %4459
  %v4461 = vsel %vm232, %v4395, 0.0
  %4462 = vadd.xlane.f32.xlu0 %v4461
  %v4463 = vpop.xlane.xlu0 %4462
  %v4464 = vsel %vm232, %v4397, 0.0
  %4465 = vadd.xlane.f32.xlu0 %v4464
  %v4466 = vpop.xlane.xlu0 %4465
  %v4467 = vsel %vm232, %v4399, 0.0
  %4468 = vadd.xlane.f32.xlu0 %v4467
  %v4469 = vpop.xlane.xlu0 %4468
  %v4470 = vsel %vm232, %v4401, 0.0
  %4471 = vadd.xlane.f32.xlu0 %v4470
  %v4472 = vpop.xlane.xlu0 %4471
  %v4473 = vsel %vm232, %v4403, 0.0
  %4474 = vadd.xlane.f32.xlu0 %v4473
  %v4475 = vpop.xlane.xlu0 %4474
  %v4476 = vsel %vm232, %v4405, 0.0
  %4477 = vadd.xlane.f32.xlu0 %v4476
  %v4478 = vpop.xlane.xlu0 %4477
  %v4479 = vsel %vm232, %v4407, 0.0
  %4480 = vadd.xlane.f32.xlu0 %v4479
  %v4481 = vpop.xlane.xlu0 %4480
  %v4482 = vsel %vm232, %v4409, 0.0
  %4483 = vadd.xlane.f32.xlu0 %v4482
  %v4484 = vpop.xlane.xlu0 %4483
  %v4485 = vsel %vm232, %v4411, 0.0
  %4486 = vadd.xlane.f32.xlu0 %v4485
  %v4487 = vpop.xlane.xlu0 %4486
  %v4488 = vsel %vm232, %v4413, 0.0
  %4489 = vadd.xlane.f32.xlu0 %v4488
  %v4490 = vpop.xlane.xlu0 %4489
  %v4491 = vsel %vm232, %v4415, 0.0
  %4492 = vadd.xlane.f32.xlu0 %v4491
  %v4493 = vpop.xlane.xlu0 %4492
  %v4494 = vsel %vm232, %v4417, 0.0
  %4495 = vadd.xlane.f32.xlu0 %v4494
  %v4496 = vpop.xlane.xlu0 %4495
  %v4497 = vsel %vm232, %v4419, 0.0
  %4498 = vadd.xlane.f32.xlu0 %v4497
  %v4499 = vpop.xlane.xlu0 %4498
  %v4500 = vsel %vm232, %v4421, 0.0
  %4501 = vadd.xlane.f32.xlu0 %v4500
  %v4502 = vpop.xlane.xlu0 %4501
  %v4503 = vsel %vm232, %v4423, 0.0
  %4504 = vadd.xlane.f32.xlu0 %v4503
  %v4505 = vpop.xlane.xlu0 %4504
  %v4506 = vsel %vm232, %v4425, 0.0
  %4507 = vadd.xlane.f32.xlu0 %v4506
  %v4508 = vpop.xlane.xlu0 %4507
  %v4509 = vsel %vm232, %v4427, 0.0
  %4510 = vadd.xlane.f32.xlu0 %v4509
  %v4511 = vpop.xlane.xlu0 %4510
  %v4512 = vsel %vm232, %v4429, 0.0
  %4513 = vadd.xlane.f32.xlu0 %v4512
  %v4514 = vpop.xlane.xlu0 %4513
  %v4515 = vsel %vm232, %v4431, 0.0
  %4516 = vadd.xlane.f32.xlu0 %v4515
  %v4517 = vpop.xlane.xlu0 %4516
  %v4518 = vsel %vm232, %v4433, 0.0
  %4519 = vadd.xlane.f32.xlu0 %v4518
  %v4520 = vpop.xlane.xlu0 %4519
  %v4521 = vsel %vm232, %v4435, 0.0
  %4522 = vadd.xlane.f32.xlu0 %v4521
  %v4523 = vpop.xlane.xlu0 %4522
  %v4524 = vsel %vm232, %v4437, 0.0
  %4525 = vadd.xlane.f32.xlu0 %v4524
  %v4526 = vpop.xlane.xlu0 %4525
  %v4527 = vsel %vm232, %v4439, 0.0
  %4528 = vadd.xlane.f32.xlu0 %v4527
  %v4529 = vpop.xlane.xlu0 %4528
  %v4530 = vsel %vm232, %v4441, 0.0
  %4531 = vadd.xlane.f32.xlu0 %v4530
  %v4532 = vpop.xlane.xlu0 %4531
  %v4533 = vsel %vm232, %v4443, 0.0
  %4534 = vadd.xlane.f32.xlu0 %v4533
  %v4535 = vpop.xlane.xlu0 %4534
  %v4536 = vsel %vm232, %v4445, 0.0
  %4537 = vadd.xlane.f32.xlu0 %v4536
  %v4538 = vpop.xlane.xlu0 %4537
  %v4539 = vsel %vm232, %v4447, 0.0
  %4540 = vadd.xlane.f32.xlu0 %v4539
  %v4541 = vpop.xlane.xlu0 %4540
  %v4542 = vsel %vm232, %v4449, 0.0
  %4543 = vadd.xlane.f32.xlu0 %v4542
  %v4544 = vpop.xlane.xlu0 %4543
  %v4545 = vsel %vm232, %v4451, 0.0
  %4546 = vadd.xlane.f32.xlu0 %v4545
  %v4547 = vpop.xlane.xlu0 %4546
  %v4548 = vperm.slane %v3966, 0
  %v4549 = vlaneseq
  %v4550 = vshrl.u32 %v4549, 7
  %4552 = vset.pattern.permute.xlu0 %v4550
  %4553 = vperm.xlu0 %4552, %v4548
  %v4554 = vpop.permute.xlu0 %4553
  %v4555 = vlaneseq
  %v4556 = vshrl.u32 %v4555, 7
  %v4557 = vadd.s32 %v4556, 8
  %4558 = vset.pattern.permute.xlu0 %v4557
  %4559 = vperm.xlu0 %4558, %v4548
  %v4560 = vpop.permute.xlu0 %4559
  %v4561 = vlaneseq
  %v4562 = vshrl.u32 %v4561, 7
  %v4563 = vadd.s32 %v4562, 16
  %4564 = vset.pattern.permute.xlu0 %v4563
  %4565 = vperm.xlu0 %4564, %v4548
  %v4566 = vpop.permute.xlu0 %4565
  %v4567 = vlaneseq
  %v4568 = vshrl.u32 %v4567, 7
  %v4569 = vadd.s32 %v4568, 24
  %4570 = vset.pattern.permute.xlu0 %v4569
  %4571 = vperm.xlu0 %4570, %v4548
  %v4572 = vpop.permute.xlu0 %4571
  %v4573 = vperm.slane %v3966, 1
  %v4574 = vlaneseq
  %v4575 = vshrl.u32 %v4574, 7
  %4577 = vset.pattern.permute.xlu0 %v4575
  %4578 = vperm.xlu0 %4577, %v4573
  %v4579 = vpop.permute.xlu0 %4578
  %v4580 = vlaneseq
  %v4581 = vshrl.u32 %v4580, 7
  %v4582 = vadd.s32 %v4581, 8
  %4583 = vset.pattern.permute.xlu0 %v4582
  %4584 = vperm.xlu0 %4583, %v4573
  %v4585 = vpop.permute.xlu0 %4584
  %v4586 = vlaneseq
  %v4587 = vshrl.u32 %v4586, 7
  %v4588 = vadd.s32 %v4587, 16
  %4589 = vset.pattern.permute.xlu0 %v4588
  %4590 = vperm.xlu0 %4589, %v4573
  %v4591 = vpop.permute.xlu0 %4590
  %v4592 = vlaneseq
  %v4593 = vshrl.u32 %v4592, 7
  %v4594 = vadd.s32 %v4593, 24
  %4595 = vset.pattern.permute.xlu0 %v4594
  %4596 = vperm.xlu0 %4595, %v4573
  %v4597 = vpop.permute.xlu0 %4596
  %v4598 = vperm.slane %v3966, 2
  %v4599 = vlaneseq
  %v4600 = vshrl.u32 %v4599, 7
  %4602 = vset.pattern.permute.xlu0 %v4600
  %4603 = vperm.xlu0 %4602, %v4598
  %v4604 = vpop.permute.xlu0 %4603
  %v4605 = vlaneseq
  %v4606 = vshrl.u32 %v4605, 7
  %v4607 = vadd.s32 %v4606, 8
  %4608 = vset.pattern.permute.xlu0 %v4607
  %4609 = vperm.xlu0 %4608, %v4598
  %v4610 = vpop.permute.xlu0 %4609
  %v4611 = vlaneseq
  %v4612 = vshrl.u32 %v4611, 7
  %v4613 = vadd.s32 %v4612, 16
  %4614 = vset.pattern.permute.xlu0 %v4613
  %4615 = vperm.xlu0 %4614, %v4598
  %v4616 = vpop.permute.xlu0 %4615
  %v4617 = vlaneseq
  %v4618 = vshrl.u32 %v4617, 7
  %v4619 = vadd.s32 %v4618, 24
  %4620 = vset.pattern.permute.xlu0 %v4619
  %4621 = vperm.xlu0 %4620, %v4598
  %v4622 = vpop.permute.xlu0 %4621
  %v4623 = vperm.slane %v3966, 3
  %v4624 = vlaneseq
  %v4625 = vshrl.u32 %v4624, 7
  %4627 = vset.pattern.permute.xlu0 %v4625
  %4628 = vperm.xlu0 %4627, %v4623
  %v4629 = vpop.permute.xlu0 %4628
  %v4630 = vlaneseq
  %v4631 = vshrl.u32 %v4630, 7
  %v4632 = vadd.s32 %v4631, 8
  %4633 = vset.pattern.permute.xlu0 %v4632
  %4634 = vperm.xlu0 %4633, %v4623
  %v4635 = vpop.permute.xlu0 %4634
  %v4636 = vlaneseq
  %v4637 = vshrl.u32 %v4636, 7
  %v4638 = vadd.s32 %v4637, 16
  %4639 = vset.pattern.permute.xlu0 %v4638
  %4640 = vperm.xlu0 %4639, %v4623
  %v4641 = vpop.permute.xlu0 %4640
  %v4642 = vlaneseq
  %v4643 = vshrl.u32 %v4642, 7
  %v4644 = vadd.s32 %v4643, 24
  %4645 = vset.pattern.permute.xlu0 %v4644
  %4646 = vperm.xlu0 %4645, %v4623
  %v4647 = vpop.permute.xlu0 %4646
  %v4648 = vperm.slane %v3966, 4
  %v4649 = vlaneseq
  %v4650 = vshrl.u32 %v4649, 7
  %4652 = vset.pattern.permute.xlu0 %v4650
  %4653 = vperm.xlu0 %4652, %v4648
  %v4654 = vpop.permute.xlu0 %4653
  %v4655 = vlaneseq
  %v4656 = vshrl.u32 %v4655, 7
  %v4657 = vadd.s32 %v4656, 8
  %4658 = vset.pattern.permute.xlu0 %v4657
  %4659 = vperm.xlu0 %4658, %v4648
  %v4660 = vpop.permute.xlu0 %4659
  %v4661 = vlaneseq
  %v4662 = vshrl.u32 %v4661, 7
  %v4663 = vadd.s32 %v4662, 16
  %4664 = vset.pattern.permute.xlu0 %v4663
  %4665 = vperm.xlu0 %4664, %v4648
  %v4666 = vpop.permute.xlu0 %4665
  %v4667 = vlaneseq
  %v4668 = vshrl.u32 %v4667, 7
  %v4669 = vadd.s32 %v4668, 24
  %4670 = vset.pattern.permute.xlu0 %v4669
  %4671 = vperm.xlu0 %4670, %v4648
  %v4672 = vpop.permute.xlu0 %4671
  %v4673 = vperm.slane %v3966, 5
  %v4674 = vlaneseq
  %v4675 = vshrl.u32 %v4674, 7
  %4677 = vset.pattern.permute.xlu0 %v4675
  %4678 = vperm.xlu0 %4677, %v4673
  %v4679 = vpop.permute.xlu0 %4678
  %v4680 = vlaneseq
  %v4681 = vshrl.u32 %v4680, 7
  %v4682 = vadd.s32 %v4681, 8
  %4683 = vset.pattern.permute.xlu0 %v4682
  %4684 = vperm.xlu0 %4683, %v4673
  %v4685 = vpop.permute.xlu0 %4684
  %v4686 = vlaneseq
  %v4687 = vshrl.u32 %v4686, 7
  %v4688 = vadd.s32 %v4687, 16
  %4689 = vset.pattern.permute.xlu0 %v4688
  %4690 = vperm.xlu0 %4689, %v4673
  %v4691 = vpop.permute.xlu0 %4690
  %v4692 = vlaneseq
  %v4693 = vshrl.u32 %v4692, 7
  %v4694 = vadd.s32 %v4693, 24
  %4695 = vset.pattern.permute.xlu0 %v4694
  %4696 = vperm.xlu0 %4695, %v4673
  %v4697 = vpop.permute.xlu0 %4696
  %v4698 = vperm.slane %v3966, 6
  %v4699 = vlaneseq
  %v4700 = vshrl.u32 %v4699, 7
  %4702 = vset.pattern.permute.xlu0 %v4700
  %4703 = vperm.xlu0 %4702, %v4698
  %v4704 = vpop.permute.xlu0 %4703
  %v4705 = vlaneseq
  %v4706 = vshrl.u32 %v4705, 7
  %v4707 = vadd.s32 %v4706, 8
  %4708 = vset.pattern.permute.xlu0 %v4707
  %4709 = vperm.xlu0 %4708, %v4698
  %v4710 = vpop.permute.xlu0 %4709
  %v4711 = vlaneseq
  %v4712 = vshrl.u32 %v4711, 7
  %v4713 = vadd.s32 %v4712, 16
  %4714 = vset.pattern.permute.xlu0 %v4713
  %4715 = vperm.xlu0 %4714, %v4698
  %v4716 = vpop.permute.xlu0 %4715
  %v4717 = vlaneseq
  %v4718 = vshrl.u32 %v4717, 7
  %v4719 = vadd.s32 %v4718, 24
  %4720 = vset.pattern.permute.xlu0 %v4719
  %4721 = vperm.xlu0 %4720, %v4698
  %v4722 = vpop.permute.xlu0 %4721
  %v4723 = vperm.slane %v3966, 7
  %v4724 = vlaneseq
  %v4725 = vshrl.u32 %v4724, 7
  %4727 = vset.pattern.permute.xlu0 %v4725
  %4728 = vperm.xlu0 %4727, %v4723
  %v4729 = vpop.permute.xlu0 %4728
  %v4730 = vlaneseq
  %v4731 = vshrl.u32 %v4730, 7
  %v4732 = vadd.s32 %v4731, 8
  %4733 = vset.pattern.permute.xlu0 %v4732
  %4734 = vperm.xlu0 %4733, %v4723
  %v4735 = vpop.permute.xlu0 %4734
  %v4736 = vlaneseq
  %v4737 = vshrl.u32 %v4736, 7
  %v4738 = vadd.s32 %v4737, 16
  %4739 = vset.pattern.permute.xlu0 %v4738
  %4740 = vperm.xlu0 %4739, %v4723
  %v4741 = vpop.permute.xlu0 %4740
  %v4742 = vlaneseq
  %v4743 = vshrl.u32 %v4742, 7
  %v4744 = vadd.s32 %v4743, 24
  %4745 = vset.pattern.permute.xlu0 %v4744
  %4746 = vperm.xlu0 %4745, %v4723
  %v4747 = vpop.permute.xlu0 %4746
  %v4748 = vrcp.pop %v4454
  %v4749 = vrcp.pop %v4457
  %v4750 = vrcp.pop %v4460
  %v4751 = vrcp.pop %v4463
  %v4752 = vrcp.pop %v4466
  %v4753 = vrcp.pop %v4469
  %v4754 = vrcp.pop %v4472
  %v4755 = vrcp.pop %v4475
  %v4756 = vrcp.pop %v4478
  %v4757 = vrcp.pop %v4481
  %v4758 = vrcp.pop %v4484
  %v4759 = vrcp.pop %v4487
  %v4760 = vrcp.pop %v4490
  %v4761 = vrcp.pop %v4493
  %v4762 = vrcp.pop %v4496
  %v4763 = vrcp.pop %v4499
  %v4764 = vrcp.pop %v4502
  %v4765 = vrcp.pop %v4505
  %v4766 = vrcp.pop %v4508
  %v4767 = vrcp.pop %v4511
  %v4768 = vrcp.pop %v4514
  %v4769 = vrcp.pop %v4517
  %v4770 = vrcp.pop %v4520
  %v4771 = vrcp.pop %v4523
  %v4772 = vrcp.pop %v4526
  %v4773 = vrcp.pop %v4529
  %v4774 = vrcp.pop %v4532
  %v4775 = vrcp.pop %v4535
  %v4776 = vrcp.pop %v4538
  %v4777 = vrcp.pop %v4541
  %v4778 = vrcp.pop %v4544
  %v4779 = vrcp.pop %v4547
  %v4780 = vmul.f32 %v4554, %v4748
  %v4781 = vmul.f32 %v4560, %v4749
  %v4782 = vmul.f32 %v4566, %v4750
  %v4783 = vmul.f32 %v4572, %v4751
  %v4784 = vmul.f32 %v4579, %v4752
  %v4785 = vmul.f32 %v4585, %v4753
  %v4786 = vmul.f32 %v4591, %v4754
  %v4787 = vmul.f32 %v4597, %v4755
  %v4788 = vmul.f32 %v4604, %v4756
  %v4789 = vmul.f32 %v4610, %v4757
  %v4790 = vmul.f32 %v4616, %v4758
  %v4791 = vmul.f32 %v4622, %v4759
  %v4792 = vmul.f32 %v4629, %v4760
  %v4793 = vmul.f32 %v4635, %v4761
  %v4794 = vmul.f32 %v4641, %v4762
  %v4795 = vmul.f32 %v4647, %v4763
  %v4796 = vmul.f32 %v4654, %v4764
  %v4797 = vmul.f32 %v4660, %v4765
  %v4798 = vmul.f32 %v4666, %v4766
  %v4799 = vmul.f32 %v4672, %v4767
  %v4800 = vmul.f32 %v4679, %v4768
  %v4801 = vmul.f32 %v4685, %v4769
  %v4802 = vmul.f32 %v4691, %v4770
  %v4803 = vmul.f32 %v4697, %v4771
  %v4804 = vmul.f32 %v4704, %v4772
  %v4805 = vmul.f32 %v4710, %v4773
  %v4806 = vmul.f32 %v4716, %v4774
  %v4807 = vmul.f32 %v4722, %v4775
  %v4808 = vmul.f32 %v4729, %v4776
  %v4809 = vmul.f32 %v4735, %v4777
  %v4810 = vmul.f32 %v4741, %v4778
  %v4811 = vmul.f32 %v4747, %v4779
  %v4812 = vmul.f32 %v4780, %v4389
  %v4813 = vmul.f32 %v4781, %v4391
  %v4814 = vmul.f32 %v4782, %v4393
  %v4815 = vmul.f32 %v4783, %v4395
  %v4816 = vmul.f32 %v4784, %v4397
  %v4817 = vmul.f32 %v4785, %v4399
  %v4818 = vmul.f32 %v4786, %v4401
  %v4819 = vmul.f32 %v4787, %v4403
  %v4820 = vmul.f32 %v4788, %v4405
  %v4821 = vmul.f32 %v4789, %v4407
  %v4822 = vmul.f32 %v4790, %v4409
  %v4823 = vmul.f32 %v4791, %v4411
  %v4824 = vmul.f32 %v4792, %v4413
  %v4825 = vmul.f32 %v4793, %v4415
  %v4826 = vmul.f32 %v4794, %v4417
  %v4827 = vmul.f32 %v4795, %v4419
  %v4828 = vmul.f32 %v4796, %v4421
  %v4829 = vmul.f32 %v4797, %v4423
  %v4830 = vmul.f32 %v4798, %v4425
  %v4831 = vmul.f32 %v4799, %v4427
  %v4832 = vmul.f32 %v4800, %v4429
  %v4833 = vmul.f32 %v4801, %v4431
  %v4834 = vmul.f32 %v4802, %v4433
  %v4835 = vmul.f32 %v4803, %v4435
  %v4836 = vmul.f32 %v4804, %v4437
  %v4837 = vmul.f32 %v4805, %v4439
  %v4838 = vmul.f32 %v4806, %v4441
  %v4839 = vmul.f32 %v4807, %v4443
  %v4840 = vmul.f32 %v4808, %v4445
  %v4841 = vmul.f32 %v4809, %v4447
  %v4842 = vmul.f32 %v4810, %v4449
  %v4843 = vmul.f32 %v4811, %v4451
  %v4844 = vsel %vm232, %v4812, 0.0
  %v4845 = vsel %vm232, %v4813, 0.0
  %v4846 = vadd.f32 %v4844, %v4845
  %v4847 = vsel %vm232, %v4814, 0.0
  %v4848 = vadd.f32 %v4846, %v4847
  %v4849 = vsel %vm232, %v4815, 0.0
  %v4850 = vadd.f32 %v4848, %v4849
  %v4851 = vrot.slane %v4850, 4
  %v4852 = vadd.f32 %v4850, %v4851
  %v4853 = vrot.slane %v4852, 2
  %v4854 = vadd.f32 %v4852, %v4853
  %v4855 = vrot.slane %v4854, 1
  %v4856 = vadd.f32 %v4854, %v4855
  %v4857 = vsel %vm232, %v4816, 0.0
  %v4858 = vsel %vm232, %v4817, 0.0
  %v4859 = vadd.f32 %v4857, %v4858
  %v4860 = vsel %vm232, %v4818, 0.0
  %v4861 = vadd.f32 %v4859, %v4860
  %v4862 = vsel %vm232, %v4819, 0.0
  %v4863 = vadd.f32 %v4861, %v4862
  %v4864 = vrot.slane %v4863, 4
  %v4865 = vadd.f32 %v4863, %v4864
  %v4866 = vrot.slane %v4865, 2
  %v4867 = vadd.f32 %v4865, %v4866
  %v4868 = vrot.slane %v4867, 1
  %v4869 = vadd.f32 %v4867, %v4868
  %v4870 = vsel %vm232, %v4820, 0.0
  %v4871 = vsel %vm232, %v4821, 0.0
  %v4872 = vadd.f32 %v4870, %v4871
  %v4873 = vsel %vm232, %v4822, 0.0
  %v4874 = vadd.f32 %v4872, %v4873
  %v4875 = vsel %vm232, %v4823, 0.0
  %v4876 = vadd.f32 %v4874, %v4875
  %v4877 = vrot.slane %v4876, 4
  %v4878 = vadd.f32 %v4876, %v4877
  %v4879 = vrot.slane %v4878, 2
  %v4880 = vadd.f32 %v4878, %v4879
  %v4881 = vrot.slane %v4880, 1
  %v4882 = vadd.f32 %v4880, %v4881
  %v4883 = vsel %vm232, %v4824, 0.0
  %v4884 = vsel %vm232, %v4825, 0.0
  %v4885 = vadd.f32 %v4883, %v4884
  %v4886 = vsel %vm232, %v4826, 0.0
  %v4887 = vadd.f32 %v4885, %v4886
  %v4888 = vsel %vm232, %v4827, 0.0
  %v4889 = vadd.f32 %v4887, %v4888
  %v4890 = vrot.slane %v4889, 4
  %v4891 = vadd.f32 %v4889, %v4890
  %v4892 = vrot.slane %v4891, 2
  %v4893 = vadd.f32 %v4891, %v4892
  %v4894 = vrot.slane %v4893, 1
  %v4895 = vadd.f32 %v4893, %v4894
  %v4896 = vsel %vm232, %v4828, 0.0
  %v4897 = vsel %vm232, %v4829, 0.0
  %v4898 = vadd.f32 %v4896, %v4897
  %v4899 = vsel %vm232, %v4830, 0.0
  %v4900 = vadd.f32 %v4898, %v4899
  %v4901 = vsel %vm232, %v4831, 0.0
  %v4902 = vadd.f32 %v4900, %v4901
  %v4903 = vrot.slane %v4902, 4
  %v4904 = vadd.f32 %v4902, %v4903
  %v4905 = vrot.slane %v4904, 2
  %v4906 = vadd.f32 %v4904, %v4905
  %v4907 = vrot.slane %v4906, 1
  %v4908 = vadd.f32 %v4906, %v4907
  %v4909 = vsel %vm232, %v4832, 0.0
  %v4910 = vsel %vm232, %v4833, 0.0
  %v4911 = vadd.f32 %v4909, %v4910
  %v4912 = vsel %vm232, %v4834, 0.0
  %v4913 = vadd.f32 %v4911, %v4912
  %v4914 = vsel %vm232, %v4835, 0.0
  %v4915 = vadd.f32 %v4913, %v4914
  %v4916 = vrot.slane %v4915, 4
  %v4917 = vadd.f32 %v4915, %v4916
  %v4918 = vrot.slane %v4917, 2
  %v4919 = vadd.f32 %v4917, %v4918
  %v4920 = vrot.slane %v4919, 1
  %v4921 = vadd.f32 %v4919, %v4920
  %v4922 = vsel %vm232, %v4836, 0.0
  %v4923 = vsel %vm232, %v4837, 0.0
  %v4924 = vadd.f32 %v4922, %v4923
  %v4925 = vsel %vm232, %v4838, 0.0
  %v4926 = vadd.f32 %v4924, %v4925
  %v4927 = vsel %vm232, %v4839, 0.0
  %v4928 = vadd.f32 %v4926, %v4927
  %v4929 = vrot.slane %v4928, 4
  %v4930 = vadd.f32 %v4928, %v4929
  %v4931 = vrot.slane %v4930, 2
  %v4932 = vadd.f32 %v4930, %v4931
  %v4933 = vrot.slane %v4932, 1
  %v4934 = vadd.f32 %v4932, %v4933
  %v4935 = vsel %vm232, %v4840, 0.0
  %v4936 = vsel %vm232, %v4841, 0.0
  %v4937 = vadd.f32 %v4935, %v4936
  %v4938 = vsel %vm232, %v4842, 0.0
  %v4939 = vadd.f32 %v4937, %v4938
  %v4940 = vsel %vm232, %v4843, 0.0
  %v4941 = vadd.f32 %v4939, %v4940
  %v4942 = vrot.slane %v4941, 4
  %v4943 = vadd.f32 %v4941, %v4942
  %v4944 = vrot.slane %v4943, 2
  %v4945 = vadd.f32 %v4943, %v4944
  %v4946 = vrot.slane %v4945, 1
  %v4947 = vadd.f32 %v4945, %v4946
  %4949 = vset.pattern.permute.xlu0 0
  %4950 = vperm.xlu0 %4949, %v3980
  %v4951 = vpop.permute.xlu0 %4950
  %v4961 = vsel %vm1891, %v4869, %v4856
  %v4962 = vsel %vm1893, %v4882, %v4961
  %v4963 = vsel %vm1895, %v4895, %v4962
  %v4964 = vsel %vm1897, %v4908, %v4963
  %v4965 = vsel %vm1899, %v4921, %v4964
  %v4966 = vsel %vm1901, %v4934, %v4965
  %v4967 = vsel %vm1903, %v4947, %v4966
  %v4969 = vmul.f32 %v4951, %v4967
  %v4970 = vsub.f32 1.0, %v3980
  %4972 = vset.pattern.permute.xlu0 0
  %4973 = vperm.xlu0 %4972, %v4970
  %v4974 = vpop.permute.xlu0 %4973
  %v4976 = vmul.f32 %v4974, %v4002
  %v4977 = vadd.f32 %v4969, %v4976
  %v4978 = vlog2.pop %v4977
  %v4979 = vmul.f32 %v4978, 0.6931472
  %v4980 = vadd.f32 %v3976, %v4979
  %v4981 = vadd.f32 %v4980, %v3963
  %v4982 = vsel %vm232, %v4981, -inf
  %4983 = vmax.xlane.f32.xlu0 %v4982
  %v4984 = vpop.xlane.xlu0 %4983
  %v4985 = vsub.f32 %v4981, %v4984
  %v4986 = vmul.f32 %v4985, 1.442695
  %v4987 = vpow.pop %v4986
  %v4988 = vsel %vm232, %v4987, 0.0
  %4989 = vadd.xlane.f32.xlu0 %v4988
  %v4990 = vpop.xlane.xlu0 %4989
  %v4991 = vlog2.pop %v4990
  %v4992 = vmul.f32 %v4991, 0.6931472
  %v4993 = vadd.f32 %v4992, %v4984
  %s4994 = scalar_lea.vmem %s10, 32
  %4995 = vst.msk [vmem:[%s4994] sm:$0xff] %vm849, %v4993
  %s4996 = scalar_lea.vmem [#allocation2], 40
  %v4997 = vld [vmem:[%s4996] sm:$0xff]
  %s4998 = scalar_lea.vmem [#allocation3], 40
  %v4999 = vld [vmem:[%s4998] sm:$0xff]
  %s5000 = scalar_lea.vmem [#allocation4], 40
  %v5001 = vld [vmem:[%s5000] sm:$0xff]
  %v5003 = vsel %vm232, %v4987, 0
  %5005 = vmatpush.msra.mxu0 0.0
  %5006 = vmatpush.msra.mxu0 0.0
  %5007 = vmatpush.msra.mxu0 0.0
  %5008 = vmatpush.msra.mxu0 0.0
  %5009 = vmatpush.msra.mxu0 0.0
  %5010 = vmatpush.msra.mxu0 0.0
  %5011 = vmatpush.msra.mxu0 0.0
  %5012 = vmatpush.msra.mxu0 0.0
  %5013 = vmatpush.msra.mxu0 0.0
  %5014 = vmatpush.msra.mxu0 0.0
  %5015 = vmatpush.msra.mxu0 0.0
  %5016 = vmatpush.msra.mxu0 0.0
  %5017 = vmatpush.msra.mxu0 %v861
  %5018 = vmatpush.msra.mxu0 %v860
  %5019 = vmatpush.msra.mxu0 %v859
  %5020 = vmatpush.msra.mxu0 %v858
  %5021 = vmatmul.f32.gmra.mxu0 %v5003
  %v5022 = vpop.f32.mrf.mxu0
  %v5023 = vadd.f32 0.0, %v5022
  %5024 = vdwg.mxu0
  %v5025 = vsel %vm232, %v4999, -inf
  %5026 = vmax.xlane.f32.xlu0 %v5025
  %v5027 = vpop.xlane.xlu0 %5026
  %v5029 = vperm.slane %v5027, 0
  %v5030 = vperm.slane %v5027, 1
  %v5031 = vperm.slane %v5027, 2
  %v5032 = vperm.slane %v5027, 3
  %v5033 = vperm.slane %v5027, 4
  %v5034 = vperm.slane %v5027, 5
  %v5035 = vperm.slane %v5027, 6
  %v5036 = vperm.slane %v5027, 7
  %v5045 = vsel %vm232, %v4999, inf
  %5046 = vmin.xlane.f32.xlu0 %v5045
  %v5047 = vpop.xlane.xlu0 %5046
  %v5049 = vperm.slane %v5047, 0
  %v5050 = vperm.slane %v5047, 1
  %v5051 = vperm.slane %v5047, 2
  %v5052 = vperm.slane %v5047, 3
  %v5053 = vperm.slane %v5047, 4
  %v5054 = vperm.slane %v5047, 5
  %v5055 = vperm.slane %v5047, 6
  %v5056 = vperm.slane %v5047, 7
  %v5065 = vmul.f32 %v5029, %v862
  %v5066 = vmul.f32 %v5029, %v863
  %v5067 = vmul.f32 %v5029, %v864
  %v5068 = vmul.f32 %v5029, %v865
  %v5069 = vmul.f32 %v5030, %v862
  %v5070 = vmul.f32 %v5030, %v863
  %v5071 = vmul.f32 %v5030, %v864
  %v5072 = vmul.f32 %v5030, %v865
  %v5073 = vmul.f32 %v5031, %v862
  %v5074 = vmul.f32 %v5031, %v863
  %v5075 = vmul.f32 %v5031, %v864
  %v5076 = vmul.f32 %v5031, %v865
  %v5077 = vmul.f32 %v5032, %v862
  %v5078 = vmul.f32 %v5032, %v863
  %v5079 = vmul.f32 %v5032, %v864
  %v5080 = vmul.f32 %v5032, %v865
  %v5081 = vmul.f32 %v5033, %v862
  %v5082 = vmul.f32 %v5033, %v863
  %v5083 = vmul.f32 %v5033, %v864
  %v5084 = vmul.f32 %v5033, %v865
  %v5085 = vmul.f32 %v5034, %v862
  %v5086 = vmul.f32 %v5034, %v863
  %v5087 = vmul.f32 %v5034, %v864
  %v5088 = vmul.f32 %v5034, %v865
  %v5089 = vmul.f32 %v5035, %v862
  %v5090 = vmul.f32 %v5035, %v863
  %v5091 = vmul.f32 %v5035, %v864
  %v5092 = vmul.f32 %v5035, %v865
  %v5093 = vmul.f32 %v5036, %v862
  %v5094 = vmul.f32 %v5036, %v863
  %v5095 = vmul.f32 %v5036, %v864
  %v5096 = vmul.f32 %v5036, %v865
  %v5097 = vmul.f32 %v5049, %v862
  %v5098 = vmul.f32 %v5049, %v863
  %v5099 = vmul.f32 %v5049, %v864
  %v5100 = vmul.f32 %v5049, %v865
  %v5101 = vmul.f32 %v5050, %v862
  %v5102 = vmul.f32 %v5050, %v863
  %v5103 = vmul.f32 %v5050, %v864
  %v5104 = vmul.f32 %v5050, %v865
  %v5105 = vmul.f32 %v5051, %v862
  %v5106 = vmul.f32 %v5051, %v863
  %v5107 = vmul.f32 %v5051, %v864
  %v5108 = vmul.f32 %v5051, %v865
  %v5109 = vmul.f32 %v5052, %v862
  %v5110 = vmul.f32 %v5052, %v863
  %v5111 = vmul.f32 %v5052, %v864
  %v5112 = vmul.f32 %v5052, %v865
  %v5113 = vmul.f32 %v5053, %v862
  %v5114 = vmul.f32 %v5053, %v863
  %v5115 = vmul.f32 %v5053, %v864
  %v5116 = vmul.f32 %v5053, %v865
  %v5117 = vmul.f32 %v5054, %v862
  %v5118 = vmul.f32 %v5054, %v863
  %v5119 = vmul.f32 %v5054, %v864
  %v5120 = vmul.f32 %v5054, %v865
  %v5121 = vmul.f32 %v5055, %v862
  %v5122 = vmul.f32 %v5055, %v863
  %v5123 = vmul.f32 %v5055, %v864
  %v5124 = vmul.f32 %v5055, %v865
  %v5125 = vmul.f32 %v5056, %v862
  %v5126 = vmul.f32 %v5056, %v863
  %v5127 = vmul.f32 %v5056, %v864
  %v5128 = vmul.f32 %v5056, %v865
  %v5129 = vmax.f32 %v5065, %v5097
  %v5130 = vmax.f32 %v5066, %v5098
  %v5131 = vmax.f32 %v5067, %v5099
  %v5132 = vmax.f32 %v5068, %v5100
  %v5133 = vmax.f32 %v5069, %v5101
  %v5134 = vmax.f32 %v5070, %v5102
  %v5135 = vmax.f32 %v5071, %v5103
  %v5136 = vmax.f32 %v5072, %v5104
  %v5137 = vmax.f32 %v5073, %v5105
  %v5138 = vmax.f32 %v5074, %v5106
  %v5139 = vmax.f32 %v5075, %v5107
  %v5140 = vmax.f32 %v5076, %v5108
  %v5141 = vmax.f32 %v5077, %v5109
  %v5142 = vmax.f32 %v5078, %v5110
  %v5143 = vmax.f32 %v5079, %v5111
  %v5144 = vmax.f32 %v5080, %v5112
  %v5145 = vmax.f32 %v5081, %v5113
  %v5146 = vmax.f32 %v5082, %v5114
  %v5147 = vmax.f32 %v5083, %v5115
  %v5148 = vmax.f32 %v5084, %v5116
  %v5149 = vmax.f32 %v5085, %v5117
  %v5150 = vmax.f32 %v5086, %v5118
  %v5151 = vmax.f32 %v5087, %v5119
  %v5152 = vmax.f32 %v5088, %v5120
  %v5153 = vmax.f32 %v5089, %v5121
  %v5154 = vmax.f32 %v5090, %v5122
  %v5155 = vmax.f32 %v5091, %v5123
  %v5156 = vmax.f32 %v5092, %v5124
  %v5157 = vmax.f32 %v5093, %v5125
  %v5158 = vmax.f32 %v5094, %v5126
  %v5159 = vmax.f32 %v5095, %v5127
  %v5160 = vmax.f32 %v5096, %v5128
  %v5162 = vrot.slane %v4999, 1
  %v5163 = vrot.slane %v4999, 2
  %v5164 = vrot.slane %v4999, 3
  %v5165 = vrot.slane %v4999, 4
  %v5166 = vrot.slane %v4999, 5
  %v5167 = vrot.slane %v4999, 6
  %v5168 = vrot.slane %v4999, 7
  %v5169 = vperm.slane %v4999, 0
  %v5170 = vperm.slane %v5162, 0
  %v5171 = vperm.slane %v5163, 0
  %v5172 = vperm.slane %v5164, 0
  %v5173 = vperm.slane %v5165, 0
  %v5174 = vperm.slane %v5166, 0
  %v5175 = vperm.slane %v5167, 0
  %v5176 = vperm.slane %v5168, 0
  %v5185 = vmul.f32 %v1061, %v5169
  %v5186 = vmul.f32 %v1066, %v5169
  %v5187 = vmul.f32 %v1071, %v5169
  %v5188 = vmul.f32 %v1076, %v5169
  %v5189 = vmul.f32 %v1061, %v5170
  %v5190 = vmul.f32 %v1066, %v5170
  %v5191 = vmul.f32 %v1071, %v5170
  %v5192 = vmul.f32 %v1076, %v5170
  %v5193 = vmul.f32 %v1061, %v5171
  %v5194 = vmul.f32 %v1066, %v5171
  %v5195 = vmul.f32 %v1071, %v5171
  %v5196 = vmul.f32 %v1076, %v5171
  %v5197 = vmul.f32 %v1061, %v5172
  %v5198 = vmul.f32 %v1066, %v5172
  %v5199 = vmul.f32 %v1071, %v5172
  %v5200 = vmul.f32 %v1076, %v5172
  %v5201 = vmul.f32 %v1061, %v5173
  %v5202 = vmul.f32 %v1066, %v5173
  %v5203 = vmul.f32 %v1071, %v5173
  %v5204 = vmul.f32 %v1076, %v5173
  %v5205 = vmul.f32 %v1061, %v5174
  %v5206 = vmul.f32 %v1066, %v5174
  %v5207 = vmul.f32 %v1071, %v5174
  %v5208 = vmul.f32 %v1076, %v5174
  %v5209 = vmul.f32 %v1061, %v5175
  %v5210 = vmul.f32 %v1066, %v5175
  %v5211 = vmul.f32 %v1071, %v5175
  %v5212 = vmul.f32 %v1076, %v5175
  %v5213 = vmul.f32 %v1061, %v5176
  %v5214 = vmul.f32 %v1066, %v5176
  %v5215 = vmul.f32 %v1071, %v5176
  %v5216 = vmul.f32 %v1076, %v5176
  %5218 = vset.pattern.permute.xlu0 0
  %5219 = vperm.xlu0 %5218, %v5129
  %v5220 = vpop.permute.xlu0 %5219
  %5223 = vset.pattern.permute.xlu0 0
  %5224 = vperm.xlu0 %5223, %v5130
  %v5225 = vpop.permute.xlu0 %5224
  %5228 = vset.pattern.permute.xlu0 0
  %5229 = vperm.xlu0 %5228, %v5131
  %v5230 = vpop.permute.xlu0 %5229
  %5233 = vset.pattern.permute.xlu0 0
  %5234 = vperm.xlu0 %5233, %v5132
  %v5235 = vpop.permute.xlu0 %5234
  %5238 = vset.pattern.permute.xlu0 0
  %5239 = vperm.xlu0 %5238, %v5133
  %v5240 = vpop.permute.xlu0 %5239
  %5243 = vset.pattern.permute.xlu0 0
  %5244 = vperm.xlu0 %5243, %v5134
  %v5245 = vpop.permute.xlu0 %5244
  %5248 = vset.pattern.permute.xlu0 0
  %5249 = vperm.xlu0 %5248, %v5135
  %v5250 = vpop.permute.xlu0 %5249
  %5253 = vset.pattern.permute.xlu0 0
  %5254 = vperm.xlu0 %5253, %v5136
  %v5255 = vpop.permute.xlu0 %5254
  %5258 = vset.pattern.permute.xlu0 0
  %5259 = vperm.xlu0 %5258, %v5137
  %v5260 = vpop.permute.xlu0 %5259
  %5263 = vset.pattern.permute.xlu0 0
  %5264 = vperm.xlu0 %5263, %v5138
  %v5265 = vpop.permute.xlu0 %5264
  %5268 = vset.pattern.permute.xlu0 0
  %5269 = vperm.xlu0 %5268, %v5139
  %v5270 = vpop.permute.xlu0 %5269
  %5273 = vset.pattern.permute.xlu0 0
  %5274 = vperm.xlu0 %5273, %v5140
  %v5275 = vpop.permute.xlu0 %5274
  %5278 = vset.pattern.permute.xlu0 0
  %5279 = vperm.xlu0 %5278, %v5141
  %v5280 = vpop.permute.xlu0 %5279
  %5283 = vset.pattern.permute.xlu0 0
  %5284 = vperm.xlu0 %5283, %v5142
  %v5285 = vpop.permute.xlu0 %5284
  %5288 = vset.pattern.permute.xlu0 0
  %5289 = vperm.xlu0 %5288, %v5143
  %v5290 = vpop.permute.xlu0 %5289
  %5293 = vset.pattern.permute.xlu0 0
  %5294 = vperm.xlu0 %5293, %v5144
  %v5295 = vpop.permute.xlu0 %5294
  %5298 = vset.pattern.permute.xlu0 0
  %5299 = vperm.xlu0 %5298, %v5145
  %v5300 = vpop.permute.xlu0 %5299
  %5303 = vset.pattern.permute.xlu0 0
  %5304 = vperm.xlu0 %5303, %v5146
  %v5305 = vpop.permute.xlu0 %5304
  %5308 = vset.pattern.permute.xlu0 0
  %5309 = vperm.xlu0 %5308, %v5147
  %v5310 = vpop.permute.xlu0 %5309
  %5313 = vset.pattern.permute.xlu0 0
  %5314 = vperm.xlu0 %5313, %v5148
  %v5315 = vpop.permute.xlu0 %5314
  %5318 = vset.pattern.permute.xlu0 0
  %5319 = vperm.xlu0 %5318, %v5149
  %v5320 = vpop.permute.xlu0 %5319
  %5323 = vset.pattern.permute.xlu0 0
  %5324 = vperm.xlu0 %5323, %v5150
  %v5325 = vpop.permute.xlu0 %5324
  %5328 = vset.pattern.permute.xlu0 0
  %5329 = vperm.xlu0 %5328, %v5151
  %v5330 = vpop.permute.xlu0 %5329
  %5333 = vset.pattern.permute.xlu0 0
  %5334 = vperm.xlu0 %5333, %v5152
  %v5335 = vpop.permute.xlu0 %5334
  %5338 = vset.pattern.permute.xlu0 0
  %5339 = vperm.xlu0 %5338, %v5153
  %v5340 = vpop.permute.xlu0 %5339
  %5343 = vset.pattern.permute.xlu0 0
  %5344 = vperm.xlu0 %5343, %v5154
  %v5345 = vpop.permute.xlu0 %5344
  %5348 = vset.pattern.permute.xlu0 0
  %5349 = vperm.xlu0 %5348, %v5155
  %v5350 = vpop.permute.xlu0 %5349
  %5353 = vset.pattern.permute.xlu0 0
  %5354 = vperm.xlu0 %5353, %v5156
  %v5355 = vpop.permute.xlu0 %5354
  %5358 = vset.pattern.permute.xlu0 0
  %5359 = vperm.xlu0 %5358, %v5157
  %v5360 = vpop.permute.xlu0 %5359
  %5363 = vset.pattern.permute.xlu0 0
  %5364 = vperm.xlu0 %5363, %v5158
  %v5365 = vpop.permute.xlu0 %5364
  %5368 = vset.pattern.permute.xlu0 0
  %5369 = vperm.xlu0 %5368, %v5159
  %v5370 = vpop.permute.xlu0 %5369
  %5373 = vset.pattern.permute.xlu0 0
  %5374 = vperm.xlu0 %5373, %v5160
  %v5375 = vpop.permute.xlu0 %5374
  %v5377 = vsub.f32 %v5185, %v5220
  %v5378 = vsub.f32 %v5186, %v5225
  %v5379 = vsub.f32 %v5187, %v5230
  %v5380 = vsub.f32 %v5188, %v5235
  %v5381 = vsub.f32 %v5189, %v5240
  %v5382 = vsub.f32 %v5190, %v5245
  %v5383 = vsub.f32 %v5191, %v5250
  %v5384 = vsub.f32 %v5192, %v5255
  %v5385 = vsub.f32 %v5193, %v5260
  %v5386 = vsub.f32 %v5194, %v5265
  %v5387 = vsub.f32 %v5195, %v5270
  %v5388 = vsub.f32 %v5196, %v5275
  %v5389 = vsub.f32 %v5197, %v5280
  %v5390 = vsub.f32 %v5198, %v5285
  %v5391 = vsub.f32 %v5199, %v5290
  %v5392 = vsub.f32 %v5200, %v5295
  %v5393 = vsub.f32 %v5201, %v5300
  %v5394 = vsub.f32 %v5202, %v5305
  %v5395 = vsub.f32 %v5203, %v5310
  %v5396 = vsub.f32 %v5204, %v5315
  %v5397 = vsub.f32 %v5205, %v5320
  %v5398 = vsub.f32 %v5206, %v5325
  %v5399 = vsub.f32 %v5207, %v5330
  %v5400 = vsub.f32 %v5208, %v5335
  %v5401 = vsub.f32 %v5209, %v5340
  %v5402 = vsub.f32 %v5210, %v5345
  %v5403 = vsub.f32 %v5211, %v5350
  %v5404 = vsub.f32 %v5212, %v5355
  %v5405 = vsub.f32 %v5213, %v5360
  %v5406 = vsub.f32 %v5214, %v5365
  %v5407 = vsub.f32 %v5215, %v5370
  %v5408 = vsub.f32 %v5216, %v5375
  %v5409 = vmul.f32 %v5377, 1.442695
  %v5410 = vpow.pop %v5409
  %v5411 = vmul.f32 %v5378, 1.442695
  %v5412 = vpow.pop %v5411
  %v5413 = vmul.f32 %v5379, 1.442695
  %v5414 = vpow.pop %v5413
  %v5415 = vmul.f32 %v5380, 1.442695
  %v5416 = vpow.pop %v5415
  %v5417 = vmul.f32 %v5381, 1.442695
  %v5418 = vpow.pop %v5417
  %v5419 = vmul.f32 %v5382, 1.442695
  %v5420 = vpow.pop %v5419
  %v5421 = vmul.f32 %v5383, 1.442695
  %v5422 = vpow.pop %v5421
  %v5423 = vmul.f32 %v5384, 1.442695
  %v5424 = vpow.pop %v5423
  %v5425 = vmul.f32 %v5385, 1.442695
  %v5426 = vpow.pop %v5425
  %v5427 = vmul.f32 %v5386, 1.442695
  %v5428 = vpow.pop %v5427
  %v5429 = vmul.f32 %v5387, 1.442695
  %v5430 = vpow.pop %v5429
  %v5431 = vmul.f32 %v5388, 1.442695
  %v5432 = vpow.pop %v5431
  %v5433 = vmul.f32 %v5389, 1.442695
  %v5434 = vpow.pop %v5433
  %v5435 = vmul.f32 %v5390, 1.442695
  %v5436 = vpow.pop %v5435
  %v5437 = vmul.f32 %v5391, 1.442695
  %v5438 = vpow.pop %v5437
  %v5439 = vmul.f32 %v5392, 1.442695
  %v5440 = vpow.pop %v5439
  %v5441 = vmul.f32 %v5393, 1.442695
  %v5442 = vpow.pop %v5441
  %v5443 = vmul.f32 %v5394, 1.442695
  %v5444 = vpow.pop %v5443
  %v5445 = vmul.f32 %v5395, 1.442695
  %v5446 = vpow.pop %v5445
  %v5447 = vmul.f32 %v5396, 1.442695
  %v5448 = vpow.pop %v5447
  %v5449 = vmul.f32 %v5397, 1.442695
  %v5450 = vpow.pop %v5449
  %v5451 = vmul.f32 %v5398, 1.442695
  %v5452 = vpow.pop %v5451
  %v5453 = vmul.f32 %v5399, 1.442695
  %v5454 = vpow.pop %v5453
  %v5455 = vmul.f32 %v5400, 1.442695
  %v5456 = vpow.pop %v5455
  %v5457 = vmul.f32 %v5401, 1.442695
  %v5458 = vpow.pop %v5457
  %v5459 = vmul.f32 %v5402, 1.442695
  %v5460 = vpow.pop %v5459
  %v5461 = vmul.f32 %v5403, 1.442695
  %v5462 = vpow.pop %v5461
  %v5463 = vmul.f32 %v5404, 1.442695
  %v5464 = vpow.pop %v5463
  %v5465 = vmul.f32 %v5405, 1.442695
  %v5466 = vpow.pop %v5465
  %v5467 = vmul.f32 %v5406, 1.442695
  %v5468 = vpow.pop %v5467
  %v5469 = vmul.f32 %v5407, 1.442695
  %v5470 = vpow.pop %v5469
  %v5471 = vmul.f32 %v5408, 1.442695
  %v5472 = vpow.pop %v5471
  %v5473 = vsel %vm232, %v5410, 0.0
  %5474 = vadd.xlane.f32.xlu0 %v5473
  %v5475 = vpop.xlane.xlu0 %5474
  %v5476 = vsel %vm232, %v5412, 0.0
  %5477 = vadd.xlane.f32.xlu0 %v5476
  %v5478 = vpop.xlane.xlu0 %5477
  %v5479 = vsel %vm232, %v5414, 0.0
  %5480 = vadd.xlane.f32.xlu0 %v5479
  %v5481 = vpop.xlane.xlu0 %5480
  %v5482 = vsel %vm232, %v5416, 0.0
  %5483 = vadd.xlane.f32.xlu0 %v5482
  %v5484 = vpop.xlane.xlu0 %5483
  %v5485 = vsel %vm232, %v5418, 0.0
  %5486 = vadd.xlane.f32.xlu0 %v5485
  %v5487 = vpop.xlane.xlu0 %5486
  %v5488 = vsel %vm232, %v5420, 0.0
  %5489 = vadd.xlane.f32.xlu0 %v5488
  %v5490 = vpop.xlane.xlu0 %5489
  %v5491 = vsel %vm232, %v5422, 0.0
  %5492 = vadd.xlane.f32.xlu0 %v5491
  %v5493 = vpop.xlane.xlu0 %5492
  %v5494 = vsel %vm232, %v5424, 0.0
  %5495 = vadd.xlane.f32.xlu0 %v5494
  %v5496 = vpop.xlane.xlu0 %5495
  %v5497 = vsel %vm232, %v5426, 0.0
  %5498 = vadd.xlane.f32.xlu0 %v5497
  %v5499 = vpop.xlane.xlu0 %5498
  %v5500 = vsel %vm232, %v5428, 0.0
  %5501 = vadd.xlane.f32.xlu0 %v5500
  %v5502 = vpop.xlane.xlu0 %5501
  %v5503 = vsel %vm232, %v5430, 0.0
  %5504 = vadd.xlane.f32.xlu0 %v5503
  %v5505 = vpop.xlane.xlu0 %5504
  %v5506 = vsel %vm232, %v5432, 0.0
  %5507 = vadd.xlane.f32.xlu0 %v5506
  %v5508 = vpop.xlane.xlu0 %5507
  %v5509 = vsel %vm232, %v5434, 0.0
  %5510 = vadd.xlane.f32.xlu0 %v5509
  %v5511 = vpop.xlane.xlu0 %5510
  %v5512 = vsel %vm232, %v5436, 0.0
  %5513 = vadd.xlane.f32.xlu0 %v5512
  %v5514 = vpop.xlane.xlu0 %5513
  %v5515 = vsel %vm232, %v5438, 0.0
  %5516 = vadd.xlane.f32.xlu0 %v5515
  %v5517 = vpop.xlane.xlu0 %5516
  %v5518 = vsel %vm232, %v5440, 0.0
  %5519 = vadd.xlane.f32.xlu0 %v5518
  %v5520 = vpop.xlane.xlu0 %5519
  %v5521 = vsel %vm232, %v5442, 0.0
  %5522 = vadd.xlane.f32.xlu0 %v5521
  %v5523 = vpop.xlane.xlu0 %5522
  %v5524 = vsel %vm232, %v5444, 0.0
  %5525 = vadd.xlane.f32.xlu0 %v5524
  %v5526 = vpop.xlane.xlu0 %5525
  %v5527 = vsel %vm232, %v5446, 0.0
  %5528 = vadd.xlane.f32.xlu0 %v5527
  %v5529 = vpop.xlane.xlu0 %5528
  %v5530 = vsel %vm232, %v5448, 0.0
  %5531 = vadd.xlane.f32.xlu0 %v5530
  %v5532 = vpop.xlane.xlu0 %5531
  %v5533 = vsel %vm232, %v5450, 0.0
  %5534 = vadd.xlane.f32.xlu0 %v5533
  %v5535 = vpop.xlane.xlu0 %5534
  %v5536 = vsel %vm232, %v5452, 0.0
  %5537 = vadd.xlane.f32.xlu0 %v5536
  %v5538 = vpop.xlane.xlu0 %5537
  %v5539 = vsel %vm232, %v5454, 0.0
  %5540 = vadd.xlane.f32.xlu0 %v5539
  %v5541 = vpop.xlane.xlu0 %5540
  %v5542 = vsel %vm232, %v5456, 0.0
  %5543 = vadd.xlane.f32.xlu0 %v5542
  %v5544 = vpop.xlane.xlu0 %5543
  %v5545 = vsel %vm232, %v5458, 0.0
  %5546 = vadd.xlane.f32.xlu0 %v5545
  %v5547 = vpop.xlane.xlu0 %5546
  %v5548 = vsel %vm232, %v5460, 0.0
  %5549 = vadd.xlane.f32.xlu0 %v5548
  %v5550 = vpop.xlane.xlu0 %5549
  %v5551 = vsel %vm232, %v5462, 0.0
  %5552 = vadd.xlane.f32.xlu0 %v5551
  %v5553 = vpop.xlane.xlu0 %5552
  %v5554 = vsel %vm232, %v5464, 0.0
  %5555 = vadd.xlane.f32.xlu0 %v5554
  %v5556 = vpop.xlane.xlu0 %5555
  %v5557 = vsel %vm232, %v5466, 0.0
  %5558 = vadd.xlane.f32.xlu0 %v5557
  %v5559 = vpop.xlane.xlu0 %5558
  %v5560 = vsel %vm232, %v5468, 0.0
  %5561 = vadd.xlane.f32.xlu0 %v5560
  %v5562 = vpop.xlane.xlu0 %5561
  %v5563 = vsel %vm232, %v5470, 0.0
  %5564 = vadd.xlane.f32.xlu0 %v5563
  %v5565 = vpop.xlane.xlu0 %5564
  %v5566 = vsel %vm232, %v5472, 0.0
  %5567 = vadd.xlane.f32.xlu0 %v5566
  %v5568 = vpop.xlane.xlu0 %5567
  %v5569 = vperm.slane %v4987, 0
  %v5570 = vlaneseq
  %v5571 = vshrl.u32 %v5570, 7
  %5573 = vset.pattern.permute.xlu0 %v5571
  %5574 = vperm.xlu0 %5573, %v5569
  %v5575 = vpop.permute.xlu0 %5574
  %v5576 = vlaneseq
  %v5577 = vshrl.u32 %v5576, 7
  %v5578 = vadd.s32 %v5577, 8
  %5579 = vset.pattern.permute.xlu0 %v5578
  %5580 = vperm.xlu0 %5579, %v5569
  %v5581 = vpop.permute.xlu0 %5580
  %v5582 = vlaneseq
  %v5583 = vshrl.u32 %v5582, 7
  %v5584 = vadd.s32 %v5583, 16
  %5585 = vset.pattern.permute.xlu0 %v5584
  %5586 = vperm.xlu0 %5585, %v5569
  %v5587 = vpop.permute.xlu0 %5586
  %v5588 = vlaneseq
  %v5589 = vshrl.u32 %v5588, 7
  %v5590 = vadd.s32 %v5589, 24
  %5591 = vset.pattern.permute.xlu0 %v5590
  %5592 = vperm.xlu0 %5591, %v5569
  %v5593 = vpop.permute.xlu0 %5592
  %v5594 = vperm.slane %v4987, 1
  %v5595 = vlaneseq
  %v5596 = vshrl.u32 %v5595, 7
  %5598 = vset.pattern.permute.xlu0 %v5596
  %5599 = vperm.xlu0 %5598, %v5594
  %v5600 = vpop.permute.xlu0 %5599
  %v5601 = vlaneseq
  %v5602 = vshrl.u32 %v5601, 7
  %v5603 = vadd.s32 %v5602, 8
  %5604 = vset.pattern.permute.xlu0 %v5603
  %5605 = vperm.xlu0 %5604, %v5594
  %v5606 = vpop.permute.xlu0 %5605
  %v5607 = vlaneseq
  %v5608 = vshrl.u32 %v5607, 7
  %v5609 = vadd.s32 %v5608, 16
  %5610 = vset.pattern.permute.xlu0 %v5609
  %5611 = vperm.xlu0 %5610, %v5594
  %v5612 = vpop.permute.xlu0 %5611
  %v5613 = vlaneseq
  %v5614 = vshrl.u32 %v5613, 7
  %v5615 = vadd.s32 %v5614, 24
  %5616 = vset.pattern.permute.xlu0 %v5615
  %5617 = vperm.xlu0 %5616, %v5594
  %v5618 = vpop.permute.xlu0 %5617
  %v5619 = vperm.slane %v4987, 2
  %v5620 = vlaneseq
  %v5621 = vshrl.u32 %v5620, 7
  %5623 = vset.pattern.permute.xlu0 %v5621
  %5624 = vperm.xlu0 %5623, %v5619
  %v5625 = vpop.permute.xlu0 %5624
  %v5626 = vlaneseq
  %v5627 = vshrl.u32 %v5626, 7
  %v5628 = vadd.s32 %v5627, 8
  %5629 = vset.pattern.permute.xlu0 %v5628
  %5630 = vperm.xlu0 %5629, %v5619
  %v5631 = vpop.permute.xlu0 %5630
  %v5632 = vlaneseq
  %v5633 = vshrl.u32 %v5632, 7
  %v5634 = vadd.s32 %v5633, 16
  %5635 = vset.pattern.permute.xlu0 %v5634
  %5636 = vperm.xlu0 %5635, %v5619
  %v5637 = vpop.permute.xlu0 %5636
  %v5638 = vlaneseq
  %v5639 = vshrl.u32 %v5638, 7
  %v5640 = vadd.s32 %v5639, 24
  %5641 = vset.pattern.permute.xlu0 %v5640
  %5642 = vperm.xlu0 %5641, %v5619
  %v5643 = vpop.permute.xlu0 %5642
  %v5644 = vperm.slane %v4987, 3
  %v5645 = vlaneseq
  %v5646 = vshrl.u32 %v5645, 7
  %5648 = vset.pattern.permute.xlu0 %v5646
  %5649 = vperm.xlu0 %5648, %v5644
  %v5650 = vpop.permute.xlu0 %5649
  %v5651 = vlaneseq
  %v5652 = vshrl.u32 %v5651, 7
  %v5653 = vadd.s32 %v5652, 8
  %5654 = vset.pattern.permute.xlu0 %v5653
  %5655 = vperm.xlu0 %5654, %v5644
  %v5656 = vpop.permute.xlu0 %5655
  %v5657 = vlaneseq
  %v5658 = vshrl.u32 %v5657, 7
  %v5659 = vadd.s32 %v5658, 16
  %5660 = vset.pattern.permute.xlu0 %v5659
  %5661 = vperm.xlu0 %5660, %v5644
  %v5662 = vpop.permute.xlu0 %5661
  %v5663 = vlaneseq
  %v5664 = vshrl.u32 %v5663, 7
  %v5665 = vadd.s32 %v5664, 24
  %5666 = vset.pattern.permute.xlu0 %v5665
  %5667 = vperm.xlu0 %5666, %v5644
  %v5668 = vpop.permute.xlu0 %5667
  %v5669 = vperm.slane %v4987, 4
  %v5670 = vlaneseq
  %v5671 = vshrl.u32 %v5670, 7
  %5673 = vset.pattern.permute.xlu0 %v5671
  %5674 = vperm.xlu0 %5673, %v5669
  %v5675 = vpop.permute.xlu0 %5674
  %v5676 = vlaneseq
  %v5677 = vshrl.u32 %v5676, 7
  %v5678 = vadd.s32 %v5677, 8
  %5679 = vset.pattern.permute.xlu0 %v5678
  %5680 = vperm.xlu0 %5679, %v5669
  %v5681 = vpop.permute.xlu0 %5680
  %v5682 = vlaneseq
  %v5683 = vshrl.u32 %v5682, 7
  %v5684 = vadd.s32 %v5683, 16
  %5685 = vset.pattern.permute.xlu0 %v5684
  %5686 = vperm.xlu0 %5685, %v5669
  %v5687 = vpop.permute.xlu0 %5686
  %v5688 = vlaneseq
  %v5689 = vshrl.u32 %v5688, 7
  %v5690 = vadd.s32 %v5689, 24
  %5691 = vset.pattern.permute.xlu0 %v5690
  %5692 = vperm.xlu0 %5691, %v5669
  %v5693 = vpop.permute.xlu0 %5692
  %v5694 = vperm.slane %v4987, 5
  %v5695 = vlaneseq
  %v5696 = vshrl.u32 %v5695, 7
  %5698 = vset.pattern.permute.xlu0 %v5696
  %5699 = vperm.xlu0 %5698, %v5694
  %v5700 = vpop.permute.xlu0 %5699
  %v5701 = vlaneseq
  %v5702 = vshrl.u32 %v5701, 7
  %v5703 = vadd.s32 %v5702, 8
  %5704 = vset.pattern.permute.xlu0 %v5703
  %5705 = vperm.xlu0 %5704, %v5694
  %v5706 = vpop.permute.xlu0 %5705
  %v5707 = vlaneseq
  %v5708 = vshrl.u32 %v5707, 7
  %v5709 = vadd.s32 %v5708, 16
  %5710 = vset.pattern.permute.xlu0 %v5709
  %5711 = vperm.xlu0 %5710, %v5694
  %v5712 = vpop.permute.xlu0 %5711
  %v5713 = vlaneseq
  %v5714 = vshrl.u32 %v5713, 7
  %v5715 = vadd.s32 %v5714, 24
  %5716 = vset.pattern.permute.xlu0 %v5715
  %5717 = vperm.xlu0 %5716, %v5694
  %v5718 = vpop.permute.xlu0 %5717
  %v5719 = vperm.slane %v4987, 6
  %v5720 = vlaneseq
  %v5721 = vshrl.u32 %v5720, 7
  %5723 = vset.pattern.permute.xlu0 %v5721
  %5724 = vperm.xlu0 %5723, %v5719
  %v5725 = vpop.permute.xlu0 %5724
  %v5726 = vlaneseq
  %v5727 = vshrl.u32 %v5726, 7
  %v5728 = vadd.s32 %v5727, 8
  %5729 = vset.pattern.permute.xlu0 %v5728
  %5730 = vperm.xlu0 %5729, %v5719
  %v5731 = vpop.permute.xlu0 %5730
  %v5732 = vlaneseq
  %v5733 = vshrl.u32 %v5732, 7
  %v5734 = vadd.s32 %v5733, 16
  %5735 = vset.pattern.permute.xlu0 %v5734
  %5736 = vperm.xlu0 %5735, %v5719
  %v5737 = vpop.permute.xlu0 %5736
  %v5738 = vlaneseq
  %v5739 = vshrl.u32 %v5738, 7
  %v5740 = vadd.s32 %v5739, 24
  %5741 = vset.pattern.permute.xlu0 %v5740
  %5742 = vperm.xlu0 %5741, %v5719
  %v5743 = vpop.permute.xlu0 %5742
  %v5744 = vperm.slane %v4987, 7
  %v5745 = vlaneseq
  %v5746 = vshrl.u32 %v5745, 7
  %5748 = vset.pattern.permute.xlu0 %v5746
  %5749 = vperm.xlu0 %5748, %v5744
  %v5750 = vpop.permute.xlu0 %5749
  %v5751 = vlaneseq
  %v5752 = vshrl.u32 %v5751, 7
  %v5753 = vadd.s32 %v5752, 8
  %5754 = vset.pattern.permute.xlu0 %v5753
  %5755 = vperm.xlu0 %5754, %v5744
  %v5756 = vpop.permute.xlu0 %5755
  %v5757 = vlaneseq
  %v5758 = vshrl.u32 %v5757, 7
  %v5759 = vadd.s32 %v5758, 16
  %5760 = vset.pattern.permute.xlu0 %v5759
  %5761 = vperm.xlu0 %5760, %v5744
  %v5762 = vpop.permute.xlu0 %5761
  %v5763 = vlaneseq
  %v5764 = vshrl.u32 %v5763, 7
  %v5765 = vadd.s32 %v5764, 24
  %5766 = vset.pattern.permute.xlu0 %v5765
  %5767 = vperm.xlu0 %5766, %v5744
  %v5768 = vpop.permute.xlu0 %5767
  %v5769 = vrcp.pop %v5475
  %v5770 = vrcp.pop %v5478
  %v5771 = vrcp.pop %v5481
  %v5772 = vrcp.pop %v5484
  %v5773 = vrcp.pop %v5487
  %v5774 = vrcp.pop %v5490
  %v5775 = vrcp.pop %v5493
  %v5776 = vrcp.pop %v5496
  %v5777 = vrcp.pop %v5499
  %v5778 = vrcp.pop %v5502
  %v5779 = vrcp.pop %v5505
  %v5780 = vrcp.pop %v5508
  %v5781 = vrcp.pop %v5511
  %v5782 = vrcp.pop %v5514
  %v5783 = vrcp.pop %v5517
  %v5784 = vrcp.pop %v5520
  %v5785 = vrcp.pop %v5523
  %v5786 = vrcp.pop %v5526
  %v5787 = vrcp.pop %v5529
  %v5788 = vrcp.pop %v5532
  %v5789 = vrcp.pop %v5535
  %v5790 = vrcp.pop %v5538
  %v5791 = vrcp.pop %v5541
  %v5792 = vrcp.pop %v5544
  %v5793 = vrcp.pop %v5547
  %v5794 = vrcp.pop %v5550
  %v5795 = vrcp.pop %v5553
  %v5796 = vrcp.pop %v5556
  %v5797 = vrcp.pop %v5559
  %v5798 = vrcp.pop %v5562
  %v5799 = vrcp.pop %v5565
  %v5800 = vrcp.pop %v5568
  %v5801 = vmul.f32 %v5575, %v5769
  %v5802 = vmul.f32 %v5581, %v5770
  %v5803 = vmul.f32 %v5587, %v5771
  %v5804 = vmul.f32 %v5593, %v5772
  %v5805 = vmul.f32 %v5600, %v5773
  %v5806 = vmul.f32 %v5606, %v5774
  %v5807 = vmul.f32 %v5612, %v5775
  %v5808 = vmul.f32 %v5618, %v5776
  %v5809 = vmul.f32 %v5625, %v5777
  %v5810 = vmul.f32 %v5631, %v5778
  %v5811 = vmul.f32 %v5637, %v5779
  %v5812 = vmul.f32 %v5643, %v5780
  %v5813 = vmul.f32 %v5650, %v5781
  %v5814 = vmul.f32 %v5656, %v5782
  %v5815 = vmul.f32 %v5662, %v5783
  %v5816 = vmul.f32 %v5668, %v5784
  %v5817 = vmul.f32 %v5675, %v5785
  %v5818 = vmul.f32 %v5681, %v5786
  %v5819 = vmul.f32 %v5687, %v5787
  %v5820 = vmul.f32 %v5693, %v5788
  %v5821 = vmul.f32 %v5700, %v5789
  %v5822 = vmul.f32 %v5706, %v5790
  %v5823 = vmul.f32 %v5712, %v5791
  %v5824 = vmul.f32 %v5718, %v5792
  %v5825 = vmul.f32 %v5725, %v5793
  %v5826 = vmul.f32 %v5731, %v5794
  %v5827 = vmul.f32 %v5737, %v5795
  %v5828 = vmul.f32 %v5743, %v5796
  %v5829 = vmul.f32 %v5750, %v5797
  %v5830 = vmul.f32 %v5756, %v5798
  %v5831 = vmul.f32 %v5762, %v5799
  %v5832 = vmul.f32 %v5768, %v5800
  %v5833 = vmul.f32 %v5801, %v5410
  %v5834 = vmul.f32 %v5802, %v5412
  %v5835 = vmul.f32 %v5803, %v5414
  %v5836 = vmul.f32 %v5804, %v5416
  %v5837 = vmul.f32 %v5805, %v5418
  %v5838 = vmul.f32 %v5806, %v5420
  %v5839 = vmul.f32 %v5807, %v5422
  %v5840 = vmul.f32 %v5808, %v5424
  %v5841 = vmul.f32 %v5809, %v5426
  %v5842 = vmul.f32 %v5810, %v5428
  %v5843 = vmul.f32 %v5811, %v5430
  %v5844 = vmul.f32 %v5812, %v5432
  %v5845 = vmul.f32 %v5813, %v5434
  %v5846 = vmul.f32 %v5814, %v5436
  %v5847 = vmul.f32 %v5815, %v5438
  %v5848 = vmul.f32 %v5816, %v5440
  %v5849 = vmul.f32 %v5817, %v5442
  %v5850 = vmul.f32 %v5818, %v5444
  %v5851 = vmul.f32 %v5819, %v5446
  %v5852 = vmul.f32 %v5820, %v5448
  %v5853 = vmul.f32 %v5821, %v5450
  %v5854 = vmul.f32 %v5822, %v5452
  %v5855 = vmul.f32 %v5823, %v5454
  %v5856 = vmul.f32 %v5824, %v5456
  %v5857 = vmul.f32 %v5825, %v5458
  %v5858 = vmul.f32 %v5826, %v5460
  %v5859 = vmul.f32 %v5827, %v5462
  %v5860 = vmul.f32 %v5828, %v5464
  %v5861 = vmul.f32 %v5829, %v5466
  %v5862 = vmul.f32 %v5830, %v5468
  %v5863 = vmul.f32 %v5831, %v5470
  %v5864 = vmul.f32 %v5832, %v5472
  %v5865 = vsel %vm232, %v5833, 0.0
  %v5866 = vsel %vm232, %v5834, 0.0
  %v5867 = vadd.f32 %v5865, %v5866
  %v5868 = vsel %vm232, %v5835, 0.0
  %v5869 = vadd.f32 %v5867, %v5868
  %v5870 = vsel %vm232, %v5836, 0.0
  %v5871 = vadd.f32 %v5869, %v5870
  %v5872 = vrot.slane %v5871, 4
  %v5873 = vadd.f32 %v5871, %v5872
  %v5874 = vrot.slane %v5873, 2
  %v5875 = vadd.f32 %v5873, %v5874
  %v5876 = vrot.slane %v5875, 1
  %v5877 = vadd.f32 %v5875, %v5876
  %v5878 = vsel %vm232, %v5837, 0.0
  %v5879 = vsel %vm232, %v5838, 0.0
  %v5880 = vadd.f32 %v5878, %v5879
  %v5881 = vsel %vm232, %v5839, 0.0
  %v5882 = vadd.f32 %v5880, %v5881
  %v5883 = vsel %vm232, %v5840, 0.0
  %v5884 = vadd.f32 %v5882, %v5883
  %v5885 = vrot.slane %v5884, 4
  %v5886 = vadd.f32 %v5884, %v5885
  %v5887 = vrot.slane %v5886, 2
  %v5888 = vadd.f32 %v5886, %v5887
  %v5889 = vrot.slane %v5888, 1
  %v5890 = vadd.f32 %v5888, %v5889
  %v5891 = vsel %vm232, %v5841, 0.0
  %v5892 = vsel %vm232, %v5842, 0.0
  %v5893 = vadd.f32 %v5891, %v5892
  %v5894 = vsel %vm232, %v5843, 0.0
  %v5895 = vadd.f32 %v5893, %v5894
  %v5896 = vsel %vm232, %v5844, 0.0
  %v5897 = vadd.f32 %v5895, %v5896
  %v5898 = vrot.slane %v5897, 4
  %v5899 = vadd.f32 %v5897, %v5898
  %v5900 = vrot.slane %v5899, 2
  %v5901 = vadd.f32 %v5899, %v5900
  %v5902 = vrot.slane %v5901, 1
  %v5903 = vadd.f32 %v5901, %v5902
  %v5904 = vsel %vm232, %v5845, 0.0
  %v5905 = vsel %vm232, %v5846, 0.0
  %v5906 = vadd.f32 %v5904, %v5905
  %v5907 = vsel %vm232, %v5847, 0.0
  %v5908 = vadd.f32 %v5906, %v5907
  %v5909 = vsel %vm232, %v5848, 0.0
  %v5910 = vadd.f32 %v5908, %v5909
  %v5911 = vrot.slane %v5910, 4
  %v5912 = vadd.f32 %v5910, %v5911
  %v5913 = vrot.slane %v5912, 2
  %v5914 = vadd.f32 %v5912, %v5913
  %v5915 = vrot.slane %v5914, 1
  %v5916 = vadd.f32 %v5914, %v5915
  %v5917 = vsel %vm232, %v5849, 0.0
  %v5918 = vsel %vm232, %v5850, 0.0
  %v5919 = vadd.f32 %v5917, %v5918
  %v5920 = vsel %vm232, %v5851, 0.0
  %v5921 = vadd.f32 %v5919, %v5920
  %v5922 = vsel %vm232, %v5852, 0.0
  %v5923 = vadd.f32 %v5921, %v5922
  %v5924 = vrot.slane %v5923, 4
  %v5925 = vadd.f32 %v5923, %v5924
  %v5926 = vrot.slane %v5925, 2
  %v5927 = vadd.f32 %v5925, %v5926
  %v5928 = vrot.slane %v5927, 1
  %v5929 = vadd.f32 %v5927, %v5928
  %v5930 = vsel %vm232, %v5853, 0.0
  %v5931 = vsel %vm232, %v5854, 0.0
  %v5932 = vadd.f32 %v5930, %v5931
  %v5933 = vsel %vm232, %v5855, 0.0
  %v5934 = vadd.f32 %v5932, %v5933
  %v5935 = vsel %vm232, %v5856, 0.0
  %v5936 = vadd.f32 %v5934, %v5935
  %v5937 = vrot.slane %v5936, 4
  %v5938 = vadd.f32 %v5936, %v5937
  %v5939 = vrot.slane %v5938, 2
  %v5940 = vadd.f32 %v5938, %v5939
  %v5941 = vrot.slane %v5940, 1
  %v5942 = vadd.f32 %v5940, %v5941
  %v5943 = vsel %vm232, %v5857, 0.0
  %v5944 = vsel %vm232, %v5858, 0.0
  %v5945 = vadd.f32 %v5943, %v5944
  %v5946 = vsel %vm232, %v5859, 0.0
  %v5947 = vadd.f32 %v5945, %v5946
  %v5948 = vsel %vm232, %v5860, 0.0
  %v5949 = vadd.f32 %v5947, %v5948
  %v5950 = vrot.slane %v5949, 4
  %v5951 = vadd.f32 %v5949, %v5950
  %v5952 = vrot.slane %v5951, 2
  %v5953 = vadd.f32 %v5951, %v5952
  %v5954 = vrot.slane %v5953, 1
  %v5955 = vadd.f32 %v5953, %v5954
  %v5956 = vsel %vm232, %v5861, 0.0
  %v5957 = vsel %vm232, %v5862, 0.0
  %v5958 = vadd.f32 %v5956, %v5957
  %v5959 = vsel %vm232, %v5863, 0.0
  %v5960 = vadd.f32 %v5958, %v5959
  %v5961 = vsel %vm232, %v5864, 0.0
  %v5962 = vadd.f32 %v5960, %v5961
  %v5963 = vrot.slane %v5962, 4
  %v5964 = vadd.f32 %v5962, %v5963
  %v5965 = vrot.slane %v5964, 2
  %v5966 = vadd.f32 %v5964, %v5965
  %v5967 = vrot.slane %v5966, 1
  %v5968 = vadd.f32 %v5966, %v5967
  %5970 = vset.pattern.permute.xlu0 0
  %5971 = vperm.xlu0 %5970, %v5001
  %v5972 = vpop.permute.xlu0 %5971
  %v5982 = vsel %vm1891, %v5890, %v5877
  %v5983 = vsel %vm1893, %v5903, %v5982
  %v5984 = vsel %vm1895, %v5916, %v5983
  %v5985 = vsel %vm1897, %v5929, %v5984
  %v5986 = vsel %vm1899, %v5942, %v5985
  %v5987 = vsel %vm1901, %v5955, %v5986
  %v5988 = vsel %vm1903, %v5968, %v5987
  %v5990 = vmul.f32 %v5972, %v5988
  %v5991 = vsub.f32 1.0, %v5001
  %5993 = vset.pattern.permute.xlu0 0
  %5994 = vperm.xlu0 %5993, %v5991
  %v5995 = vpop.permute.xlu0 %5994
  %v5997 = vmul.f32 %v5995, %v5023
  %v5998 = vadd.f32 %v5990, %v5997
  %v5999 = vlog2.pop %v5998
  %v6000 = vmul.f32 %v5999, 0.6931472
  %v6001 = vadd.f32 %v4997, %v6000
  %v6002 = vadd.f32 %v6001, %v4984
  %v6003 = vsel %vm232, %v6002, -inf
  %6004 = vmax.xlane.f32.xlu0 %v6003
  %v6005 = vpop.xlane.xlu0 %6004
  %v6006 = vsub.f32 %v6002, %v6005
  %v6007 = vmul.f32 %v6006, 1.442695
  %v6008 = vpow.pop %v6007
  %v6009 = vsel %vm232, %v6008, 0.0
  %6010 = vadd.xlane.f32.xlu0 %v6009
  %v6011 = vpop.xlane.xlu0 %6010
  %v6012 = vlog2.pop %v6011
  %v6013 = vmul.f32 %v6012, 0.6931472
  %v6014 = vadd.f32 %v6013, %v6005
  %s6015 = scalar_lea.vmem %s10, 40
  %6016 = vst.msk [vmem:[%s6015] sm:$0xff] %vm849, %v6014
  %s6017 = scalar_lea.vmem [#allocation2], 48
  %v6018 = vld [vmem:[%s6017] sm:$0xff]
  %s6019 = scalar_lea.vmem [#allocation3], 48
  %v6020 = vld [vmem:[%s6019] sm:$0xff]
  %s6021 = scalar_lea.vmem [#allocation4], 48
  %v6022 = vld [vmem:[%s6021] sm:$0xff]
  %v6024 = vsel %vm232, %v6008, 0
  %6026 = vmatpush.msra.mxu0 0.0
  %6027 = vmatpush.msra.mxu0 0.0
  %6028 = vmatpush.msra.mxu0 0.0
  %6029 = vmatpush.msra.mxu0 0.0
  %6030 = vmatpush.msra.mxu0 0.0
  %6031 = vmatpush.msra.mxu0 0.0
  %6032 = vmatpush.msra.mxu0 0.0
  %6033 = vmatpush.msra.mxu0 0.0
  %6034 = vmatpush.msra.mxu0 0.0
  %6035 = vmatpush.msra.mxu0 0.0
  %6036 = vmatpush.msra.mxu0 0.0
  %6037 = vmatpush.msra.mxu0 0.0
  %6038 = vmatpush.msra.mxu0 %v861
  %6039 = vmatpush.msra.mxu0 %v860
  %6040 = vmatpush.msra.mxu0 %v859
  %6041 = vmatpush.msra.mxu0 %v858
  %6042 = vmatmul.f32.gmra.mxu0 %v6024
  %v6043 = vpop.f32.mrf.mxu0
  %v6044 = vadd.f32 0.0, %v6043
  %6045 = vdwg.mxu0
  %v6046 = vsel %vm232, %v6020, -inf
  %6047 = vmax.xlane.f32.xlu0 %v6046
  %v6048 = vpop.xlane.xlu0 %6047
  %v6050 = vperm.slane %v6048, 0
  %v6051 = vperm.slane %v6048, 1
  %v6052 = vperm.slane %v6048, 2
  %v6053 = vperm.slane %v6048, 3
  %v6054 = vperm.slane %v6048, 4
  %v6055 = vperm.slane %v6048, 5
  %v6056 = vperm.slane %v6048, 6
  %v6057 = vperm.slane %v6048, 7
  %v6066 = vsel %vm232, %v6020, inf
  %6067 = vmin.xlane.f32.xlu0 %v6066
  %v6068 = vpop.xlane.xlu0 %6067
  %v6070 = vperm.slane %v6068, 0
  %v6071 = vperm.slane %v6068, 1
  %v6072 = vperm.slane %v6068, 2
  %v6073 = vperm.slane %v6068, 3
  %v6074 = vperm.slane %v6068, 4
  %v6075 = vperm.slane %v6068, 5
  %v6076 = vperm.slane %v6068, 6
  %v6077 = vperm.slane %v6068, 7
  %v6086 = vmul.f32 %v6050, %v862
  %v6087 = vmul.f32 %v6050, %v863
  %v6088 = vmul.f32 %v6050, %v864
  %v6089 = vmul.f32 %v6050, %v865
  %v6090 = vmul.f32 %v6051, %v862
  %v6091 = vmul.f32 %v6051, %v863
  %v6092 = vmul.f32 %v6051, %v864
  %v6093 = vmul.f32 %v6051, %v865
  %v6094 = vmul.f32 %v6052, %v862
  %v6095 = vmul.f32 %v6052, %v863
  %v6096 = vmul.f32 %v6052, %v864
  %v6097 = vmul.f32 %v6052, %v865
  %v6098 = vmul.f32 %v6053, %v862
  %v6099 = vmul.f32 %v6053, %v863
  %v6100 = vmul.f32 %v6053, %v864
  %v6101 = vmul.f32 %v6053, %v865
  %v6102 = vmul.f32 %v6054, %v862
  %v6103 = vmul.f32 %v6054, %v863
  %v6104 = vmul.f32 %v6054, %v864
  %v6105 = vmul.f32 %v6054, %v865
  %v6106 = vmul.f32 %v6055, %v862
  %v6107 = vmul.f32 %v6055, %v863
  %v6108 = vmul.f32 %v6055, %v864
  %v6109 = vmul.f32 %v6055, %v865
  %v6110 = vmul.f32 %v6056, %v862
  %v6111 = vmul.f32 %v6056, %v863
  %v6112 = vmul.f32 %v6056, %v864
  %v6113 = vmul.f32 %v6056, %v865
  %v6114 = vmul.f32 %v6057, %v862
  %v6115 = vmul.f32 %v6057, %v863
  %v6116 = vmul.f32 %v6057, %v864
  %v6117 = vmul.f32 %v6057, %v865
  %v6118 = vmul.f32 %v6070, %v862
  %v6119 = vmul.f32 %v6070, %v863
  %v6120 = vmul.f32 %v6070, %v864
  %v6121 = vmul.f32 %v6070, %v865
  %v6122 = vmul.f32 %v6071, %v862
  %v6123 = vmul.f32 %v6071, %v863
  %v6124 = vmul.f32 %v6071, %v864
  %v6125 = vmul.f32 %v6071, %v865
  %v6126 = vmul.f32 %v6072, %v862
  %v6127 = vmul.f32 %v6072, %v863
  %v6128 = vmul.f32 %v6072, %v864
  %v6129 = vmul.f32 %v6072, %v865
  %v6130 = vmul.f32 %v6073, %v862
  %v6131 = vmul.f32 %v6073, %v863
  %v6132 = vmul.f32 %v6073, %v864
  %v6133 = vmul.f32 %v6073, %v865
  %v6134 = vmul.f32 %v6074, %v862
  %v6135 = vmul.f32 %v6074, %v863
  %v6136 = vmul.f32 %v6074, %v864
  %v6137 = vmul.f32 %v6074, %v865
  %v6138 = vmul.f32 %v6075, %v862
  %v6139 = vmul.f32 %v6075, %v863
  %v6140 = vmul.f32 %v6075, %v864
  %v6141 = vmul.f32 %v6075, %v865
  %v6142 = vmul.f32 %v6076, %v862
  %v6143 = vmul.f32 %v6076, %v863
  %v6144 = vmul.f32 %v6076, %v864
  %v6145 = vmul.f32 %v6076, %v865
  %v6146 = vmul.f32 %v6077, %v862
  %v6147 = vmul.f32 %v6077, %v863
  %v6148 = vmul.f32 %v6077, %v864
  %v6149 = vmul.f32 %v6077, %v865
  %v6150 = vmax.f32 %v6086, %v6118
  %v6151 = vmax.f32 %v6087, %v6119
  %v6152 = vmax.f32 %v6088, %v6120
  %v6153 = vmax.f32 %v6089, %v6121
  %v6154 = vmax.f32 %v6090, %v6122
  %v6155 = vmax.f32 %v6091, %v6123
  %v6156 = vmax.f32 %v6092, %v6124
  %v6157 = vmax.f32 %v6093, %v6125
  %v6158 = vmax.f32 %v6094, %v6126
  %v6159 = vmax.f32 %v6095, %v6127
  %v6160 = vmax.f32 %v6096, %v6128
  %v6161 = vmax.f32 %v6097, %v6129
  %v6162 = vmax.f32 %v6098, %v6130
  %v6163 = vmax.f32 %v6099, %v6131
  %v6164 = vmax.f32 %v6100, %v6132
  %v6165 = vmax.f32 %v6101, %v6133
  %v6166 = vmax.f32 %v6102, %v6134
  %v6167 = vmax.f32 %v6103, %v6135
  %v6168 = vmax.f32 %v6104, %v6136
  %v6169 = vmax.f32 %v6105, %v6137
  %v6170 = vmax.f32 %v6106, %v6138
  %v6171 = vmax.f32 %v6107, %v6139
  %v6172 = vmax.f32 %v6108, %v6140
  %v6173 = vmax.f32 %v6109, %v6141
  %v6174 = vmax.f32 %v6110, %v6142
  %v6175 = vmax.f32 %v6111, %v6143
  %v6176 = vmax.f32 %v6112, %v6144
  %v6177 = vmax.f32 %v6113, %v6145
  %v6178 = vmax.f32 %v6114, %v6146
  %v6179 = vmax.f32 %v6115, %v6147
  %v6180 = vmax.f32 %v6116, %v6148
  %v6181 = vmax.f32 %v6117, %v6149
  %v6183 = vrot.slane %v6020, 1
  %v6184 = vrot.slane %v6020, 2
  %v6185 = vrot.slane %v6020, 3
  %v6186 = vrot.slane %v6020, 4
  %v6187 = vrot.slane %v6020, 5
  %v6188 = vrot.slane %v6020, 6
  %v6189 = vrot.slane %v6020, 7
  %v6190 = vperm.slane %v6020, 0
  %v6191 = vperm.slane %v6183, 0
  %v6192 = vperm.slane %v6184, 0
  %v6193 = vperm.slane %v6185, 0
  %v6194 = vperm.slane %v6186, 0
  %v6195 = vperm.slane %v6187, 0
  %v6196 = vperm.slane %v6188, 0
  %v6197 = vperm.slane %v6189, 0
  %v6206 = vmul.f32 %v1061, %v6190
  %v6207 = vmul.f32 %v1066, %v6190
  %v6208 = vmul.f32 %v1071, %v6190
  %v6209 = vmul.f32 %v1076, %v6190
  %v6210 = vmul.f32 %v1061, %v6191
  %v6211 = vmul.f32 %v1066, %v6191
  %v6212 = vmul.f32 %v1071, %v6191
  %v6213 = vmul.f32 %v1076, %v6191
  %v6214 = vmul.f32 %v1061, %v6192
  %v6215 = vmul.f32 %v1066, %v6192
  %v6216 = vmul.f32 %v1071, %v6192
  %v6217 = vmul.f32 %v1076, %v6192
  %v6218 = vmul.f32 %v1061, %v6193
  %v6219 = vmul.f32 %v1066, %v6193
  %v6220 = vmul.f32 %v1071, %v6193
  %v6221 = vmul.f32 %v1076, %v6193
  %v6222 = vmul.f32 %v1061, %v6194
  %v6223 = vmul.f32 %v1066, %v6194
  %v6224 = vmul.f32 %v1071, %v6194
  %v6225 = vmul.f32 %v1076, %v6194
  %v6226 = vmul.f32 %v1061, %v6195
  %v6227 = vmul.f32 %v1066, %v6195
  %v6228 = vmul.f32 %v1071, %v6195
  %v6229 = vmul.f32 %v1076, %v6195
  %v6230 = vmul.f32 %v1061, %v6196
  %v6231 = vmul.f32 %v1066, %v6196
  %v6232 = vmul.f32 %v1071, %v6196
  %v6233 = vmul.f32 %v1076, %v6196
  %v6234 = vmul.f32 %v1061, %v6197
  %v6235 = vmul.f32 %v1066, %v6197
  %v6236 = vmul.f32 %v1071, %v6197
  %v6237 = vmul.f32 %v1076, %v6197
  %6239 = vset.pattern.permute.xlu0 0
  %6240 = vperm.xlu0 %6239, %v6150
  %v6241 = vpop.permute.xlu0 %6240
  %6244 = vset.pattern.permute.xlu0 0
  %6245 = vperm.xlu0 %6244, %v6151
  %v6246 = vpop.permute.xlu0 %6245
  %6249 = vset.pattern.permute.xlu0 0
  %6250 = vperm.xlu0 %6249, %v6152
  %v6251 = vpop.permute.xlu0 %6250
  %6254 = vset.pattern.permute.xlu0 0
  %6255 = vperm.xlu0 %6254, %v6153
  %v6256 = vpop.permute.xlu0 %6255
  %6259 = vset.pattern.permute.xlu0 0
  %6260 = vperm.xlu0 %6259, %v6154
  %v6261 = vpop.permute.xlu0 %6260
  %6264 = vset.pattern.permute.xlu0 0
  %6265 = vperm.xlu0 %6264, %v6155
  %v6266 = vpop.permute.xlu0 %6265
  %6269 = vset.pattern.permute.xlu0 0
  %6270 = vperm.xlu0 %6269, %v6156
  %v6271 = vpop.permute.xlu0 %6270
  %6274 = vset.pattern.permute.xlu0 0
  %6275 = vperm.xlu0 %6274, %v6157
  %v6276 = vpop.permute.xlu0 %6275
  %6279 = vset.pattern.permute.xlu0 0
  %6280 = vperm.xlu0 %6279, %v6158
  %v6281 = vpop.permute.xlu0 %6280
  %6284 = vset.pattern.permute.xlu0 0
  %6285 = vperm.xlu0 %6284, %v6159
  %v6286 = vpop.permute.xlu0 %6285
  %6289 = vset.pattern.permute.xlu0 0
  %6290 = vperm.xlu0 %6289, %v6160
  %v6291 = vpop.permute.xlu0 %6290
  %6294 = vset.pattern.permute.xlu0 0
  %6295 = vperm.xlu0 %6294, %v6161
  %v6296 = vpop.permute.xlu0 %6295
  %6299 = vset.pattern.permute.xlu0 0
  %6300 = vperm.xlu0 %6299, %v6162
  %v6301 = vpop.permute.xlu0 %6300
  %6304 = vset.pattern.permute.xlu0 0
  %6305 = vperm.xlu0 %6304, %v6163
  %v6306 = vpop.permute.xlu0 %6305
  %6309 = vset.pattern.permute.xlu0 0
  %6310 = vperm.xlu0 %6309, %v6164
  %v6311 = vpop.permute.xlu0 %6310
  %6314 = vset.pattern.permute.xlu0 0
  %6315 = vperm.xlu0 %6314, %v6165
  %v6316 = vpop.permute.xlu0 %6315
  %6319 = vset.pattern.permute.xlu0 0
  %6320 = vperm.xlu0 %6319, %v6166
  %v6321 = vpop.permute.xlu0 %6320
  %6324 = vset.pattern.permute.xlu0 0
  %6325 = vperm.xlu0 %6324, %v6167
  %v6326 = vpop.permute.xlu0 %6325
  %6329 = vset.pattern.permute.xlu0 0
  %6330 = vperm.xlu0 %6329, %v6168
  %v6331 = vpop.permute.xlu0 %6330
  %6334 = vset.pattern.permute.xlu0 0
  %6335 = vperm.xlu0 %6334, %v6169
  %v6336 = vpop.permute.xlu0 %6335
  %6339 = vset.pattern.permute.xlu0 0
  %6340 = vperm.xlu0 %6339, %v6170
  %v6341 = vpop.permute.xlu0 %6340
  %6344 = vset.pattern.permute.xlu0 0
  %6345 = vperm.xlu0 %6344, %v6171
  %v6346 = vpop.permute.xlu0 %6345
  %6349 = vset.pattern.permute.xlu0 0
  %6350 = vperm.xlu0 %6349, %v6172
  %v6351 = vpop.permute.xlu0 %6350
  %6354 = vset.pattern.permute.xlu0 0
  %6355 = vperm.xlu0 %6354, %v6173
  %v6356 = vpop.permute.xlu0 %6355
  %6359 = vset.pattern.permute.xlu0 0
  %6360 = vperm.xlu0 %6359, %v6174
  %v6361 = vpop.permute.xlu0 %6360
  %6364 = vset.pattern.permute.xlu0 0
  %6365 = vperm.xlu0 %6364, %v6175
  %v6366 = vpop.permute.xlu0 %6365
  %6369 = vset.pattern.permute.xlu0 0
  %6370 = vperm.xlu0 %6369, %v6176
  %v6371 = vpop.permute.xlu0 %6370
  %6374 = vset.pattern.permute.xlu0 0
  %6375 = vperm.xlu0 %6374, %v6177
  %v6376 = vpop.permute.xlu0 %6375
  %6379 = vset.pattern.permute.xlu0 0
  %6380 = vperm.xlu0 %6379, %v6178
  %v6381 = vpop.permute.xlu0 %6380
  %6384 = vset.pattern.permute.xlu0 0
  %6385 = vperm.xlu0 %6384, %v6179
  %v6386 = vpop.permute.xlu0 %6385
  %6389 = vset.pattern.permute.xlu0 0
  %6390 = vperm.xlu0 %6389, %v6180
  %v6391 = vpop.permute.xlu0 %6390
  %6394 = vset.pattern.permute.xlu0 0
  %6395 = vperm.xlu0 %6394, %v6181
  %v6396 = vpop.permute.xlu0 %6395
  %v6398 = vsub.f32 %v6206, %v6241
  %v6399 = vsub.f32 %v6207, %v6246
  %v6400 = vsub.f32 %v6208, %v6251
  %v6401 = vsub.f32 %v6209, %v6256
  %v6402 = vsub.f32 %v6210, %v6261
  %v6403 = vsub.f32 %v6211, %v6266
  %v6404 = vsub.f32 %v6212, %v6271
  %v6405 = vsub.f32 %v6213, %v6276
  %v6406 = vsub.f32 %v6214, %v6281
  %v6407 = vsub.f32 %v6215, %v6286
  %v6408 = vsub.f32 %v6216, %v6291
  %v6409 = vsub.f32 %v6217, %v6296
  %v6410 = vsub.f32 %v6218, %v6301
  %v6411 = vsub.f32 %v6219, %v6306
  %v6412 = vsub.f32 %v6220, %v6311
  %v6413 = vsub.f32 %v6221, %v6316
  %v6414 = vsub.f32 %v6222, %v6321
  %v6415 = vsub.f32 %v6223, %v6326
  %v6416 = vsub.f32 %v6224, %v6331
  %v6417 = vsub.f32 %v6225, %v6336
  %v6418 = vsub.f32 %v6226, %v6341
  %v6419 = vsub.f32 %v6227, %v6346
  %v6420 = vsub.f32 %v6228, %v6351
  %v6421 = vsub.f32 %v6229, %v6356
  %v6422 = vsub.f32 %v6230, %v6361
  %v6423 = vsub.f32 %v6231, %v6366
  %v6424 = vsub.f32 %v6232, %v6371
  %v6425 = vsub.f32 %v6233, %v6376
  %v6426 = vsub.f32 %v6234, %v6381
  %v6427 = vsub.f32 %v6235, %v6386
  %v6428 = vsub.f32 %v6236, %v6391
  %v6429 = vsub.f32 %v6237, %v6396
  %v6430 = vmul.f32 %v6398, 1.442695
  %v6431 = vpow.pop %v6430
  %v6432 = vmul.f32 %v6399, 1.442695
  %v6433 = vpow.pop %v6432
  %v6434 = vmul.f32 %v6400, 1.442695
  %v6435 = vpow.pop %v6434
  %v6436 = vmul.f32 %v6401, 1.442695
  %v6437 = vpow.pop %v6436
  %v6438 = vmul.f32 %v6402, 1.442695
  %v6439 = vpow.pop %v6438
  %v6440 = vmul.f32 %v6403, 1.442695
  %v6441 = vpow.pop %v6440
  %v6442 = vmul.f32 %v6404, 1.442695
  %v6443 = vpow.pop %v6442
  %v6444 = vmul.f32 %v6405, 1.442695
  %v6445 = vpow.pop %v6444
  %v6446 = vmul.f32 %v6406, 1.442695
  %v6447 = vpow.pop %v6446
  %v6448 = vmul.f32 %v6407, 1.442695
  %v6449 = vpow.pop %v6448
  %v6450 = vmul.f32 %v6408, 1.442695
  %v6451 = vpow.pop %v6450
  %v6452 = vmul.f32 %v6409, 1.442695
  %v6453 = vpow.pop %v6452
  %v6454 = vmul.f32 %v6410, 1.442695
  %v6455 = vpow.pop %v6454
  %v6456 = vmul.f32 %v6411, 1.442695
  %v6457 = vpow.pop %v6456
  %v6458 = vmul.f32 %v6412, 1.442695
  %v6459 = vpow.pop %v6458
  %v6460 = vmul.f32 %v6413, 1.442695
  %v6461 = vpow.pop %v6460
  %v6462 = vmul.f32 %v6414, 1.442695
  %v6463 = vpow.pop %v6462
  %v6464 = vmul.f32 %v6415, 1.442695
  %v6465 = vpow.pop %v6464
  %v6466 = vmul.f32 %v6416, 1.442695
  %v6467 = vpow.pop %v6466
  %v6468 = vmul.f32 %v6417, 1.442695
  %v6469 = vpow.pop %v6468
  %v6470 = vmul.f32 %v6418, 1.442695
  %v6471 = vpow.pop %v6470
  %v6472 = vmul.f32 %v6419, 1.442695
  %v6473 = vpow.pop %v6472
  %v6474 = vmul.f32 %v6420, 1.442695
  %v6475 = vpow.pop %v6474
  %v6476 = vmul.f32 %v6421, 1.442695
  %v6477 = vpow.pop %v6476
  %v6478 = vmul.f32 %v6422, 1.442695
  %v6479 = vpow.pop %v6478
  %v6480 = vmul.f32 %v6423, 1.442695
  %v6481 = vpow.pop %v6480
  %v6482 = vmul.f32 %v6424, 1.442695
  %v6483 = vpow.pop %v6482
  %v6484 = vmul.f32 %v6425, 1.442695
  %v6485 = vpow.pop %v6484
  %v6486 = vmul.f32 %v6426, 1.442695
  %v6487 = vpow.pop %v6486
  %v6488 = vmul.f32 %v6427, 1.442695
  %v6489 = vpow.pop %v6488
  %v6490 = vmul.f32 %v6428, 1.442695
  %v6491 = vpow.pop %v6490
  %v6492 = vmul.f32 %v6429, 1.442695
  %v6493 = vpow.pop %v6492
  %v6494 = vsel %vm232, %v6431, 0.0
  %6495 = vadd.xlane.f32.xlu0 %v6494
  %v6496 = vpop.xlane.xlu0 %6495
  %v6497 = vsel %vm232, %v6433, 0.0
  %6498 = vadd.xlane.f32.xlu0 %v6497
  %v6499 = vpop.xlane.xlu0 %6498
  %v6500 = vsel %vm232, %v6435, 0.0
  %6501 = vadd.xlane.f32.xlu0 %v6500
  %v6502 = vpop.xlane.xlu0 %6501
  %v6503 = vsel %vm232, %v6437, 0.0
  %6504 = vadd.xlane.f32.xlu0 %v6503
  %v6505 = vpop.xlane.xlu0 %6504
  %v6506 = vsel %vm232, %v6439, 0.0
  %6507 = vadd.xlane.f32.xlu0 %v6506
  %v6508 = vpop.xlane.xlu0 %6507
  %v6509 = vsel %vm232, %v6441, 0.0
  %6510 = vadd.xlane.f32.xlu0 %v6509
  %v6511 = vpop.xlane.xlu0 %6510
  %v6512 = vsel %vm232, %v6443, 0.0
  %6513 = vadd.xlane.f32.xlu0 %v6512
  %v6514 = vpop.xlane.xlu0 %6513
  %v6515 = vsel %vm232, %v6445, 0.0
  %6516 = vadd.xlane.f32.xlu0 %v6515
  %v6517 = vpop.xlane.xlu0 %6516
  %v6518 = vsel %vm232, %v6447, 0.0
  %6519 = vadd.xlane.f32.xlu0 %v6518
  %v6520 = vpop.xlane.xlu0 %6519
  %v6521 = vsel %vm232, %v6449, 0.0
  %6522 = vadd.xlane.f32.xlu0 %v6521
  %v6523 = vpop.xlane.xlu0 %6522
  %v6524 = vsel %vm232, %v6451, 0.0
  %6525 = vadd.xlane.f32.xlu0 %v6524
  %v6526 = vpop.xlane.xlu0 %6525
  %v6527 = vsel %vm232, %v6453, 0.0
  %6528 = vadd.xlane.f32.xlu0 %v6527
  %v6529 = vpop.xlane.xlu0 %6528
  %v6530 = vsel %vm232, %v6455, 0.0
  %6531 = vadd.xlane.f32.xlu0 %v6530
  %v6532 = vpop.xlane.xlu0 %6531
  %v6533 = vsel %vm232, %v6457, 0.0
  %6534 = vadd.xlane.f32.xlu0 %v6533
  %v6535 = vpop.xlane.xlu0 %6534
  %v6536 = vsel %vm232, %v6459, 0.0
  %6537 = vadd.xlane.f32.xlu0 %v6536
  %v6538 = vpop.xlane.xlu0 %6537
  %v6539 = vsel %vm232, %v6461, 0.0
  %6540 = vadd.xlane.f32.xlu0 %v6539
  %v6541 = vpop.xlane.xlu0 %6540
  %v6542 = vsel %vm232, %v6463, 0.0
  %6543 = vadd.xlane.f32.xlu0 %v6542
  %v6544 = vpop.xlane.xlu0 %6543
  %v6545 = vsel %vm232, %v6465, 0.0
  %6546 = vadd.xlane.f32.xlu0 %v6545
  %v6547 = vpop.xlane.xlu0 %6546
  %v6548 = vsel %vm232, %v6467, 0.0
  %6549 = vadd.xlane.f32.xlu0 %v6548
  %v6550 = vpop.xlane.xlu0 %6549
  %v6551 = vsel %vm232, %v6469, 0.0
  %6552 = vadd.xlane.f32.xlu0 %v6551
  %v6553 = vpop.xlane.xlu0 %6552
  %v6554 = vsel %vm232, %v6471, 0.0
  %6555 = vadd.xlane.f32.xlu0 %v6554
  %v6556 = vpop.xlane.xlu0 %6555
  %v6557 = vsel %vm232, %v6473, 0.0
  %6558 = vadd.xlane.f32.xlu0 %v6557
  %v6559 = vpop.xlane.xlu0 %6558
  %v6560 = vsel %vm232, %v6475, 0.0
  %6561 = vadd.xlane.f32.xlu0 %v6560
  %v6562 = vpop.xlane.xlu0 %6561
  %v6563 = vsel %vm232, %v6477, 0.0
  %6564 = vadd.xlane.f32.xlu0 %v6563
  %v6565 = vpop.xlane.xlu0 %6564
  %v6566 = vsel %vm232, %v6479, 0.0
  %6567 = vadd.xlane.f32.xlu0 %v6566
  %v6568 = vpop.xlane.xlu0 %6567
  %v6569 = vsel %vm232, %v6481, 0.0
  %6570 = vadd.xlane.f32.xlu0 %v6569
  %v6571 = vpop.xlane.xlu0 %6570
  %v6572 = vsel %vm232, %v6483, 0.0
  %6573 = vadd.xlane.f32.xlu0 %v6572
  %v6574 = vpop.xlane.xlu0 %6573
  %v6575 = vsel %vm232, %v6485, 0.0
  %6576 = vadd.xlane.f32.xlu0 %v6575
  %v6577 = vpop.xlane.xlu0 %6576
  %v6578 = vsel %vm232, %v6487, 0.0
  %6579 = vadd.xlane.f32.xlu0 %v6578
  %v6580 = vpop.xlane.xlu0 %6579
  %v6581 = vsel %vm232, %v6489, 0.0
  %6582 = vadd.xlane.f32.xlu0 %v6581
  %v6583 = vpop.xlane.xlu0 %6582
  %v6584 = vsel %vm232, %v6491, 0.0
  %6585 = vadd.xlane.f32.xlu0 %v6584
  %v6586 = vpop.xlane.xlu0 %6585
  %v6587 = vsel %vm232, %v6493, 0.0
  %6588 = vadd.xlane.f32.xlu0 %v6587
  %v6589 = vpop.xlane.xlu0 %6588
  %v6590 = vperm.slane %v6008, 0
  %v6591 = vlaneseq
  %v6592 = vshrl.u32 %v6591, 7
  %6594 = vset.pattern.permute.xlu0 %v6592
  %6595 = vperm.xlu0 %6594, %v6590
  %v6596 = vpop.permute.xlu0 %6595
  %v6597 = vlaneseq
  %v6598 = vshrl.u32 %v6597, 7
  %v6599 = vadd.s32 %v6598, 8
  %6600 = vset.pattern.permute.xlu0 %v6599
  %6601 = vperm.xlu0 %6600, %v6590
  %v6602 = vpop.permute.xlu0 %6601
  %v6603 = vlaneseq
  %v6604 = vshrl.u32 %v6603, 7
  %v6605 = vadd.s32 %v6604, 16
  %6606 = vset.pattern.permute.xlu0 %v6605
  %6607 = vperm.xlu0 %6606, %v6590
  %v6608 = vpop.permute.xlu0 %6607
  %v6609 = vlaneseq
  %v6610 = vshrl.u32 %v6609, 7
  %v6611 = vadd.s32 %v6610, 24
  %6612 = vset.pattern.permute.xlu0 %v6611
  %6613 = vperm.xlu0 %6612, %v6590
  %v6614 = vpop.permute.xlu0 %6613
  %v6615 = vperm.slane %v6008, 1
  %v6616 = vlaneseq
  %v6617 = vshrl.u32 %v6616, 7
  %6619 = vset.pattern.permute.xlu0 %v6617
  %6620 = vperm.xlu0 %6619, %v6615
  %v6621 = vpop.permute.xlu0 %6620
  %v6622 = vlaneseq
  %v6623 = vshrl.u32 %v6622, 7
  %v6624 = vadd.s32 %v6623, 8
  %6625 = vset.pattern.permute.xlu0 %v6624
  %6626 = vperm.xlu0 %6625, %v6615
  %v6627 = vpop.permute.xlu0 %6626
  %v6628 = vlaneseq
  %v6629 = vshrl.u32 %v6628, 7
  %v6630 = vadd.s32 %v6629, 16
  %6631 = vset.pattern.permute.xlu0 %v6630
  %6632 = vperm.xlu0 %6631, %v6615
  %v6633 = vpop.permute.xlu0 %6632
  %v6634 = vlaneseq
  %v6635 = vshrl.u32 %v6634, 7
  %v6636 = vadd.s32 %v6635, 24
  %6637 = vset.pattern.permute.xlu0 %v6636
  %6638 = vperm.xlu0 %6637, %v6615
  %v6639 = vpop.permute.xlu0 %6638
  %v6640 = vperm.slane %v6008, 2
  %v6641 = vlaneseq
  %v6642 = vshrl.u32 %v6641, 7
  %6644 = vset.pattern.permute.xlu0 %v6642
  %6645 = vperm.xlu0 %6644, %v6640
  %v6646 = vpop.permute.xlu0 %6645
  %v6647 = vlaneseq
  %v6648 = vshrl.u32 %v6647, 7
  %v6649 = vadd.s32 %v6648, 8
  %6650 = vset.pattern.permute.xlu0 %v6649
  %6651 = vperm.xlu0 %6650, %v6640
  %v6652 = vpop.permute.xlu0 %6651
  %v6653 = vlaneseq
  %v6654 = vshrl.u32 %v6653, 7
  %v6655 = vadd.s32 %v6654, 16
  %6656 = vset.pattern.permute.xlu0 %v6655
  %6657 = vperm.xlu0 %6656, %v6640
  %v6658 = vpop.permute.xlu0 %6657
  %v6659 = vlaneseq
  %v6660 = vshrl.u32 %v6659, 7
  %v6661 = vadd.s32 %v6660, 24
  %6662 = vset.pattern.permute.xlu0 %v6661
  %6663 = vperm.xlu0 %6662, %v6640
  %v6664 = vpop.permute.xlu0 %6663
  %v6665 = vperm.slane %v6008, 3
  %v6666 = vlaneseq
  %v6667 = vshrl.u32 %v6666, 7
  %6669 = vset.pattern.permute.xlu0 %v6667
  %6670 = vperm.xlu0 %6669, %v6665
  %v6671 = vpop.permute.xlu0 %6670
  %v6672 = vlaneseq
  %v6673 = vshrl.u32 %v6672, 7
  %v6674 = vadd.s32 %v6673, 8
  %6675 = vset.pattern.permute.xlu0 %v6674
  %6676 = vperm.xlu0 %6675, %v6665
  %v6677 = vpop.permute.xlu0 %6676
  %v6678 = vlaneseq
  %v6679 = vshrl.u32 %v6678, 7
  %v6680 = vadd.s32 %v6679, 16
  %6681 = vset.pattern.permute.xlu0 %v6680
  %6682 = vperm.xlu0 %6681, %v6665
  %v6683 = vpop.permute.xlu0 %6682
  %v6684 = vlaneseq
  %v6685 = vshrl.u32 %v6684, 7
  %v6686 = vadd.s32 %v6685, 24
  %6687 = vset.pattern.permute.xlu0 %v6686
  %6688 = vperm.xlu0 %6687, %v6665
  %v6689 = vpop.permute.xlu0 %6688
  %v6690 = vperm.slane %v6008, 4
  %v6691 = vlaneseq
  %v6692 = vshrl.u32 %v6691, 7
  %6694 = vset.pattern.permute.xlu0 %v6692
  %6695 = vperm.xlu0 %6694, %v6690
  %v6696 = vpop.permute.xlu0 %6695
  %v6697 = vlaneseq
  %v6698 = vshrl.u32 %v6697, 7
  %v6699 = vadd.s32 %v6698, 8
  %6700 = vset.pattern.permute.xlu0 %v6699
  %6701 = vperm.xlu0 %6700, %v6690
  %v6702 = vpop.permute.xlu0 %6701
  %v6703 = vlaneseq
  %v6704 = vshrl.u32 %v6703, 7
  %v6705 = vadd.s32 %v6704, 16
  %6706 = vset.pattern.permute.xlu0 %v6705
  %6707 = vperm.xlu0 %6706, %v6690
  %v6708 = vpop.permute.xlu0 %6707
  %v6709 = vlaneseq
  %v6710 = vshrl.u32 %v6709, 7
  %v6711 = vadd.s32 %v6710, 24
  %6712 = vset.pattern.permute.xlu0 %v6711
  %6713 = vperm.xlu0 %6712, %v6690
  %v6714 = vpop.permute.xlu0 %6713
  %v6715 = vperm.slane %v6008, 5
  %v6716 = vlaneseq
  %v6717 = vshrl.u32 %v6716, 7
  %6719 = vset.pattern.permute.xlu0 %v6717
  %6720 = vperm.xlu0 %6719, %v6715
  %v6721 = vpop.permute.xlu0 %6720
  %v6722 = vlaneseq
  %v6723 = vshrl.u32 %v6722, 7
  %v6724 = vadd.s32 %v6723, 8
  %6725 = vset.pattern.permute.xlu0 %v6724
  %6726 = vperm.xlu0 %6725, %v6715
  %v6727 = vpop.permute.xlu0 %6726
  %v6728 = vlaneseq
  %v6729 = vshrl.u32 %v6728, 7
  %v6730 = vadd.s32 %v6729, 16
  %6731 = vset.pattern.permute.xlu0 %v6730
  %6732 = vperm.xlu0 %6731, %v6715
  %v6733 = vpop.permute.xlu0 %6732
  %v6734 = vlaneseq
  %v6735 = vshrl.u32 %v6734, 7
  %v6736 = vadd.s32 %v6735, 24
  %6737 = vset.pattern.permute.xlu0 %v6736
  %6738 = vperm.xlu0 %6737, %v6715
  %v6739 = vpop.permute.xlu0 %6738
  %v6740 = vperm.slane %v6008, 6
  %v6741 = vlaneseq
  %v6742 = vshrl.u32 %v6741, 7
  %6744 = vset.pattern.permute.xlu0 %v6742
  %6745 = vperm.xlu0 %6744, %v6740
  %v6746 = vpop.permute.xlu0 %6745
  %v6747 = vlaneseq
  %v6748 = vshrl.u32 %v6747, 7
  %v6749 = vadd.s32 %v6748, 8
  %6750 = vset.pattern.permute.xlu0 %v6749
  %6751 = vperm.xlu0 %6750, %v6740
  %v6752 = vpop.permute.xlu0 %6751
  %v6753 = vlaneseq
  %v6754 = vshrl.u32 %v6753, 7
  %v6755 = vadd.s32 %v6754, 16
  %6756 = vset.pattern.permute.xlu0 %v6755
  %6757 = vperm.xlu0 %6756, %v6740
  %v6758 = vpop.permute.xlu0 %6757
  %v6759 = vlaneseq
  %v6760 = vshrl.u32 %v6759, 7
  %v6761 = vadd.s32 %v6760, 24
  %6762 = vset.pattern.permute.xlu0 %v6761
  %6763 = vperm.xlu0 %6762, %v6740
  %v6764 = vpop.permute.xlu0 %6763
  %v6765 = vperm.slane %v6008, 7
  %v6766 = vlaneseq
  %v6767 = vshrl.u32 %v6766, 7
  %6769 = vset.pattern.permute.xlu0 %v6767
  %6770 = vperm.xlu0 %6769, %v6765
  %v6771 = vpop.permute.xlu0 %6770
  %v6772 = vlaneseq
  %v6773 = vshrl.u32 %v6772, 7
  %v6774 = vadd.s32 %v6773, 8
  %6775 = vset.pattern.permute.xlu0 %v6774
  %6776 = vperm.xlu0 %6775, %v6765
  %v6777 = vpop.permute.xlu0 %6776
  %v6778 = vlaneseq
  %v6779 = vshrl.u32 %v6778, 7
  %v6780 = vadd.s32 %v6779, 16
  %6781 = vset.pattern.permute.xlu0 %v6780
  %6782 = vperm.xlu0 %6781, %v6765
  %v6783 = vpop.permute.xlu0 %6782
  %v6784 = vlaneseq
  %v6785 = vshrl.u32 %v6784, 7
  %v6786 = vadd.s32 %v6785, 24
  %6787 = vset.pattern.permute.xlu0 %v6786
  %6788 = vperm.xlu0 %6787, %v6765
  %v6789 = vpop.permute.xlu0 %6788
  %v6790 = vrcp.pop %v6496
  %v6791 = vrcp.pop %v6499
  %v6792 = vrcp.pop %v6502
  %v6793 = vrcp.pop %v6505
  %v6794 = vrcp.pop %v6508
  %v6795 = vrcp.pop %v6511
  %v6796 = vrcp.pop %v6514
  %v6797 = vrcp.pop %v6517
  %v6798 = vrcp.pop %v6520
  %v6799 = vrcp.pop %v6523
  %v6800 = vrcp.pop %v6526
  %v6801 = vrcp.pop %v6529
  %v6802 = vrcp.pop %v6532
  %v6803 = vrcp.pop %v6535
  %v6804 = vrcp.pop %v6538
  %v6805 = vrcp.pop %v6541
  %v6806 = vrcp.pop %v6544
  %v6807 = vrcp.pop %v6547
  %v6808 = vrcp.pop %v6550
  %v6809 = vrcp.pop %v6553
  %v6810 = vrcp.pop %v6556
  %v6811 = vrcp.pop %v6559
  %v6812 = vrcp.pop %v6562
  %v6813 = vrcp.pop %v6565
  %v6814 = vrcp.pop %v6568
  %v6815 = vrcp.pop %v6571
  %v6816 = vrcp.pop %v6574
  %v6817 = vrcp.pop %v6577
  %v6818 = vrcp.pop %v6580
  %v6819 = vrcp.pop %v6583
  %v6820 = vrcp.pop %v6586
  %v6821 = vrcp.pop %v6589
  %v6822 = vmul.f32 %v6596, %v6790
  %v6823 = vmul.f32 %v6602, %v6791
  %v6824 = vmul.f32 %v6608, %v6792
  %v6825 = vmul.f32 %v6614, %v6793
  %v6826 = vmul.f32 %v6621, %v6794
  %v6827 = vmul.f32 %v6627, %v6795
  %v6828 = vmul.f32 %v6633, %v6796
  %v6829 = vmul.f32 %v6639, %v6797
  %v6830 = vmul.f32 %v6646, %v6798
  %v6831 = vmul.f32 %v6652, %v6799
  %v6832 = vmul.f32 %v6658, %v6800
  %v6833 = vmul.f32 %v6664, %v6801
  %v6834 = vmul.f32 %v6671, %v6802
  %v6835 = vmul.f32 %v6677, %v6803
  %v6836 = vmul.f32 %v6683, %v6804
  %v6837 = vmul.f32 %v6689, %v6805
  %v6838 = vmul.f32 %v6696, %v6806
  %v6839 = vmul.f32 %v6702, %v6807
  %v6840 = vmul.f32 %v6708, %v6808
  %v6841 = vmul.f32 %v6714, %v6809
  %v6842 = vmul.f32 %v6721, %v6810
  %v6843 = vmul.f32 %v6727, %v6811
  %v6844 = vmul.f32 %v6733, %v6812
  %v6845 = vmul.f32 %v6739, %v6813
  %v6846 = vmul.f32 %v6746, %v6814
  %v6847 = vmul.f32 %v6752, %v6815
  %v6848 = vmul.f32 %v6758, %v6816
  %v6849 = vmul.f32 %v6764, %v6817
  %v6850 = vmul.f32 %v6771, %v6818
  %v6851 = vmul.f32 %v6777, %v6819
  %v6852 = vmul.f32 %v6783, %v6820
  %v6853 = vmul.f32 %v6789, %v6821
  %v6854 = vmul.f32 %v6822, %v6431
  %v6855 = vmul.f32 %v6823, %v6433
  %v6856 = vmul.f32 %v6824, %v6435
  %v6857 = vmul.f32 %v6825, %v6437
  %v6858 = vmul.f32 %v6826, %v6439
  %v6859 = vmul.f32 %v6827, %v6441
  %v6860 = vmul.f32 %v6828, %v6443
  %v6861 = vmul.f32 %v6829, %v6445
  %v6862 = vmul.f32 %v6830, %v6447
  %v6863 = vmul.f32 %v6831, %v6449
  %v6864 = vmul.f32 %v6832, %v6451
  %v6865 = vmul.f32 %v6833, %v6453
  %v6866 = vmul.f32 %v6834, %v6455
  %v6867 = vmul.f32 %v6835, %v6457
  %v6868 = vmul.f32 %v6836, %v6459
  %v6869 = vmul.f32 %v6837, %v6461
  %v6870 = vmul.f32 %v6838, %v6463
  %v6871 = vmul.f32 %v6839, %v6465
  %v6872 = vmul.f32 %v6840, %v6467
  %v6873 = vmul.f32 %v6841, %v6469
  %v6874 = vmul.f32 %v6842, %v6471
  %v6875 = vmul.f32 %v6843, %v6473
  %v6876 = vmul.f32 %v6844, %v6475
  %v6877 = vmul.f32 %v6845, %v6477
  %v6878 = vmul.f32 %v6846, %v6479
  %v6879 = vmul.f32 %v6847, %v6481
  %v6880 = vmul.f32 %v6848, %v6483
  %v6881 = vmul.f32 %v6849, %v6485
  %v6882 = vmul.f32 %v6850, %v6487
  %v6883 = vmul.f32 %v6851, %v6489
  %v6884 = vmul.f32 %v6852, %v6491
  %v6885 = vmul.f32 %v6853, %v6493
  %v6886 = vsel %vm232, %v6854, 0.0
  %v6887 = vsel %vm232, %v6855, 0.0
  %v6888 = vadd.f32 %v6886, %v6887
  %v6889 = vsel %vm232, %v6856, 0.0
  %v6890 = vadd.f32 %v6888, %v6889
  %v6891 = vsel %vm232, %v6857, 0.0
  %v6892 = vadd.f32 %v6890, %v6891
  %v6893 = vrot.slane %v6892, 4
  %v6894 = vadd.f32 %v6892, %v6893
  %v6895 = vrot.slane %v6894, 2
  %v6896 = vadd.f32 %v6894, %v6895
  %v6897 = vrot.slane %v6896, 1
  %v6898 = vadd.f32 %v6896, %v6897
  %v6899 = vsel %vm232, %v6858, 0.0
  %v6900 = vsel %vm232, %v6859, 0.0
  %v6901 = vadd.f32 %v6899, %v6900
  %v6902 = vsel %vm232, %v6860, 0.0
  %v6903 = vadd.f32 %v6901, %v6902
  %v6904 = vsel %vm232, %v6861, 0.0
  %v6905 = vadd.f32 %v6903, %v6904
  %v6906 = vrot.slane %v6905, 4
  %v6907 = vadd.f32 %v6905, %v6906
  %v6908 = vrot.slane %v6907, 2
  %v6909 = vadd.f32 %v6907, %v6908
  %v6910 = vrot.slane %v6909, 1
  %v6911 = vadd.f32 %v6909, %v6910
  %v6912 = vsel %vm232, %v6862, 0.0
  %v6913 = vsel %vm232, %v6863, 0.0
  %v6914 = vadd.f32 %v6912, %v6913
  %v6915 = vsel %vm232, %v6864, 0.0
  %v6916 = vadd.f32 %v6914, %v6915
  %v6917 = vsel %vm232, %v6865, 0.0
  %v6918 = vadd.f32 %v6916, %v6917
  %v6919 = vrot.slane %v6918, 4
  %v6920 = vadd.f32 %v6918, %v6919
  %v6921 = vrot.slane %v6920, 2
  %v6922 = vadd.f32 %v6920, %v6921
  %v6923 = vrot.slane %v6922, 1
  %v6924 = vadd.f32 %v6922, %v6923
  %v6925 = vsel %vm232, %v6866, 0.0
  %v6926 = vsel %vm232, %v6867, 0.0
  %v6927 = vadd.f32 %v6925, %v6926
  %v6928 = vsel %vm232, %v6868, 0.0
  %v6929 = vadd.f32 %v6927, %v6928
  %v6930 = vsel %vm232, %v6869, 0.0
  %v6931 = vadd.f32 %v6929, %v6930
  %v6932 = vrot.slane %v6931, 4
  %v6933 = vadd.f32 %v6931, %v6932
  %v6934 = vrot.slane %v6933, 2
  %v6935 = vadd.f32 %v6933, %v6934
  %v6936 = vrot.slane %v6935, 1
  %v6937 = vadd.f32 %v6935, %v6936
  %v6938 = vsel %vm232, %v6870, 0.0
  %v6939 = vsel %vm232, %v6871, 0.0
  %v6940 = vadd.f32 %v6938, %v6939
  %v6941 = vsel %vm232, %v6872, 0.0
  %v6942 = vadd.f32 %v6940, %v6941
  %v6943 = vsel %vm232, %v6873, 0.0
  %v6944 = vadd.f32 %v6942, %v6943
  %v6945 = vrot.slane %v6944, 4
  %v6946 = vadd.f32 %v6944, %v6945
  %v6947 = vrot.slane %v6946, 2
  %v6948 = vadd.f32 %v6946, %v6947
  %v6949 = vrot.slane %v6948, 1
  %v6950 = vadd.f32 %v6948, %v6949
  %v6951 = vsel %vm232, %v6874, 0.0
  %v6952 = vsel %vm232, %v6875, 0.0
  %v6953 = vadd.f32 %v6951, %v6952
  %v6954 = vsel %vm232, %v6876, 0.0
  %v6955 = vadd.f32 %v6953, %v6954
  %v6956 = vsel %vm232, %v6877, 0.0
  %v6957 = vadd.f32 %v6955, %v6956
  %v6958 = vrot.slane %v6957, 4
  %v6959 = vadd.f32 %v6957, %v6958
  %v6960 = vrot.slane %v6959, 2
  %v6961 = vadd.f32 %v6959, %v6960
  %v6962 = vrot.slane %v6961, 1
  %v6963 = vadd.f32 %v6961, %v6962
  %v6964 = vsel %vm232, %v6878, 0.0
  %v6965 = vsel %vm232, %v6879, 0.0
  %v6966 = vadd.f32 %v6964, %v6965
  %v6967 = vsel %vm232, %v6880, 0.0
  %v6968 = vadd.f32 %v6966, %v6967
  %v6969 = vsel %vm232, %v6881, 0.0
  %v6970 = vadd.f32 %v6968, %v6969
  %v6971 = vrot.slane %v6970, 4
  %v6972 = vadd.f32 %v6970, %v6971
  %v6973 = vrot.slane %v6972, 2
  %v6974 = vadd.f32 %v6972, %v6973
  %v6975 = vrot.slane %v6974, 1
  %v6976 = vadd.f32 %v6974, %v6975
  %v6977 = vsel %vm232, %v6882, 0.0
  %v6978 = vsel %vm232, %v6883, 0.0
  %v6979 = vadd.f32 %v6977, %v6978
  %v6980 = vsel %vm232, %v6884, 0.0
  %v6981 = vadd.f32 %v6979, %v6980
  %v6982 = vsel %vm232, %v6885, 0.0
  %v6983 = vadd.f32 %v6981, %v6982
  %v6984 = vrot.slane %v6983, 4
  %v6985 = vadd.f32 %v6983, %v6984
  %v6986 = vrot.slane %v6985, 2
  %v6987 = vadd.f32 %v6985, %v6986
  %v6988 = vrot.slane %v6987, 1
  %v6989 = vadd.f32 %v6987, %v6988
  %6991 = vset.pattern.permute.xlu0 0
  %6992 = vperm.xlu0 %6991, %v6022
  %v6993 = vpop.permute.xlu0 %6992
  %v7003 = vsel %vm1891, %v6911, %v6898
  %v7004 = vsel %vm1893, %v6924, %v7003
  %v7005 = vsel %vm1895, %v6937, %v7004
  %v7006 = vsel %vm1897, %v6950, %v7005
  %v7007 = vsel %vm1899, %v6963, %v7006
  %v7008 = vsel %vm1901, %v6976, %v7007
  %v7009 = vsel %vm1903, %v6989, %v7008
  %v7011 = vmul.f32 %v6993, %v7009
  %v7012 = vsub.f32 1.0, %v6022
  %7014 = vset.pattern.permute.xlu0 0
  %7015 = vperm.xlu0 %7014, %v7012
  %v7016 = vpop.permute.xlu0 %7015
  %v7018 = vmul.f32 %v7016, %v6044
  %v7019 = vadd.f32 %v7011, %v7018
  %v7020 = vlog2.pop %v7019
  %v7021 = vmul.f32 %v7020, 0.6931472
  %v7022 = vadd.f32 %v6018, %v7021
  %v7023 = vadd.f32 %v7022, %v6005
  %v7024 = vsel %vm232, %v7023, -inf
  %7025 = vmax.xlane.f32.xlu0 %v7024
  %v7026 = vpop.xlane.xlu0 %7025
  %v7027 = vsub.f32 %v7023, %v7026
  %v7028 = vmul.f32 %v7027, 1.442695
  %v7029 = vpow.pop %v7028
  %v7030 = vsel %vm232, %v7029, 0.0
  %7031 = vadd.xlane.f32.xlu0 %v7030
  %v7032 = vpop.xlane.xlu0 %7031
  %v7033 = vlog2.pop %v7032
  %v7034 = vmul.f32 %v7033, 0.6931472
  %v7035 = vadd.f32 %v7034, %v7026
  %s7036 = scalar_lea.vmem %s10, 48
  %7037 = vst.msk [vmem:[%s7036] sm:$0xff] %vm849, %v7035
  %s7038 = scalar_lea.vmem [#allocation2], 56
  %v7039 = vld [vmem:[%s7038] sm:$0xff]
  %s7040 = scalar_lea.vmem [#allocation3], 56
  %v7041 = vld [vmem:[%s7040] sm:$0xff]
  %s7042 = scalar_lea.vmem [#allocation4], 56
  %v7043 = vld [vmem:[%s7042] sm:$0xff]
  %v7045 = vsel %vm232, %v7029, 0
  %7047 = vmatpush.msra.mxu0 0.0
  %7048 = vmatpush.msra.mxu0 0.0
  %7049 = vmatpush.msra.mxu0 0.0
  %7050 = vmatpush.msra.mxu0 0.0
  %7051 = vmatpush.msra.mxu0 0.0
  %7052 = vmatpush.msra.mxu0 0.0
  %7053 = vmatpush.msra.mxu0 0.0
  %7054 = vmatpush.msra.mxu0 0.0
  %7055 = vmatpush.msra.mxu0 0.0
  %7056 = vmatpush.msra.mxu0 0.0
  %7057 = vmatpush.msra.mxu0 0.0
  %7058 = vmatpush.msra.mxu0 0.0
  %7059 = vmatpush.msra.mxu0 %v861
  %7060 = vmatpush.msra.mxu0 %v860
  %7061 = vmatpush.msra.mxu0 %v859
  %7062 = vmatpush.msra.mxu0 %v858
  %7063 = vmatmul.f32.gmra.mxu0 %v7045
  %v7064 = vpop.f32.mrf.mxu0
  %v7065 = vadd.f32 0.0, %v7064
  %7066 = vdwg.mxu0
  %v7067 = vsel %vm232, %v7041, -inf
  %7068 = vmax.xlane.f32.xlu0 %v7067
  %v7069 = vpop.xlane.xlu0 %7068
  %v7071 = vperm.slane %v7069, 0
  %v7072 = vperm.slane %v7069, 1
  %v7073 = vperm.slane %v7069, 2
  %v7074 = vperm.slane %v7069, 3
  %v7075 = vperm.slane %v7069, 4
  %v7076 = vperm.slane %v7069, 5
  %v7077 = vperm.slane %v7069, 6
  %v7078 = vperm.slane %v7069, 7
  %v7087 = vsel %vm232, %v7041, inf
  %7088 = vmin.xlane.f32.xlu0 %v7087
  %v7089 = vpop.xlane.xlu0 %7088
  %v7091 = vperm.slane %v7089, 0
  %v7092 = vperm.slane %v7089, 1
  %v7093 = vperm.slane %v7089, 2
  %v7094 = vperm.slane %v7089, 3
  %v7095 = vperm.slane %v7089, 4
  %v7096 = vperm.slane %v7089, 5
  %v7097 = vperm.slane %v7089, 6
  %v7098 = vperm.slane %v7089, 7
  %v7107 = vmul.f32 %v7071, %v862
  %v7108 = vmul.f32 %v7071, %v863
  %v7109 = vmul.f32 %v7071, %v864
  %v7110 = vmul.f32 %v7071, %v865
  %v7111 = vmul.f32 %v7072, %v862
  %v7112 = vmul.f32 %v7072, %v863
  %v7113 = vmul.f32 %v7072, %v864
  %v7114 = vmul.f32 %v7072, %v865
  %v7115 = vmul.f32 %v7073, %v862
  %v7116 = vmul.f32 %v7073, %v863
  %v7117 = vmul.f32 %v7073, %v864
  %v7118 = vmul.f32 %v7073, %v865
  %v7119 = vmul.f32 %v7074, %v862
  %v7120 = vmul.f32 %v7074, %v863
  %v7121 = vmul.f32 %v7074, %v864
  %v7122 = vmul.f32 %v7074, %v865
  %v7123 = vmul.f32 %v7075, %v862
  %v7124 = vmul.f32 %v7075, %v863
  %v7125 = vmul.f32 %v7075, %v864
  %v7126 = vmul.f32 %v7075, %v865
  %v7127 = vmul.f32 %v7076, %v862
  %v7128 = vmul.f32 %v7076, %v863
  %v7129 = vmul.f32 %v7076, %v864
  %v7130 = vmul.f32 %v7076, %v865
  %v7131 = vmul.f32 %v7077, %v862
  %v7132 = vmul.f32 %v7077, %v863
  %v7133 = vmul.f32 %v7077, %v864
  %v7134 = vmul.f32 %v7077, %v865
  %v7135 = vmul.f32 %v7078, %v862
  %v7136 = vmul.f32 %v7078, %v863
  %v7137 = vmul.f32 %v7078, %v864
  %v7138 = vmul.f32 %v7078, %v865
  %v7139 = vmul.f32 %v7091, %v862
  %v7140 = vmul.f32 %v7091, %v863
  %v7141 = vmul.f32 %v7091, %v864
  %v7142 = vmul.f32 %v7091, %v865
  %v7143 = vmul.f32 %v7092, %v862
  %v7144 = vmul.f32 %v7092, %v863
  %v7145 = vmul.f32 %v7092, %v864
  %v7146 = vmul.f32 %v7092, %v865
  %v7147 = vmul.f32 %v7093, %v862
  %v7148 = vmul.f32 %v7093, %v863
  %v7149 = vmul.f32 %v7093, %v864
  %v7150 = vmul.f32 %v7093, %v865
  %v7151 = vmul.f32 %v7094, %v862
  %v7152 = vmul.f32 %v7094, %v863
  %v7153 = vmul.f32 %v7094, %v864
  %v7154 = vmul.f32 %v7094, %v865
  %v7155 = vmul.f32 %v7095, %v862
  %v7156 = vmul.f32 %v7095, %v863
  %v7157 = vmul.f32 %v7095, %v864
  %v7158 = vmul.f32 %v7095, %v865
  %v7159 = vmul.f32 %v7096, %v862
  %v7160 = vmul.f32 %v7096, %v863
  %v7161 = vmul.f32 %v7096, %v864
  %v7162 = vmul.f32 %v7096, %v865
  %v7163 = vmul.f32 %v7097, %v862
  %v7164 = vmul.f32 %v7097, %v863
  %v7165 = vmul.f32 %v7097, %v864
  %v7166 = vmul.f32 %v7097, %v865
  %v7167 = vmul.f32 %v7098, %v862
  %v7168 = vmul.f32 %v7098, %v863
  %v7169 = vmul.f32 %v7098, %v864
  %v7170 = vmul.f32 %v7098, %v865
  %v7171 = vmax.f32 %v7107, %v7139
  %v7172 = vmax.f32 %v7108, %v7140
  %v7173 = vmax.f32 %v7109, %v7141
  %v7174 = vmax.f32 %v7110, %v7142
  %v7175 = vmax.f32 %v7111, %v7143
  %v7176 = vmax.f32 %v7112, %v7144
  %v7177 = vmax.f32 %v7113, %v7145
  %v7178 = vmax.f32 %v7114, %v7146
  %v7179 = vmax.f32 %v7115, %v7147
  %v7180 = vmax.f32 %v7116, %v7148
  %v7181 = vmax.f32 %v7117, %v7149
  %v7182 = vmax.f32 %v7118, %v7150
  %v7183 = vmax.f32 %v7119, %v7151
  %v7184 = vmax.f32 %v7120, %v7152
  %v7185 = vmax.f32 %v7121, %v7153
  %v7186 = vmax.f32 %v7122, %v7154
  %v7187 = vmax.f32 %v7123, %v7155
  %v7188 = vmax.f32 %v7124, %v7156
  %v7189 = vmax.f32 %v7125, %v7157
  %v7190 = vmax.f32 %v7126, %v7158
  %v7191 = vmax.f32 %v7127, %v7159
  %v7192 = vmax.f32 %v7128, %v7160
  %v7193 = vmax.f32 %v7129, %v7161
  %v7194 = vmax.f32 %v7130, %v7162
  %v7195 = vmax.f32 %v7131, %v7163
  %v7196 = vmax.f32 %v7132, %v7164
  %v7197 = vmax.f32 %v7133, %v7165
  %v7198 = vmax.f32 %v7134, %v7166
  %v7199 = vmax.f32 %v7135, %v7167
  %v7200 = vmax.f32 %v7136, %v7168
  %v7201 = vmax.f32 %v7137, %v7169
  %v7202 = vmax.f32 %v7138, %v7170
  %v7204 = vrot.slane %v7041, 1
  %v7205 = vrot.slane %v7041, 2
  %v7206 = vrot.slane %v7041, 3
  %v7207 = vrot.slane %v7041, 4
  %v7208 = vrot.slane %v7041, 5
  %v7209 = vrot.slane %v7041, 6
  %v7210 = vrot.slane %v7041, 7
  %v7211 = vperm.slane %v7041, 0
  %v7212 = vperm.slane %v7204, 0
  %v7213 = vperm.slane %v7205, 0
  %v7214 = vperm.slane %v7206, 0
  %v7215 = vperm.slane %v7207, 0
  %v7216 = vperm.slane %v7208, 0
  %v7217 = vperm.slane %v7209, 0
  %v7218 = vperm.slane %v7210, 0
  %v7227 = vmul.f32 %v1061, %v7211
  %v7228 = vmul.f32 %v1066, %v7211
  %v7229 = vmul.f32 %v1071, %v7211
  %v7230 = vmul.f32 %v1076, %v7211
  %v7231 = vmul.f32 %v1061, %v7212
  %v7232 = vmul.f32 %v1066, %v7212
  %v7233 = vmul.f32 %v1071, %v7212
  %v7234 = vmul.f32 %v1076, %v7212
  %v7235 = vmul.f32 %v1061, %v7213
  %v7236 = vmul.f32 %v1066, %v7213
  %v7237 = vmul.f32 %v1071, %v7213
  %v7238 = vmul.f32 %v1076, %v7213
  %v7239 = vmul.f32 %v1061, %v7214
  %v7240 = vmul.f32 %v1066, %v7214
  %v7241 = vmul.f32 %v1071, %v7214
  %v7242 = vmul.f32 %v1076, %v7214
  %v7243 = vmul.f32 %v1061, %v7215
  %v7244 = vmul.f32 %v1066, %v7215
  %v7245 = vmul.f32 %v1071, %v7215
  %v7246 = vmul.f32 %v1076, %v7215
  %v7247 = vmul.f32 %v1061, %v7216
  %v7248 = vmul.f32 %v1066, %v7216
  %v7249 = vmul.f32 %v1071, %v7216
  %v7250 = vmul.f32 %v1076, %v7216
  %v7251 = vmul.f32 %v1061, %v7217
  %v7252 = vmul.f32 %v1066, %v7217
  %v7253 = vmul.f32 %v1071, %v7217
  %v7254 = vmul.f32 %v1076, %v7217
  %v7255 = vmul.f32 %v1061, %v7218
  %v7256 = vmul.f32 %v1066, %v7218
  %v7257 = vmul.f32 %v1071, %v7218
  %v7258 = vmul.f32 %v1076, %v7218
  %7260 = vset.pattern.permute.xlu0 0
  %7261 = vperm.xlu0 %7260, %v7171
  %v7262 = vpop.permute.xlu0 %7261
  %7265 = vset.pattern.permute.xlu0 0
  %7266 = vperm.xlu0 %7265, %v7172
  %v7267 = vpop.permute.xlu0 %7266
  %7270 = vset.pattern.permute.xlu0 0
  %7271 = vperm.xlu0 %7270, %v7173
  %v7272 = vpop.permute.xlu0 %7271
  %7275 = vset.pattern.permute.xlu0 0
  %7276 = vperm.xlu0 %7275, %v7174
  %v7277 = vpop.permute.xlu0 %7276
  %7280 = vset.pattern.permute.xlu0 0
  %7281 = vperm.xlu0 %7280, %v7175
  %v7282 = vpop.permute.xlu0 %7281
  %7285 = vset.pattern.permute.xlu0 0
  %7286 = vperm.xlu0 %7285, %v7176
  %v7287 = vpop.permute.xlu0 %7286
  %7290 = vset.pattern.permute.xlu0 0
  %7291 = vperm.xlu0 %7290, %v7177
  %v7292 = vpop.permute.xlu0 %7291
  %7295 = vset.pattern.permute.xlu0 0
  %7296 = vperm.xlu0 %7295, %v7178
  %v7297 = vpop.permute.xlu0 %7296
  %7300 = vset.pattern.permute.xlu0 0
  %7301 = vperm.xlu0 %7300, %v7179
  %v7302 = vpop.permute.xlu0 %7301
  %7305 = vset.pattern.permute.xlu0 0
  %7306 = vperm.xlu0 %7305, %v7180
  %v7307 = vpop.permute.xlu0 %7306
  %7310 = vset.pattern.permute.xlu0 0
  %7311 = vperm.xlu0 %7310, %v7181
  %v7312 = vpop.permute.xlu0 %7311
  %7315 = vset.pattern.permute.xlu0 0
  %7316 = vperm.xlu0 %7315, %v7182
  %v7317 = vpop.permute.xlu0 %7316
  %7320 = vset.pattern.permute.xlu0 0
  %7321 = vperm.xlu0 %7320, %v7183
  %v7322 = vpop.permute.xlu0 %7321
  %7325 = vset.pattern.permute.xlu0 0
  %7326 = vperm.xlu0 %7325, %v7184
  %v7327 = vpop.permute.xlu0 %7326
  %7330 = vset.pattern.permute.xlu0 0
  %7331 = vperm.xlu0 %7330, %v7185
  %v7332 = vpop.permute.xlu0 %7331
  %7335 = vset.pattern.permute.xlu0 0
  %7336 = vperm.xlu0 %7335, %v7186
  %v7337 = vpop.permute.xlu0 %7336
  %7340 = vset.pattern.permute.xlu0 0
  %7341 = vperm.xlu0 %7340, %v7187
  %v7342 = vpop.permute.xlu0 %7341
  %7345 = vset.pattern.permute.xlu0 0
  %7346 = vperm.xlu0 %7345, %v7188
  %v7347 = vpop.permute.xlu0 %7346
  %7350 = vset.pattern.permute.xlu0 0
  %7351 = vperm.xlu0 %7350, %v7189
  %v7352 = vpop.permute.xlu0 %7351
  %7355 = vset.pattern.permute.xlu0 0
  %7356 = vperm.xlu0 %7355, %v7190
  %v7357 = vpop.permute.xlu0 %7356
  %7360 = vset.pattern.permute.xlu0 0
  %7361 = vperm.xlu0 %7360, %v7191
  %v7362 = vpop.permute.xlu0 %7361
  %7365 = vset.pattern.permute.xlu0 0
  %7366 = vperm.xlu0 %7365, %v7192
  %v7367 = vpop.permute.xlu0 %7366
  %7370 = vset.pattern.permute.xlu0 0
  %7371 = vperm.xlu0 %7370, %v7193
  %v7372 = vpop.permute.xlu0 %7371
  %7375 = vset.pattern.permute.xlu0 0
  %7376 = vperm.xlu0 %7375, %v7194
  %v7377 = vpop.permute.xlu0 %7376
  %7380 = vset.pattern.permute.xlu0 0
  %7381 = vperm.xlu0 %7380, %v7195
  %v7382 = vpop.permute.xlu0 %7381
  %7385 = vset.pattern.permute.xlu0 0
  %7386 = vperm.xlu0 %7385, %v7196
  %v7387 = vpop.permute.xlu0 %7386
  %7390 = vset.pattern.permute.xlu0 0
  %7391 = vperm.xlu0 %7390, %v7197
  %v7392 = vpop.permute.xlu0 %7391
  %7395 = vset.pattern.permute.xlu0 0
  %7396 = vperm.xlu0 %7395, %v7198
  %v7397 = vpop.permute.xlu0 %7396
  %7400 = vset.pattern.permute.xlu0 0
  %7401 = vperm.xlu0 %7400, %v7199
  %v7402 = vpop.permute.xlu0 %7401
  %7405 = vset.pattern.permute.xlu0 0
  %7406 = vperm.xlu0 %7405, %v7200
  %v7407 = vpop.permute.xlu0 %7406
  %7410 = vset.pattern.permute.xlu0 0
  %7411 = vperm.xlu0 %7410, %v7201
  %v7412 = vpop.permute.xlu0 %7411
  %7415 = vset.pattern.permute.xlu0 0
  %7416 = vperm.xlu0 %7415, %v7202
  %v7417 = vpop.permute.xlu0 %7416
  %v7419 = vsub.f32 %v7227, %v7262
  %v7420 = vsub.f32 %v7228, %v7267
  %v7421 = vsub.f32 %v7229, %v7272
  %v7422 = vsub.f32 %v7230, %v7277
  %v7423 = vsub.f32 %v7231, %v7282
  %v7424 = vsub.f32 %v7232, %v7287
  %v7425 = vsub.f32 %v7233, %v7292
  %v7426 = vsub.f32 %v7234, %v7297
  %v7427 = vsub.f32 %v7235, %v7302
  %v7428 = vsub.f32 %v7236, %v7307
  %v7429 = vsub.f32 %v7237, %v7312
  %v7430 = vsub.f32 %v7238, %v7317
  %v7431 = vsub.f32 %v7239, %v7322
  %v7432 = vsub.f32 %v7240, %v7327
  %v7433 = vsub.f32 %v7241, %v7332
  %v7434 = vsub.f32 %v7242, %v7337
  %v7435 = vsub.f32 %v7243, %v7342
  %v7436 = vsub.f32 %v7244, %v7347
  %v7437 = vsub.f32 %v7245, %v7352
  %v7438 = vsub.f32 %v7246, %v7357
  %v7439 = vsub.f32 %v7247, %v7362
  %v7440 = vsub.f32 %v7248, %v7367
  %v7441 = vsub.f32 %v7249, %v7372
  %v7442 = vsub.f32 %v7250, %v7377
  %v7443 = vsub.f32 %v7251, %v7382
  %v7444 = vsub.f32 %v7252, %v7387
  %v7445 = vsub.f32 %v7253, %v7392
  %v7446 = vsub.f32 %v7254, %v7397
  %v7447 = vsub.f32 %v7255, %v7402
  %v7448 = vsub.f32 %v7256, %v7407
  %v7449 = vsub.f32 %v7257, %v7412
  %v7450 = vsub.f32 %v7258, %v7417
  %v7451 = vmul.f32 %v7419, 1.442695
  %v7452 = vpow.pop %v7451
  %v7453 = vmul.f32 %v7420, 1.442695
  %v7454 = vpow.pop %v7453
  %v7455 = vmul.f32 %v7421, 1.442695
  %v7456 = vpow.pop %v7455
  %v7457 = vmul.f32 %v7422, 1.442695
  %v7458 = vpow.pop %v7457
  %v7459 = vmul.f32 %v7423, 1.442695
  %v7460 = vpow.pop %v7459
  %v7461 = vmul.f32 %v7424, 1.442695
  %v7462 = vpow.pop %v7461
  %v7463 = vmul.f32 %v7425, 1.442695
  %v7464 = vpow.pop %v7463
  %v7465 = vmul.f32 %v7426, 1.442695
  %v7466 = vpow.pop %v7465
  %v7467 = vmul.f32 %v7427, 1.442695
  %v7468 = vpow.pop %v7467
  %v7469 = vmul.f32 %v7428, 1.442695
  %v7470 = vpow.pop %v7469
  %v7471 = vmul.f32 %v7429, 1.442695
  %v7472 = vpow.pop %v7471
  %v7473 = vmul.f32 %v7430, 1.442695
  %v7474 = vpow.pop %v7473
  %v7475 = vmul.f32 %v7431, 1.442695
  %v7476 = vpow.pop %v7475
  %v7477 = vmul.f32 %v7432, 1.442695
  %v7478 = vpow.pop %v7477
  %v7479 = vmul.f32 %v7433, 1.442695
  %v7480 = vpow.pop %v7479
  %v7481 = vmul.f32 %v7434, 1.442695
  %v7482 = vpow.pop %v7481
  %v7483 = vmul.f32 %v7435, 1.442695
  %v7484 = vpow.pop %v7483
  %v7485 = vmul.f32 %v7436, 1.442695
  %v7486 = vpow.pop %v7485
  %v7487 = vmul.f32 %v7437, 1.442695
  %v7488 = vpow.pop %v7487
  %v7489 = vmul.f32 %v7438, 1.442695
  %v7490 = vpow.pop %v7489
  %v7491 = vmul.f32 %v7439, 1.442695
  %v7492 = vpow.pop %v7491
  %v7493 = vmul.f32 %v7440, 1.442695
  %v7494 = vpow.pop %v7493
  %v7495 = vmul.f32 %v7441, 1.442695
  %v7496 = vpow.pop %v7495
  %v7497 = vmul.f32 %v7442, 1.442695
  %v7498 = vpow.pop %v7497
  %v7499 = vmul.f32 %v7443, 1.442695
  %v7500 = vpow.pop %v7499
  %v7501 = vmul.f32 %v7444, 1.442695
  %v7502 = vpow.pop %v7501
  %v7503 = vmul.f32 %v7445, 1.442695
  %v7504 = vpow.pop %v7503
  %v7505 = vmul.f32 %v7446, 1.442695
  %v7506 = vpow.pop %v7505
  %v7507 = vmul.f32 %v7447, 1.442695
  %v7508 = vpow.pop %v7507
  %v7509 = vmul.f32 %v7448, 1.442695
  %v7510 = vpow.pop %v7509
  %v7511 = vmul.f32 %v7449, 1.442695
  %v7512 = vpow.pop %v7511
  %v7513 = vmul.f32 %v7450, 1.442695
  %v7514 = vpow.pop %v7513
  %v7515 = vsel %vm232, %v7452, 0.0
  %7516 = vadd.xlane.f32.xlu0 %v7515
  %v7517 = vpop.xlane.xlu0 %7516
  %v7518 = vsel %vm232, %v7454, 0.0
  %7519 = vadd.xlane.f32.xlu0 %v7518
  %v7520 = vpop.xlane.xlu0 %7519
  %v7521 = vsel %vm232, %v7456, 0.0
  %7522 = vadd.xlane.f32.xlu0 %v7521
  %v7523 = vpop.xlane.xlu0 %7522
  %v7524 = vsel %vm232, %v7458, 0.0
  %7525 = vadd.xlane.f32.xlu0 %v7524
  %v7526 = vpop.xlane.xlu0 %7525
  %v7527 = vsel %vm232, %v7460, 0.0
  %7528 = vadd.xlane.f32.xlu0 %v7527
  %v7529 = vpop.xlane.xlu0 %7528
  %v7530 = vsel %vm232, %v7462, 0.0
  %7531 = vadd.xlane.f32.xlu0 %v7530
  %v7532 = vpop.xlane.xlu0 %7531
  %v7533 = vsel %vm232, %v7464, 0.0
  %7534 = vadd.xlane.f32.xlu0 %v7533
  %v7535 = vpop.xlane.xlu0 %7534
  %v7536 = vsel %vm232, %v7466, 0.0
  %7537 = vadd.xlane.f32.xlu0 %v7536
  %v7538 = vpop.xlane.xlu0 %7537
  %v7539 = vsel %vm232, %v7468, 0.0
  %7540 = vadd.xlane.f32.xlu0 %v7539
  %v7541 = vpop.xlane.xlu0 %7540
  %v7542 = vsel %vm232, %v7470, 0.0
  %7543 = vadd.xlane.f32.xlu0 %v7542
  %v7544 = vpop.xlane.xlu0 %7543
  %v7545 = vsel %vm232, %v7472, 0.0
  %7546 = vadd.xlane.f32.xlu0 %v7545
  %v7547 = vpop.xlane.xlu0 %7546
  %v7548 = vsel %vm232, %v7474, 0.0
  %7549 = vadd.xlane.f32.xlu0 %v7548
  %v7550 = vpop.xlane.xlu0 %7549
  %v7551 = vsel %vm232, %v7476, 0.0
  %7552 = vadd.xlane.f32.xlu0 %v7551
  %v7553 = vpop.xlane.xlu0 %7552
  %v7554 = vsel %vm232, %v7478, 0.0
  %7555 = vadd.xlane.f32.xlu0 %v7554
  %v7556 = vpop.xlane.xlu0 %7555
  %v7557 = vsel %vm232, %v7480, 0.0
  %7558 = vadd.xlane.f32.xlu0 %v7557
  %v7559 = vpop.xlane.xlu0 %7558
  %v7560 = vsel %vm232, %v7482, 0.0
  %7561 = vadd.xlane.f32.xlu0 %v7560
  %v7562 = vpop.xlane.xlu0 %7561
  %v7563 = vsel %vm232, %v7484, 0.0
  %7564 = vadd.xlane.f32.xlu0 %v7563
  %v7565 = vpop.xlane.xlu0 %7564
  %v7566 = vsel %vm232, %v7486, 0.0
  %7567 = vadd.xlane.f32.xlu0 %v7566
  %v7568 = vpop.xlane.xlu0 %7567
  %v7569 = vsel %vm232, %v7488, 0.0
  %7570 = vadd.xlane.f32.xlu0 %v7569
  %v7571 = vpop.xlane.xlu0 %7570
  %v7572 = vsel %vm232, %v7490, 0.0
  %7573 = vadd.xlane.f32.xlu0 %v7572
  %v7574 = vpop.xlane.xlu0 %7573
  %v7575 = vsel %vm232, %v7492, 0.0
  %7576 = vadd.xlane.f32.xlu0 %v7575
  %v7577 = vpop.xlane.xlu0 %7576
  %v7578 = vsel %vm232, %v7494, 0.0
  %7579 = vadd.xlane.f32.xlu0 %v7578
  %v7580 = vpop.xlane.xlu0 %7579
  %v7581 = vsel %vm232, %v7496, 0.0
  %7582 = vadd.xlane.f32.xlu0 %v7581
  %v7583 = vpop.xlane.xlu0 %7582
  %v7584 = vsel %vm232, %v7498, 0.0
  %7585 = vadd.xlane.f32.xlu0 %v7584
  %v7586 = vpop.xlane.xlu0 %7585
  %v7587 = vsel %vm232, %v7500, 0.0
  %7588 = vadd.xlane.f32.xlu0 %v7587
  %v7589 = vpop.xlane.xlu0 %7588
  %v7590 = vsel %vm232, %v7502, 0.0
  %7591 = vadd.xlane.f32.xlu0 %v7590
  %v7592 = vpop.xlane.xlu0 %7591
  %v7593 = vsel %vm232, %v7504, 0.0
  %7594 = vadd.xlane.f32.xlu0 %v7593
  %v7595 = vpop.xlane.xlu0 %7594
  %v7596 = vsel %vm232, %v7506, 0.0
  %7597 = vadd.xlane.f32.xlu0 %v7596
  %v7598 = vpop.xlane.xlu0 %7597
  %v7599 = vsel %vm232, %v7508, 0.0
  %7600 = vadd.xlane.f32.xlu0 %v7599
  %v7601 = vpop.xlane.xlu0 %7600
  %v7602 = vsel %vm232, %v7510, 0.0
  %7603 = vadd.xlane.f32.xlu0 %v7602
  %v7604 = vpop.xlane.xlu0 %7603
  %v7605 = vsel %vm232, %v7512, 0.0
  %7606 = vadd.xlane.f32.xlu0 %v7605
  %v7607 = vpop.xlane.xlu0 %7606
  %v7608 = vsel %vm232, %v7514, 0.0
  %7609 = vadd.xlane.f32.xlu0 %v7608
  %v7610 = vpop.xlane.xlu0 %7609
  %v7611 = vperm.slane %v7029, 0
  %v7612 = vlaneseq
  %v7613 = vshrl.u32 %v7612, 7
  %7615 = vset.pattern.permute.xlu0 %v7613
  %7616 = vperm.xlu0 %7615, %v7611
  %v7617 = vpop.permute.xlu0 %7616
  %v7618 = vlaneseq
  %v7619 = vshrl.u32 %v7618, 7
  %v7620 = vadd.s32 %v7619, 8
  %7621 = vset.pattern.permute.xlu0 %v7620
  %7622 = vperm.xlu0 %7621, %v7611
  %v7623 = vpop.permute.xlu0 %7622
  %v7624 = vlaneseq
  %v7625 = vshrl.u32 %v7624, 7
  %v7626 = vadd.s32 %v7625, 16
  %7627 = vset.pattern.permute.xlu0 %v7626
  %7628 = vperm.xlu0 %7627, %v7611
  %v7629 = vpop.permute.xlu0 %7628
  %v7630 = vlaneseq
  %v7631 = vshrl.u32 %v7630, 7
  %v7632 = vadd.s32 %v7631, 24
  %7633 = vset.pattern.permute.xlu0 %v7632
  %7634 = vperm.xlu0 %7633, %v7611
  %v7635 = vpop.permute.xlu0 %7634
  %v7636 = vperm.slane %v7029, 1
  %v7637 = vlaneseq
  %v7638 = vshrl.u32 %v7637, 7
  %7640 = vset.pattern.permute.xlu0 %v7638
  %7641 = vperm.xlu0 %7640, %v7636
  %v7642 = vpop.permute.xlu0 %7641
  %v7643 = vlaneseq
  %v7644 = vshrl.u32 %v7643, 7
  %v7645 = vadd.s32 %v7644, 8
  %7646 = vset.pattern.permute.xlu0 %v7645
  %7647 = vperm.xlu0 %7646, %v7636
  %v7648 = vpop.permute.xlu0 %7647
  %v7649 = vlaneseq
  %v7650 = vshrl.u32 %v7649, 7
  %v7651 = vadd.s32 %v7650, 16
  %7652 = vset.pattern.permute.xlu0 %v7651
  %7653 = vperm.xlu0 %7652, %v7636
  %v7654 = vpop.permute.xlu0 %7653
  %v7655 = vlaneseq
  %v7656 = vshrl.u32 %v7655, 7
  %v7657 = vadd.s32 %v7656, 24
  %7658 = vset.pattern.permute.xlu0 %v7657
  %7659 = vperm.xlu0 %7658, %v7636
  %v7660 = vpop.permute.xlu0 %7659
  %v7661 = vperm.slane %v7029, 2
  %v7662 = vlaneseq
  %v7663 = vshrl.u32 %v7662, 7
  %7665 = vset.pattern.permute.xlu0 %v7663
  %7666 = vperm.xlu0 %7665, %v7661
  %v7667 = vpop.permute.xlu0 %7666
  %v7668 = vlaneseq
  %v7669 = vshrl.u32 %v7668, 7
  %v7670 = vadd.s32 %v7669, 8
  %7671 = vset.pattern.permute.xlu0 %v7670
  %7672 = vperm.xlu0 %7671, %v7661
  %v7673 = vpop.permute.xlu0 %7672
  %v7674 = vlaneseq
  %v7675 = vshrl.u32 %v7674, 7
  %v7676 = vadd.s32 %v7675, 16
  %7677 = vset.pattern.permute.xlu0 %v7676
  %7678 = vperm.xlu0 %7677, %v7661
  %v7679 = vpop.permute.xlu0 %7678
  %v7680 = vlaneseq
  %v7681 = vshrl.u32 %v7680, 7
  %v7682 = vadd.s32 %v7681, 24
  %7683 = vset.pattern.permute.xlu0 %v7682
  %7684 = vperm.xlu0 %7683, %v7661
  %v7685 = vpop.permute.xlu0 %7684
  %v7686 = vperm.slane %v7029, 3
  %v7687 = vlaneseq
  %v7688 = vshrl.u32 %v7687, 7
  %7690 = vset.pattern.permute.xlu0 %v7688
  %7691 = vperm.xlu0 %7690, %v7686
  %v7692 = vpop.permute.xlu0 %7691
  %v7693 = vlaneseq
  %v7694 = vshrl.u32 %v7693, 7
  %v7695 = vadd.s32 %v7694, 8
  %7696 = vset.pattern.permute.xlu0 %v7695
  %7697 = vperm.xlu0 %7696, %v7686
  %v7698 = vpop.permute.xlu0 %7697
  %v7699 = vlaneseq
  %v7700 = vshrl.u32 %v7699, 7
  %v7701 = vadd.s32 %v7700, 16
  %7702 = vset.pattern.permute.xlu0 %v7701
  %7703 = vperm.xlu0 %7702, %v7686
  %v7704 = vpop.permute.xlu0 %7703
  %v7705 = vlaneseq
  %v7706 = vshrl.u32 %v7705, 7
  %v7707 = vadd.s32 %v7706, 24
  %7708 = vset.pattern.permute.xlu0 %v7707
  %7709 = vperm.xlu0 %7708, %v7686
  %v7710 = vpop.permute.xlu0 %7709
  %v7711 = vperm.slane %v7029, 4
  %v7712 = vlaneseq
  %v7713 = vshrl.u32 %v7712, 7
  %7715 = vset.pattern.permute.xlu0 %v7713
  %7716 = vperm.xlu0 %7715, %v7711
  %v7717 = vpop.permute.xlu0 %7716
  %v7718 = vlaneseq
  %v7719 = vshrl.u32 %v7718, 7
  %v7720 = vadd.s32 %v7719, 8
  %7721 = vset.pattern.permute.xlu0 %v7720
  %7722 = vperm.xlu0 %7721, %v7711
  %v7723 = vpop.permute.xlu0 %7722
  %v7724 = vlaneseq
  %v7725 = vshrl.u32 %v7724, 7
  %v7726 = vadd.s32 %v7725, 16
  %7727 = vset.pattern.permute.xlu0 %v7726
  %7728 = vperm.xlu0 %7727, %v7711
  %v7729 = vpop.permute.xlu0 %7728
  %v7730 = vlaneseq
  %v7731 = vshrl.u32 %v7730, 7
  %v7732 = vadd.s32 %v7731, 24
  %7733 = vset.pattern.permute.xlu0 %v7732
  %7734 = vperm.xlu0 %7733, %v7711
  %v7735 = vpop.permute.xlu0 %7734
  %v7736 = vperm.slane %v7029, 5
  %v7737 = vlaneseq
  %v7738 = vshrl.u32 %v7737, 7
  %7740 = vset.pattern.permute.xlu0 %v7738
  %7741 = vperm.xlu0 %7740, %v7736
  %v7742 = vpop.permute.xlu0 %7741
  %v7743 = vlaneseq
  %v7744 = vshrl.u32 %v7743, 7
  %v7745 = vadd.s32 %v7744, 8
  %7746 = vset.pattern.permute.xlu0 %v7745
  %7747 = vperm.xlu0 %7746, %v7736
  %v7748 = vpop.permute.xlu0 %7747
  %v7749 = vlaneseq
  %v7750 = vshrl.u32 %v7749, 7
  %v7751 = vadd.s32 %v7750, 16
  %7752 = vset.pattern.permute.xlu0 %v7751
  %7753 = vperm.xlu0 %7752, %v7736
  %v7754 = vpop.permute.xlu0 %7753
  %v7755 = vlaneseq
  %v7756 = vshrl.u32 %v7755, 7
  %v7757 = vadd.s32 %v7756, 24
  %7758 = vset.pattern.permute.xlu0 %v7757
  %7759 = vperm.xlu0 %7758, %v7736
  %v7760 = vpop.permute.xlu0 %7759
  %v7761 = vperm.slane %v7029, 6
  %v7762 = vlaneseq
  %v7763 = vshrl.u32 %v7762, 7
  %7765 = vset.pattern.permute.xlu0 %v7763
  %7766 = vperm.xlu0 %7765, %v7761
  %v7767 = vpop.permute.xlu0 %7766
  %v7768 = vlaneseq
  %v7769 = vshrl.u32 %v7768, 7
  %v7770 = vadd.s32 %v7769, 8
  %7771 = vset.pattern.permute.xlu0 %v7770
  %7772 = vperm.xlu0 %7771, %v7761
  %v7773 = vpop.permute.xlu0 %7772
  %v7774 = vlaneseq
  %v7775 = vshrl.u32 %v7774, 7
  %v7776 = vadd.s32 %v7775, 16
  %7777 = vset.pattern.permute.xlu0 %v7776
  %7778 = vperm.xlu0 %7777, %v7761
  %v7779 = vpop.permute.xlu0 %7778
  %v7780 = vlaneseq
  %v7781 = vshrl.u32 %v7780, 7
  %v7782 = vadd.s32 %v7781, 24
  %7783 = vset.pattern.permute.xlu0 %v7782
  %7784 = vperm.xlu0 %7783, %v7761
  %v7785 = vpop.permute.xlu0 %7784
  %v7786 = vperm.slane %v7029, 7
  %v7787 = vlaneseq
  %v7788 = vshrl.u32 %v7787, 7
  %7790 = vset.pattern.permute.xlu0 %v7788
  %7791 = vperm.xlu0 %7790, %v7786
  %v7792 = vpop.permute.xlu0 %7791
  %v7793 = vlaneseq
  %v7794 = vshrl.u32 %v7793, 7
  %v7795 = vadd.s32 %v7794, 8
  %7796 = vset.pattern.permute.xlu0 %v7795
  %7797 = vperm.xlu0 %7796, %v7786
  %v7798 = vpop.permute.xlu0 %7797
  %v7799 = vlaneseq
  %v7800 = vshrl.u32 %v7799, 7
  %v7801 = vadd.s32 %v7800, 16
  %7802 = vset.pattern.permute.xlu0 %v7801
  %7803 = vperm.xlu0 %7802, %v7786
  %v7804 = vpop.permute.xlu0 %7803
  %v7805 = vlaneseq
  %v7806 = vshrl.u32 %v7805, 7
  %v7807 = vadd.s32 %v7806, 24
  %7808 = vset.pattern.permute.xlu0 %v7807
  %7809 = vperm.xlu0 %7808, %v7786
  %v7810 = vpop.permute.xlu0 %7809
  %v7811 = vrcp.pop %v7517
  %v7812 = vrcp.pop %v7520
  %v7813 = vrcp.pop %v7523
  %v7814 = vrcp.pop %v7526
  %v7815 = vrcp.pop %v7529
  %v7816 = vrcp.pop %v7532
  %v7817 = vrcp.pop %v7535
  %v7818 = vrcp.pop %v7538
  %v7819 = vrcp.pop %v7541
  %v7820 = vrcp.pop %v7544
  %v7821 = vrcp.pop %v7547
  %v7822 = vrcp.pop %v7550
  %v7823 = vrcp.pop %v7553
  %v7824 = vrcp.pop %v7556
  %v7825 = vrcp.pop %v7559
  %v7826 = vrcp.pop %v7562
  %v7827 = vrcp.pop %v7565
  %v7828 = vrcp.pop %v7568
  %v7829 = vrcp.pop %v7571
  %v7830 = vrcp.pop %v7574
  %v7831 = vrcp.pop %v7577
  %v7832 = vrcp.pop %v7580
  %v7833 = vrcp.pop %v7583
  %v7834 = vrcp.pop %v7586
  %v7835 = vrcp.pop %v7589
  %v7836 = vrcp.pop %v7592
  %v7837 = vrcp.pop %v7595
  %v7838 = vrcp.pop %v7598
  %v7839 = vrcp.pop %v7601
  %v7840 = vrcp.pop %v7604
  %v7841 = vrcp.pop %v7607
  %v7842 = vrcp.pop %v7610
  %v7843 = vmul.f32 %v7617, %v7811
  %v7844 = vmul.f32 %v7623, %v7812
  %v7845 = vmul.f32 %v7629, %v7813
  %v7846 = vmul.f32 %v7635, %v7814
  %v7847 = vmul.f32 %v7642, %v7815
  %v7848 = vmul.f32 %v7648, %v7816
  %v7849 = vmul.f32 %v7654, %v7817
  %v7850 = vmul.f32 %v7660, %v7818
  %v7851 = vmul.f32 %v7667, %v7819
  %v7852 = vmul.f32 %v7673, %v7820
  %v7853 = vmul.f32 %v7679, %v7821
  %v7854 = vmul.f32 %v7685, %v7822
  %v7855 = vmul.f32 %v7692, %v7823
  %v7856 = vmul.f32 %v7698, %v7824
  %v7857 = vmul.f32 %v7704, %v7825
  %v7858 = vmul.f32 %v7710, %v7826
  %v7859 = vmul.f32 %v7717, %v7827
  %v7860 = vmul.f32 %v7723, %v7828
  %v7861 = vmul.f32 %v7729, %v7829
  %v7862 = vmul.f32 %v7735, %v7830
  %v7863 = vmul.f32 %v7742, %v7831
  %v7864 = vmul.f32 %v7748, %v7832
  %v7865 = vmul.f32 %v7754, %v7833
  %v7866 = vmul.f32 %v7760, %v7834
  %v7867 = vmul.f32 %v7767, %v7835
  %v7868 = vmul.f32 %v7773, %v7836
  %v7869 = vmul.f32 %v7779, %v7837
  %v7870 = vmul.f32 %v7785, %v7838
  %v7871 = vmul.f32 %v7792, %v7839
  %v7872 = vmul.f32 %v7798, %v7840
  %v7873 = vmul.f32 %v7804, %v7841
  %v7874 = vmul.f32 %v7810, %v7842
  %v7875 = vmul.f32 %v7843, %v7452
  %v7876 = vmul.f32 %v7844, %v7454
  %v7877 = vmul.f32 %v7845, %v7456
  %v7878 = vmul.f32 %v7846, %v7458
  %v7879 = vmul.f32 %v7847, %v7460
  %v7880 = vmul.f32 %v7848, %v7462
  %v7881 = vmul.f32 %v7849, %v7464
  %v7882 = vmul.f32 %v7850, %v7466
  %v7883 = vmul.f32 %v7851, %v7468
  %v7884 = vmul.f32 %v7852, %v7470
  %v7885 = vmul.f32 %v7853, %v7472
  %v7886 = vmul.f32 %v7854, %v7474
  %v7887 = vmul.f32 %v7855, %v7476
  %v7888 = vmul.f32 %v7856, %v7478
  %v7889 = vmul.f32 %v7857, %v7480
  %v7890 = vmul.f32 %v7858, %v7482
  %v7891 = vmul.f32 %v7859, %v7484
  %v7892 = vmul.f32 %v7860, %v7486
  %v7893 = vmul.f32 %v7861, %v7488
  %v7894 = vmul.f32 %v7862, %v7490
  %v7895 = vmul.f32 %v7863, %v7492
  %v7896 = vmul.f32 %v7864, %v7494
  %v7897 = vmul.f32 %v7865, %v7496
  %v7898 = vmul.f32 %v7866, %v7498
  %v7899 = vmul.f32 %v7867, %v7500
  %v7900 = vmul.f32 %v7868, %v7502
  %v7901 = vmul.f32 %v7869, %v7504
  %v7902 = vmul.f32 %v7870, %v7506
  %v7903 = vmul.f32 %v7871, %v7508
  %v7904 = vmul.f32 %v7872, %v7510
  %v7905 = vmul.f32 %v7873, %v7512
  %v7906 = vmul.f32 %v7874, %v7514
  %v7907 = vsel %vm232, %v7875, 0.0
  %v7908 = vsel %vm232, %v7876, 0.0
  %v7909 = vadd.f32 %v7907, %v7908
  %v7910 = vsel %vm232, %v7877, 0.0
  %v7911 = vadd.f32 %v7909, %v7910
  %v7912 = vsel %vm232, %v7878, 0.0
  %v7913 = vadd.f32 %v7911, %v7912
  %v7914 = vrot.slane %v7913, 4
  %v7915 = vadd.f32 %v7913, %v7914
  %v7916 = vrot.slane %v7915, 2
  %v7917 = vadd.f32 %v7915, %v7916
  %v7918 = vrot.slane %v7917, 1
  %v7919 = vadd.f32 %v7917, %v7918
  %v7920 = vsel %vm232, %v7879, 0.0
  %v7921 = vsel %vm232, %v7880, 0.0
  %v7922 = vadd.f32 %v7920, %v7921
  %v7923 = vsel %vm232, %v7881, 0.0
  %v7924 = vadd.f32 %v7922, %v7923
  %v7925 = vsel %vm232, %v7882, 0.0
  %v7926 = vadd.f32 %v7924, %v7925
  %v7927 = vrot.slane %v7926, 4
  %v7928 = vadd.f32 %v7926, %v7927
  %v7929 = vrot.slane %v7928, 2
  %v7930 = vadd.f32 %v7928, %v7929
  %v7931 = vrot.slane %v7930, 1
  %v7932 = vadd.f32 %v7930, %v7931
  %v7933 = vsel %vm232, %v7883, 0.0
  %v7934 = vsel %vm232, %v7884, 0.0
  %v7935 = vadd.f32 %v7933, %v7934
  %v7936 = vsel %vm232, %v7885, 0.0
  %v7937 = vadd.f32 %v7935, %v7936
  %v7938 = vsel %vm232, %v7886, 0.0
  %v7939 = vadd.f32 %v7937, %v7938
  %v7940 = vrot.slane %v7939, 4
  %v7941 = vadd.f32 %v7939, %v7940
  %v7942 = vrot.slane %v7941, 2
  %v7943 = vadd.f32 %v7941, %v7942
  %v7944 = vrot.slane %v7943, 1
  %v7945 = vadd.f32 %v7943, %v7944
  %v7946 = vsel %vm232, %v7887, 0.0
  %v7947 = vsel %vm232, %v7888, 0.0
  %v7948 = vadd.f32 %v7946, %v7947
  %v7949 = vsel %vm232, %v7889, 0.0
  %v7950 = vadd.f32 %v7948, %v7949
  %v7951 = vsel %vm232, %v7890, 0.0
  %v7952 = vadd.f32 %v7950, %v7951
  %v7953 = vrot.slane %v7952, 4
  %v7954 = vadd.f32 %v7952, %v7953
  %v7955 = vrot.slane %v7954, 2
  %v7956 = vadd.f32 %v7954, %v7955
  %v7957 = vrot.slane %v7956, 1
  %v7958 = vadd.f32 %v7956, %v7957
  %v7959 = vsel %vm232, %v7891, 0.0
  %v7960 = vsel %vm232, %v7892, 0.0
  %v7961 = vadd.f32 %v7959, %v7960
  %v7962 = vsel %vm232, %v7893, 0.0
  %v7963 = vadd.f32 %v7961, %v7962
  %v7964 = vsel %vm232, %v7894, 0.0
  %v7965 = vadd.f32 %v7963, %v7964
  %v7966 = vrot.slane %v7965, 4
  %v7967 = vadd.f32 %v7965, %v7966
  %v7968 = vrot.slane %v7967, 2
  %v7969 = vadd.f32 %v7967, %v7968
  %v7970 = vrot.slane %v7969, 1
  %v7971 = vadd.f32 %v7969, %v7970
  %v7972 = vsel %vm232, %v7895, 0.0
  %v7973 = vsel %vm232, %v7896, 0.0
  %v7974 = vadd.f32 %v7972, %v7973
  %v7975 = vsel %vm232, %v7897, 0.0
  %v7976 = vadd.f32 %v7974, %v7975
  %v7977 = vsel %vm232, %v7898, 0.0
  %v7978 = vadd.f32 %v7976, %v7977
  %v7979 = vrot.slane %v7978, 4
  %v7980 = vadd.f32 %v7978, %v7979
  %v7981 = vrot.slane %v7980, 2
  %v7982 = vadd.f32 %v7980, %v7981
  %v7983 = vrot.slane %v7982, 1
  %v7984 = vadd.f32 %v7982, %v7983
  %v7985 = vsel %vm232, %v7899, 0.0
  %v7986 = vsel %vm232, %v7900, 0.0
  %v7987 = vadd.f32 %v7985, %v7986
  %v7988 = vsel %vm232, %v7901, 0.0
  %v7989 = vadd.f32 %v7987, %v7988
  %v7990 = vsel %vm232, %v7902, 0.0
  %v7991 = vadd.f32 %v7989, %v7990
  %v7992 = vrot.slane %v7991, 4
  %v7993 = vadd.f32 %v7991, %v7992
  %v7994 = vrot.slane %v7993, 2
  %v7995 = vadd.f32 %v7993, %v7994
  %v7996 = vrot.slane %v7995, 1
  %v7997 = vadd.f32 %v7995, %v7996
  %v7998 = vsel %vm232, %v7903, 0.0
  %v7999 = vsel %vm232, %v7904, 0.0
  %v8000 = vadd.f32 %v7998, %v7999
  %v8001 = vsel %vm232, %v7905, 0.0
  %v8002 = vadd.f32 %v8000, %v8001
  %v8003 = vsel %vm232, %v7906, 0.0
  %v8004 = vadd.f32 %v8002, %v8003
  %v8005 = vrot.slane %v8004, 4
  %v8006 = vadd.f32 %v8004, %v8005
  %v8007 = vrot.slane %v8006, 2
  %v8008 = vadd.f32 %v8006, %v8007
  %v8009 = vrot.slane %v8008, 1
  %v8010 = vadd.f32 %v8008, %v8009
  %8012 = vset.pattern.permute.xlu0 0
  %8013 = vperm.xlu0 %8012, %v7043
  %v8014 = vpop.permute.xlu0 %8013
  %v8024 = vsel %vm1891, %v7932, %v7919
  %v8025 = vsel %vm1893, %v7945, %v8024
  %v8026 = vsel %vm1895, %v7958, %v8025
  %v8027 = vsel %vm1897, %v7971, %v8026
  %v8028 = vsel %vm1899, %v7984, %v8027
  %v8029 = vsel %vm1901, %v7997, %v8028
  %v8030 = vsel %vm1903, %v8010, %v8029
  %v8032 = vmul.f32 %v8014, %v8030
  %v8033 = vsub.f32 1.0, %v7043
  %8035 = vset.pattern.permute.xlu0 0
  %8036 = vperm.xlu0 %8035, %v8033
  %v8037 = vpop.permute.xlu0 %8036
  %v8039 = vmul.f32 %v8037, %v7065
  %v8040 = vadd.f32 %v8032, %v8039
  %v8041 = vlog2.pop %v8040
  %v8042 = vmul.f32 %v8041, 0.6931472
  %v8043 = vadd.f32 %v7039, %v8042
  %v8044 = vadd.f32 %v8043, %v7026
  %v8045 = vsel %vm232, %v8044, -inf
  %8046 = vmax.xlane.f32.xlu0 %v8045
  %v8047 = vpop.xlane.xlu0 %8046
  %v8048 = vsub.f32 %v8044, %v8047
  %v8049 = vmul.f32 %v8048, 1.442695
  %v8050 = vpow.pop %v8049
  %v8051 = vsel %vm232, %v8050, 0.0
  %8052 = vadd.xlane.f32.xlu0 %v8051
  %v8053 = vpop.xlane.xlu0 %8052
  %v8054 = vlog2.pop %v8053
  %v8055 = vmul.f32 %v8054, 0.6931472
  %v8056 = vadd.f32 %v8055, %v8047
  %s8057 = scalar_lea.vmem %s10, 56
  %8058 = vst.msk [vmem:[%s8057] sm:$0xff] %vm849, %v8056
  // Predicated region
  $region42: #{tpu_custom_call.1} parent=0 // pred_check
    _
  $region43: #{tpu_custom_call.1} parent=0 // pred_check_branch
    %8060 = sbr.rel (0) target = $region45
  $region44: #{tpu_custom_call.1} parent=0 // pred_region
    _
  $region45: #{tpu_custom_call.1} parent=0 // pred_fallthru
    _
  // Predicated region
  $region46: #{tpu_custom_call.1} parent=0 // pred_check
    _
  $region47: #{tpu_custom_call.1} parent=0 // pred_check_branch
    %8062 = sbr.rel (0) target = $region49
  $region48: #{tpu_custom_call.1} parent=0 // pred_region
    _
  $region49: #{tpu_custom_call.1} parent=0 // pred_fallthru
    _

</llo_original>
